<compile_context>
chip_gen: v6e
topology: v6e:2x2x1
jax: 0.10.0
libtpu: 0.0.40
codegen_flags: <defaults>
</compile_context>

<pallas_src>
import functools

import numpy as np
import jax
import jax.numpy as jnp
from jax.experimental import pallas as pl
from jax.experimental.pallas import tpu as pltpu


# --------------------------------------------------------------------------- #
# small helpers
# --------------------------------------------------------------------------- #

def _largest_divisor(n, cap):
    for d in range(min(cap, n), 0, -1):
        if n % d == 0:
            return d
    return 1


def _pick_group(width, cin):
    """Even divisor G of `width`; the conv kernel folds G input columns into the
    lane axis (input lanes G*cin, output lanes (G/2)*cout).  Capped at 16 so the
    2G/3 MAC overhead stays negligible; cin>=32 keeps G=2 (no extra MACs)."""
    cap = min(16, max(2, 32 // cin), width)
    g = 2
    for cand in range(2, cap + 1, 2):
        if width % cand == 0:
            g = cand
    return g


def _pick_band(ho, cap=16):
    """Pooled rows per conv grid step: largest divisor of Ho <= cap (cap=16 keeps
    the unrolled body and v7x VMEM in check while amortizing ~0.35us/step)."""
    return _largest_divisor(ho, cap)


def _pick_k_tile(n, cap=32768):
    """Largest 128-multiple divisor of n <= cap (bf16 (tk,128) weight block is
    <= 8 MB/buffer, fits double-buffered on every generation)."""
    cap = min(cap, n)
    start = cap - cap % 128
    for tk in range(start, 127, -128):
        if n % tk == 0:
            return tk
    return n


def _fold_conv_weight(w_hwio, g):
    """(3,3,Cin,Cout) HWIO -> (3*2g*Cin, g*Cout) matrix for the column-folded conv.

    Row index  = kh*(2g*Cin) + delta*Cin + ch   (delta = column offset in [0,2g))
    Col index  = j*Cout + o                     (j = output column within a group)
    Entry      = K[kh, delta - j, ch, o] if 0 <= delta - j <= 2 else 0.
    """
    kh, kw, cin, cout = w_hwio.shape
    assert kh == 3 and kw == 3
    big = jnp.zeros((3, 2 * g, cin, g, cout), w_hwio.dtype)
    for j in range(g):
        big = big.at[:, j:j + 3, :, j, :].set(w_hwio)
    return big.reshape(3 * 2 * g * cin, g * cout)


# --------------------------------------------------------------------------- #
# fused 3x3 same-conv + bias + ReLU + 2x2 max-pool kernel
# --------------------------------------------------------------------------- #

def _conv_pool_kernel(x0_ref, x1_ref, w_ref, b_ref, o_ref, *, cout, g):
    """One (batch, band) grid step.

    x0_ref: (1, TR, 2, Wf, g*Cin) bf16  band of TR padded row-pairs
    x1_ref: (1, 1,  2, Wf, g*Cin) bf16  halo: next padded row-pair
    w_ref : (6*g*Cin, g*Cout)     bf16  folded conv weight (kh, kw in K)
    b_ref : (1, g*Cout)           f32   bias tiled over the g output columns
    o_ref : (1, TR, Wg, (g/2)*Cout) bf16  pooled rows, group-folded columns
    """
    tr = o_ref.shape[1]
    wg = o_ref.shape[2]

    w_mat = w_ref[...]                       # hoisted, loop-invariant
    bias = b_ref[...]                        # (1, g*cout) f32

    def load_ab(r):
        # Band-local padded row r -> [A | B] = (Wg, 2*g*Cin) contiguous slices.
        if r < 2 * tr:
            ref, i, j = x0_ref, r // 2, r % 2
        else:
            ref, i, j = x1_ref, 0, r - 2 * tr
        a = ref[0, i, j, 0:wg, :]            # column groups 0..Wg-1
        b = ref[0, i, j, 1:wg + 1, :]        # column groups 1..Wg
        return jnp.concatenate([a, b], axis=-1)

    def conv_row(pieces):
        # pieces: 3 x (Wg, 2*g*Cin) for kh = 0,1,2.  One MXU dot per conv row.
        patch = jnp.concatenate(pieces, axis=-1)               # (Wg, 6*g*Cin)
        r = jnp.dot(patch, w_mat, preferred_element_type=jnp.float32)
        return jnp.maximum(r + bias, 0.0)                      # (Wg, g*cout)

    nxt = (load_ab(0), load_ab(1))
    for t in range(tr):
        p0, p1 = nxt
        p2 = load_ab(2 * t + 2)
        p3 = load_ab(2 * t + 3)
        m = jnp.maximum(conv_row((p0, p1, p2)), conv_row((p1, p2, p3)))
        # 2-wide max-pool along the in-group column axis (lane blocks of cout).
        parts = [jnp.maximum(m[:, (2 * u) * cout:(2 * u + 1) * cout],
                             m[:, (2 * u + 1) * cout:(2 * u + 2) * cout])
                 for u in range(g // 2)]
        pooled = parts[0] if g == 2 else jnp.concatenate(parts, axis=-1)
        o_ref[0, t] = pooled.astype(o_ref.dtype)
        nxt = (p2, p3)


def conv3x3_relu_pool(x_nhwc, w_hwio, b):
    """Fused 3x3 same-conv + bias + ReLU + 2x2 max-pool.  NHWC in, bf16 NHWC out."""
    B, H, W, Cin = x_nhwc.shape
    Cout = w_hwio.shape[-1]
    assert H % 2 == 0 and W % 2 == 0, "MaxPool2d(2) path assumes even H, W"
    g = _pick_group(W, Cin)
    Ho, Wo = H // 2, W // 2
    Wg = W // g                      # column groups per row
    Wf = Wg + 1                      # groups after padding (W + g columns)
    tr = _pick_band(Ho)

    xb = x_nhwc.astype(jnp.bfloat16)
    # zero pad: 1 row top/bottom, 1 col left, (g-1) cols right (extra right cols
    # only ever hit zero weight entries).
    xp = jnp.pad(xb, ((0, 0), (1, 1), (1, g - 1), (0, 0)))
    xf = xp.reshape(B, Ho + 1, 2, Wf, g * Cin)              # row-pair + column-group view
    wf = _fold_conv_weight(w_hwio, g).astype(jnp.bfloat16)  # (6*g*Cin, g*Cout)
    bf = jnp.tile(b.reshape(1, Cout).astype(jnp.float32), (1, g))

    out = pl.pallas_call(
        functools.partial(_conv_pool_kernel, cout=Cout, g=g),
        out_shape=jax.ShapeDtypeStruct((B, Ho, Wg, (g // 2) * Cout), jnp.bfloat16),
        grid=(B, Ho // tr),
        in_specs=[
            # Band of TR row-pairs ...
            pl.BlockSpec((1, tr, 2, Wf, g * Cin),
                         lambda bi, pi: (bi, pi, 0, 0, 0)),
            # ... plus the next row-pair as the bottom halo (same array, 2nd spec).
            pl.BlockSpec((1, 1, 2, Wf, g * Cin),
                         lambda bi, pi: (bi, (pi + 1) * tr, 0, 0, 0)),
            pl.BlockSpec((6 * g * Cin, g * Cout), lambda bi, pi: (0, 0)),
            pl.BlockSpec((1, g * Cout), lambda bi, pi: (0, 0)),
        ],
        out_specs=pl.BlockSpec((1, tr, Wg, (g // 2) * Cout),
                               lambda bi, pi: (bi, pi, 0, 0)),
        compiler_params=pltpu.CompilerParams(
            dimension_semantics=("parallel", "parallel"),
            vmem_limit_bytes=32 * 1024 * 1024),
    )(xf, xf, wf, bf)

    # Group-folded storage has identical row-major bytes to NHWC -> free reshape.
    return out.reshape(B, Ho, Wo, Cout)


# --------------------------------------------------------------------------- #
# fc1 (+ReLU) with both 64->1 heads fused, weight streamed lane-dense in bf16
# --------------------------------------------------------------------------- #

def _fc1_heads_kernel(xa_ref, xb_ref, w_ref, b1_ref, hw_ref, hb_ref, o_ref,
                      acc_a, acc_b):
    """K-tiled fc1 with the packed (F/2, 128) weight.

    xa_ref/xb_ref: (B, tk) bf16  first / second half of the features
    w_ref        : (tk, 2*N1) bf16  packed weight (cols 0:N1 -> first half rows,
                                    cols N1:2*N1 -> second half rows)
    b1_ref: (1, N1) f32   hw_ref: (N1, NH) f32   hb_ref: (1, NH) f32
    o_ref : (B, NH) f32   acc_a/acc_b: (B, 2*N1) f32 VMEM accumulators
    """
    k = pl.program_id(0)

    @pl.when(k == 0)
    def _():
        acc_a[...] = jnp.zeros_like(acc_a)
        acc_b[...] = jnp.zeros_like(acc_b)

    w = w_ref[...]
    acc_a[...] += jnp.dot(xa_ref[...], w, preferred_element_type=jnp.float32)
    acc_b[...] += jnp.dot(xb_ref[...], w, preferred_element_type=jnp.float32)

    @pl.when(k == pl.num_programs(0) - 1)
    def _():
        n1 = b1_ref.shape[-1]
        h = jnp.maximum(acc_a[:, 0:n1] + acc_b[:, n1:2 * n1] + b1_ref[...], 0.0)
        out = jnp.dot(h, hw_ref[...], preferred_element_type=jnp.float32) + hb_ref[...]
        o_ref[...] = out.astype(o_ref.dtype)


def fc1_heads(feats, w_packed, b1, heads_w, heads_b):
    """relu(fc1(feats)) -> both linear heads, as one weight-streaming kernel."""
    B, F = feats.shape
    half, width = w_packed.shape
    assert half * 2 == F, "packed fc1 weight must have F/2 rows"
    assert half % 128 == 0, "F/2 must be a multiple of 128 (true for H,W % 8 == 0)"
    n1 = width // 2
    nh = heads_w.shape[1]
    tk = _pick_k_tile(half)
    nk = half // tk

    return pl.pallas_call(
        _fc1_heads_kernel,
        out_shape=jax.ShapeDtypeStruct((B, nh), jnp.float32),
        grid=(nk,),
        in_specs=[
            pl.BlockSpec((B, tk), lambda k: (0, k)),            # first half of feats
            pl.BlockSpec((B, tk), lambda k: (0, k + nk)),       # second half of feats
            pl.BlockSpec((tk, width), lambda k: (k, 0)),        # streamed bf16 weight
            pl.BlockSpec((1, n1), lambda k: (0, 0)),
            pl.BlockSpec((n1, nh), lambda k: (0, 0)),
            pl.BlockSpec((1, nh), lambda k: (0, 0)),
        ],
        out_specs=pl.BlockSpec((B, nh), lambda k: (0, 0)),      # resident across k
        scratch_shapes=[pltpu.VMEM((B, width), jnp.float32),
                        pltpu.VMEM((B, width), jnp.float32)],
        compiler_params=pltpu.CompilerParams(
            dimension_semantics=("arbitrary",),                 # K reduction axis
            vmem_limit_bytes=48 * 1024 * 1024),
    )(feats, feats, w_packed,
      b1.reshape(1, n1).astype(jnp.float32),
      heads_w.astype(jnp.float32),
      heads_b.reshape(1, nh).astype(jnp.float32))


# --------------------------------------------------------------------------- #
# model pieces
# --------------------------------------------------------------------------- #

def init_params(key, img_size):
    """Deterministic synthetic params (PyTorch-default-style uniform bounds)."""
    ks = jax.random.split(key, 10)

    def uni(k, shape, fan_in):
        bound = 1.0 / np.sqrt(fan_in)
        return jax.random.uniform(k, shape, jnp.float32, -bound, bound)

    F = 64 * (img_size[0] // 4) * (img_size[1] // 4)
    fc1_w = uni(ks[4], (F, 64), F)
    # Lane-dense packed storage of the dominant HBM stream: (F/2, 128) bf16,
    # columns 0:64 = rows of the first feature half, 64:128 = second half.
    # NOTE: flatten order is (h, w, c); a real PyTorch checkpoint flattens
    # (c, h, w) and would need a permutation before packing.
    fc1_w_packed = jnp.concatenate(
        [fc1_w[: F // 2], fc1_w[F // 2:]], axis=1).astype(jnp.bfloat16)

    return {
        "conv1_w": uni(ks[0], (3, 3, 2, 32), 2 * 9),             # HWIO
        "conv1_b": uni(ks[1], (32,), 2 * 9),
        "conv2_w": uni(ks[2], (3, 3, 32, 64), 32 * 9),
        "conv2_b": uni(ks[3], (64,), 32 * 9),
        "fc1_w_packed": fc1_w_packed,
        "fc1_b": uni(ks[5], (64,), F),
        # slice_classifier (col 0) and slice_attn (col 1) fused into one head.
        "heads_w": jnp.concatenate(
            [uni(ks[6], (64, 1), 64), uni(ks[8], (64, 1), 64)], axis=1),
        "heads_b": jnp.concatenate(
            [uni(ks[7], (1,), 64), uni(ks[9], (1,), 64)]),
    }


def cnn_backbone_forward(params, x_nchw):
    """Mirrors CNNBackbone.forward (eval mode). Returns (logit, attn_weight), each (B,)."""
    x = jnp.transpose(x_nchw, (0, 2, 3, 1)).astype(jnp.float32)   # NCHW -> NHWC
    B = x.shape[0]

    # x = pool(relu(conv1(x)));  x = pool(relu(conv2(x)))  -- fully fused kernels
    y = conv3x3_relu_pool(x, params["conv1_w"], params["conv1_b"])
    y = conv3x3_relu_pool(y, params["conv2_w"], params["conv2_b"])

    # x = x.view(B, -1); dropout is identity in eval mode.
    # TODO(synk): training-mode nn.Dropout / attn_dropout (RNG) not implemented.
    feats = y.reshape(B, -1)                                      # bf16 (h, w, c)

    heads = fc1_heads(feats, params["fc1_w_packed"], params["fc1_b"],
                      params["heads_w"], params["heads_b"])
    logit = heads[:, 0]
    attn_weight = heads[:, 1]
    return logit, attn_weight


# --------------------------------------------------------------------------- #
# pure-JAX reference (same bf16 operand strategy)
# --------------------------------------------------------------------------- #

def reference_forward(params, x_nchw):
    x = jnp.transpose(x_nchw, (0, 2, 3, 1)).astype(jnp.float32)

    def conv_pool(x, w, b):
        y = jax.lax.conv_general_dilated(
            x.astype(jnp.bfloat16), w.astype(jnp.bfloat16),
            window_strides=(1, 1), padding="SAME",
            dimension_numbers=("NHWC", "HWIO", "NHWC"),
            preferred_element_type=jnp.float32)
        y = jnp.maximum(y + b, 0.0)
        y = jax.lax.reduce_window(
            y, jnp.array(-jnp.inf, y.dtype), jax.lax.max,
            (1, 2, 2, 1), (1, 2, 2, 1), "VALID")
        return y.astype(jnp.bfloat16)

    y = conv_pool(x, params["conv1_w"], params["conv1_b"])
    y = conv_pool(y, params["conv2_w"], params["conv2_b"])
    feats = y.reshape(y.shape[0], -1)

    wp = params["fc1_w_packed"]
    n1 = wp.shape[1] // 2
    w1 = jnp.concatenate([wp[:, :n1], wp[:, n1:]], axis=0)        # (F, 64) bf16
    h = jnp.maximum(
        jnp.dot(feats, w1, preferred_element_type=jnp.float32) + params["fc1_b"], 0.0)
    out = jnp.dot(h, params["heads_w"],
                  preferred_element_type=jnp.float32) + params["heads_b"]
    return out[:, 0], out[:, 1]


# --------------------------------------------------------------------------- #
# main
# --------------------------------------------------------------------------- #

if __name__ == "__main__":
    img_size = (16, 16)          # small stand-in for IMG_SIZE=(384,384)
    batch = 2

    key = jax.random.PRNGKey(0)
    pkey, xkey = jax.random.split(key)
    params = init_params(pkey, img_size)
    x = jax.random.normal(xkey, (batch, 2, img_size[0], img_size[1]), jnp.float32)  # NCHW

    logit, attn = jax.jit(cnn_backbone_forward)(params, x)
    jax.block_until_ready((logit, attn))

    ref_logit, ref_attn = jax.jit(reference_forward)(params, x)
    jax.block_until_ready((ref_logit, ref_attn))

    assert logit.shape == (batch,) and attn.shape == (batch,)
    assert logit.dtype == jnp.float32 and attn.dtype == jnp.float32
    np.testing.assert_allclose(np.asarray(logit), np.asarray(ref_logit), rtol=1e-2, atol=1e-2)
    np.testing.assert_allclose(np.asarray(attn), np.asarray(ref_attn), rtol=1e-2, atol=1e-2)
    print("KERNEL_OK")
</pallas_src>

<mosaic_0001>
module attributes {stable_mosaic.version = 11 : i64} {
  func.func @_conv_pool_kernel(%arg0: i32, %arg1: i32, %arg2: memref<1x8x2x2x32xbf16, #tpu.memory_space<vmem>>, %arg3: memref<1x1x2x2x32xbf16, #tpu.memory_space<vmem>>, %arg4: memref<192x512xbf16, #tpu.memory_space<vmem>>, %arg5: memref<1x512xf32, #tpu.memory_space<vmem>>, %arg6: memref<1x8x1x256xbf16, #tpu.memory_space<vmem>>) attributes {dimension_semantics = [#tpu.dimension_semantics<parallel>, #tpu.dimension_semantics<parallel>], iteration_bounds = array<i64: 2, 1>, scalar_prefetch = 0 : i64, scratch_operands = 0 : i64, tpu.core_type = #tpu.core_type<tc>, window_params = [{transform_indices = @transform_0, window_bounds = array<i64: 1, 8, 2, 2, 32>}, {transform_indices = @transform_1, window_bounds = array<i64: 1, 1, 2, 2, 32>}, {pipeline_mode = #tpu.pipeline_mode<synchronous>, transform_indices = @transform_2, window_bounds = array<i64: 192, 512>}, {pipeline_mode = #tpu.pipeline_mode<synchronous>, transform_indices = @transform_3, window_bounds = array<i64: 1, 512>}, {transform_indices = @transform_4, window_bounds = array<i64: 1, 8, 1, 256>}]} {
    %c0 = arith.constant 0 : index
    %c0_0 = arith.constant 0 : index
    %0 = vector.load %arg4[%c0, %c0_0] : memref<192x512xbf16, #tpu.memory_space<vmem>>, vector<192x512xbf16>
    %c0_1 = arith.constant 0 : index
    %c0_2 = arith.constant 0 : index
    %1 = vector.load %arg5[%c0_1, %c0_2] : memref<1x512xf32, #tpu.memory_space<vmem>>, vector<1x512xf32>
    %c0_3 = arith.constant 0 : index
    %c0_4 = arith.constant 0 : index
    %c0_5 = arith.constant 0 : index
    %c0_6 = arith.constant 0 : index
    %c0_7 = arith.constant 0 : index
    %2 = vector.load %arg2[%c0_3, %c0_4, %c0_5, %c0_6, %c0_7] : memref<1x8x2x2x32xbf16, #tpu.memory_space<vmem>>, vector<1x1x1x1x32xbf16>
    %3 = vector.shape_cast %2 : vector<1x1x1x1x32xbf16> to vector<1x32xbf16>
    %c0_8 = arith.constant 0 : index
    %c0_9 = arith.constant 0 : index
    %c0_10 = arith.constant 0 : index
    %c1 = arith.constant 1 : index
    %c0_11 = arith.constant 0 : index
    %4 = vector.load %arg2[%c0_8, %c0_9, %c0_10, %c1, %c0_11] : memref<1x8x2x2x32xbf16, #tpu.memory_space<vmem>>, vector<1x1x1x1x32xbf16>
    %5 = vector.shape_cast %4 : vector<1x1x1x1x32xbf16> to vector<1x32xbf16>
    %6 = tpu.concatenate %3, %5 in 1 : vector<1x32xbf16>, vector<1x32xbf16> -> vector<1x64xbf16>
    %c0_12 = arith.constant 0 : index
    %c0_13 = arith.constant 0 : index
    %c1_14 = arith.constant 1 : index
    %c0_15 = arith.constant 0 : index
    %c0_16 = arith.constant 0 : index
    %7 = vector.load %arg2[%c0_12, %c0_13, %c1_14, %c0_15, %c0_16] : memref<1x8x2x2x32xbf16, #tpu.memory_space<vmem>>, vector<1x1x1x1x32xbf16>
    %8 = vector.shape_cast %7 : vector<1x1x1x1x32xbf16> to vector<1x32xbf16>
    %c0_17 = arith.constant 0 : index
    %c0_18 = arith.constant 0 : index
    %c1_19 = arith.constant 1 : index
    %c1_20 = arith.constant 1 : index
    %c0_21 = arith.constant 0 : index
    %9 = vector.load %arg2[%c0_17, %c0_18, %c1_19, %c1_20, %c0_21] : memref<1x8x2x2x32xbf16, #tpu.memory_space<vmem>>, vector<1x1x1x1x32xbf16>
    %10 = vector.shape_cast %9 : vector<1x1x1x1x32xbf16> to vector<1x32xbf16>
    %11 = tpu.concatenate %8, %10 in 1 : vector<1x32xbf16>, vector<1x32xbf16> -> vector<1x64xbf16>
    %c0_22 = arith.constant 0 : index
    %c1_23 = arith.constant 1 : index
    %c0_24 = arith.constant 0 : index
    %c0_25 = arith.constant 0 : index
    %c0_26 = arith.constant 0 : index
    %12 = vector.load %arg2[%c0_22, %c1_23, %c0_24, %c0_25, %c0_26] : memref<1x8x2x2x32xbf16, #tpu.memory_space<vmem>>, vector<1x1x1x1x32xbf16>
    %13 = vector.shape_cast %12 : vector<1x1x1x1x32xbf16> to vector<1x32xbf16>
    %c0_27 = arith.constant 0 : index
    %c1_28 = arith.constant 1 : index
    %c0_29 = arith.constant 0 : index
    %c1_30 = arith.constant 1 : index
    %c0_31 = arith.constant 0 : index
    %14 = vector.load %arg2[%c0_27, %c1_28, %c0_29, %c1_30, %c0_31] : memref<1x8x2x2x32xbf16, #tpu.memory_space<vmem>>, vector<1x1x1x1x32xbf16>
    %15 = vector.shape_cast %14 : vector<1x1x1x1x32xbf16> to vector<1x32xbf16>
    %16 = tpu.concatenate %13, %15 in 1 : vector<1x32xbf16>, vector<1x32xbf16> -> vector<1x64xbf16>
    %c0_32 = arith.constant 0 : index
    %c1_33 = arith.constant 1 : index
    %c1_34 = arith.constant 1 : index
    %c0_35 = arith.constant 0 : index
    %c0_36 = arith.constant 0 : index
    %17 = vector.load %arg2[%c0_32, %c1_33, %c1_34, %c0_35, %c0_36] : memref<1x8x2x2x32xbf16, #tpu.memory_space<vmem>>, vector<1x1x1x1x32xbf16>
    %18 = vector.shape_cast %17 : vector<1x1x1x1x32xbf16> to vector<1x32xbf16>
    %c0_37 = arith.constant 0 : index
    %c1_38 = arith.constant 1 : index
    %c1_39 = arith.constant 1 : index
    %c1_40 = arith.constant 1 : index
    %c0_41 = arith.constant 0 : index
    %19 = vector.load %arg2[%c0_37, %c1_38, %c1_39, %c1_40, %c0_41] : memref<1x8x2x2x32xbf16, #tpu.memory_space<vmem>>, vector<1x1x1x1x32xbf16>
    %20 = vector.shape_cast %19 : vector<1x1x1x1x32xbf16> to vector<1x32xbf16>
    %21 = tpu.concatenate %18, %20 in 1 : vector<1x32xbf16>, vector<1x32xbf16> -> vector<1x64xbf16>
    %22 = tpu.concatenate %6, %11, %16 in 1 : vector<1x64xbf16>, vector<1x64xbf16>, vector<1x64xbf16> -> vector<1x192xbf16>
    %cst = arith.constant dense<0.000000e+00> : vector<1x512xf32>
    %23 = tpu.matmul %22, %0, %cst {dimension_numbers = #tpu.dot_dimension_numbers<[1], [0], [0], [1], [0, 0, 1, 1], [], []>} : vector<1x192xbf16>, vector<192x512xbf16>, vector<1x512xf32> -> vector<1x512xf32>
    %24 = arith.addf %23, %1 : vector<1x512xf32>
    %cst_42 = arith.constant 0.000000e+00 : f32
    %25 = vector.broadcast %cst_42 : f32 to vector<1x512xf32>
    %26 = arith.maximumf %24, %25 : vector<1x512xf32>
    %27 = tpu.concatenate %11, %16, %21 in 1 : vector<1x64xbf16>, vector<1x64xbf16>, vector<1x64xbf16> -> vector<1x192xbf16>
    %cst_43 = arith.constant dense<0.000000e+00> : vector<1x512xf32>
    %28 = tpu.matmul %27, %0, %cst_43 {dimension_numbers = #tpu.dot_dimension_numbers<[1], [0], [0], [1], [0, 0, 1, 1], [], []>} : vector<1x192xbf16>, vector<192x512xbf16>, vector<1x512xf32> -> vector<1x512xf32>
    %29 = arith.addf %28, %1 : vector<1x512xf32>
    %cst_44 = arith.constant 0.000000e+00 : f32
    %30 = vector.broadcast %cst_44 : f32 to vector<1x512xf32>
    %31 = arith.maximumf %29, %30 : vector<1x512xf32>
    %32 = arith.maximumf %26, %31 : vector<1x512xf32>
    %33 = vector.extract_strided_slice %32 {offsets = [0, 0], sizes = [1, 32], strides = [1, 1]} : vector<1x512xf32> to vector<1x32xf32>
    %34 = vector.extract_strided_slice %32 {offsets = [0, 32], sizes = [1, 32], strides = [1, 1]} : vector<1x512xf32> to vector<1x32xf32>
    %35 = arith.maximumf %33, %34 : vector<1x32xf32>
    %36 = vector.extract_strided_slice %32 {offsets = [0, 64], sizes = [1, 32], strides = [1, 1]} : vector<1x512xf32> to vector<1x32xf32>
    %37 = vector.extract_strided_slice %32 {offsets = [0, 96], sizes = [1, 32], strides = [1, 1]} : vector<1x512xf32> to vector<1x32xf32>
    %38 = arith.maximumf %36, %37 : vector<1x32xf32>
    %39 = vector.extract_strided_slice %32 {offsets = [0, 128], sizes = [1, 32], strides = [1, 1]} : vector<1x512xf32> to vector<1x32xf32>
    %40 = vector.extract_strided_slice %32 {offsets = [0, 160], sizes = [1, 32], strides = [1, 1]} : vector<1x512xf32> to vector<1x32xf32>
    %41 = arith.maximumf %39, %40 : vector<1x32xf32>
    %42 = vector.extract_strided_slice %32 {offsets = [0, 192], sizes = [1, 32], strides = [1, 1]} : vector<1x512xf32> to vector<1x32xf32>
    %43 = vector.extract_strided_slice %32 {offsets = [0, 224], sizes = [1, 32], strides = [1, 1]} : vector<1x512xf32> to vector<1x32xf32>
    %44 = arith.maximumf %42, %43 : vector<1x32xf32>
    %45 = vector.extract_strided_slice %32 {offsets = [0, 256], sizes = [1, 32], strides = [1, 1]} : vector<1x512xf32> to vector<1x32xf32>
    %46 = vector.extract_strided_slice %32 {offsets = [0, 288], sizes = [1, 32], strides = [1, 1]} : vector<1x512xf32> to vector<1x32xf32>
    %47 = arith.maximumf %45, %46 : vector<1x32xf32>
    %48 = vector.extract_strided_slice %32 {offsets = [0, 320], sizes = [1, 32], strides = [1, 1]} : vector<1x512xf32> to vector<1x32xf32>
    %49 = vector.extract_strided_slice %32 {offsets = [0, 352], sizes = [1, 32], strides = [1, 1]} : vector<1x512xf32> to vector<1x32xf32>
    %50 = arith.maximumf %48, %49 : vector<1x32xf32>
    %51 = vector.extract_strided_slice %32 {offsets = [0, 384], sizes = [1, 32], strides = [1, 1]} : vector<1x512xf32> to vector<1x32xf32>
    %52 = vector.extract_strided_slice %32 {offsets = [0, 416], sizes = [1, 32], strides = [1, 1]} : vector<1x512xf32> to vector<1x32xf32>
    %53 = arith.maximumf %51, %52 : vector<1x32xf32>
    %54 = vector.extract_strided_slice %32 {offsets = [0, 448], sizes = [1, 32], strides = [1, 1]} : vector<1x512xf32> to vector<1x32xf32>
    %55 = vector.extract_strided_slice %32 {offsets = [0, 480], sizes = [1, 32], strides = [1, 1]} : vector<1x512xf32> to vector<1x32xf32>
    %56 = arith.maximumf %54, %55 : vector<1x32xf32>
    %57 = tpu.concatenate %35, %38, %41, %44, %47, %50, %53, %56 in 1 : vector<1x32xf32>, vector<1x32xf32>, vector<1x32xf32>, vector<1x32xf32>, vector<1x32xf32>, vector<1x32xf32>, vector<1x32xf32>, vector<1x32xf32> -> vector<1x256xf32>
    %58 = arith.truncf %57 : vector<1x256xf32> to vector<1x256xbf16>
    %c0_45 = arith.constant 0 : index
    %c0_46 = arith.constant 0 : index
    %c0_47 = arith.constant 0 : index
    %c0_48 = arith.constant 0 : index
    %59 = vector.load %arg6[%c0_45, %c0_46, %c0_47, %c0_48] : memref<1x8x1x256xbf16, #tpu.memory_space<vmem>>, vector<1x1x1x256xbf16>
    %60 = vector.shape_cast %59 : vector<1x1x1x256xbf16> to vector<1x256xbf16>
    %61 = vector.shape_cast %58 : vector<1x256xbf16> to vector<1x1x1x256xbf16>
    tpu.vector_store %arg6[%c0_45, %c0_46, %c0_47, %c0_48], %61 {strides = array<i32>} : memref<1x8x1x256xbf16, #tpu.memory_space<vmem>>, vector<1x1x1x256xbf16>,
    %c0_49 = arith.constant 0 : index
    %c2 = arith.constant 2 : index
    %c0_50 = arith.constant 0 : index
    %c0_51 = arith.constant 0 : index
    %c0_52 = arith.constant 0 : index
    %62 = vector.load %arg2[%c0_49, %c2, %c0_50, %c0_51, %c0_52] : memref<1x8x2x2x32xbf16, #tpu.memory_space<vmem>>, vector<1x1x1x1x32xbf16>
    %63 = vector.shape_cast %62 : vector<1x1x1x1x32xbf16> to vector<1x32xbf16>
    %c0_53 = arith.constant 0 : index
    %c2_54 = arith.constant 2 : index
    %c0_55 = arith.constant 0 : index
    %c1_56 = arith.constant 1 : index
    %c0_57 = arith.constant 0 : index
    %64 = vector.load %arg2[%c0_53, %c2_54, %c0_55, %c1_56, %c0_57] : memref<1x8x2x2x32xbf16, #tpu.memory_space<vmem>>, vector<1x1x1x1x32xbf16>
    %65 = vector.shape_cast %64 : vector<1x1x1x1x32xbf16> to vector<1x32xbf16>
    %66 = tpu.concatenate %63, %65 in 1 : vector<1x32xbf16>, vector<1x32xbf16> -> vector<1x64xbf16>
    %c0_58 = arith.constant 0 : index
    %c2_59 = arith.constant 2 : index
    %c1_60 = arith.constant 1 : index
    %c0_61 = arith.constant 0 : index
    %c0_62 = arith.constant 0 : index
    %67 = vector.load %arg2[%c0_58, %c2_59, %c1_60, %c0_61, %c0_62] : memref<1x8x2x2x32xbf16, #tpu.memory_space<vmem>>, vector<1x1x1x1x32xbf16>
    %68 = vector.shape_cast %67 : vector<1x1x1x1x32xbf16> to vector<1x32xbf16>
    %c0_63 = arith.constant 0 : index
    %c2_64 = arith.constant 2 : index
    %c1_65 = arith.constant 1 : index
    %c1_66 = arith.constant 1 : index
    %c0_67 = arith.constant 0 : index
    %69 = vector.load %arg2[%c0_63, %c2_64, %c1_65, %c1_66, %c0_67] : memref<1x8x2x2x32xbf16, #tpu.memory_space<vmem>>, vector<1x1x1x1x32xbf16>
    %70 = vector.shape_cast %69 : vector<1x1x1x1x32xbf16> to vector<1x32xbf16>
    %71 = tpu.concatenate %68, %70 in 1 : vector<1x32xbf16>, vector<1x32xbf16> -> vector<1x64xbf16>
    %72 = tpu.concatenate %16, %21, %66 in 1 : vector<1x64xbf16>, vector<1x64xbf16>, vector<1x64xbf16> -> vector<1x192xbf16>
    %cst_68 = arith.constant dense<0.000000e+00> : vector<1x512xf32>
    %73 = tpu.matmul %72, %0, %cst_68 {dimension_numbers = #tpu.dot_dimension_numbers<[1], [0], [0], [1], [0, 0, 1, 1], [], []>} : vector<1x192xbf16>, vector<192x512xbf16>, vector<1x512xf32> -> vector<1x512xf32>
    %74 = arith.addf %73, %1 : vector<1x512xf32>
    %cst_69 = arith.constant 0.000000e+00 : f32
    %75 = vector.broadcast %cst_69 : f32 to vector<1x512xf32>
    %76 = arith.maximumf %74, %75 : vector<1x512xf32>
    %77 = tpu.concatenate %21, %66, %71 in 1 : vector<1x64xbf16>, vector<1x64xbf16>, vector<1x64xbf16> -> vector<1x192xbf16>
    %cst_70 = arith.constant dense<0.000000e+00> : vector<1x512xf32>
    %78 = tpu.matmul %77, %0, %cst_70 {dimension_numbers = #tpu.dot_dimension_numbers<[1], [0], [0], [1], [0, 0, 1, 1], [], []>} : vector<1x192xbf16>, vector<192x512xbf16>, vector<1x512xf32> -> vector<1x512xf32>
    %79 = arith.addf %78, %1 : vector<1x512xf32>
    %cst_71 = arith.constant 0.000000e+00 : f32
    %80 = vector.broadcast %cst_71 : f32 to vector<1x512xf32>
    %81 = arith.maximumf %79, %80 : vector<1x512xf32>
    %82 = arith.maximumf %76, %81 : vector<1x512xf32>
    %83 = vector.extract_strided_slice %82 {offsets = [0, 0], sizes = [1, 32], strides = [1, 1]} : vector<1x512xf32> to vector<1x32xf32>
    %84 = vector.extract_strided_slice %82 {offsets = [0, 32], sizes = [1, 32], strides = [1, 1]} : vector<1x512xf32> to vector<1x32xf32>
    %85 = arith.maximumf %83, %84 : vector<1x32xf32>
    %86 = vector.extract_strided_slice %82 {offsets = [0, 64], sizes = [1, 32], strides = [1, 1]} : vector<1x512xf32> to vector<1x32xf32>
    %87 = vector.extract_strided_slice %82 {offsets = [0, 96], sizes = [1, 32], strides = [1, 1]} : vector<1x512xf32> to vector<1x32xf32>
    %88 = arith.maximumf %86, %87 : vector<1x32xf32>
    %89 = vector.extract_strided_slice %82 {offsets = [0, 128], sizes = [1, 32], strides = [1, 1]} : vector<1x512xf32> to vector<1x32xf32>
    %90 = vector.extract_strided_slice %82 {offsets = [0, 160], sizes = [1, 32], strides = [1, 1]} : vector<1x512xf32> to vector<1x32xf32>
    %91 = arith.maximumf %89, %90 : vector<1x32xf32>
    %92 = vector.extract_strided_slice %82 {offsets = [0, 192], sizes = [1, 32], strides = [1, 1]} : vector<1x512xf32> to vector<1x32xf32>
    %93 = vector.extract_strided_slice %82 {offsets = [0, 224], sizes = [1, 32], strides = [1, 1]} : vector<1x512xf32> to vector<1x32xf32>
    %94 = arith.maximumf %92, %93 : vector<1x32xf32>
    %95 = vector.extract_strided_slice %82 {offsets = [0, 256], sizes = [1, 32], strides = [1, 1]} : vector<1x512xf32> to vector<1x32xf32>
    %96 = vector.extract_strided_slice %82 {offsets = [0, 288], sizes = [1, 32], strides = [1, 1]} : vector<1x512xf32> to vector<1x32xf32>
    %97 = arith.maximumf %95, %96 : vector<1x32xf32>
    %98 = vector.extract_strided_slice %82 {offsets = [0, 320], sizes = [1, 32], strides = [1, 1]} : vector<1x512xf32> to vector<1x32xf32>
    %99 = vector.extract_strided_slice %82 {offsets = [0, 352], sizes = [1, 32], strides = [1, 1]} : vector<1x512xf32> to vector<1x32xf32>
    %100 = arith.maximumf %98, %99 : vector<1x32xf32>
    %101 = vector.extract_strided_slice %82 {offsets = [0, 384], sizes = [1, 32], strides = [1, 1]} : vector<1x512xf32> to vector<1x32xf32>
    %102 = vector.extract_strided_slice %82 {offsets = [0, 416], sizes = [1, 32], strides = [1, 1]} : vector<1x512xf32> to vector<1x32xf32>
    %103 = arith.maximumf %101, %102 : vector<1x32xf32>
    %104 = vector.extract_strided_slice %82 {offsets = [0, 448], sizes = [1, 32], strides = [1, 1]} : vector<1x512xf32> to vector<1x32xf32>
    %105 = vector.extract_strided_slice %82 {offsets = [0, 480], sizes = [1, 32], strides = [1, 1]} : vector<1x512xf32> to vector<1x32xf32>
    %106 = arith.maximumf %104, %105 : vector<1x32xf32>
    %107 = tpu.concatenate %85, %88, %91, %94, %97, %100, %103, %106 in 1 : vector<1x32xf32>, vector<1x32xf32>, vector<1x32xf32>, vector<1x32xf32>, vector<1x32xf32>, vector<1x32xf32>, vector<1x32xf32>, vector<1x32xf32> -> vector<1x256xf32>
    %108 = arith.truncf %107 : vector<1x256xf32> to vector<1x256xbf16>
    %c0_72 = arith.constant 0 : index
    %c1_73 = arith.constant 1 : index
    %c0_74 = arith.constant 0 : index
    %c0_75 = arith.constant 0 : index
    %109 = vector.load %arg6[%c0_72, %c1_73, %c0_74, %c0_75] : memref<1x8x1x256xbf16, #tpu.memory_space<vmem>>, vector<1x1x1x256xbf16>
    %110 = vector.shape_cast %109 : vector<1x1x1x256xbf16> to vector<1x256xbf16>
    %111 = vector.shape_cast %108 : vector<1x256xbf16> to vector<1x1x1x256xbf16>
    tpu.vector_store %arg6[%c0_72, %c1_73, %c0_74, %c0_75], %111 {strides = array<i32>} : memref<1x8x1x256xbf16, #tpu.memory_space<vmem>>, vector<1x1x1x256xbf16>,
    %c0_76 = arith.constant 0 : index
    %c3 = arith.constant 3 : index
    %c0_77 = arith.constant 0 : index
    %c0_78 = arith.constant 0 : index
    %c0_79 = arith.constant 0 : index
    %112 = vector.load %arg2[%c0_76, %c3, %c0_77, %c0_78, %c0_79] : memref<1x8x2x2x32xbf16, #tpu.memory_space<vmem>>, vector<1x1x1x1x32xbf16>
    %113 = vector.shape_cast %112 : vector<1x1x1x1x32xbf16> to vector<1x32xbf16>
    %c0_80 = arith.constant 0 : index
    %c3_81 = arith.constant 3 : index
    %c0_82 = arith.constant 0 : index
    %c1_83 = arith.constant 1 : index
    %c0_84 = arith.constant 0 : index
    %114 = vector.load %arg2[%c0_80, %c3_81, %c0_82, %c1_83, %c0_84] : memref<1x8x2x2x32xbf16, #tpu.memory_space<vmem>>, vector<1x1x1x1x32xbf16>
    %115 = vector.shape_cast %114 : vector<1x1x1x1x32xbf16> to vector<1x32xbf16>
    %116 = tpu.concatenate %113, %115 in 1 : vector<1x32xbf16>, vector<1x32xbf16> -> vector<1x64xbf16>
    %c0_85 = arith.constant 0 : index
    %c3_86 = arith.constant 3 : index
    %c1_87 = arith.constant 1 : index
    %c0_88 = arith.constant 0 : index
    %c0_89 = arith.constant 0 : index
    %117 = vector.load %arg2[%c0_85, %c3_86, %c1_87, %c0_88, %c0_89] : memref<1x8x2x2x32xbf16, #tpu.memory_space<vmem>>, vector<1x1x1x1x32xbf16>
    %118 = vector.shape_cast %117 : vector<1x1x1x1x32xbf16> to vector<1x32xbf16>
    %c0_90 = arith.constant 0 : index
    %c3_91 = arith.constant 3 : index
    %c1_92 = arith.constant 1 : index
    %c1_93 = arith.constant 1 : index
    %c0_94 = arith.constant 0 : index
    %119 = vector.load %arg2[%c0_90, %c3_91, %c1_92, %c1_93, %c0_94] : memref<1x8x2x2x32xbf16, #tpu.memory_space<vmem>>, vector<1x1x1x1x32xbf16>
    %120 = vector.shape_cast %119 : vector<1x1x1x1x32xbf16> to vector<1x32xbf16>
    %121 = tpu.concatenate %118, %120 in 1 : vector<1x32xbf16>, vector<1x32xbf16> -> vector<1x64xbf16>
    %122 = tpu.concatenate %66, %71, %116 in 1 : vector<1x64xbf16>, vector<1x64xbf16>, vector<1x64xbf16> -> vector<1x192xbf16>
    %cst_95 = arith.constant dense<0.000000e+00> : vector<1x512xf32>
    %123 = tpu.matmul %122, %0, %cst_95 {dimension_numbers = #tpu.dot_dimension_numbers<[1], [0], [0], [1], [0, 0, 1, 1], [], []>} : vector<1x192xbf16>, vector<192x512xbf16>, vector<1x512xf32> -> vector<1x512xf32>
    %124 = arith.addf %123, %1 : vector<1x512xf32>
    %cst_96 = arith.constant 0.000000e+00 : f32
    %125 = vector.broadcast %cst_96 : f32 to vector<1x512xf32>
    %126 = arith.maximumf %124, %125 : vector<1x512xf32>
    %127 = tpu.concatenate %71, %116, %121 in 1 : vector<1x64xbf16>, vector<1x64xbf16>, vector<1x64xbf16> -> vector<1x192xbf16>
    %cst_97 = arith.constant dense<0.000000e+00> : vector<1x512xf32>
    %128 = tpu.matmul %127, %0, %cst_97 {dimension_numbers = #tpu.dot_dimension_numbers<[1], [0], [0], [1], [0, 0, 1, 1], [], []>} : vector<1x192xbf16>, vector<192x512xbf16>, vector<1x512xf32> -> vector<1x512xf32>
    %129 = arith.addf %128, %1 : vector<1x512xf32>
    %cst_98 = arith.constant 0.000000e+00 : f32
    %130 = vector.broadcast %cst_98 : f32 to vector<1x512xf32>
    %131 = arith.maximumf %129, %130 : vector<1x512xf32>
    %132 = arith.maximumf %126, %131 : vector<1x512xf32>
    %133 = vector.extract_strided_slice %132 {offsets = [0, 0], sizes = [1, 32], strides = [1, 1]} : vector<1x512xf32> to vector<1x32xf32>
    %134 = vector.extract_strided_slice %132 {offsets = [0, 32], sizes = [1, 32], strides = [1, 1]} : vector<1x512xf32> to vector<1x32xf32>
    %135 = arith.maximumf %133, %134 : vector<1x32xf32>
    %136 = vector.extract_strided_slice %132 {offsets = [0, 64], sizes = [1, 32], strides = [1, 1]} : vector<1x512xf32> to vector<1x32xf32>
    %137 = vector.extract_strided_slice %132 {offsets = [0, 96], sizes = [1, 32], strides = [1, 1]} : vector<1x512xf32> to vector<1x32xf32>
    %138 = arith.maximumf %136, %137 : vector<1x32xf32>
    %139 = vector.extract_strided_slice %132 {offsets = [0, 128], sizes = [1, 32], strides = [1, 1]} : vector<1x512xf32> to vector<1x32xf32>
    %140 = vector.extract_strided_slice %132 {offsets = [0, 160], sizes = [1, 32], strides = [1, 1]} : vector<1x512xf32> to vector<1x32xf32>
    %141 = arith.maximumf %139, %140 : vector<1x32xf32>
    %142 = vector.extract_strided_slice %132 {offsets = [0, 192], sizes = [1, 32], strides = [1, 1]} : vector<1x512xf32> to vector<1x32xf32>
    %143 = vector.extract_strided_slice %132 {offsets = [0, 224], sizes = [1, 32], strides = [1, 1]} : vector<1x512xf32> to vector<1x32xf32>
    %144 = arith.maximumf %142, %143 : vector<1x32xf32>
    %145 = vector.extract_strided_slice %132 {offsets = [0, 256], sizes = [1, 32], strides = [1, 1]} : vector<1x512xf32> to vector<1x32xf32>
    %146 = vector.extract_strided_slice %132 {offsets = [0, 288], sizes = [1, 32], strides = [1, 1]} : vector<1x512xf32> to vector<1x32xf32>
    %147 = arith.maximumf %145, %146 : vector<1x32xf32>
    %148 = vector.extract_strided_slice %132 {offsets = [0, 320], sizes = [1, 32], strides = [1, 1]} : vector<1x512xf32> to vector<1x32xf32>
    %149 = vector.extract_strided_slice %132 {offsets = [0, 352], sizes = [1, 32], strides = [1, 1]} : vector<1x512xf32> to vector<1x32xf32>
    %150 = arith.maximumf %148, %149 : vector<1x32xf32>
    %151 = vector.extract_strided_slice %132 {offsets = [0, 384], sizes = [1, 32], strides = [1, 1]} : vector<1x512xf32> to vector<1x32xf32>
    %152 = vector.extract_strided_slice %132 {offsets = [0, 416], sizes = [1, 32], strides = [1, 1]} : vector<1x512xf32> to vector<1x32xf32>
    %153 = arith.maximumf %151, %152 : vector<1x32xf32>
    %154 = vector.extract_strided_slice %132 {offsets = [0, 448], sizes = [1, 32], strides = [1, 1]} : vector<1x512xf32> to vector<1x32xf32>
    %155 = vector.extract_strided_slice %132 {offsets = [0, 480], sizes = [1, 32], strides = [1, 1]} : vector<1x512xf32> to vector<1x32xf32>
    %156 = arith.maximumf %154, %155 : vector<1x32xf32>
    %157 = tpu.concatenate %135, %138, %141, %144, %147, %150, %153, %156 in 1 : vector<1x32xf32>, vector<1x32xf32>, vector<1x32xf32>, vector<1x32xf32>, vector<1x32xf32>, vector<1x32xf32>, vector<1x32xf32>, vector<1x32xf32> -> vector<1x256xf32>
    %158 = arith.truncf %157 : vector<1x256xf32> to vector<1x256xbf16>
    %c0_99 = arith.constant 0 : index
    %c2_100 = arith.constant 2 : index
    %c0_101 = arith.constant 0 : index
    %c0_102 = arith.constant 0 : index
    %159 = vector.load %arg6[%c0_99, %c2_100, %c0_101, %c0_102] : memref<1x8x1x256xbf16, #tpu.memory_space<vmem>>, vector<1x1x1x256xbf16>
    %160 = vector.shape_cast %159 : vector<1x1x1x256xbf16> to vector<1x256xbf16>
    %161 = vector.shape_cast %158 : vector<1x256xbf16> to vector<1x1x1x256xbf16>
    tpu.vector_store %arg6[%c0_99, %c2_100, %c0_101, %c0_102], %161 {strides = array<i32>} : memref<1x8x1x256xbf16, #tpu.memory_space<vmem>>, vector<1x1x1x256xbf16>,
    %c0_103 = arith.constant 0 : index
    %c4 = arith.constant 4 : index
    %c0_104 = arith.constant 0 : index
    %c0_105 = arith.constant 0 : index
    %c0_106 = arith.constant 0 : index
    %162 = vector.load %arg2[%c0_103, %c4, %c0_104, %c0_105, %c0_106] : memref<1x8x2x2x32xbf16, #tpu.memory_space<vmem>>, vector<1x1x1x1x32xbf16>
    %163 = vector.shape_cast %162 : vector<1x1x1x1x32xbf16> to vector<1x32xbf16>
    %c0_107 = arith.constant 0 : index
    %c4_108 = arith.constant 4 : index
    %c0_109 = arith.constant 0 : index
    %c1_110 = arith.constant 1 : index
    %c0_111 = arith.constant 0 : index
    %164 = vector.load %arg2[%c0_107, %c4_108, %c0_109, %c1_110, %c0_111] : memref<1x8x2x2x32xbf16, #tpu.memory_space<vmem>>, vector<1x1x1x1x32xbf16>
    %165 = vector.shape_cast %164 : vector<1x1x1x1x32xbf16> to vector<1x32xbf16>
    %166 = tpu.concatenate %163, %165 in 1 : vector<1x32xbf16>, vector<1x32xbf16> -> vector<1x64xbf16>
    %c0_112 = arith.constant 0 : index
    %c4_113 = arith.constant 4 : index
    %c1_114 = arith.constant 1 : index
    %c0_115 = arith.constant 0 : index
    %c0_116 = arith.constant 0 : index
    %167 = vector.load %arg2[%c0_112, %c4_113, %c1_114, %c0_115, %c0_116] : memref<1x8x2x2x32xbf16, #tpu.memory_space<vmem>>, vector<1x1x1x1x32xbf16>
    %168 = vector.shape_cast %167 : vector<1x1x1x1x32xbf16> to vector<1x32xbf16>
    %c0_117 = arith.constant 0 : index
    %c4_118 = arith.constant 4 : index
    %c1_119 = arith.constant 1 : index
    %c1_120 = arith.constant 1 : index
    %c0_121 = arith.constant 0 : index
    %169 = vector.load %arg2[%c0_117, %c4_118, %c1_119, %c1_120, %c0_121] : memref<1x8x2x2x32xbf16, #tpu.memory_space<vmem>>, vector<1x1x1x1x32xbf16>
    %170 = vector.shape_cast %169 : vector<1x1x1x1x32xbf16> to vector<1x32xbf16>
    %171 = tpu.concatenate %168, %170 in 1 : vector<1x32xbf16>, vector<1x32xbf16> -> vector<1x64xbf16>
    %172 = tpu.concatenate %116, %121, %166 in 1 : vector<1x64xbf16>, vector<1x64xbf16>, vector<1x64xbf16> -> vector<1x192xbf16>
    %cst_122 = arith.constant dense<0.000000e+00> : vector<1x512xf32>
    %173 = tpu.matmul %172, %0, %cst_122 {dimension_numbers = #tpu.dot_dimension_numbers<[1], [0], [0], [1], [0, 0, 1, 1], [], []>} : vector<1x192xbf16>, vector<192x512xbf16>, vector<1x512xf32> -> vector<1x512xf32>
    %174 = arith.addf %173, %1 : vector<1x512xf32>
    %cst_123 = arith.constant 0.000000e+00 : f32
    %175 = vector.broadcast %cst_123 : f32 to vector<1x512xf32>
    %176 = arith.maximumf %174, %175 : vector<1x512xf32>
    %177 = tpu.concatenate %121, %166, %171 in 1 : vector<1x64xbf16>, vector<1x64xbf16>, vector<1x64xbf16> -> vector<1x192xbf16>
    %cst_124 = arith.constant dense<0.000000e+00> : vector<1x512xf32>
    %178 = tpu.matmul %177, %0, %cst_124 {dimension_numbers = #tpu.dot_dimension_numbers<[1], [0], [0], [1], [0, 0, 1, 1], [], []>} : vector<1x192xbf16>, vector<192x512xbf16>, vector<1x512xf32> -> vector<1x512xf32>
    %179 = arith.addf %178, %1 : vector<1x512xf32>
    %cst_125 = arith.constant 0.000000e+00 : f32
    %180 = vector.broadcast %cst_125 : f32 to vector<1x512xf32>
    %181 = arith.maximumf %179, %180 : vector<1x512xf32>
    %182 = arith.maximumf %176, %181 : vector<1x512xf32>
    %183 = vector.extract_strided_slice %182 {offsets = [0, 0], sizes = [1, 32], strides = [1, 1]} : vector<1x512xf32> to vector<1x32xf32>
    %184 = vector.extract_strided_slice %182 {offsets = [0, 32], sizes = [1, 32], strides = [1, 1]} : vector<1x512xf32> to vector<1x32xf32>
    %185 = arith.maximumf %183, %184 : vector<1x32xf32>
    %186 = vector.extract_strided_slice %182 {offsets = [0, 64], sizes = [1, 32], strides = [1, 1]} : vector<1x512xf32> to vector<1x32xf32>
    %187 = vector.extract_strided_slice %182 {offsets = [0, 96], sizes = [1, 32], strides = [1, 1]} : vector<1x512xf32> to vector<1x32xf32>
    %188 = arith.maximumf %186, %187 : vector<1x32xf32>
    %189 = vector.extract_strided_slice %182 {offsets = [0, 128], sizes = [1, 32], strides = [1, 1]} : vector<1x512xf32> to vector<1x32xf32>
    %190 = vector.extract_strided_slice %182 {offsets = [0, 160], sizes = [1, 32], strides = [1, 1]} : vector<1x512xf32> to vector<1x32xf32>
    %191 = arith.maximumf %189, %190 : vector<1x32xf32>
    %192 = vector.extract_strided_slice %182 {offsets = [0, 192], sizes = [1, 32], strides = [1, 1]} : vector<1x512xf32> to vector<1x32xf32>
    %193 = vector.extract_strided_slice %182 {offsets = [0, 224], sizes = [1, 32], strides = [1, 1]} : vector<1x512xf32> to vector<1x32xf32>
    %194 = arith.maximumf %192, %193 : vector<1x32xf32>
    %195 = vector.extract_strided_slice %182 {offsets = [0, 256], sizes = [1, 32], strides = [1, 1]} : vector<1x512xf32> to vector<1x32xf32>
    %196 = vector.extract_strided_slice %182 {offsets = [0, 288], sizes = [1, 32], strides = [1, 1]} : vector<1x512xf32> to vector<1x32xf32>
    %197 = arith.maximumf %195, %196 : vector<1x32xf32>
    %198 = vector.extract_strided_slice %182 {offsets = [0, 320], sizes = [1, 32], strides = [1, 1]} : vector<1x512xf32> to vector<1x32xf32>
    %199 = vector.extract_strided_slice %182 {offsets = [0, 352], sizes = [1, 32], strides = [1, 1]} : vector<1x512xf32> to vector<1x32xf32>
    %200 = arith.maximumf %198, %199 : vector<1x32xf32>
    %201 = vector.extract_strided_slice %182 {offsets = [0, 384], sizes = [1, 32], strides = [1, 1]} : vector<1x512xf32> to vector<1x32xf32>
    %202 = vector.extract_strided_slice %182 {offsets = [0, 416], sizes = [1, 32], strides = [1, 1]} : vector<1x512xf32> to vector<1x32xf32>
    %203 = arith.maximumf %201, %202 : vector<1x32xf32>
    %204 = vector.extract_strided_slice %182 {offsets = [0, 448], sizes = [1, 32], strides = [1, 1]} : vector<1x512xf32> to vector<1x32xf32>
    %205 = vector.extract_strided_slice %182 {offsets = [0, 480], sizes = [1, 32], strides = [1, 1]} : vector<1x512xf32> to vector<1x32xf32>
    %206 = arith.maximumf %204, %205 : vector<1x32xf32>
    %207 = tpu.concatenate %185, %188, %191, %194, %197, %200, %203, %206 in 1 : vector<1x32xf32>, vector<1x32xf32>, vector<1x32xf32>, vector<1x32xf32>, vector<1x32xf32>, vector<1x32xf32>, vector<1x32xf32>, vector<1x32xf32> -> vector<1x256xf32>
    %208 = arith.truncf %207 : vector<1x256xf32> to vector<1x256xbf16>
    %c0_126 = arith.constant 0 : index
    %c3_127 = arith.constant 3 : index
    %c0_128 = arith.constant 0 : index
    %c0_129 = arith.constant 0 : index
    %209 = vector.load %arg6[%c0_126, %c3_127, %c0_128, %c0_129] : memref<1x8x1x256xbf16, #tpu.memory_space<vmem>>, vector<1x1x1x256xbf16>
    %210 = vector.shape_cast %209 : vector<1x1x1x256xbf16> to vector<1x256xbf16>
    %211 = vector.shape_cast %208 : vector<1x256xbf16> to vector<1x1x1x256xbf16>
    tpu.vector_store %arg6[%c0_126, %c3_127, %c0_128, %c0_129], %211 {strides = array<i32>} : memref<1x8x1x256xbf16, #tpu.memory_space<vmem>>, vector<1x1x1x256xbf16>,
    %c0_130 = arith.constant 0 : index
    %c5 = arith.constant 5 : index
    %c0_131 = arith.constant 0 : index
    %c0_132 = arith.constant 0 : index
    %c0_133 = arith.constant 0 : index
    %212 = vector.load %arg2[%c0_130, %c5, %c0_131, %c0_132, %c0_133] : memref<1x8x2x2x32xbf16, #tpu.memory_space<vmem>>, vector<1x1x1x1x32xbf16>
    %213 = vector.shape_cast %212 : vector<1x1x1x1x32xbf16> to vector<1x32xbf16>
    %c0_134 = arith.constant 0 : index
    %c5_135 = arith.constant 5 : index
    %c0_136 = arith.constant 0 : index
    %c1_137 = arith.constant 1 : index
    %c0_138 = arith.constant 0 : index
    %214 = vector.load %arg2[%c0_134, %c5_135, %c0_136, %c1_137, %c0_138] : memref<1x8x2x2x32xbf16, #tpu.memory_space<vmem>>, vector<1x1x1x1x32xbf16>
    %215 = vector.shape_cast %214 : vector<1x1x1x1x32xbf16> to vector<1x32xbf16>
    %216 = tpu.concatenate %213, %215 in 1 : vector<1x32xbf16>, vector<1x32xbf16> -> vector<1x64xbf16>
    %c0_139 = arith.constant 0 : index
    %c5_140 = arith.constant 5 : index
    %c1_141 = arith.constant 1 : index
    %c0_142 = arith.constant 0 : index
    %c0_143 = arith.constant 0 : index
    %217 = vector.load %arg2[%c0_139, %c5_140, %c1_141, %c0_142, %c0_143] : memref<1x8x2x2x32xbf16, #tpu.memory_space<vmem>>, vector<1x1x1x1x32xbf16>
    %218 = vector.shape_cast %217 : vector<1x1x1x1x32xbf16> to vector<1x32xbf16>
    %c0_144 = arith.constant 0 : index
    %c5_145 = arith.constant 5 : index
    %c1_146 = arith.constant 1 : index
    %c1_147 = arith.constant 1 : index
    %c0_148 = arith.constant 0 : index
    %219 = vector.load %arg2[%c0_144, %c5_145, %c1_146, %c1_147, %c0_148] : memref<1x8x2x2x32xbf16, #tpu.memory_space<vmem>>, vector<1x1x1x1x32xbf16>
    %220 = vector.shape_cast %219 : vector<1x1x1x1x32xbf16> to vector<1x32xbf16>
    %221 = tpu.concatenate %218, %220 in 1 : vector<1x32xbf16>, vector<1x32xbf16> -> vector<1x64xbf16>
    %222 = tpu.concatenate %166, %171, %216 in 1 : vector<1x64xbf16>, vector<1x64xbf16>, vector<1x64xbf16> -> vector<1x192xbf16>
    %cst_149 = arith.constant dense<0.000000e+00> : vector<1x512xf32>
    %223 = tpu.matmul %222, %0, %cst_149 {dimension_numbers = #tpu.dot_dimension_numbers<[1], [0], [0], [1], [0, 0, 1, 1], [], []>} : vector<1x192xbf16>, vector<192x512xbf16>, vector<1x512xf32> -> vector<1x512xf32>
    %224 = arith.addf %223, %1 : vector<1x512xf32>
    %cst_150 = arith.constant 0.000000e+00 : f32
    %225 = vector.broadcast %cst_150 : f32 to vector<1x512xf32>
    %226 = arith.maximumf %224, %225 : vector<1x512xf32>
    %227 = tpu.concatenate %171, %216, %221 in 1 : vector<1x64xbf16>, vector<1x64xbf16>, vector<1x64xbf16> -> vector<1x192xbf16>
    %cst_151 = arith.constant dense<0.000000e+00> : vector<1x512xf32>
    %228 = tpu.matmul %227, %0, %cst_151 {dimension_numbers = #tpu.dot_dimension_numbers<[1], [0], [0], [1], [0, 0, 1, 1], [], []>} : vector<1x192xbf16>, vector<192x512xbf16>, vector<1x512xf32> -> vector<1x512xf32>
    %229 = arith.addf %228, %1 : vector<1x512xf32>
    %cst_152 = arith.constant 0.000000e+00 : f32
    %230 = vector.broadcast %cst_152 : f32 to vector<1x512xf32>
    %231 = arith.maximumf %229, %230 : vector<1x512xf32>
    %232 = arith.maximumf %226, %231 : vector<1x512xf32>
    %233 = vector.extract_strided_slice %232 {offsets = [0, 0], sizes = [1, 32], strides = [1, 1]} : vector<1x512xf32> to vector<1x32xf32>
    %234 = vector.extract_strided_slice %232 {offsets = [0, 32], sizes = [1, 32], strides = [1, 1]} : vector<1x512xf32> to vector<1x32xf32>
    %235 = arith.maximumf %233, %234 : vector<1x32xf32>
    %236 = vector.extract_strided_slice %232 {offsets = [0, 64], sizes = [1, 32], strides = [1, 1]} : vector<1x512xf32> to vector<1x32xf32>
    %237 = vector.extract_strided_slice %232 {offsets = [0, 96], sizes = [1, 32], strides = [1, 1]} : vector<1x512xf32> to vector<1x32xf32>
    %238 = arith.maximumf %236, %237 : vector<1x32xf32>
    %239 = vector.extract_strided_slice %232 {offsets = [0, 128], sizes = [1, 32], strides = [1, 1]} : vector<1x512xf32> to vector<1x32xf32>
    %240 = vector.extract_strided_slice %232 {offsets = [0, 160], sizes = [1, 32], strides = [1, 1]} : vector<1x512xf32> to vector<1x32xf32>
    %241 = arith.maximumf %239, %240 : vector<1x32xf32>
    %242 = vector.extract_strided_slice %232 {offsets = [0, 192], sizes = [1, 32], strides = [1, 1]} : vector<1x512xf32> to vector<1x32xf32>
    %243 = vector.extract_strided_slice %232 {offsets = [0, 224], sizes = [1, 32], strides = [1, 1]} : vector<1x512xf32> to vector<1x32xf32>
    %244 = arith.maximumf %242, %243 : vector<1x32xf32>
    %245 = vector.extract_strided_slice %232 {offsets = [0, 256], sizes = [1, 32], strides = [1, 1]} : vector<1x512xf32> to vector<1x32xf32>
    %246 = vector.extract_strided_slice %232 {offsets = [0, 288], sizes = [1, 32], strides = [1, 1]} : vector<1x512xf32> to vector<1x32xf32>
    %247 = arith.maximumf %245, %246 : vector<1x32xf32>
    %248 = vector.extract_strided_slice %232 {offsets = [0, 320], sizes = [1, 32], strides = [1, 1]} : vector<1x512xf32> to vector<1x32xf32>
    %249 = vector.extract_strided_slice %232 {offsets = [0, 352], sizes = [1, 32], strides = [1, 1]} : vector<1x512xf32> to vector<1x32xf32>
    %250 = arith.maximumf %248, %249 : vector<1x32xf32>
    %251 = vector.extract_strided_slice %232 {offsets = [0, 384], sizes = [1, 32], strides = [1, 1]} : vector<1x512xf32> to vector<1x32xf32>
    %252 = vector.extract_strided_slice %232 {offsets = [0, 416], sizes = [1, 32], strides = [1, 1]} : vector<1x512xf32> to vector<1x32xf32>
    %253 = arith.maximumf %251, %252 : vector<1x32xf32>
    %254 = vector.extract_strided_slice %232 {offsets = [0, 448], sizes = [1, 32], strides = [1, 1]} : vector<1x512xf32> to vector<1x32xf32>
    %255 = vector.extract_strided_slice %232 {offsets = [0, 480], sizes = [1, 32], strides = [1, 1]} : vector<1x512xf32> to vector<1x32xf32>
    %256 = arith.maximumf %254, %255 : vector<1x32xf32>
    %257 = tpu.concatenate %235, %238, %241, %244, %247, %250, %253, %256 in 1 : vector<1x32xf32>, vector<1x32xf32>, vector<1x32xf32>, vector<1x32xf32>, vector<1x32xf32>, vector<1x32xf32>, vector<1x32xf32>, vector<1x32xf32> -> vector<1x256xf32>
    %258 = arith.truncf %257 : vector<1x256xf32> to vector<1x256xbf16>
    %c0_153 = arith.constant 0 : index
    %c4_154 = arith.constant 4 : index
    %c0_155 = arith.constant 0 : index
    %c0_156 = arith.constant 0 : index
    %259 = vector.load %arg6[%c0_153, %c4_154, %c0_155, %c0_156] : memref<1x8x1x256xbf16, #tpu.memory_space<vmem>>, vector<1x1x1x256xbf16>
    %260 = vector.shape_cast %259 : vector<1x1x1x256xbf16> to vector<1x256xbf16>
    %261 = vector.shape_cast %258 : vector<1x256xbf16> to vector<1x1x1x256xbf16>
    tpu.vector_store %arg6[%c0_153, %c4_154, %c0_155, %c0_156], %261 {strides = array<i32>} : memref<1x8x1x256xbf16, #tpu.memory_space<vmem>>, vector<1x1x1x256xbf16>,
    %c0_157 = arith.constant 0 : index
    %c6 = arith.constant 6 : index
    %c0_158 = arith.constant 0 : index
    %c0_159 = arith.constant 0 : index
    %c0_160 = arith.constant 0 : index
    %262 = vector.load %arg2[%c0_157, %c6, %c0_158, %c0_159, %c0_160] : memref<1x8x2x2x32xbf16, #tpu.memory_space<vmem>>, vector<1x1x1x1x32xbf16>
    %263 = vector.shape_cast %262 : vector<1x1x1x1x32xbf16> to vector<1x32xbf16>
    %c0_161 = arith.constant 0 : index
    %c6_162 = arith.constant 6 : index
    %c0_163 = arith.constant 0 : index
    %c1_164 = arith.constant 1 : index
    %c0_165 = arith.constant 0 : index
    %264 = vector.load %arg2[%c0_161, %c6_162, %c0_163, %c1_164, %c0_165] : memref<1x8x2x2x32xbf16, #tpu.memory_space<vmem>>, vector<1x1x1x1x32xbf16>
    %265 = vector.shape_cast %264 : vector<1x1x1x1x32xbf16> to vector<1x32xbf16>
    %266 = tpu.concatenate %263, %265 in 1 : vector<1x32xbf16>, vector<1x32xbf16> -> vector<1x64xbf16>
    %c0_166 = arith.constant 0 : index
    %c6_167 = arith.constant 6 : index
    %c1_168 = arith.constant 1 : index
    %c0_169 = arith.constant 0 : index
    %c0_170 = arith.constant 0 : index
    %267 = vector.load %arg2[%c0_166, %c6_167, %c1_168, %c0_169, %c0_170] : memref<1x8x2x2x32xbf16, #tpu.memory_space<vmem>>, vector<1x1x1x1x32xbf16>
    %268 = vector.shape_cast %267 : vector<1x1x1x1x32xbf16> to vector<1x32xbf16>
    %c0_171 = arith.constant 0 : index
    %c6_172 = arith.constant 6 : index
    %c1_173 = arith.constant 1 : index
    %c1_174 = arith.constant 1 : index
    %c0_175 = arith.constant 0 : index
    %269 = vector.load %arg2[%c0_171, %c6_172, %c1_173, %c1_174, %c0_175] : memref<1x8x2x2x32xbf16, #tpu.memory_space<vmem>>, vector<1x1x1x1x32xbf16>
    %270 = vector.shape_cast %269 : vector<1x1x1x1x32xbf16> to vector<1x32xbf16>
    %271 = tpu.concatenate %268, %270 in 1 : vector<1x32xbf16>, vector<1x32xbf16> -> vector<1x64xbf16>
    %272 = tpu.concatenate %216, %221, %266 in 1 : vector<1x64xbf16>, vector<1x64xbf16>, vector<1x64xbf16> -> vector<1x192xbf16>
    %cst_176 = arith.constant dense<0.000000e+00> : vector<1x512xf32>
    %273 = tpu.matmul %272, %0, %cst_176 {dimension_numbers = #tpu.dot_dimension_numbers<[1], [0], [0], [1], [0, 0, 1, 1], [], []>} : vector<1x192xbf16>, vector<192x512xbf16>, vector<1x512xf32> -> vector<1x512xf32>
    %274 = arith.addf %273, %1 : vector<1x512xf32>
    %cst_177 = arith.constant 0.000000e+00 : f32
    %275 = vector.broadcast %cst_177 : f32 to vector<1x512xf32>
    %276 = arith.maximumf %274, %275 : vector<1x512xf32>
    %277 = tpu.concatenate %221, %266, %271 in 1 : vector<1x64xbf16>, vector<1x64xbf16>, vector<1x64xbf16> -> vector<1x192xbf16>
    %cst_178 = arith.constant dense<0.000000e+00> : vector<1x512xf32>
    %278 = tpu.matmul %277, %0, %cst_178 {dimension_numbers = #tpu.dot_dimension_numbers<[1], [0], [0], [1], [0, 0, 1, 1], [], []>} : vector<1x192xbf16>, vector<192x512xbf16>, vector<1x512xf32> -> vector<1x512xf32>
    %279 = arith.addf %278, %1 : vector<1x512xf32>
    %cst_179 = arith.constant 0.000000e+00 : f32
    %280 = vector.broadcast %cst_179 : f32 to vector<1x512xf32>
    %281 = arith.maximumf %279, %280 : vector<1x512xf32>
    %282 = arith.maximumf %276, %281 : vector<1x512xf32>
    %283 = vector.extract_strided_slice %282 {offsets = [0, 0], sizes = [1, 32], strides = [1, 1]} : vector<1x512xf32> to vector<1x32xf32>
    %284 = vector.extract_strided_slice %282 {offsets = [0, 32], sizes = [1, 32], strides = [1, 1]} : vector<1x512xf32> to vector<1x32xf32>
    %285 = arith.maximumf %283, %284 : vector<1x32xf32>
    %286 = vector.extract_strided_slice %282 {offsets = [0, 64], sizes = [1, 32], strides = [1, 1]} : vector<1x512xf32> to vector<1x32xf32>
    %287 = vector.extract_strided_slice %282 {offsets = [0, 96], sizes = [1, 32], strides = [1, 1]} : vector<1x512xf32> to vector<1x32xf32>
    %288 = arith.maximumf %286, %287 : vector<1x32xf32>
    %289 = vector.extract_strided_slice %282 {offsets = [0, 128], sizes = [1, 32], strides = [1, 1]} : vector<1x512xf32> to vector<1x32xf32>
    %290 = vector.extract_strided_slice %282 {offsets = [0, 160], sizes = [1, 32], strides = [1, 1]} : vector<1x512xf32> to vector<1x32xf32>
    %291 = arith.maximumf %289, %290 : vector<1x32xf32>
    %292 = vector.extract_strided_slice %282 {offsets = [0, 192], sizes = [1, 32], strides = [1, 1]} : vector<1x512xf32> to vector<1x32xf32>
    %293 = vector.extract_strided_slice %282 {offsets = [0, 224], sizes = [1, 32], strides = [1, 1]} : vector<1x512xf32> to vector<1x32xf32>
    %294 = arith.maximumf %292, %293 : vector<1x32xf32>
    %295 = vector.extract_strided_slice %282 {offsets = [0, 256], sizes = [1, 32], strides = [1, 1]} : vector<1x512xf32> to vector<1x32xf32>
    %296 = vector.extract_strided_slice %282 {offsets = [0, 288], sizes = [1, 32], strides = [1, 1]} : vector<1x512xf32> to vector<1x32xf32>
    %297 = arith.maximumf %295, %296 : vector<1x32xf32>
    %298 = vector.extract_strided_slice %282 {offsets = [0, 320], sizes = [1, 32], strides = [1, 1]} : vector<1x512xf32> to vector<1x32xf32>
    %299 = vector.extract_strided_slice %282 {offsets = [0, 352], sizes = [1, 32], strides = [1, 1]} : vector<1x512xf32> to vector<1x32xf32>
    %300 = arith.maximumf %298, %299 : vector<1x32xf32>
    %301 = vector.extract_strided_slice %282 {offsets = [0, 384], sizes = [1, 32], strides = [1, 1]} : vector<1x512xf32> to vector<1x32xf32>
    %302 = vector.extract_strided_slice %282 {offsets = [0, 416], sizes = [1, 32], strides = [1, 1]} : vector<1x512xf32> to vector<1x32xf32>
    %303 = arith.maximumf %301, %302 : vector<1x32xf32>
    %304 = vector.extract_strided_slice %282 {offsets = [0, 448], sizes = [1, 32], strides = [1, 1]} : vector<1x512xf32> to vector<1x32xf32>
    %305 = vector.extract_strided_slice %282 {offsets = [0, 480], sizes = [1, 32], strides = [1, 1]} : vector<1x512xf32> to vector<1x32xf32>
    %306 = arith.maximumf %304, %305 : vector<1x32xf32>
    %307 = tpu.concatenate %285, %288, %291, %294, %297, %300, %303, %306 in 1 : vector<1x32xf32>, vector<1x32xf32>, vector<1x32xf32>, vector<1x32xf32>, vector<1x32xf32>, vector<1x32xf32>, vector<1x32xf32>, vector<1x32xf32> -> vector<1x256xf32>
    %308 = arith.truncf %307 : vector<1x256xf32> to vector<1x256xbf16>
    %c0_180 = arith.constant 0 : index
    %c5_181 = arith.constant 5 : index
    %c0_182 = arith.constant 0 : index
    %c0_183 = arith.constant 0 : index
    %309 = vector.load %arg6[%c0_180, %c5_181, %c0_182, %c0_183] : memref<1x8x1x256xbf16, #tpu.memory_space<vmem>>, vector<1x1x1x256xbf16>
    %310 = vector.shape_cast %309 : vector<1x1x1x256xbf16> to vector<1x256xbf16>
    %311 = vector.shape_cast %308 : vector<1x256xbf16> to vector<1x1x1x256xbf16>
    tpu.vector_store %arg6[%c0_180, %c5_181, %c0_182, %c0_183], %311 {strides = array<i32>} : memref<1x8x1x256xbf16, #tpu.memory_space<vmem>>, vector<1x1x1x256xbf16>,
    %c0_184 = arith.constant 0 : index
    %c7 = arith.constant 7 : index
    %c0_185 = arith.constant 0 : index
    %c0_186 = arith.constant 0 : index
    %c0_187 = arith.constant 0 : index
    %312 = vector.load %arg2[%c0_184, %c7, %c0_185, %c0_186, %c0_187] : memref<1x8x2x2x32xbf16, #tpu.memory_space<vmem>>, vector<1x1x1x1x32xbf16>
    %313 = vector.shape_cast %312 : vector<1x1x1x1x32xbf16> to vector<1x32xbf16>
    %c0_188 = arith.constant 0 : index
    %c7_189 = arith.constant 7 : index
    %c0_190 = arith.constant 0 : index
    %c1_191 = arith.constant 1 : index
    %c0_192 = arith.constant 0 : index
    %314 = vector.load %arg2[%c0_188, %c7_189, %c0_190, %c1_191, %c0_192] : memref<1x8x2x2x32xbf16, #tpu.memory_space<vmem>>, vector<1x1x1x1x32xbf16>
    %315 = vector.shape_cast %314 : vector<1x1x1x1x32xbf16> to vector<1x32xbf16>
    %316 = tpu.concatenate %313, %315 in 1 : vector<1x32xbf16>, vector<1x32xbf16> -> vector<1x64xbf16>
    %c0_193 = arith.constant 0 : index
    %c7_194 = arith.constant 7 : index
    %c1_195 = arith.constant 1 : index
    %c0_196 = arith.constant 0 : index
    %c0_197 = arith.constant 0 : index
    %317 = vector.load %arg2[%c0_193, %c7_194, %c1_195, %c0_196, %c0_197] : memref<1x8x2x2x32xbf16, #tpu.memory_space<vmem>>, vector<1x1x1x1x32xbf16>
    %318 = vector.shape_cast %317 : vector<1x1x1x1x32xbf16> to vector<1x32xbf16>
    %c0_198 = arith.constant 0 : index
    %c7_199 = arith.constant 7 : index
    %c1_200 = arith.constant 1 : index
    %c1_201 = arith.constant 1 : index
    %c0_202 = arith.constant 0 : index
    %319 = vector.load %arg2[%c0_198, %c7_199, %c1_200, %c1_201, %c0_202] : memref<1x8x2x2x32xbf16, #tpu.memory_space<vmem>>, vector<1x1x1x1x32xbf16>
    %320 = vector.shape_cast %319 : vector<1x1x1x1x32xbf16> to vector<1x32xbf16>
    %321 = tpu.concatenate %318, %320 in 1 : vector<1x32xbf16>, vector<1x32xbf16> -> vector<1x64xbf16>
    %322 = tpu.concatenate %266, %271, %316 in 1 : vector<1x64xbf16>, vector<1x64xbf16>, vector<1x64xbf16> -> vector<1x192xbf16>
    %cst_203 = arith.constant dense<0.000000e+00> : vector<1x512xf32>
    %323 = tpu.matmul %322, %0, %cst_203 {dimension_numbers = #tpu.dot_dimension_numbers<[1], [0], [0], [1], [0, 0, 1, 1], [], []>} : vector<1x192xbf16>, vector<192x512xbf16>, vector<1x512xf32> -> vector<1x512xf32>
    %324 = arith.addf %323, %1 : vector<1x512xf32>
    %cst_204 = arith.constant 0.000000e+00 : f32
    %325 = vector.broadcast %cst_204 : f32 to vector<1x512xf32>
    %326 = arith.maximumf %324, %325 : vector<1x512xf32>
    %327 = tpu.concatenate %271, %316, %321 in 1 : vector<1x64xbf16>, vector<1x64xbf16>, vector<1x64xbf16> -> vector<1x192xbf16>
    %cst_205 = arith.constant dense<0.000000e+00> : vector<1x512xf32>
    %328 = tpu.matmul %327, %0, %cst_205 {dimension_numbers = #tpu.dot_dimension_numbers<[1], [0], [0], [1], [0, 0, 1, 1], [], []>} : vector<1x192xbf16>, vector<192x512xbf16>, vector<1x512xf32> -> vector<1x512xf32>
    %329 = arith.addf %328, %1 : vector<1x512xf32>
    %cst_206 = arith.constant 0.000000e+00 : f32
    %330 = vector.broadcast %cst_206 : f32 to vector<1x512xf32>
    %331 = arith.maximumf %329, %330 : vector<1x512xf32>
    %332 = arith.maximumf %326, %331 : vector<1x512xf32>
    %333 = vector.extract_strided_slice %332 {offsets = [0, 0], sizes = [1, 32], strides = [1, 1]} : vector<1x512xf32> to vector<1x32xf32>
    %334 = vector.extract_strided_slice %332 {offsets = [0, 32], sizes = [1, 32], strides = [1, 1]} : vector<1x512xf32> to vector<1x32xf32>
    %335 = arith.maximumf %333, %334 : vector<1x32xf32>
    %336 = vector.extract_strided_slice %332 {offsets = [0, 64], sizes = [1, 32], strides = [1, 1]} : vector<1x512xf32> to vector<1x32xf32>
    %337 = vector.extract_strided_slice %332 {offsets = [0, 96], sizes = [1, 32], strides = [1, 1]} : vector<1x512xf32> to vector<1x32xf32>
    %338 = arith.maximumf %336, %337 : vector<1x32xf32>
    %339 = vector.extract_strided_slice %332 {offsets = [0, 128], sizes = [1, 32], strides = [1, 1]} : vector<1x512xf32> to vector<1x32xf32>
    %340 = vector.extract_strided_slice %332 {offsets = [0, 160], sizes = [1, 32], strides = [1, 1]} : vector<1x512xf32> to vector<1x32xf32>
    %341 = arith.maximumf %339, %340 : vector<1x32xf32>
    %342 = vector.extract_strided_slice %332 {offsets = [0, 192], sizes = [1, 32], strides = [1, 1]} : vector<1x512xf32> to vector<1x32xf32>
    %343 = vector.extract_strided_slice %332 {offsets = [0, 224], sizes = [1, 32], strides = [1, 1]} : vector<1x512xf32> to vector<1x32xf32>
    %344 = arith.maximumf %342, %343 : vector<1x32xf32>
    %345 = vector.extract_strided_slice %332 {offsets = [0, 256], sizes = [1, 32], strides = [1, 1]} : vector<1x512xf32> to vector<1x32xf32>
    %346 = vector.extract_strided_slice %332 {offsets = [0, 288], sizes = [1, 32], strides = [1, 1]} : vector<1x512xf32> to vector<1x32xf32>
    %347 = arith.maximumf %345, %346 : vector<1x32xf32>
    %348 = vector.extract_strided_slice %332 {offsets = [0, 320], sizes = [1, 32], strides = [1, 1]} : vector<1x512xf32> to vector<1x32xf32>
    %349 = vector.extract_strided_slice %332 {offsets = [0, 352], sizes = [1, 32], strides = [1, 1]} : vector<1x512xf32> to vector<1x32xf32>
    %350 = arith.maximumf %348, %349 : vector<1x32xf32>
    %351 = vector.extract_strided_slice %332 {offsets = [0, 384], sizes = [1, 32], strides = [1, 1]} : vector<1x512xf32> to vector<1x32xf32>
    %352 = vector.extract_strided_slice %332 {offsets = [0, 416], sizes = [1, 32], strides = [1, 1]} : vector<1x512xf32> to vector<1x32xf32>
    %353 = arith.maximumf %351, %352 : vector<1x32xf32>
    %354 = vector.extract_strided_slice %332 {offsets = [0, 448], sizes = [1, 32], strides = [1, 1]} : vector<1x512xf32> to vector<1x32xf32>
    %355 = vector.extract_strided_slice %332 {offsets = [0, 480], sizes = [1, 32], strides = [1, 1]} : vector<1x512xf32> to vector<1x32xf32>
    %356 = arith.maximumf %354, %355 : vector<1x32xf32>
    %357 = tpu.concatenate %335, %338, %341, %344, %347, %350, %353, %356 in 1 : vector<1x32xf32>, vector<1x32xf32>, vector<1x32xf32>, vector<1x32xf32>, vector<1x32xf32>, vector<1x32xf32>, vector<1x32xf32>, vector<1x32xf32> -> vector<1x256xf32>
    %358 = arith.truncf %357 : vector<1x256xf32> to vector<1x256xbf16>
    %c0_207 = arith.constant 0 : index
    %c6_208 = arith.constant 6 : index
    %c0_209 = arith.constant 0 : index
    %c0_210 = arith.constant 0 : index
    %359 = vector.load %arg6[%c0_207, %c6_208, %c0_209, %c0_210] : memref<1x8x1x256xbf16, #tpu.memory_space<vmem>>, vector<1x1x1x256xbf16>
    %360 = vector.shape_cast %359 : vector<1x1x1x256xbf16> to vector<1x256xbf16>
    %361 = vector.shape_cast %358 : vector<1x256xbf16> to vector<1x1x1x256xbf16>
    tpu.vector_store %arg6[%c0_207, %c6_208, %c0_209, %c0_210], %361 {strides = array<i32>} : memref<1x8x1x256xbf16, #tpu.memory_space<vmem>>, vector<1x1x1x256xbf16>,
    %c0_211 = arith.constant 0 : index
    %c0_212 = arith.constant 0 : index
    %c0_213 = arith.constant 0 : index
    %c0_214 = arith.constant 0 : index
    %c0_215 = arith.constant 0 : index
    %362 = vector.load %arg3[%c0_211, %c0_212, %c0_213, %c0_214, %c0_215] : memref<1x1x2x2x32xbf16, #tpu.memory_space<vmem>>, vector<1x1x1x1x32xbf16>
    %363 = vector.shape_cast %362 : vector<1x1x1x1x32xbf16> to vector<1x32xbf16>
    %c0_216 = arith.constant 0 : index
    %c0_217 = arith.constant 0 : index
    %c0_218 = arith.constant 0 : index
    %c1_219 = arith.constant 1 : index
    %c0_220 = arith.constant 0 : index
    %364 = vector.load %arg3[%c0_216, %c0_217, %c0_218, %c1_219, %c0_220] : memref<1x1x2x2x32xbf16, #tpu.memory_space<vmem>>, vector<1x1x1x1x32xbf16>
    %365 = vector.shape_cast %364 : vector<1x1x1x1x32xbf16> to vector<1x32xbf16>
    %366 = tpu.concatenate %363, %365 in 1 : vector<1x32xbf16>, vector<1x32xbf16> -> vector<1x64xbf16>
    %c0_221 = arith.constant 0 : index
    %c0_222 = arith.constant 0 : index
    %c1_223 = arith.constant 1 : index
    %c0_224 = arith.constant 0 : index
    %c0_225 = arith.constant 0 : index
    %367 = vector.load %arg3[%c0_221, %c0_222, %c1_223, %c0_224, %c0_225] : memref<1x1x2x2x32xbf16, #tpu.memory_space<vmem>>, vector<1x1x1x1x32xbf16>
    %368 = vector.shape_cast %367 : vector<1x1x1x1x32xbf16> to vector<1x32xbf16>
    %c0_226 = arith.constant 0 : index
    %c0_227 = arith.constant 0 : index
    %c1_228 = arith.constant 1 : index
    %c1_229 = arith.constant 1 : index
    %c0_230 = arith.constant 0 : index
    %369 = vector.load %arg3[%c0_226, %c0_227, %c1_228, %c1_229, %c0_230] : memref<1x1x2x2x32xbf16, #tpu.memory_space<vmem>>, vector<1x1x1x1x32xbf16>
    %370 = vector.shape_cast %369 : vector<1x1x1x1x32xbf16> to vector<1x32xbf16>
    %371 = tpu.concatenate %368, %370 in 1 : vector<1x32xbf16>, vector<1x32xbf16> -> vector<1x64xbf16>
    %372 = tpu.concatenate %316, %321, %366 in 1 : vector<1x64xbf16>, vector<1x64xbf16>, vector<1x64xbf16> -> vector<1x192xbf16>
    %cst_231 = arith.constant dense<0.000000e+00> : vector<1x512xf32>
    %373 = tpu.matmul %372, %0, %cst_231 {dimension_numbers = #tpu.dot_dimension_numbers<[1], [0], [0], [1], [0, 0, 1, 1], [], []>} : vector<1x192xbf16>, vector<192x512xbf16>, vector<1x512xf32> -> vector<1x512xf32>
    %374 = arith.addf %373, %1 : vector<1x512xf32>
    %cst_232 = arith.constant 0.000000e+00 : f32
    %375 = vector.broadcast %cst_232 : f32 to vector<1x512xf32>
    %376 = arith.maximumf %374, %375 : vector<1x512xf32>
    %377 = tpu.concatenate %321, %366, %371 in 1 : vector<1x64xbf16>, vector<1x64xbf16>, vector<1x64xbf16> -> vector<1x192xbf16>
    %cst_233 = arith.constant dense<0.000000e+00> : vector<1x512xf32>
    %378 = tpu.matmul %377, %0, %cst_233 {dimension_numbers = #tpu.dot_dimension_numbers<[1], [0], [0], [1], [0, 0, 1, 1], [], []>} : vector<1x192xbf16>, vector<192x512xbf16>, vector<1x512xf32> -> vector<1x512xf32>
    %379 = arith.addf %378, %1 : vector<1x512xf32>
    %cst_234 = arith.constant 0.000000e+00 : f32
    %380 = vector.broadcast %cst_234 : f32 to vector<1x512xf32>
    %381 = arith.maximumf %379, %380 : vector<1x512xf32>
    %382 = arith.maximumf %376, %381 : vector<1x512xf32>
    %383 = vector.extract_strided_slice %382 {offsets = [0, 0], sizes = [1, 32], strides = [1, 1]} : vector<1x512xf32> to vector<1x32xf32>
    %384 = vector.extract_strided_slice %382 {offsets = [0, 32], sizes = [1, 32], strides = [1, 1]} : vector<1x512xf32> to vector<1x32xf32>
    %385 = arith.maximumf %383, %384 : vector<1x32xf32>
    %386 = vector.extract_strided_slice %382 {offsets = [0, 64], sizes = [1, 32], strides = [1, 1]} : vector<1x512xf32> to vector<1x32xf32>
    %387 = vector.extract_strided_slice %382 {offsets = [0, 96], sizes = [1, 32], strides = [1, 1]} : vector<1x512xf32> to vector<1x32xf32>
    %388 = arith.maximumf %386, %387 : vector<1x32xf32>
    %389 = vector.extract_strided_slice %382 {offsets = [0, 128], sizes = [1, 32], strides = [1, 1]} : vector<1x512xf32> to vector<1x32xf32>
    %390 = vector.extract_strided_slice %382 {offsets = [0, 160], sizes = [1, 32], strides = [1, 1]} : vector<1x512xf32> to vector<1x32xf32>
    %391 = arith.maximumf %389, %390 : vector<1x32xf32>
    %392 = vector.extract_strided_slice %382 {offsets = [0, 192], sizes = [1, 32], strides = [1, 1]} : vector<1x512xf32> to vector<1x32xf32>
    %393 = vector.extract_strided_slice %382 {offsets = [0, 224], sizes = [1, 32], strides = [1, 1]} : vector<1x512xf32> to vector<1x32xf32>
    %394 = arith.maximumf %392, %393 : vector<1x32xf32>
    %395 = vector.extract_strided_slice %382 {offsets = [0, 256], sizes = [1, 32], strides = [1, 1]} : vector<1x512xf32> to vector<1x32xf32>
    %396 = vector.extract_strided_slice %382 {offsets = [0, 288], sizes = [1, 32], strides = [1, 1]} : vector<1x512xf32> to vector<1x32xf32>
    %397 = arith.maximumf %395, %396 : vector<1x32xf32>
    %398 = vector.extract_strided_slice %382 {offsets = [0, 320], sizes = [1, 32], strides = [1, 1]} : vector<1x512xf32> to vector<1x32xf32>
    %399 = vector.extract_strided_slice %382 {offsets = [0, 352], sizes = [1, 32], strides = [1, 1]} : vector<1x512xf32> to vector<1x32xf32>
    %400 = arith.maximumf %398, %399 : vector<1x32xf32>
    %401 = vector.extract_strided_slice %382 {offsets = [0, 384], sizes = [1, 32], strides = [1, 1]} : vector<1x512xf32> to vector<1x32xf32>
    %402 = vector.extract_strided_slice %382 {offsets = [0, 416], sizes = [1, 32], strides = [1, 1]} : vector<1x512xf32> to vector<1x32xf32>
    %403 = arith.maximumf %401, %402 : vector<1x32xf32>
    %404 = vector.extract_strided_slice %382 {offsets = [0, 448], sizes = [1, 32], strides = [1, 1]} : vector<1x512xf32> to vector<1x32xf32>
    %405 = vector.extract_strided_slice %382 {offsets = [0, 480], sizes = [1, 32], strides = [1, 1]} : vector<1x512xf32> to vector<1x32xf32>
    %406 = arith.maximumf %404, %405 : vector<1x32xf32>
    %407 = tpu.concatenate %385, %388, %391, %394, %397, %400, %403, %406 in 1 : vector<1x32xf32>, vector<1x32xf32>, vector<1x32xf32>, vector<1x32xf32>, vector<1x32xf32>, vector<1x32xf32>, vector<1x32xf32>, vector<1x32xf32> -> vector<1x256xf32>
    %408 = arith.truncf %407 : vector<1x256xf32> to vector<1x256xbf16>
    %c0_235 = arith.constant 0 : index
    %c7_236 = arith.constant 7 : index
    %c0_237 = arith.constant 0 : index
    %c0_238 = arith.constant 0 : index
    %409 = vector.load %arg6[%c0_235, %c7_236, %c0_237, %c0_238] : memref<1x8x1x256xbf16, #tpu.memory_space<vmem>>, vector<1x1x1x256xbf16>
    %410 = vector.shape_cast %409 : vector<1x1x1x256xbf16> to vector<1x256xbf16>
    %411 = vector.shape_cast %408 : vector<1x256xbf16> to vector<1x1x1x256xbf16>
    tpu.vector_store %arg6[%c0_235, %c7_236, %c0_237, %c0_238], %411 {strides = array<i32>} : memref<1x8x1x256xbf16, #tpu.memory_space<vmem>>, vector<1x1x1x256xbf16>,
    return
  }
  func.func @transform_0(%arg0: i32, %arg1: i32) -> (i32, i32, i32, i32, i32) {
    %c0_i32 = arith.constant 0 : i32
    %c0_i32_0 = arith.constant 0 : i32
    %c0_i32_1 = arith.constant 0 : i32
    %c0_i32_2 = arith.constant 0 : i32
    return %arg0, %arg1, %c0_i32, %c0_i32_0, %c0_i32_1 : i32, i32, i32, i32, i32
  }
  func.func @transform_1(%arg0: i32, %arg1: i32) -> (i32, i32, i32, i32, i32) {
    %c1_i32 = arith.constant 1 : i32
    %0 = arith.addi %arg1, %c1_i32 : i32
    %c8_i32 = arith.constant 8 : i32
    %1 = arith.muli %0, %c8_i32 : i32
    %c0_i32 = arith.constant 0 : i32
    %c0_i32_0 = arith.constant 0 : i32
    %c0_i32_1 = arith.constant 0 : i32
    %c0_i32_2 = arith.constant 0 : i32
    return %arg0, %1, %c0_i32, %c0_i32_0, %c0_i32_1 : i32, i32, i32, i32, i32
  }
  func.func @transform_2(%arg0: i32, %arg1: i32) -> (i32, i32) {
    %c0_i32 = arith.constant 0 : i32
    %c0_i32_0 = arith.constant 0 : i32
    %c0_i32_1 = arith.constant 0 : i32
    return %c0_i32, %c0_i32_0 : i32, i32
  }
  func.func @transform_3(%arg0: i32, %arg1: i32) -> (i32, i32) {
    %c0_i32 = arith.constant 0 : i32
    %c0_i32_0 = arith.constant 0 : i32
    %c0_i32_1 = arith.constant 0 : i32
    return %c0_i32, %c0_i32_0 : i32, i32
  }
  func.func @transform_4(%arg0: i32, %arg1: i32) -> (i32, i32, i32, i32) {
    %c0_i32 = arith.constant 0 : i32
    %c0_i32_0 = arith.constant 0 : i32
    %c0_i32_1 = arith.constant 0 : i32
    return %arg0, %arg1, %c0_i32, %c0_i32_0 : i32, i32, i32, i32
  }
}

module attributes {stable_mosaic.version = 11 : i64} {
  func.func @_conv_pool_kernel(%arg0: i32, %arg1: i32, %arg2: memref<1x4x2x5x64xbf16, #tpu.memory_space<vmem>>, %arg3: memref<1x1x2x5x64xbf16, #tpu.memory_space<vmem>>, %arg4: memref<384x128xbf16, #tpu.memory_space<vmem>>, %arg5: memref<1x128xf32, #tpu.memory_space<vmem>>, %arg6: memref<1x4x4x64xbf16, #tpu.memory_space<vmem>>) attributes {dimension_semantics = [#tpu.dimension_semantics<parallel>, #tpu.dimension_semantics<parallel>], iteration_bounds = array<i64: 2, 1>, scalar_prefetch = 0 : i64, scratch_operands = 0 : i64, tpu.core_type = #tpu.core_type<tc>, window_params = [{transform_indices = @transform_0, window_bounds = array<i64: 1, 4, 2, 5, 64>}, {transform_indices = @transform_1, window_bounds = array<i64: 1, 1, 2, 5, 64>}, {pipeline_mode = #tpu.pipeline_mode<synchronous>, transform_indices = @transform_2, window_bounds = array<i64: 384, 128>}, {pipeline_mode = #tpu.pipeline_mode<synchronous>, transform_indices = @transform_3, window_bounds = array<i64: 1, 128>}, {transform_indices = @transform_4, window_bounds = array<i64: 1, 4, 4, 64>}]} {
    %c0 = arith.constant 0 : index
    %c0_0 = arith.constant 0 : index
    %0 = vector.load %arg4[%c0, %c0_0] : memref<384x128xbf16, #tpu.memory_space<vmem>>, vector<384x128xbf16>
    %c0_1 = arith.constant 0 : index
    %c0_2 = arith.constant 0 : index
    %1 = vector.load %arg5[%c0_1, %c0_2] : memref<1x128xf32, #tpu.memory_space<vmem>>, vector<1x128xf32>
    %c0_3 = arith.constant 0 : index
    %c0_4 = arith.constant 0 : index
    %c0_5 = arith.constant 0 : index
    %c0_6 = arith.constant 0 : index
    %c0_7 = arith.constant 0 : index
    %2 = vector.load %arg2[%c0_3, %c0_4, %c0_5, %c0_6, %c0_7] : memref<1x4x2x5x64xbf16, #tpu.memory_space<vmem>>, vector<1x1x1x4x64xbf16>
    %3 = vector.shape_cast %2 : vector<1x1x1x4x64xbf16> to vector<4x64xbf16>
    %c0_8 = arith.constant 0 : index
    %c0_9 = arith.constant 0 : index
    %c0_10 = arith.constant 0 : index
    %c1 = arith.constant 1 : index
    %c0_11 = arith.constant 0 : index
    %4 = vector.load %arg2[%c0_8, %c0_9, %c0_10, %c1, %c0_11] : memref<1x4x2x5x64xbf16, #tpu.memory_space<vmem>>, vector<1x1x1x4x64xbf16>
    %5 = vector.shape_cast %4 : vector<1x1x1x4x64xbf16> to vector<4x64xbf16>
    %6 = tpu.concatenate %3, %5 in 1 : vector<4x64xbf16>, vector<4x64xbf16> -> vector<4x128xbf16>
    %c0_12 = arith.constant 0 : index
    %c0_13 = arith.constant 0 : index
    %c1_14 = arith.constant 1 : index
    %c0_15 = arith.constant 0 : index
    %c0_16 = arith.constant 0 : index
    %7 = vector.load %arg2[%c0_12, %c0_13, %c1_14, %c0_15, %c0_16] : memref<1x4x2x5x64xbf16, #tpu.memory_space<vmem>>, vector<1x1x1x4x64xbf16>
    %8 = vector.shape_cast %7 : vector<1x1x1x4x64xbf16> to vector<4x64xbf16>
    %c0_17 = arith.constant 0 : index
    %c0_18 = arith.constant 0 : index
    %c1_19 = arith.constant 1 : index
    %c1_20 = arith.constant 1 : index
    %c0_21 = arith.constant 0 : index
    %9 = vector.load %arg2[%c0_17, %c0_18, %c1_19, %c1_20, %c0_21] : memref<1x4x2x5x64xbf16, #tpu.memory_space<vmem>>, vector<1x1x1x4x64xbf16>
    %10 = vector.shape_cast %9 : vector<1x1x1x4x64xbf16> to vector<4x64xbf16>
    %11 = tpu.concatenate %8, %10 in 1 : vector<4x64xbf16>, vector<4x64xbf16> -> vector<4x128xbf16>
    %c0_22 = arith.constant 0 : index
    %c1_23 = arith.constant 1 : index
    %c0_24 = arith.constant 0 : index
    %c0_25 = arith.constant 0 : index
    %c0_26 = arith.constant 0 : index
    %12 = vector.load %arg2[%c0_22, %c1_23, %c0_24, %c0_25, %c0_26] : memref<1x4x2x5x64xbf16, #tpu.memory_space<vmem>>, vector<1x1x1x4x64xbf16>
    %13 = vector.shape_cast %12 : vector<1x1x1x4x64xbf16> to vector<4x64xbf16>
    %c0_27 = arith.constant 0 : index
    %c1_28 = arith.constant 1 : index
    %c0_29 = arith.constant 0 : index
    %c1_30 = arith.constant 1 : index
    %c0_31 = arith.constant 0 : index
    %14 = vector.load %arg2[%c0_27, %c1_28, %c0_29, %c1_30, %c0_31] : memref<1x4x2x5x64xbf16, #tpu.memory_space<vmem>>, vector<1x1x1x4x64xbf16>
    %15 = vector.shape_cast %14 : vector<1x1x1x4x64xbf16> to vector<4x64xbf16>
    %16 = tpu.concatenate %13, %15 in 1 : vector<4x64xbf16>, vector<4x64xbf16> -> vector<4x128xbf16>
    %c0_32 = arith.constant 0 : index
    %c1_33 = arith.constant 1 : index
    %c1_34 = arith.constant 1 : index
    %c0_35 = arith.constant 0 : index
    %c0_36 = arith.constant 0 : index
    %17 = vector.load %arg2[%c0_32, %c1_33, %c1_34, %c0_35, %c0_36] : memref<1x4x2x5x64xbf16, #tpu.memory_space<vmem>>, vector<1x1x1x4x64xbf16>
    %18 = vector.shape_cast %17 : vector<1x1x1x4x64xbf16> to vector<4x64xbf16>
    %c0_37 = arith.constant 0 : index
    %c1_38 = arith.constant 1 : index
    %c1_39 = arith.constant 1 : index
    %c1_40 = arith.constant 1 : index
    %c0_41 = arith.constant 0 : index
    %19 = vector.load %arg2[%c0_37, %c1_38, %c1_39, %c1_40, %c0_41] : memref<1x4x2x5x64xbf16, #tpu.memory_space<vmem>>, vector<1x1x1x4x64xbf16>
    %20 = vector.shape_cast %19 : vector<1x1x1x4x64xbf16> to vector<4x64xbf16>
    %21 = tpu.concatenate %18, %20 in 1 : vector<4x64xbf16>, vector<4x64xbf16> -> vector<4x128xbf16>
    %22 = tpu.concatenate %6, %11, %16 in 1 : vector<4x128xbf16>, vector<4x128xbf16>, vector<4x128xbf16> -> vector<4x384xbf16>
    %cst = arith.constant dense<0.000000e+00> : vector<4x128xf32>
    %23 = tpu.matmul %22, %0, %cst {dimension_numbers = #tpu.dot_dimension_numbers<[1], [0], [0], [1], [0, 0, 1, 1], [], []>} : vector<4x384xbf16>, vector<384x128xbf16>, vector<4x128xf32> -> vector<4x128xf32>
    %24 = vector.broadcast %1 : vector<1x128xf32> to vector<4x128xf32>
    %25 = arith.addf %23, %24 : vector<4x128xf32>
    %cst_42 = arith.constant 0.000000e+00 : f32
    %26 = vector.broadcast %cst_42 : f32 to vector<4x128xf32>
    %27 = arith.maximumf %25, %26 : vector<4x128xf32>
    %28 = tpu.concatenate %11, %16, %21 in 1 : vector<4x128xbf16>, vector<4x128xbf16>, vector<4x128xbf16> -> vector<4x384xbf16>
    %cst_43 = arith.constant dense<0.000000e+00> : vector<4x128xf32>
    %29 = tpu.matmul %28, %0, %cst_43 {dimension_numbers = #tpu.dot_dimension_numbers<[1], [0], [0], [1], [0, 0, 1, 1], [], []>} : vector<4x384xbf16>, vector<384x128xbf16>, vector<4x128xf32> -> vector<4x128xf32>
    %30 = vector.broadcast %1 : vector<1x128xf32> to vector<4x128xf32>
    %31 = arith.addf %29, %30 : vector<4x128xf32>
    %cst_44 = arith.constant 0.000000e+00 : f32
    %32 = vector.broadcast %cst_44 : f32 to vector<4x128xf32>
    %33 = arith.maximumf %31, %32 : vector<4x128xf32>
    %34 = arith.maximumf %27, %33 : vector<4x128xf32>
    %35 = vector.extract_strided_slice %34 {offsets = [0, 0], sizes = [4, 64], strides = [1, 1]} : vector<4x128xf32> to vector<4x64xf32>
    %36 = vector.extract_strided_slice %34 {offsets = [0, 64], sizes = [4, 64], strides = [1, 1]} : vector<4x128xf32> to vector<4x64xf32>
    %37 = arith.maximumf %35, %36 : vector<4x64xf32>
    %38 = arith.truncf %37 : vector<4x64xf32> to vector<4x64xbf16>
    %c0_45 = arith.constant 0 : index
    %c0_46 = arith.constant 0 : index
    %c0_47 = arith.constant 0 : index
    %c0_48 = arith.constant 0 : index
    %39 = vector.load %arg6[%c0_45, %c0_46, %c0_47, %c0_48] : memref<1x4x4x64xbf16, #tpu.memory_space<vmem>>, vector<1x1x4x64xbf16>
    %40 = vector.shape_cast %39 : vector<1x1x4x64xbf16> to vector<4x64xbf16>
    %41 = vector.shape_cast %38 : vector<4x64xbf16> to vector<1x1x4x64xbf16>
    tpu.vector_store %arg6[%c0_45, %c0_46, %c0_47, %c0_48], %41 {strides = array<i32>} : memref<1x4x4x64xbf16, #tpu.memory_space<vmem>>, vector<1x1x4x64xbf16>,
    %c0_49 = arith.constant 0 : index
    %c2 = arith.constant 2 : index
    %c0_50 = arith.constant 0 : index
    %c0_51 = arith.constant 0 : index
    %c0_52 = arith.constant 0 : index
    %42 = vector.load %arg2[%c0_49, %c2, %c0_50, %c0_51, %c0_52] : memref<1x4x2x5x64xbf16, #tpu.memory_space<vmem>>, vector<1x1x1x4x64xbf16>
    %43 = vector.shape_cast %42 : vector<1x1x1x4x64xbf16> to vector<4x64xbf16>
    %c0_53 = arith.constant 0 : index
    %c2_54 = arith.constant 2 : index
    %c0_55 = arith.constant 0 : index
    %c1_56 = arith.constant 1 : index
    %c0_57 = arith.constant 0 : index
    %44 = vector.load %arg2[%c0_53, %c2_54, %c0_55, %c1_56, %c0_57] : memref<1x4x2x5x64xbf16, #tpu.memory_space<vmem>>, vector<1x1x1x4x64xbf16>
    %45 = vector.shape_cast %44 : vector<1x1x1x4x64xbf16> to vector<4x64xbf16>
    %46 = tpu.concatenate %43, %45 in 1 : vector<4x64xbf16>, vector<4x64xbf16> -> vector<4x128xbf16>
    %c0_58 = arith.constant 0 : index
    %c2_59 = arith.constant 2 : index
    %c1_60 = arith.constant 1 : index
    %c0_61 = arith.constant 0 : index
    %c0_62 = arith.constant 0 : index
    %47 = vector.load %arg2[%c0_58, %c2_59, %c1_60, %c0_61, %c0_62] : memref<1x4x2x5x64xbf16, #tpu.memory_space<vmem>>, vector<1x1x1x4x64xbf16>
    %48 = vector.shape_cast %47 : vector<1x1x1x4x64xbf16> to vector<4x64xbf16>
    %c0_63 = arith.constant 0 : index
    %c2_64 = arith.constant 2 : index
    %c1_65 = arith.constant 1 : index
    %c1_66 = arith.constant 1 : index
    %c0_67 = arith.constant 0 : index
    %49 = vector.load %arg2[%c0_63, %c2_64, %c1_65, %c1_66, %c0_67] : memref<1x4x2x5x64xbf16, #tpu.memory_space<vmem>>, vector<1x1x1x4x64xbf16>
    %50 = vector.shape_cast %49 : vector<1x1x1x4x64xbf16> to vector<4x64xbf16>
    %51 = tpu.concatenate %48, %50 in 1 : vector<4x64xbf16>, vector<4x64xbf16> -> vector<4x128xbf16>
    %52 = tpu.concatenate %16, %21, %46 in 1 : vector<4x128xbf16>, vector<4x128xbf16>, vector<4x128xbf16> -> vector<4x384xbf16>
    %cst_68 = arith.constant dense<0.000000e+00> : vector<4x128xf32>
    %53 = tpu.matmul %52, %0, %cst_68 {dimension_numbers = #tpu.dot_dimension_numbers<[1], [0], [0], [1], [0, 0, 1, 1], [], []>} : vector<4x384xbf16>, vector<384x128xbf16>, vector<4x128xf32> -> vector<4x128xf32>
    %54 = vector.broadcast %1 : vector<1x128xf32> to vector<4x128xf32>
    %55 = arith.addf %53, %54 : vector<4x128xf32>
    %cst_69 = arith.constant 0.000000e+00 : f32
    %56 = vector.broadcast %cst_69 : f32 to vector<4x128xf32>
    %57 = arith.maximumf %55, %56 : vector<4x128xf32>
    %58 = tpu.concatenate %21, %46, %51 in 1 : vector<4x128xbf16>, vector<4x128xbf16>, vector<4x128xbf16> -> vector<4x384xbf16>
    %cst_70 = arith.constant dense<0.000000e+00> : vector<4x128xf32>
    %59 = tpu.matmul %58, %0, %cst_70 {dimension_numbers = #tpu.dot_dimension_numbers<[1], [0], [0], [1], [0, 0, 1, 1], [], []>} : vector<4x384xbf16>, vector<384x128xbf16>, vector<4x128xf32> -> vector<4x128xf32>
    %60 = vector.broadcast %1 : vector<1x128xf32> to vector<4x128xf32>
    %61 = arith.addf %59, %60 : vector<4x128xf32>
    %cst_71 = arith.constant 0.000000e+00 : f32
    %62 = vector.broadcast %cst_71 : f32 to vector<4x128xf32>
    %63 = arith.maximumf %61, %62 : vector<4x128xf32>
    %64 = arith.maximumf %57, %63 : vector<4x128xf32>
    %65 = vector.extract_strided_slice %64 {offsets = [0, 0], sizes = [4, 64], strides = [1, 1]} : vector<4x128xf32> to vector<4x64xf32>
    %66 = vector.extract_strided_slice %64 {offsets = [0, 64], sizes = [4, 64], strides = [1, 1]} : vector<4x128xf32> to vector<4x64xf32>
    %67 = arith.maximumf %65, %66 : vector<4x64xf32>
    %68 = arith.truncf %67 : vector<4x64xf32> to vector<4x64xbf16>
    %c0_72 = arith.constant 0 : index
    %c1_73 = arith.constant 1 : index
    %c0_74 = arith.constant 0 : index
    %c0_75 = arith.constant 0 : index
    %69 = vector.load %arg6[%c0_72, %c1_73, %c0_74, %c0_75] : memref<1x4x4x64xbf16, #tpu.memory_space<vmem>>, vector<1x1x4x64xbf16>
    %70 = vector.shape_cast %69 : vector<1x1x4x64xbf16> to vector<4x64xbf16>
    %71 = vector.shape_cast %68 : vector<4x64xbf16> to vector<1x1x4x64xbf16>
    tpu.vector_store %arg6[%c0_72, %c1_73, %c0_74, %c0_75], %71 {strides = array<i32>} : memref<1x4x4x64xbf16, #tpu.memory_space<vmem>>, vector<1x1x4x64xbf16>,
    %c0_76 = arith.constant 0 : index
    %c3 = arith.constant 3 : index
    %c0_77 = arith.constant 0 : index
    %c0_78 = arith.constant 0 : index
    %c0_79 = arith.constant 0 : index
    %72 = vector.load %arg2[%c0_76, %c3, %c0_77, %c0_78, %c0_79] : memref<1x4x2x5x64xbf16, #tpu.memory_space<vmem>>, vector<1x1x1x4x64xbf16>
    %73 = vector.shape_cast %72 : vector<1x1x1x4x64xbf16> to vector<4x64xbf16>
    %c0_80 = arith.constant 0 : index
    %c3_81 = arith.constant 3 : index
    %c0_82 = arith.constant 0 : index
    %c1_83 = arith.constant 1 : index
    %c0_84 = arith.constant 0 : index
    %74 = vector.load %arg2[%c0_80, %c3_81, %c0_82, %c1_83, %c0_84] : memref<1x4x2x5x64xbf16, #tpu.memory_space<vmem>>, vector<1x1x1x4x64xbf16>
    %75 = vector.shape_cast %74 : vector<1x1x1x4x64xbf16> to vector<4x64xbf16>
    %76 = tpu.concatenate %73, %75 in 1 : vector<4x64xbf16>, vector<4x64xbf16> -> vector<4x128xbf16>
    %c0_85 = arith.constant 0 : index
    %c3_86 = arith.constant 3 : index
    %c1_87 = arith.constant 1 : index
    %c0_88 = arith.constant 0 : index
    %c0_89 = arith.constant 0 : index
    %77 = vector.load %arg2[%c0_85, %c3_86, %c1_87, %c0_88, %c0_89] : memref<1x4x2x5x64xbf16, #tpu.memory_space<vmem>>, vector<1x1x1x4x64xbf16>
    %78 = vector.shape_cast %77 : vector<1x1x1x4x64xbf16> to vector<4x64xbf16>
    %c0_90 = arith.constant 0 : index
    %c3_91 = arith.constant 3 : index
    %c1_92 = arith.constant 1 : index
    %c1_93 = arith.constant 1 : index
    %c0_94 = arith.constant 0 : index
    %79 = vector.load %arg2[%c0_90, %c3_91, %c1_92, %c1_93, %c0_94] : memref<1x4x2x5x64xbf16, #tpu.memory_space<vmem>>, vector<1x1x1x4x64xbf16>
    %80 = vector.shape_cast %79 : vector<1x1x1x4x64xbf16> to vector<4x64xbf16>
    %81 = tpu.concatenate %78, %80 in 1 : vector<4x64xbf16>, vector<4x64xbf16> -> vector<4x128xbf16>
    %82 = tpu.concatenate %46, %51, %76 in 1 : vector<4x128xbf16>, vector<4x128xbf16>, vector<4x128xbf16> -> vector<4x384xbf16>
    %cst_95 = arith.constant dense<0.000000e+00> : vector<4x128xf32>
    %83 = tpu.matmul %82, %0, %cst_95 {dimension_numbers = #tpu.dot_dimension_numbers<[1], [0], [0], [1], [0, 0, 1, 1], [], []>} : vector<4x384xbf16>, vector<384x128xbf16>, vector<4x128xf32> -> vector<4x128xf32>
    %84 = vector.broadcast %1 : vector<1x128xf32> to vector<4x128xf32>
    %85 = arith.addf %83, %84 : vector<4x128xf32>
    %cst_96 = arith.constant 0.000000e+00 : f32
    %86 = vector.broadcast %cst_96 : f32 to vector<4x128xf32>
    %87 = arith.maximumf %85, %86 : vector<4x128xf32>
    %88 = tpu.concatenate %51, %76, %81 in 1 : vector<4x128xbf16>, vector<4x128xbf16>, vector<4x128xbf16> -> vector<4x384xbf16>
    %cst_97 = arith.constant dense<0.000000e+00> : vector<4x128xf32>
    %89 = tpu.matmul %88, %0, %cst_97 {dimension_numbers = #tpu.dot_dimension_numbers<[1], [0], [0], [1], [0, 0, 1, 1], [], []>} : vector<4x384xbf16>, vector<384x128xbf16>, vector<4x128xf32> -> vector<4x128xf32>
    %90 = vector.broadcast %1 : vector<1x128xf32> to vector<4x128xf32>
    %91 = arith.addf %89, %90 : vector<4x128xf32>
    %cst_98 = arith.constant 0.000000e+00 : f32
    %92 = vector.broadcast %cst_98 : f32 to vector<4x128xf32>
    %93 = arith.maximumf %91, %92 : vector<4x128xf32>
    %94 = arith.maximumf %87, %93 : vector<4x128xf32>
    %95 = vector.extract_strided_slice %94 {offsets = [0, 0], sizes = [4, 64], strides = [1, 1]} : vector<4x128xf32> to vector<4x64xf32>
    %96 = vector.extract_strided_slice %94 {offsets = [0, 64], sizes = [4, 64], strides = [1, 1]} : vector<4x128xf32> to vector<4x64xf32>
    %97 = arith.maximumf %95, %96 : vector<4x64xf32>
    %98 = arith.truncf %97 : vector<4x64xf32> to vector<4x64xbf16>
    %c0_99 = arith.constant 0 : index
    %c2_100 = arith.constant 2 : index
    %c0_101 = arith.constant 0 : index
    %c0_102 = arith.constant 0 : index
    %99 = vector.load %arg6[%c0_99, %c2_100, %c0_101, %c0_102] : memref<1x4x4x64xbf16, #tpu.memory_space<vmem>>, vector<1x1x4x64xbf16>
    %100 = vector.shape_cast %99 : vector<1x1x4x64xbf16> to vector<4x64xbf16>
    %101 = vector.shape_cast %98 : vector<4x64xbf16> to vector<1x1x4x64xbf16>
    tpu.vector_store %arg6[%c0_99, %c2_100, %c0_101, %c0_102], %101 {strides = array<i32>} : memref<1x4x4x64xbf16, #tpu.memory_space<vmem>>, vector<1x1x4x64xbf16>,
    %c0_103 = arith.constant 0 : index
    %c0_104 = arith.constant 0 : index
    %c0_105 = arith.constant 0 : index
    %c0_106 = arith.constant 0 : index
    %c0_107 = arith.constant 0 : index
    %102 = vector.load %arg3[%c0_103, %c0_104, %c0_105, %c0_106, %c0_107] : memref<1x1x2x5x64xbf16, #tpu.memory_space<vmem>>, vector<1x1x1x4x64xbf16>
    %103 = vector.shape_cast %102 : vector<1x1x1x4x64xbf16> to vector<4x64xbf16>
    %c0_108 = arith.constant 0 : index
    %c0_109 = arith.constant 0 : index
    %c0_110 = arith.constant 0 : index
    %c1_111 = arith.constant 1 : index
    %c0_112 = arith.constant 0 : index
    %104 = vector.load %arg3[%c0_108, %c0_109, %c0_110, %c1_111, %c0_112] : memref<1x1x2x5x64xbf16, #tpu.memory_space<vmem>>, vector<1x1x1x4x64xbf16>
    %105 = vector.shape_cast %104 : vector<1x1x1x4x64xbf16> to vector<4x64xbf16>
    %106 = tpu.concatenate %103, %105 in 1 : vector<4x64xbf16>, vector<4x64xbf16> -> vector<4x128xbf16>
    %c0_113 = arith.constant 0 : index
    %c0_114 = arith.constant 0 : index
    %c1_115 = arith.constant 1 : index
    %c0_116 = arith.constant 0 : index
    %c0_117 = arith.constant 0 : index
    %107 = vector.load %arg3[%c0_113, %c0_114, %c1_115, %c0_116, %c0_117] : memref<1x1x2x5x64xbf16, #tpu.memory_space<vmem>>, vector<1x1x1x4x64xbf16>
    %108 = vector.shape_cast %107 : vector<1x1x1x4x64xbf16> to vector<4x64xbf16>
    %c0_118 = arith.constant 0 : index
    %c0_119 = arith.constant 0 : index
    %c1_120 = arith.constant 1 : index
    %c1_121 = arith.constant 1 : index
    %c0_122 = arith.constant 0 : index
    %109 = vector.load %arg3[%c0_118, %c0_119, %c1_120, %c1_121, %c0_122] : memref<1x1x2x5x64xbf16, #tpu.memory_space<vmem>>, vector<1x1x1x4x64xbf16>
    %110 = vector.shape_cast %109 : vector<1x1x1x4x64xbf16> to vector<4x64xbf16>
    %111 = tpu.concatenate %108, %110 in 1 : vector<4x64xbf16>, vector<4x64xbf16> -> vector<4x128xbf16>
    %112 = tpu.concatenate %76, %81, %106 in 1 : vector<4x128xbf16>, vector<4x128xbf16>, vector<4x128xbf16> -> vector<4x384xbf16>
    %cst_123 = arith.constant dense<0.000000e+00> : vector<4x128xf32>
    %113 = tpu.matmul %112, %0, %cst_123 {dimension_numbers = #tpu.dot_dimension_numbers<[1], [0], [0], [1], [0, 0, 1, 1], [], []>} : vector<4x384xbf16>, vector<384x128xbf16>, vector<4x128xf32> -> vector<4x128xf32>
    %114 = vector.broadcast %1 : vector<1x128xf32> to vector<4x128xf32>
    %115 = arith.addf %113, %114 : vector<4x128xf32>
    %cst_124 = arith.constant 0.000000e+00 : f32
    %116 = vector.broadcast %cst_124 : f32 to vector<4x128xf32>
    %117 = arith.maximumf %115, %116 : vector<4x128xf32>
    %118 = tpu.concatenate %81, %106, %111 in 1 : vector<4x128xbf16>, vector<4x128xbf16>, vector<4x128xbf16> -> vector<4x384xbf16>
    %cst_125 = arith.constant dense<0.000000e+00> : vector<4x128xf32>
    %119 = tpu.matmul %118, %0, %cst_125 {dimension_numbers = #tpu.dot_dimension_numbers<[1], [0], [0], [1], [0, 0, 1, 1], [], []>} : vector<4x384xbf16>, vector<384x128xbf16>, vector<4x128xf32> -> vector<4x128xf32>
    %120 = vector.broadcast %1 : vector<1x128xf32> to vector<4x128xf32>
    %121 = arith.addf %119, %120 : vector<4x128xf32>
    %cst_126 = arith.constant 0.000000e+00 : f32
    %122 = vector.broadcast %cst_126 : f32 to vector<4x128xf32>
    %123 = arith.maximumf %121, %122 : vector<4x128xf32>
    %124 = arith.maximumf %117, %123 : vector<4x128xf32>
    %125 = vector.extract_strided_slice %124 {offsets = [0, 0], sizes = [4, 64], strides = [1, 1]} : vector<4x128xf32> to vector<4x64xf32>
    %126 = vector.extract_strided_slice %124 {offsets = [0, 64], sizes = [4, 64], strides = [1, 1]} : vector<4x128xf32> to vector<4x64xf32>
    %127 = arith.maximumf %125, %126 : vector<4x64xf32>
    %128 = arith.truncf %127 : vector<4x64xf32> to vector<4x64xbf16>
    %c0_127 = arith.constant 0 : index
    %c3_128 = arith.constant 3 : index
    %c0_129 = arith.constant 0 : index
    %c0_130 = arith.constant 0 : index
    %129 = vector.load %arg6[%c0_127, %c3_128, %c0_129, %c0_130] : memref<1x4x4x64xbf16, #tpu.memory_space<vmem>>, vector<1x1x4x64xbf16>
    %130 = vector.shape_cast %129 : vector<1x1x4x64xbf16> to vector<4x64xbf16>
    %131 = vector.shape_cast %128 : vector<4x64xbf16> to vector<1x1x4x64xbf16>
    tpu.vector_store %arg6[%c0_127, %c3_128, %c0_129, %c0_130], %131 {strides = array<i32>} : memref<1x4x4x64xbf16, #tpu.memory_space<vmem>>, vector<1x1x4x64xbf16>,
    return
  }
  func.func @transform_0(%arg0: i32, %arg1: i32) -> (i32, i32, i32, i32, i32) {
    %c0_i32 = arith.constant 0 : i32
    %c0_i32_0 = arith.constant 0 : i32
    %c0_i32_1 = arith.constant 0 : i32
    %c0_i32_2 = arith.constant 0 : i32
    return %arg0, %arg1, %c0_i32, %c0_i32_0, %c0_i32_1 : i32, i32, i32, i32, i32
  }
  func.func @transform_1(%arg0: i32, %arg1: i32) -> (i32, i32, i32, i32, i32) {
    %c1_i32 = arith.constant 1 : i32
    %0 = arith.addi %arg1, %c1_i32 : i32
    %c4_i32 = arith.constant 4 : i32
    %1 = arith.muli %0, %c4_i32 : i32
    %c0_i32 = arith.constant 0 : i32
    %c0_i32_0 = arith.constant 0 : i32
    %c0_i32_1 = arith.constant 0 : i32
    %c0_i32_2 = arith.constant 0 : i32
    return %arg0, %1, %c0_i32, %c0_i32_0, %c0_i32_1 : i32, i32, i32, i32, i32
  }
  func.func @transform_2(%arg0: i32, %arg1: i32) -> (i32, i32) {
    %c0_i32 = arith.constant 0 : i32
    %c0_i32_0 = arith.constant 0 : i32
    %c0_i32_1 = arith.constant 0 : i32
    return %c0_i32, %c0_i32_0 : i32, i32
  }
  func.func @transform_3(%arg0: i32, %arg1: i32) -> (i32, i32) {
    %c0_i32 = arith.constant 0 : i32
    %c0_i32_0 = arith.constant 0 : i32
    %c0_i32_1 = arith.constant 0 : i32
    return %c0_i32, %c0_i32_0 : i32, i32
  }
  func.func @transform_4(%arg0: i32, %arg1: i32) -> (i32, i32, i32, i32) {
    %c0_i32 = arith.constant 0 : i32
    %c0_i32_0 = arith.constant 0 : i32
    %c0_i32_1 = arith.constant 0 : i32
    return %arg0, %arg1, %c0_i32, %c0_i32_0 : i32, i32, i32, i32
  }
}

module attributes {stable_mosaic.version = 11 : i64} {
  func.func @_fc1_heads_kernel(%arg0: i32, %arg1: memref<2x512xbf16, #tpu.memory_space<vmem>>, %arg2: memref<2x512xbf16, #tpu.memory_space<vmem>>, %arg3: memref<512x128xbf16, #tpu.memory_space<vmem>>, %arg4: memref<1x64xf32, #tpu.memory_space<vmem>>, %arg5: memref<64x2xf32, #tpu.memory_space<vmem>>, %arg6: memref<1x2xf32, #tpu.memory_space<vmem>>, %arg7: memref<2x2xf32, #tpu.memory_space<vmem>>, %arg8: memref<2x128xf32, #tpu.memory_space<vmem>>, %arg9: memref<2x128xf32, #tpu.memory_space<vmem>>) attributes {dimension_semantics = [#tpu.dimension_semantics<arbitrary>], iteration_bounds = array<i64: 1>, scalar_prefetch = 0 : i64, scratch_operands = 2 : i64, tpu.core_type = #tpu.core_type<tc>, window_params = [{transform_indices = @transform_0, window_bounds = array<i64: 2, 512>}, {transform_indices = @transform_1, window_bounds = array<i64: 2, 512>}, {transform_indices = @transform_2, window_bounds = array<i64: 512, 128>}, {pipeline_mode = #tpu.pipeline_mode<synchronous>, transform_indices = @transform_3, window_bounds = array<i64: 1, 64>}, {pipeline_mode = #tpu.pipeline_mode<synchronous>, transform_indices = @transform_4, window_bounds = array<i64: 64, 2>}, {pipeline_mode = #tpu.pipeline_mode<synchronous>, transform_indices = @transform_5, window_bounds = array<i64: 1, 2>}, {pipeline_mode = #tpu.pipeline_mode<synchronous>, transform_indices = @transform_6, window_bounds = array<i64: 2, 2>}]} {
    %c0_i32 = arith.constant 0 : i32
    %0 = arith.cmpi eq, %arg0, %c0_i32 : i32
    %1 = arith.extui %0 : i1 to i32
    %c0_i32_0 = arith.constant 0 : i32
    %2 = arith.cmpi ne, %1, %c0_i32_0 : i32
    scf.if %2 {
      %cst_17 = arith.constant 0.000000e+00 : f32
      %17 = vector.broadcast %cst_17 : f32 to vector<2x128xf32>
      %c0_18 = arith.constant 0 : index
      %c0_19 = arith.constant 0 : index
      %18 = vector.load %arg8[%c0_18, %c0_19] : memref<2x128xf32, #tpu.memory_space<vmem>>, vector<2x128xf32>
      tpu.vector_store %arg8[%c0_18, %c0_19], %17 {strides = array<i32>} : memref<2x128xf32, #tpu.memory_space<vmem>>, vector<2x128xf32>,
      %cst_20 = arith.constant 0.000000e+00 : f32
      %19 = vector.broadcast %cst_20 : f32 to vector<2x128xf32>
      %c0_21 = arith.constant 0 : index
      %c0_22 = arith.constant 0 : index
      %20 = vector.load %arg9[%c0_21, %c0_22] : memref<2x128xf32, #tpu.memory_space<vmem>>, vector<2x128xf32>
      tpu.vector_store %arg9[%c0_21, %c0_22], %19 {strides = array<i32>} : memref<2x128xf32, #tpu.memory_space<vmem>>, vector<2x128xf32>,
    } else {
    }
    %c0 = arith.constant 0 : index
    %c0_1 = arith.constant 0 : index
    %3 = vector.load %arg3[%c0, %c0_1] : memref<512x128xbf16, #tpu.memory_space<vmem>>, vector<512x128xbf16>
    %c0_2 = arith.constant 0 : index
    %c0_3 = arith.constant 0 : index
    %4 = vector.load %arg8[%c0_2, %c0_3] : memref<2x128xf32, #tpu.memory_space<vmem>>, vector<2x128xf32>
    %c0_4 = arith.constant 0 : index
    %c0_5 = arith.constant 0 : index
    %5 = vector.load %arg1[%c0_4, %c0_5] : memref<2x512xbf16, #tpu.memory_space<vmem>>, vector<2x512xbf16>
    %cst = arith.constant dense<0.000000e+00> : vector<2x128xf32>
    %6 = tpu.matmul %5, %3, %cst {dimension_numbers = #tpu.dot_dimension_numbers<[1], [0], [0], [1], [0, 0, 1, 1], [], []>} : vector<2x512xbf16>, vector<512x128xbf16>, vector<2x128xf32> -> vector<2x128xf32>
    %7 = arith.addf %4, %6 : vector<2x128xf32>
    %c0_6 = arith.constant 0 : index
    %c0_7 = arith.constant 0 : index
    %8 = vector.load %arg8[%c0_6, %c0_7] : memref<2x128xf32, #tpu.memory_space<vmem>>, vector<2x128xf32>
    tpu.vector_store %arg8[%c0_6, %c0_7], %7 {strides = array<i32>} : memref<2x128xf32, #tpu.memory_space<vmem>>, vector<2x128xf32>,
    %c0_8 = arith.constant 0 : index
    %c0_9 = arith.constant 0 : index
    %9 = vector.load %arg9[%c0_8, %c0_9] : memref<2x128xf32, #tpu.memory_space<vmem>>, vector<2x128xf32>
    %c0_10 = arith.constant 0 : index
    %c0_11 = arith.constant 0 : index
    %10 = vector.load %arg2[%c0_10, %c0_11] : memref<2x512xbf16, #tpu.memory_space<vmem>>, vector<2x512xbf16>
    %cst_12 = arith.constant dense<0.000000e+00> : vector<2x128xf32>
    %11 = tpu.matmul %10, %3, %cst_12 {dimension_numbers = #tpu.dot_dimension_numbers<[1], [0], [0], [1], [0, 0, 1, 1], [], []>} : vector<2x512xbf16>, vector<512x128xbf16>, vector<2x128xf32> -> vector<2x128xf32>
    %12 = arith.addf %9, %11 : vector<2x128xf32>
    %c0_13 = arith.constant 0 : index
    %c0_14 = arith.constant 0 : index
    %13 = vector.load %arg9[%c0_13, %c0_14] : memref<2x128xf32, #tpu.memory_space<vmem>>, vector<2x128xf32>
    tpu.vector_store %arg9[%c0_13, %c0_14], %12 {strides = array<i32>} : memref<2x128xf32, #tpu.memory_space<vmem>>, vector<2x128xf32>,
    %c0_i32_15 = arith.constant 0 : i32
    %14 = arith.cmpi eq, %arg0, %c0_i32_15 : i32
    %15 = arith.extui %14 : i1 to i32
    %c0_i32_16 = arith.constant 0 : i32
    %16 = arith.cmpi ne, %15, %c0_i32_16 : i32
    scf.if %16 {
      %c0_17 = arith.constant 0 : index
      %c0_18 = arith.constant 0 : index
      %17 = vector.load %arg8[%c0_17, %c0_18] : memref<2x128xf32, #tpu.memory_space<vmem>>, vector<2x64xf32>
      %c0_19 = arith.constant 0 : index
      %c64 = arith.constant 64 : index
      %18 = vector.load %arg9[%c0_19, %c64] : memref<2x128xf32, #tpu.memory_space<vmem>>, vector<2x64xf32>
      %19 = arith.addf %17, %18 : vector<2x64xf32>
      %c0_20 = arith.constant 0 : index
      %c0_21 = arith.constant 0 : index
      %20 = vector.load %arg4[%c0_20, %c0_21] : memref<1x64xf32, #tpu.memory_space<vmem>>, vector<1x64xf32>
      %21 = vector.broadcast %20 : vector<1x64xf32> to vector<2x64xf32>
      %22 = arith.addf %19, %21 : vector<2x64xf32>
      %cst_22 = arith.constant 0.000000e+00 : f32
      %23 = vector.broadcast %cst_22 : f32 to vector<2x64xf32>
      %24 = arith.maximumf %22, %23 : vector<2x64xf32>
      %c0_23 = arith.constant 0 : index
      %c0_24 = arith.constant 0 : index
      %25 = vector.load %arg5[%c0_23, %c0_24] : memref<64x2xf32, #tpu.memory_space<vmem>>, vector<64x2xf32>
      %cst_25 = arith.constant dense<0.000000e+00> : vector<2x2xf32>
      %26 = tpu.matmul %24, %25, %cst_25 {dimension_numbers = #tpu.dot_dimension_numbers<[1], [0], [0], [1], [0, 0, 1, 1], [], []>} : vector<2x64xf32>, vector<64x2xf32>, vector<2x2xf32> -> vector<2x2xf32>
      %c0_26 = arith.constant 0 : index
      %c0_27 = arith.constant 0 : index
      %27 = vector.load %arg6[%c0_26, %c0_27] : memref<1x2xf32, #tpu.memory_space<vmem>>, vector<1x2xf32>
      %28 = vector.broadcast %27 : vector<1x2xf32> to vector<2x2xf32>
      %29 = arith.addf %26, %28 : vector<2x2xf32>
      %c0_28 = arith.constant 0 : index
      %c0_29 = arith.constant 0 : index
      %30 = vector.load %arg7[%c0_28, %c0_29] : memref<2x2xf32, #tpu.memory_space<vmem>>, vector<2x2xf32>
      tpu.vector_store %arg7[%c0_28, %c0_29], %29 {strides = array<i32>} : memref<2x2xf32, #tpu.memory_space<vmem>>, vector<2x2xf32>,
    } else {
    }
    return
  }
  func.func @transform_0(%arg0: i32) -> (i32, i32) {
    %c0_i32 = arith.constant 0 : i32
    %c0_i32_0 = arith.constant 0 : i32
    return %c0_i32, %arg0 : i32, i32
  }
  func.func @transform_1(%arg0: i32) -> (i32, i32) {
    %c1_i32 = arith.constant 1 : i32
    %0 = arith.addi %arg0, %c1_i32 : i32
    %c0_i32 = arith.constant 0 : i32
    %c0_i32_0 = arith.constant 0 : i32
    return %c0_i32, %0 : i32, i32
  }
  func.func @transform_2(%arg0: i32) -> (i32, i32) {
    %c0_i32 = arith.constant 0 : i32
    %c0_i32_0 = arith.constant 0 : i32
    return %arg0, %c0_i32 : i32, i32
  }
  func.func @transform_3(%arg0: i32) -> (i32, i32) {
    %c0_i32 = arith.constant 0 : i32
    %c0_i32_0 = arith.constant 0 : i32
    %c0_i32_1 = arith.constant 0 : i32
    return %c0_i32, %c0_i32_0 : i32, i32
  }
  func.func @transform_4(%arg0: i32) -> (i32, i32) {
    %c0_i32 = arith.constant 0 : i32
    %c0_i32_0 = arith.constant 0 : i32
    %c0_i32_1 = arith.constant 0 : i32
    return %c0_i32, %c0_i32_0 : i32, i32
  }
  func.func @transform_5(%arg0: i32) -> (i32, i32) {
    %c0_i32 = arith.constant 0 : i32
    %c0_i32_0 = arith.constant 0 : i32
    %c0_i32_1 = arith.constant 0 : i32
    return %c0_i32, %c0_i32_0 : i32, i32
  }
  func.func @transform_6(%arg0: i32) -> (i32, i32) {
    %c0_i32 = arith.constant 0 : i32
    %c0_i32_0 = arith.constant 0 : i32
    %c0_i32_1 = arith.constant 0 : i32
    return %c0_i32, %c0_i32_0 : i32, i32
  }
}

</mosaic_0001>

<llo_original>
// kernel: cnn_backbone_forward.3
$region0: #{cnn_backbone_forward.3}
  #allocation0 [shape = 'u32[]', space=smem, size = 0x4, offset = 0x4, fixed_abs, tag = 'smem constant byte address 0x4 - core index']
  #allocation1 [shape = 'u32[144,128]{1,0:T(1,128)}', space=vmem, size = 0x12000, scoped, tag = 'internal scratch']
  %s0 = inlined_call_operand.vmem [shape: bf16[2,9,2,2,32], index: 0, kind: input, shape index: {}, may-alias: {0,1}]
  %s1 = inlined_call_operand.vmem [shape: bf16[2,9,2,2,32], index: 1, kind: input, shape index: {}, may-alias: {0,1}]
  %s2 = inlined_call_operand.vmem [shape: bf16[192,512], index: 2, kind: input, shape index: {}]
  %s3 = inlined_call_operand.vmem [shape: f32[1,512], index: 3, kind: input, shape index: {}]
  %s4 = inlined_call_operand.vmem [shape: bf16[2,8,1,256], index: 4, kind: output, shape index: {}]
  %s5 = sld [smem:[#allocation0]]
  $region49: #{cnn_backbone_forward.3} parent=0
    _
  %s7 = ssub.s32 1, %s5
  %s8 = scalar_select 0, %s7, %s5
  loop: start=0, step=1, limit=4
  $region2: #{cnn_backbone_forward.3} parent=0 // loop_pre_header
    _
  $region3: #{cnn_backbone_forward.3} parent=0 // loop_header
    %s10 = sphi 0, %s14
    %p11 = scmp.ge.s32.totalorder %s10, 4
    %s17 = sphi 0, %s29
    %s18 = sphi 0, %s25
    %s19 = sphi 0, %s17
    %s20 = sphi 0, %s18
    %s21 = sphi 0, %s19
    %s22 = sphi 0, %s20
    %s34 = sphi 0, %s36
    %s37 = sphi 0, %s34
    %s38 = sphi 0, %s37
    %s54 = sphi 0, %s38
    %s66 = sphi 0, %s68
    %s69 = sphi 0, %s66
    %s70 = sphi 0, %s69
    %s86 = sphi 0, %s70
    %s90 = sphi 0, %s90
    %s92 = sphi 0, %s90
    %s93 = sphi 0, %s92
    %s107 = sphi 0, %s93
    %s111 = sphi 0, %s111
    %s113 = sphi 0, %s111
    %s114 = sphi 0, %s113
    %s128 = sphi 0, %s114
    %s136 = sphi 0, %s138
    %s139 = sphi 0, %s136
    %s140 = sphi 0, %s139
    %s156 = sphi 0, %s140
  $region4: #{cnn_backbone_forward.3} parent=0 // loop_header_branch
    %13 = sbr.rel (%p11) target = $region8
  $region5: #{cnn_backbone_forward.3} parent=0 // loop_body
    %s15 = ssub.s32 %s10, 1
    %s16 = ssub.s32 %s10, 2
    %s23 = sadd.s32 1, %s18
    %p24 = scmp.ge.s32.totalorder %s23, 1
    %s25 = scalar_select %p24, 0, %s23
    %s26 = sadd.s32 1, %s17
    %s27 = scalar_select %p24, %s26, %s17
    %p28 = scmp.ge.s32.totalorder %s27, 2
    %s29 = scalar_select %p28, 0, %s27
    %s30 = ssub.s32 %s17, %s29
    %s31 = ssub.s32 %s18, %s25
    %s32 = sor.u32 %s30, %s31
    %p33 = scmp.eq.s32.totalorder %s32, 0
    %s35 = sadd.s32 %s34, 1
    %s36 = scalar_select %p33, %s34, %s35
    %p39 = pneg %p33
    %p40 = scmp.eq.s32.totalorder %s10, 1
    %p41 = por %p39, %p40
    %p42 = scmp.ne.s32.totalorder %s34, %s37
    %p43 = scmp.eq.s32.totalorder %s10, 0
    %p44 = por %p42, %p43
    %p45 = scmp.ne.s32.totalorder %s34, %s37
    %p46 = scmp.eq.s32.totalorder %s15, 1
    %p47 = por %p45, %p46
    %p48 = scmp.ne.s32.totalorder %s37, %s38
    %p49 = scmp.eq.s32.totalorder %s15, 0
    %p50 = por %p48, %p49
    %p51 = scmp.ne.s32.totalorder %s37, %s38
    %p52 = scmp.eq.s32.totalorder %s16, 1
    %p53 = por %p51, %p52
    %p55 = scmp.ne.s32.totalorder %s38, %s54
    %p56 = scmp.eq.s32.totalorder %s16, 0
    %p57 = por %p55, %p56
    %s58 = sadd.s32 %s18, 1
    %s59 = smul.u32 %s58, 8
    %s60 = sadd.s32 %s25, 1
    %s61 = smul.u32 %s60, 8
    %s62 = ssub.s32 %s17, %s29
    %s63 = ssub.s32 %s59, %s61
    %s64 = sor.u32 %s62, %s63
    %p65 = scmp.eq.s32.totalorder %s64, 0
    %s67 = sadd.s32 %s66, 1
    %s68 = scalar_select %p65, %s66, %s67
    %p71 = pneg %p65
    %p72 = scmp.eq.s32.totalorder %s10, 1
    %p73 = por %p71, %p72
    %p74 = scmp.ne.s32.totalorder %s66, %s69
    %p75 = scmp.eq.s32.totalorder %s10, 0
    %p76 = por %p74, %p75
    %p77 = scmp.ne.s32.totalorder %s66, %s69
    %p78 = scmp.eq.s32.totalorder %s15, 1
    %p79 = por %p77, %p78
    %p80 = scmp.ne.s32.totalorder %s69, %s70
    %p81 = scmp.eq.s32.totalorder %s15, 0
    %p82 = por %p80, %p81
    %p83 = scmp.ne.s32.totalorder %s69, %s70
    %p84 = scmp.eq.s32.totalorder %s16, 1
    %p85 = por %p83, %p84
    %p87 = scmp.ne.s32.totalorder %s70, %s86
    %p88 = scmp.eq.s32.totalorder %s16, 0
    %p89 = por %p87, %p88
    %s91 = sadd.s32 %s90, 1
    %p94 = scmp.eq.s32.totalorder %s10, 1
    %p95 = scmp.ne.s32.totalorder %s90, %s92
    %p96 = scmp.eq.s32.totalorder %s10, 0
    %p97 = por %p95, %p96
    %p98 = scmp.ne.s32.totalorder %s90, %s92
    %p99 = scmp.eq.s32.totalorder %s15, 1
    %p100 = por %p98, %p99
    %p101 = scmp.ne.s32.totalorder %s92, %s93
    %p102 = scmp.eq.s32.totalorder %s15, 0
    %p103 = por %p101, %p102
    %p104 = scmp.ne.s32.totalorder %s92, %s93
    %p105 = scmp.eq.s32.totalorder %s16, 1
    %p106 = por %p104, %p105
    %p108 = scmp.ne.s32.totalorder %s93, %s107
    %p109 = scmp.eq.s32.totalorder %s16, 0
    %p110 = por %p108, %p109
    %s112 = sadd.s32 %s111, 1
    %p115 = scmp.eq.s32.totalorder %s10, 1
    %p116 = scmp.ne.s32.totalorder %s111, %s113
    %p117 = scmp.eq.s32.totalorder %s10, 0
    %p118 = por %p116, %p117
    %p119 = scmp.ne.s32.totalorder %s111, %s113
    %p120 = scmp.eq.s32.totalorder %s15, 1
    %p121 = por %p119, %p120
    %p122 = scmp.ne.s32.totalorder %s113, %s114
    %p123 = scmp.eq.s32.totalorder %s15, 0
    %p124 = por %p122, %p123
    %p125 = scmp.ne.s32.totalorder %s113, %s114
    %p126 = scmp.eq.s32.totalorder %s16, 1
    %p127 = por %p125, %p126
    %p129 = scmp.ne.s32.totalorder %s114, %s128
    %p130 = scmp.eq.s32.totalorder %s16, 0
    %p131 = por %p129, %p130
    %s132 = ssub.s32 %s17, %s29
    %s133 = ssub.s32 %s18, %s25
    %s134 = sor.u32 %s132, %s133
    %p135 = scmp.eq.s32.totalorder %s134, 0
    %s137 = sadd.s32 %s136, 1
    %s138 = scalar_select %p135, %s136, %s137
    %p141 = pneg %p135
    %p142 = scmp.eq.s32.totalorder %s10, 1
    %p143 = por %p141, %p142
    %p144 = scmp.ne.s32.totalorder %s136, %s139
    %p145 = scmp.eq.s32.totalorder %s10, 0
    %p146 = por %p144, %p145
    %p147 = scmp.ne.s32.totalorder %s136, %s139
    %p148 = scmp.eq.s32.totalorder %s15, 1
    %p149 = por %p147, %p148
    %p150 = scmp.ne.s32.totalorder %s139, %s140
    %p151 = scmp.eq.s32.totalorder %s15, 0
    %p152 = por %p150, %p151
    %p153 = scmp.ne.s32.totalorder %s139, %s140
    %p154 = scmp.eq.s32.totalorder %s16, 1
    %p155 = por %p153, %p154
    %p157 = scmp.ne.s32.totalorder %s140, %s156
    %p158 = scmp.eq.s32.totalorder %s16, 0
    %p159 = por %p157, %p158
    %p160 = scmp.le.s32.totalorder 1, %s10
    %p161 = scmp.lt.s32.totalorder %s10, 3
    %p162 = pnand %p160, %p161
    %p163 = pneg %p162
    // Predicated region
    $region9: #{cnn_backbone_forward.3} parent=5 // pred_check
      _
    $region10: #{cnn_backbone_forward.3} parent=5 // pred_check_branch
      %165 = sbr.rel (%p162) target = $region12
    $region11: #{cnn_backbone_forward.3} parent=5 // pred_region
      %s166 = ssub.s32 %s10, 1
      // Predicated region
      $region13: #{cnn_backbone_forward.3} parent=11 // pred_check
        %p167 = pneg %p103
      $region14: #{cnn_backbone_forward.3} parent=11 // pred_check_branch
        %169 = sbr.rel (%p167) target = $region16
      $region15: #{cnn_backbone_forward.3} parent=11 // pred_region
        _
      $region16: #{cnn_backbone_forward.3} parent=11 // pred_fallthru
        _
      // Predicated region
      $region17: #{cnn_backbone_forward.3} parent=11 // pred_check
        %p170 = pneg %p124
      $region18: #{cnn_backbone_forward.3} parent=11 // pred_check_branch
        %172 = sbr.rel (%p170) target = $region20
      $region19: #{cnn_backbone_forward.3} parent=11 // pred_region
        _
      $region20: #{cnn_backbone_forward.3} parent=11 // pred_fallthru
        _
    $region12: #{cnn_backbone_forward.3} parent=5 // pred_fallthru
      _
    %p173 = scmp.lt.s32.totalorder %s10, 2
    // Predicated region
    $region21: #{cnn_backbone_forward.3} parent=5 // pred_check
      %p174 = pneg %p173
    $region22: #{cnn_backbone_forward.3} parent=5 // pred_check_branch
      %176 = sbr.rel (%p174) target = $region24
    $region23: #{cnn_backbone_forward.3} parent=5 // pred_region
      // Predicated region
      $region25: #{cnn_backbone_forward.3} parent=23 // pred_check
        %p177 = pneg %p44
      $region26: #{cnn_backbone_forward.3} parent=23 // pred_check_branch
        %179 = sbr.rel (%p177) target = $region28
      $region27: #{cnn_backbone_forward.3} parent=23 // pred_region
        %s180 = smul.u32 8, %s18
        %s181 = ssub.s32 9, %s180
        %p182 = scmp.lt.s32.totalorder %s181, 8
        %s183 = scalar_select %p182, %s181, 8
        %s184 = smul.u32 16, %s183
        %s185 = smul.u32 %s184, 2
        %p186 = scmp.lt.s32.totalorder %s17, 1
        %s187 = scalar_select %p186, %s17, 1
        %p188 = scmp.lt.s32.totalorder %s180, 8
        %s189 = scalar_select %p188, %s180, 8
        %s190 = smul.addr %s189, 2
        %s191 = smul.addr %s187, 18
        %s192 = sadd.s32 %s190, %s191
        %s193 = scalar_lea.vmem %s0, %s192
        %s194 = smul.u32 8, %s18
        %s195 = ssub.s32 9, %s194
        %p196 = scmp.lt.s32.totalorder %s195, 8
        %s197 = scalar_select %p196, %s195, 8
        %s198 = smul.u32 16, %s197
        %s199 = smul.u32 %s198, 2
      $region28: #{cnn_backbone_forward.3} parent=23 // pred_fallthru
        _
      // Predicated region
      $region29: #{cnn_backbone_forward.3} parent=23 // pred_check
        %p200 = pneg %p76
      $region30: #{cnn_backbone_forward.3} parent=23 // pred_check_branch
        %202 = sbr.rel (%p200) target = $region32
      $region31: #{cnn_backbone_forward.3} parent=23 // pred_region
        %s203 = sadd.s32 %s18, 1
        %s204 = smul.u32 %s203, 8
        %p205 = scmp.lt.s32.totalorder %s17, 1
        %s206 = scalar_select %p205, %s17, 1
        %p207 = scmp.lt.s32.totalorder %s204, 8
        %s208 = scalar_select %p207, %s204, 8
        %s209 = smul.addr %s208, 2
        %s210 = smul.addr %s206, 18
        %s211 = sadd.s32 %s209, %s210
        %s212 = scalar_lea.vmem %s1, %s211
        %s213 = sadd.s32 %s18, 1
        %s214 = smul.u32 %s213, 8
      $region32: #{cnn_backbone_forward.3} parent=23 // pred_fallthru
        _
    $region24: #{cnn_backbone_forward.3} parent=5 // pred_fallthru
      _
    %p215 = scmp.le.s32.totalorder 1, %s10
    %p216 = scmp.lt.s32.totalorder %s10, 3
    %p217 = pnand %p215, %p216
    %p218 = pneg %p217
    // Predicated region
    $region33: #{cnn_backbone_forward.3} parent=5 // pred_check
      _
    $region34: #{cnn_backbone_forward.3} parent=5 // pred_check_branch
      %220 = sbr.rel (%p217) target = $region36
    $region35: #{cnn_backbone_forward.3} parent=5 // pred_region
      %s221 = ssub.s32 %s10, 1
      %s222 = smul.u32 8, %s20
      %s223 = ssub.s32 9, %s222
      %p224 = scmp.lt.s32.totalorder %s223, 8
      %s225 = scalar_select %p224, %s223, 8
      %s226 = smul.u32 16, %s225
      %s227 = smul.u32 %s226, 2
      %p228 = scmp.lt.s32.totalorder %s19, 1
      %s229 = scalar_select %p228, %s19, 1
      %p230 = scmp.lt.s32.totalorder %s222, 8
      %s231 = scalar_select %p230, %s222, 8
      %s232 = smul.addr %s231, 2
      %s233 = smul.addr %s229, 18
      %s234 = sadd.s32 %s232, %s233
      %s235 = scalar_lea.vmem %s0, %s234
      %p236 = pneg %p50
      %p237 = pneg %p47
      %s238 = sadd.s32 %s20, 1
      %s239 = smul.u32 %s238, 8
      %p240 = scmp.lt.s32.totalorder %s19, 1
      %s241 = scalar_select %p240, %s19, 1
      %p242 = scmp.lt.s32.totalorder %s239, 8
      %s243 = scalar_select %p242, %s239, 8
      %s244 = smul.addr %s243, 2
      %s245 = smul.addr %s241, 18
      %s246 = sadd.s32 %s244, %s245
      %s247 = scalar_lea.vmem %s1, %s246
      %p248 = pneg %p82
      %p249 = pneg %p79
      %p250 = pneg %p103
      %p251 = pneg %p100
      %p252 = pneg %p124
      %p253 = pneg %p121
      %p254 = pneg %p152
      %p255 = pneg %p149
      %s256 = smul.u32 8, %s20
      %p257 = scmp.lt.s32.totalorder %s19, 1
      %s258 = scalar_select %p257, %s19, 1
      %p259 = scmp.lt.s32.totalorder %s256, 7
      %s260 = scalar_select %p259, %s256, 7
      %s261 = smul.addr %s260, 2
      %s262 = smul.addr %s258, 16
      %s263 = sadd.s32 %s261, %s262
      %s264 = scalar_lea.vmem %s4, %s263
      %s265 = smul.u32 8, %s20
      %s266 = ssub.s32 9, %s265
      %p267 = scmp.lt.s32.totalorder %s266, 8
      %s268 = scalar_select %p267, %s266, 8
      %s269 = smul.u32 16, %s268
      %s270 = smul.u32 %s269, 2
      %p271 = scmp.lt.s32.totalorder %s19, 1
      %s272 = scalar_select %p271, %s19, 1
      %p273 = scmp.lt.s32.totalorder %s265, 8
      %s274 = scalar_select %p273, %s265, 8
      %s275 = smul.addr %s274, 2
      %s276 = smul.addr %s272, 18
      %s277 = sadd.s32 %s275, %s276
      %s278 = scalar_lea.vmem %s0, %s277
      %s279 = smul.u32 8, %s20
      %s280 = ssub.s32 9, %s279
      %p281 = scmp.lt.s32.totalorder %s280, 8
      %s282 = scalar_select %p281, %s280, 8
      %s283 = smul.u32 16, %s282
      %s284 = smul.u32 %s283, 2
      %s285 = sadd.s32 %s20, 1
      %s286 = smul.u32 %s285, 8
      %p287 = scmp.lt.s32.totalorder %s19, 1
      %s288 = scalar_select %p287, %s19, 1
      %p289 = scmp.lt.s32.totalorder %s286, 8
      %s290 = scalar_select %p289, %s286, 8
      %s291 = smul.addr %s290, 2
      %s292 = smul.addr %s288, 18
      %s293 = sadd.s32 %s291, %s292
      %s294 = scalar_lea.vmem %s1, %s293
      %s295 = sadd.s32 %s20, 1
      %s296 = smul.u32 %s295, 8
      %s297 = smul.u32 8, %s20
      %p298 = scmp.lt.s32.totalorder %s19, 1
      %s299 = scalar_select %p298, %s19, 1
      %p300 = scmp.lt.s32.totalorder %s297, 7
      %s301 = scalar_select %p300, %s297, 7
      %s302 = smul.addr %s301, 2
      %s303 = smul.addr %s299, 16
      %s304 = sadd.s32 %s302, %s303
      %s305 = scalar_lea.vmem %s4, %s304
      %s306 = smul.u32 8, %s20
      %v308 = vld [vmem:[%s2] sm:$0xff]
      %v309 = vld [vmem:[%s2 + $0x8] sm:$0xff]
      %v310 = vld [vmem:[%s2 + $0x10] sm:$0xff]
      %v311 = vld [vmem:[%s2 + $0x18] sm:$0xff]
      %v312 = vld [vmem:[%s2 + $0x20] sm:$0xff]
      %v313 = vld [vmem:[%s2 + $0x28] sm:$0xff]
      %v314 = vld [vmem:[%s2 + $0x30] sm:$0xff]
      %v315 = vld [vmem:[%s2 + $0x38] sm:$0xff]
      %v316 = vld [vmem:[%s2 + $0x40] sm:$0xff]
      %v317 = vld [vmem:[%s2 + $0x48] sm:$0xff]
      %v318 = vld [vmem:[%s2 + $0x50] sm:$0xff]
      %v319 = vld [vmem:[%s2 + $0x58] sm:$0xff]
      %v320 = vld [vmem:[%s2 + $0x60] sm:$0xff]
      %v321 = vld [vmem:[%s2 + $0x68] sm:$0xff]
      %v322 = vld [vmem:[%s2 + $0x70] sm:$0xff]
      %v323 = vld [vmem:[%s2 + $0x78] sm:$0xff]
      %v324 = vld [vmem:[%s2 + $0x80] sm:$0xff]
      %v325 = vld [vmem:[%s2 + $0x88] sm:$0xff]
      %v326 = vld [vmem:[%s2 + $0x90] sm:$0xff]
      %v327 = vld [vmem:[%s2 + $0x98] sm:$0xff]
      %v328 = vld [vmem:[%s2 + $0xa0] sm:$0xff]
      %v329 = vld [vmem:[%s2 + $0xa8] sm:$0xff]
      %v330 = vld [vmem:[%s2 + $0xb0] sm:$0xff]
      %v331 = vld [vmem:[%s2 + $0xb8] sm:$0xff]
      %v332 = vld [vmem:[%s2 + $0xc0] sm:$0xff]
      %v333 = vld [vmem:[%s2 + $0xc8] sm:$0xff]
      %v334 = vld [vmem:[%s2 + $0xd0] sm:$0xff]
      %v335 = vld [vmem:[%s2 + $0xd8] sm:$0xff]
      %v336 = vld [vmem:[%s2 + $0xe0] sm:$0xff]
      %v337 = vld [vmem:[%s2 + $0xe8] sm:$0xff]
      %v338 = vld [vmem:[%s2 + $0xf0] sm:$0xff]
      %v339 = vld [vmem:[%s2 + $0xf8] sm:$0xff]
      %v340 = vld [vmem:[%s2 + $0x100] sm:$0xff]
      %v341 = vld [vmem:[%s2 + $0x108] sm:$0xff]
      %v342 = vld [vmem:[%s2 + $0x110] sm:$0xff]
      %v343 = vld [vmem:[%s2 + $0x118] sm:$0xff]
      %v344 = vld [vmem:[%s2 + $0x120] sm:$0xff]
      %v345 = vld [vmem:[%s2 + $0x128] sm:$0xff]
      %v346 = vld [vmem:[%s2 + $0x130] sm:$0xff]
      %v347 = vld [vmem:[%s2 + $0x138] sm:$0xff]
      %v348 = vld [vmem:[%s2 + $0x140] sm:$0xff]
      %v349 = vld [vmem:[%s2 + $0x148] sm:$0xff]
      %v350 = vld [vmem:[%s2 + $0x150] sm:$0xff]
      %v351 = vld [vmem:[%s2 + $0x158] sm:$0xff]
      %v352 = vld [vmem:[%s2 + $0x160] sm:$0xff]
      %v353 = vld [vmem:[%s2 + $0x168] sm:$0xff]
      %v354 = vld [vmem:[%s2 + $0x170] sm:$0xff]
      %v355 = vld [vmem:[%s2 + $0x178] sm:$0xff]
      %v356 = vld [vmem:[%s3] sm:$0xf]
      %v357 = vld [vmem:[%s278] sm:$0x1]
      %v360 = vunpack.c.l.s4 1966171168
      %v361 = vunpack.c.0.s8 %v360
      %v362 = vlaneseq
      %v363 = vshrl.u32 %v362, 7
      %v364 = vsub.s32 %v361, %v363
      %v365 = vrot.slane %v357, %v364
      %v367 = vunpack.c.l.s4 1966171168
      %v368 = vunpack.c.0.s8 %v367
      %v369 = vlaneseq
      %v370 = vshrl.u32 %v369, 7
      %v371 = vsub.s32 %v368, %v370
      %v372 = vrot.slane %v365, %v371
      %v374 = vshrl.u32 %v372, 16
      %376 = vrot.lane.b32.xlu0 %v374, 32
      %v377 = vpop.permute.xlu0 %376
      %vm378 = vcmask 261120
      %v381 = vsel %vm378, %v357, %v377
      %s382 = scalar_lea.vmem %s278, 1
      %v383 = vld [vmem:[%s382] sm:$0x1]
      %v386 = vunpack.c.l.s4 1966171168
      %v387 = vunpack.c.0.s8 %v386
      %v388 = vlaneseq
      %v389 = vshrl.u32 %v388, 7
      %v390 = vsub.s32 %v387, %v389
      %v391 = vrot.slane %v383, %v390
      %v393 = vunpack.c.l.s4 1966171168
      %v394 = vunpack.c.0.s8 %v393
      %v395 = vlaneseq
      %v396 = vshrl.u32 %v395, 7
      %v397 = vsub.s32 %v394, %v396
      %v398 = vrot.slane %v391, %v397
      %v400 = vshrl.u32 %v398, 16
      %402 = vrot.lane.b32.xlu0 %v400, 32
      %v403 = vpop.permute.xlu0 %402
      %v406 = vsel %vm378, %v383, %v403
      %s407 = scalar_lea.vmem %s278, 2
      %v408 = vld [vmem:[%s407] sm:$0x1]
      %v411 = vunpack.c.l.s4 1966171168
      %v412 = vunpack.c.0.s8 %v411
      %v413 = vlaneseq
      %v414 = vshrl.u32 %v413, 7
      %v415 = vsub.s32 %v412, %v414
      %v416 = vrot.slane %v408, %v415
      %v418 = vunpack.c.l.s4 1966171168
      %v419 = vunpack.c.0.s8 %v418
      %v420 = vlaneseq
      %v421 = vshrl.u32 %v420, 7
      %v422 = vsub.s32 %v419, %v421
      %v423 = vrot.slane %v416, %v422
      %v425 = vshrl.u32 %v423, 16
      %427 = vrot.lane.b32.xlu0 %v425, 32
      %v428 = vpop.permute.xlu0 %427
      %v431 = vsel %vm378, %v408, %v428
      %s432 = scalar_lea.vmem %s278, 3
      %v433 = vld [vmem:[%s432] sm:$0x1]
      %v436 = vunpack.c.l.s4 1966171168
      %v437 = vunpack.c.0.s8 %v436
      %v438 = vlaneseq
      %v439 = vshrl.u32 %v438, 7
      %v440 = vsub.s32 %v437, %v439
      %v441 = vrot.slane %v433, %v440
      %v443 = vunpack.c.l.s4 1966171168
      %v444 = vunpack.c.0.s8 %v443
      %v445 = vlaneseq
      %v446 = vshrl.u32 %v445, 7
      %v447 = vsub.s32 %v444, %v446
      %v448 = vrot.slane %v441, %v447
      %v450 = vshrl.u32 %v448, 16
      %452 = vrot.lane.b32.xlu0 %v450, 32
      %v453 = vpop.permute.xlu0 %452
      %v456 = vsel %vm378, %v433, %v453
      %458 = vrot.lane.b32.xlu0 %v406, 64
      %v459 = vpop.permute.xlu0 %458
      %vm460 = vcmask 523264
      %v462 = vsel %vm460, %v381, %v459
      %v512 = vunpack.c.l.b16 %v308
      %v513 = vunpack.c.h.b16 %v308
      %v514 = vunpack.c.l.b16 %v309
      %v515 = vunpack.c.h.b16 %v309
      %v516 = vunpack.c.l.b16 %v310
      %v517 = vunpack.c.h.b16 %v310
      %v518 = vunpack.c.l.b16 %v311
      %v519 = vunpack.c.h.b16 %v311
      %v520 = vunpack.c.l.b16 %v312
      %v521 = vunpack.c.h.b16 %v312
      %v522 = vunpack.c.l.b16 %v313
      %v523 = vunpack.c.h.b16 %v313
      %v524 = vunpack.c.l.b16 %v314
      %v525 = vunpack.c.h.b16 %v314
      %v526 = vunpack.c.l.b16 %v315
      %v527 = vunpack.c.h.b16 %v315
      %v528 = vunpack.c.l.b16 %v316
      %v529 = vunpack.c.h.b16 %v316
      %v530 = vunpack.c.l.b16 %v317
      %v531 = vunpack.c.h.b16 %v317
      %v532 = vunpack.c.l.b16 %v318
      %v533 = vunpack.c.h.b16 %v318
      %v534 = vunpack.c.l.b16 %v319
      %v535 = vunpack.c.h.b16 %v319
      %v536 = vunpack.c.l.b16 %v320
      %v537 = vunpack.c.h.b16 %v320
      %v538 = vunpack.c.l.b16 %v321
      %v539 = vunpack.c.h.b16 %v321
      %v540 = vunpack.c.l.b16 %v322
      %v541 = vunpack.c.h.b16 %v322
      %v542 = vunpack.c.l.b16 %v323
      %v543 = vunpack.c.h.b16 %v323
      %v544 = vunpack.c.l.b16 %v324
      %v545 = vunpack.c.h.b16 %v324
      %v546 = vunpack.c.l.b16 %v325
      %v547 = vunpack.c.h.b16 %v325
      %v548 = vunpack.c.l.b16 %v326
      %v549 = vunpack.c.h.b16 %v326
      %v550 = vunpack.c.l.b16 %v327
      %v551 = vunpack.c.h.b16 %v327
      %v552 = vunpack.c.l.b16 %v328
      %v553 = vunpack.c.h.b16 %v328
      %v554 = vunpack.c.l.b16 %v329
      %v555 = vunpack.c.h.b16 %v329
      %v556 = vunpack.c.l.b16 %v330
      %v557 = vunpack.c.h.b16 %v330
      %v558 = vunpack.c.l.b16 %v331
      %v559 = vunpack.c.h.b16 %v331
      %v560 = vunpack.c.l.b16 %v332
      %v561 = vunpack.c.h.b16 %v332
      %v562 = vunpack.c.l.b16 %v333
      %v563 = vunpack.c.h.b16 %v333
      %v564 = vunpack.c.l.b16 %v334
      %v565 = vunpack.c.h.b16 %v334
      %v566 = vunpack.c.l.b16 %v335
      %v567 = vunpack.c.h.b16 %v335
      %v568 = vunpack.c.l.b16 %v336
      %v569 = vunpack.c.h.b16 %v336
      %v570 = vunpack.c.l.b16 %v337
      %v571 = vunpack.c.h.b16 %v337
      %v572 = vunpack.c.l.b16 %v338
      %v573 = vunpack.c.h.b16 %v338
      %v574 = vunpack.c.l.b16 %v339
      %v575 = vunpack.c.h.b16 %v339
      %v576 = vunpack.c.l.b16 %v340
      %v577 = vunpack.c.h.b16 %v340
      %v578 = vunpack.c.l.b16 %v341
      %v579 = vunpack.c.h.b16 %v341
      %v580 = vunpack.c.l.b16 %v342
      %v581 = vunpack.c.h.b16 %v342
      %v582 = vunpack.c.l.b16 %v343
      %v583 = vunpack.c.h.b16 %v343
      %v584 = vunpack.c.l.b16 %v344
      %v585 = vunpack.c.h.b16 %v344
      %v586 = vunpack.c.l.b16 %v345
      %v587 = vunpack.c.h.b16 %v345
      %v588 = vunpack.c.l.b16 %v346
      %v589 = vunpack.c.h.b16 %v346
      %v590 = vunpack.c.l.b16 %v347
      %v591 = vunpack.c.h.b16 %v347
      %v592 = vunpack.c.l.b16 %v348
      %v593 = vunpack.c.h.b16 %v348
      %v594 = vunpack.c.l.b16 %v349
      %v595 = vunpack.c.h.b16 %v349
      %v596 = vunpack.c.l.b16 %v350
      %v597 = vunpack.c.h.b16 %v350
      %v598 = vunpack.c.l.b16 %v351
      %v599 = vunpack.c.h.b16 %v351
      %v600 = vunpack.c.l.b16 %v352
      %v601 = vunpack.c.h.b16 %v352
      %v602 = vunpack.c.l.b16 %v353
      %v603 = vunpack.c.h.b16 %v353
      %v604 = vunpack.c.l.b16 %v354
      %v605 = vunpack.c.h.b16 %v354
      %v606 = vunpack.c.l.b16 %v355
      %v607 = vunpack.c.h.b16 %v355
      %v608 = vpack.c.b16 %v516, %v512
      %v609 = vpack.c.b16 %v517, %v513
      %v610 = vpack.c.b16 %v518, %v514
      %v611 = vpack.c.b16 %v519, %v515
      %v612 = vpack.c.b16 %v524, %v520
      %v613 = vpack.c.b16 %v525, %v521
      %v614 = vpack.c.b16 %v526, %v522
      %v615 = vpack.c.b16 %v527, %v523
      %v616 = vpack.c.b16 %v532, %v528
      %v617 = vpack.c.b16 %v533, %v529
      %v618 = vpack.c.b16 %v534, %v530
      %v619 = vpack.c.b16 %v535, %v531
      %v620 = vpack.c.b16 %v540, %v536
      %v621 = vpack.c.b16 %v541, %v537
      %v622 = vpack.c.b16 %v542, %v538
      %v623 = vpack.c.b16 %v543, %v539
      %v624 = vpack.c.b16 %v548, %v544
      %v625 = vpack.c.b16 %v549, %v545
      %v626 = vpack.c.b16 %v550, %v546
      %v627 = vpack.c.b16 %v551, %v547
      %v628 = vpack.c.b16 %v556, %v552
      %v629 = vpack.c.b16 %v557, %v553
      %v630 = vpack.c.b16 %v558, %v554
      %v631 = vpack.c.b16 %v559, %v555
      %v632 = vpack.c.b16 %v564, %v560
      %v633 = vpack.c.b16 %v565, %v561
      %v634 = vpack.c.b16 %v566, %v562
      %v635 = vpack.c.b16 %v567, %v563
      %v636 = vpack.c.b16 %v572, %v568
      %v637 = vpack.c.b16 %v573, %v569
      %v638 = vpack.c.b16 %v574, %v570
      %v639 = vpack.c.b16 %v575, %v571
      %v640 = vpack.c.b16 %v580, %v576
      %v641 = vpack.c.b16 %v581, %v577
      %v642 = vpack.c.b16 %v582, %v578
      %v643 = vpack.c.b16 %v583, %v579
      %v644 = vpack.c.b16 %v588, %v584
      %v645 = vpack.c.b16 %v589, %v585
      %v646 = vpack.c.b16 %v590, %v586
      %v647 = vpack.c.b16 %v591, %v587
      %v648 = vpack.c.b16 %v596, %v592
      %v649 = vpack.c.b16 %v597, %v593
      %v650 = vpack.c.b16 %v598, %v594
      %v651 = vpack.c.b16 %v599, %v595
      %v652 = vpack.c.b16 %v604, %v600
      %v653 = vpack.c.b16 %v605, %v601
      %v654 = vpack.c.b16 %v606, %v602
      %v655 = vpack.c.b16 %v607, %v603
      %v705 = vlaneseq
      %v706 = vshrl.u32 %v705, 7
      %v707 = vsub.s32 0, %v706
      %v708 = vrot.slane %v356, %v707
      %v709 = vlaneseq
      %v710 = vshrl.u32 %v709, 7
      %v711 = vsub.s32 1, %v710
      %v712 = vrot.slane %v356, %v711
      %v713 = vlaneseq
      %v714 = vshrl.u32 %v713, 7
      %v715 = vsub.s32 2, %v714
      %v716 = vrot.slane %v356, %v715
      %v717 = vlaneseq
      %v718 = vshrl.u32 %v717, 7
      %v719 = vsub.s32 3, %v718
      %v720 = vrot.slane %v356, %v719
      %v725 = vsel %vm460, %v431, 0
      %727 = vmatprep.subr.bf16.mxu0 %v637
      %728 = vmatpush1.bf16.msra.mxu0 %v636
      %729 = vmatprep.subr.bf16.mxu0 %v633
      %730 = vmatpush1.bf16.msra.mxu0 %v632
      %731 = vmatprep.subr.bf16.mxu0 %v629
      %732 = vmatpush1.bf16.msra.mxu0 %v628
      %733 = vmatprep.subr.bf16.mxu0 %v625
      %734 = vmatpush1.bf16.msra.mxu0 %v624
      %735 = vmatprep.subr.bf16.mxu0 %v621
      %736 = vmatpush1.bf16.msra.mxu0 %v620
      %737 = vmatprep.subr.bf16.mxu0 %v617
      %738 = vmatpush1.bf16.msra.mxu0 %v616
      %739 = vmatprep.subr.bf16.mxu0 %v613
      %740 = vmatpush1.bf16.msra.mxu0 %v612
      %741 = vmatprep.subr.bf16.mxu0 %v609
      %742 = vmatpush1.bf16.msra.mxu0 %v608
      %743 = vmatprep.subr.bf16.mxu0 0
      %744 = vmatpush2.bf16.msra.mxu0 0
      %745 = vmatprep.subr.bf16.mxu0 0
      %746 = vmatpush2.bf16.msra.mxu0 0
      %747 = vmatprep.subr.bf16.mxu0 0
      %748 = vmatpush2.bf16.msra.mxu0 0
      %749 = vmatprep.subr.bf16.mxu0 0
      %750 = vmatpush2.bf16.msra.mxu0 0
      %751 = vmatprep.subr.bf16.mxu0 %v653
      %752 = vmatpush2.bf16.msra.mxu0 %v652
      %753 = vmatprep.subr.bf16.mxu0 %v649
      %754 = vmatpush2.bf16.msra.mxu0 %v648
      %755 = vmatprep.subr.bf16.mxu0 %v645
      %756 = vmatpush2.bf16.msra.mxu0 %v644
      %757 = vmatprep.subr.bf16.mxu0 %v641
      %758 = vmatpush2.bf16.msra.mxu0 %v640
      %759 = vmatprep.mubr.bf16.mxu0 %v725
      %760 = vmatmul.mubr.bf16.gmra.mxu0 %v462
      %v761 = vpop.f32.mrf.mxu0
      %v762 = vadd.f32 %v708, %v761
      %v763 = vpop.f32.mrf.mxu0
      %v764 = vadd.f32 %v712, %v763
      %v765 = vpop.f32.mrf.mxu0
      %v766 = vpop.f32.mrf.mxu0
      %767 = vdwg.mxu0
      %768 = vmatprep.subr.bf16.mxu0 %v639
      %769 = vmatpush1.bf16.msra.mxu0 %v638
      %770 = vmatprep.subr.bf16.mxu0 %v635
      %771 = vmatpush1.bf16.msra.mxu0 %v634
      %772 = vmatprep.subr.bf16.mxu0 %v631
      %773 = vmatpush1.bf16.msra.mxu0 %v630
      %774 = vmatprep.subr.bf16.mxu0 %v627
      %775 = vmatpush1.bf16.msra.mxu0 %v626
      %776 = vmatprep.subr.bf16.mxu0 %v623
      %777 = vmatpush1.bf16.msra.mxu0 %v622
      %778 = vmatprep.subr.bf16.mxu0 %v619
      %779 = vmatpush1.bf16.msra.mxu0 %v618
      %780 = vmatprep.subr.bf16.mxu0 %v615
      %781 = vmatpush1.bf16.msra.mxu0 %v614
      %782 = vmatprep.subr.bf16.mxu0 %v611
      %783 = vmatpush1.bf16.msra.mxu0 %v610
      %784 = vmatprep.subr.bf16.mxu0 0
      %785 = vmatpush2.bf16.msra.mxu0 0
      %786 = vmatprep.subr.bf16.mxu0 0
      %787 = vmatpush2.bf16.msra.mxu0 0
      %788 = vmatprep.subr.bf16.mxu0 0
      %789 = vmatpush2.bf16.msra.mxu0 0
      %790 = vmatprep.subr.bf16.mxu0 0
      %791 = vmatpush2.bf16.msra.mxu0 0
      %792 = vmatprep.subr.bf16.mxu0 %v655
      %793 = vmatpush2.bf16.msra.mxu0 %v654
      %794 = vmatprep.subr.bf16.mxu0 %v651
      %795 = vmatpush2.bf16.msra.mxu0 %v650
      %796 = vmatprep.subr.bf16.mxu0 %v647
      %797 = vmatpush2.bf16.msra.mxu0 %v646
      %798 = vmatprep.subr.bf16.mxu0 %v643
      %799 = vmatpush2.bf16.msra.mxu0 %v642
      %800 = vmatprep.mubr.bf16.mxu0 %v725
      %801 = vmatmul.mubr.bf16.gmra.mxu0 %v462
      %v802 = vpop.f32.mrf.mxu0
      %v803 = vadd.f32 %v716, %v802
      %v804 = vpop.f32.mrf.mxu0
      %v805 = vadd.f32 %v720, %v804
      %v806 = vpop.f32.mrf.mxu0
      %v807 = vpop.f32.mrf.mxu0
      %808 = vdwg.mxu0
      %v809 = vmax.f32 %v762, 0.0
      %v810 = vmax.f32 %v764, 0.0
      %v811 = vmax.f32 %v803, 0.0
      %v812 = vmax.f32 %v805, 0.0
      %814 = vrot.lane.b32.xlu0 %v431, 64
      %v815 = vpop.permute.xlu0 %814
      %v817 = vsel %vm460, %v406, %v815
      %v819 = vsel %vm460, %v456, 0
      %821 = vmatprep.subr.bf16.mxu0 %v637
      %822 = vmatpush1.bf16.msra.mxu0 %v636
      %823 = vmatprep.subr.bf16.mxu0 %v633
      %824 = vmatpush1.bf16.msra.mxu0 %v632
      %825 = vmatprep.subr.bf16.mxu0 %v629
      %826 = vmatpush1.bf16.msra.mxu0 %v628
      %827 = vmatprep.subr.bf16.mxu0 %v625
      %828 = vmatpush1.bf16.msra.mxu0 %v624
      %829 = vmatprep.subr.bf16.mxu0 %v621
      %830 = vmatpush1.bf16.msra.mxu0 %v620
      %831 = vmatprep.subr.bf16.mxu0 %v617
      %832 = vmatpush1.bf16.msra.mxu0 %v616
      %833 = vmatprep.subr.bf16.mxu0 %v613
      %834 = vmatpush1.bf16.msra.mxu0 %v612
      %835 = vmatprep.subr.bf16.mxu0 %v609
      %836 = vmatpush1.bf16.msra.mxu0 %v608
      %837 = vmatprep.subr.bf16.mxu0 0
      %838 = vmatpush2.bf16.msra.mxu0 0
      %839 = vmatprep.subr.bf16.mxu0 0
      %840 = vmatpush2.bf16.msra.mxu0 0
      %841 = vmatprep.subr.bf16.mxu0 0
      %842 = vmatpush2.bf16.msra.mxu0 0
      %843 = vmatprep.subr.bf16.mxu0 0
      %844 = vmatpush2.bf16.msra.mxu0 0
      %845 = vmatprep.subr.bf16.mxu0 %v653
      %846 = vmatpush2.bf16.msra.mxu0 %v652
      %847 = vmatprep.subr.bf16.mxu0 %v649
      %848 = vmatpush2.bf16.msra.mxu0 %v648
      %849 = vmatprep.subr.bf16.mxu0 %v645
      %850 = vmatpush2.bf16.msra.mxu0 %v644
      %851 = vmatprep.subr.bf16.mxu0 %v641
      %852 = vmatpush2.bf16.msra.mxu0 %v640
      %853 = vmatprep.mubr.bf16.mxu0 %v819
      %854 = vmatmul.mubr.bf16.gmra.mxu0 %v817
      %v855 = vpop.f32.mrf.mxu0
      %v856 = vadd.f32 %v708, %v855
      %v857 = vpop.f32.mrf.mxu0
      %v858 = vadd.f32 %v712, %v857
      %v859 = vpop.f32.mrf.mxu0
      %v860 = vpop.f32.mrf.mxu0
      %861 = vdwg.mxu0
      %862 = vmatprep.subr.bf16.mxu0 %v639
      %863 = vmatpush1.bf16.msra.mxu0 %v638
      %864 = vmatprep.subr.bf16.mxu0 %v635
      %865 = vmatpush1.bf16.msra.mxu0 %v634
      %866 = vmatprep.subr.bf16.mxu0 %v631
      %867 = vmatpush1.bf16.msra.mxu0 %v630
      %868 = vmatprep.subr.bf16.mxu0 %v627
      %869 = vmatpush1.bf16.msra.mxu0 %v626
      %870 = vmatprep.subr.bf16.mxu0 %v623
      %871 = vmatpush1.bf16.msra.mxu0 %v622
      %872 = vmatprep.subr.bf16.mxu0 %v619
      %873 = vmatpush1.bf16.msra.mxu0 %v618
      %874 = vmatprep.subr.bf16.mxu0 %v615
      %875 = vmatpush1.bf16.msra.mxu0 %v614
      %876 = vmatprep.subr.bf16.mxu0 %v611
      %877 = vmatpush1.bf16.msra.mxu0 %v610
      %878 = vmatprep.subr.bf16.mxu0 0
      %879 = vmatpush2.bf16.msra.mxu0 0
      %880 = vmatprep.subr.bf16.mxu0 0
      %881 = vmatpush2.bf16.msra.mxu0 0
      %882 = vmatprep.subr.bf16.mxu0 0
      %883 = vmatpush2.bf16.msra.mxu0 0
      %884 = vmatprep.subr.bf16.mxu0 0
      %885 = vmatpush2.bf16.msra.mxu0 0
      %886 = vmatprep.subr.bf16.mxu0 %v655
      %887 = vmatpush2.bf16.msra.mxu0 %v654
      %888 = vmatprep.subr.bf16.mxu0 %v651
      %889 = vmatpush2.bf16.msra.mxu0 %v650
      %890 = vmatprep.subr.bf16.mxu0 %v647
      %891 = vmatpush2.bf16.msra.mxu0 %v646
      %892 = vmatprep.subr.bf16.mxu0 %v643
      %893 = vmatpush2.bf16.msra.mxu0 %v642
      %894 = vmatprep.mubr.bf16.mxu0 %v819
      %895 = vmatmul.mubr.bf16.gmra.mxu0 %v817
      %v896 = vpop.f32.mrf.mxu0
      %v897 = vadd.f32 %v716, %v896
      %v898 = vpop.f32.mrf.mxu0
      %v899 = vadd.f32 %v720, %v898
      %v900 = vpop.f32.mrf.mxu0
      %v901 = vpop.f32.mrf.mxu0
      %902 = vdwg.mxu0
      %v903 = vmax.f32 %v856, 0.0
      %v904 = vmax.f32 %v858, 0.0
      %v905 = vmax.f32 %v897, 0.0
      %v906 = vmax.f32 %v899, 0.0
      %v907 = vmax.f32 %v809, %v903
      %v908 = vmax.f32 %v810, %v904
      %v909 = vmax.f32 %v811, %v905
      %v910 = vmax.f32 %v812, %v906
      %912 = vrot.lane.b32.xlu0 %v907, 96
      %v913 = vpop.permute.xlu0 %912
      %v915 = vmax.f32 %v907, %v913
      %917 = vrot.lane.b32.xlu0 %v908, 96
      %v918 = vpop.permute.xlu0 %917
      %v920 = vmax.f32 %v908, %v918
      %922 = vrot.lane.b32.xlu0 %v909, 96
      %v923 = vpop.permute.xlu0 %922
      %v925 = vmax.f32 %v909, %v923
      %927 = vrot.lane.b32.xlu0 %v910, 96
      %v928 = vpop.permute.xlu0 %927
      %v930 = vmax.f32 %v910, %v928
      %932 = vrot.lane.b32.xlu0 %v915, 96
      %v933 = vpop.permute.xlu0 %932
      %936 = vrot.lane.b32.xlu0 %v920, 64
      %v937 = vpop.permute.xlu0 %936
      %939 = vrot.lane.b32.xlu0 %v920, 32
      %v940 = vpop.permute.xlu0 %939
      %943 = vrot.lane.b32.xlu0 %v925, 96
      %v944 = vpop.permute.xlu0 %943
      %947 = vrot.lane.b32.xlu0 %v930, 64
      %v948 = vpop.permute.xlu0 %947
      %950 = vrot.lane.b32.xlu0 %v930, 32
      %v951 = vpop.permute.xlu0 %950
      %v953 = vsel %vm378, %v915, %v933
      %v954 = vsel %vm460, %v953, %v937
      %vm955 = vcmask 785408
      %v956 = vsel %vm955, %v954, %v940
      %v957 = vsel %vm378, %v925, %v944
      %v958 = vsel %vm460, %v957, %v948
      %v959 = vsel %vm955, %v958, %v951
      %v960 = vpack.c.bf16 %v956, %v956
      %v961 = vpack.c.bf16 %v959, %v959
      %v964 = vcombine.low %v960, %v961
      %v966 = vunpack.c.l.s4 1966171168
      %v967 = vunpack.c.0.s8 %v966
      %v968 = vlaneseq
      %v969 = vshrl.u32 %v968, 7
      %v970 = vsub.s32 %v967, %v969
      %v971 = vrot.slane %v964, %v970
      %v973 = vunpack.c.l.s4 1966171168
      %v974 = vunpack.c.0.s8 %v973
      %v975 = vlaneseq
      %v976 = vshrl.u32 %v975, 7
      %v977 = vsub.s32 %v974, %v976
      %v978 = vrot.slane %v971, %v977
      %vm980 = vcmask 1040384
      %vm981 = vsmask.f32 256
      %vm982 = vmand %vm980, %vm981
      %vm983 = vcmask 1041409
      %vm984 = vsmask.f32 1280
      %vm985 = vmand %vm983, %vm984
      %vm986 = vmor %vm985, %vm982
      %v987 = vld [vmem:[%s305] sm:$0x3]
      %v988 = vsel %vm986, %v978, %v987
      %989 = vst [vmem:[%s305] sm:$0x3] %v988
      %s990 = scalar_lea.vmem %s278, 4
      %v991 = vld [vmem:[%s990] sm:$0x1]
      %v994 = vunpack.c.l.s4 1966171168
      %v995 = vunpack.c.0.s8 %v994
      %v996 = vlaneseq
      %v997 = vshrl.u32 %v996, 7
      %v998 = vsub.s32 %v995, %v997
      %v999 = vrot.slane %v991, %v998
      %v1001 = vunpack.c.l.s4 1966171168
      %v1002 = vunpack.c.0.s8 %v1001
      %v1003 = vlaneseq
      %v1004 = vshrl.u32 %v1003, 7
      %v1005 = vsub.s32 %v1002, %v1004
      %v1006 = vrot.slane %v999, %v1005
      %v1008 = vshrl.u32 %v1006, 16
      %1010 = vrot.lane.b32.xlu0 %v1008, 32
      %v1011 = vpop.permute.xlu0 %1010
      %v1014 = vsel %vm378, %v991, %v1011
      %s1015 = scalar_lea.vmem %s278, 5
      %v1016 = vld [vmem:[%s1015] sm:$0x1]
      %v1019 = vunpack.c.l.s4 1966171168
      %v1020 = vunpack.c.0.s8 %v1019
      %v1021 = vlaneseq
      %v1022 = vshrl.u32 %v1021, 7
      %v1023 = vsub.s32 %v1020, %v1022
      %v1024 = vrot.slane %v1016, %v1023
      %v1026 = vunpack.c.l.s4 1966171168
      %v1027 = vunpack.c.0.s8 %v1026
      %v1028 = vlaneseq
      %v1029 = vshrl.u32 %v1028, 7
      %v1030 = vsub.s32 %v1027, %v1029
      %v1031 = vrot.slane %v1024, %v1030
      %v1033 = vshrl.u32 %v1031, 16
      %1035 = vrot.lane.b32.xlu0 %v1033, 32
      %v1036 = vpop.permute.xlu0 %1035
      %v1039 = vsel %vm378, %v1016, %v1036
      %1041 = vrot.lane.b32.xlu0 %v456, 64
      %v1042 = vpop.permute.xlu0 %1041
      %v1044 = vsel %vm460, %v431, %v1042
      %v1046 = vsel %vm460, %v1014, 0
      %1048 = vmatprep.subr.bf16.mxu0 %v637
      %1049 = vmatpush1.bf16.msra.mxu0 %v636
      %1050 = vmatprep.subr.bf16.mxu0 %v633
      %1051 = vmatpush1.bf16.msra.mxu0 %v632
      %1052 = vmatprep.subr.bf16.mxu0 %v629
      %1053 = vmatpush1.bf16.msra.mxu0 %v628
      %1054 = vmatprep.subr.bf16.mxu0 %v625
      %1055 = vmatpush1.bf16.msra.mxu0 %v624
      %1056 = vmatprep.subr.bf16.mxu0 %v621
      %1057 = vmatpush1.bf16.msra.mxu0 %v620
      %1058 = vmatprep.subr.bf16.mxu0 %v617
      %1059 = vmatpush1.bf16.msra.mxu0 %v616
      %1060 = vmatprep.subr.bf16.mxu0 %v613
      %1061 = vmatpush1.bf16.msra.mxu0 %v612
      %1062 = vmatprep.subr.bf16.mxu0 %v609
      %1063 = vmatpush1.bf16.msra.mxu0 %v608
      %1064 = vmatprep.subr.bf16.mxu0 0
      %1065 = vmatpush2.bf16.msra.mxu0 0
      %1066 = vmatprep.subr.bf16.mxu0 0
      %1067 = vmatpush2.bf16.msra.mxu0 0
      %1068 = vmatprep.subr.bf16.mxu0 0
      %1069 = vmatpush2.bf16.msra.mxu0 0
      %1070 = vmatprep.subr.bf16.mxu0 0
      %1071 = vmatpush2.bf16.msra.mxu0 0
      %1072 = vmatprep.subr.bf16.mxu0 %v653
      %1073 = vmatpush2.bf16.msra.mxu0 %v652
      %1074 = vmatprep.subr.bf16.mxu0 %v649
      %1075 = vmatpush2.bf16.msra.mxu0 %v648
      %1076 = vmatprep.subr.bf16.mxu0 %v645
      %1077 = vmatpush2.bf16.msra.mxu0 %v644
      %1078 = vmatprep.subr.bf16.mxu0 %v641
      %1079 = vmatpush2.bf16.msra.mxu0 %v640
      %1080 = vmatprep.mubr.bf16.mxu0 %v1046
      %1081 = vmatmul.mubr.bf16.gmra.mxu0 %v1044
      %v1082 = vpop.f32.mrf.mxu0
      %v1083 = vadd.f32 %v708, %v1082
      %v1084 = vpop.f32.mrf.mxu0
      %v1085 = vadd.f32 %v712, %v1084
      %v1086 = vpop.f32.mrf.mxu0
      %v1087 = vpop.f32.mrf.mxu0
      %1088 = vdwg.mxu0
      %1089 = vmatprep.subr.bf16.mxu0 %v639
      %1090 = vmatpush1.bf16.msra.mxu0 %v638
      %1091 = vmatprep.subr.bf16.mxu0 %v635
      %1092 = vmatpush1.bf16.msra.mxu0 %v634
      %1093 = vmatprep.subr.bf16.mxu0 %v631
      %1094 = vmatpush1.bf16.msra.mxu0 %v630
      %1095 = vmatprep.subr.bf16.mxu0 %v627
      %1096 = vmatpush1.bf16.msra.mxu0 %v626
      %1097 = vmatprep.subr.bf16.mxu0 %v623
      %1098 = vmatpush1.bf16.msra.mxu0 %v622
      %1099 = vmatprep.subr.bf16.mxu0 %v619
      %1100 = vmatpush1.bf16.msra.mxu0 %v618
      %1101 = vmatprep.subr.bf16.mxu0 %v615
      %1102 = vmatpush1.bf16.msra.mxu0 %v614
      %1103 = vmatprep.subr.bf16.mxu0 %v611
      %1104 = vmatpush1.bf16.msra.mxu0 %v610
      %1105 = vmatprep.subr.bf16.mxu0 0
      %1106 = vmatpush2.bf16.msra.mxu0 0
      %1107 = vmatprep.subr.bf16.mxu0 0
      %1108 = vmatpush2.bf16.msra.mxu0 0
      %1109 = vmatprep.subr.bf16.mxu0 0
      %1110 = vmatpush2.bf16.msra.mxu0 0
      %1111 = vmatprep.subr.bf16.mxu0 0
      %1112 = vmatpush2.bf16.msra.mxu0 0
      %1113 = vmatprep.subr.bf16.mxu0 %v655
      %1114 = vmatpush2.bf16.msra.mxu0 %v654
      %1115 = vmatprep.subr.bf16.mxu0 %v651
      %1116 = vmatpush2.bf16.msra.mxu0 %v650
      %1117 = vmatprep.subr.bf16.mxu0 %v647
      %1118 = vmatpush2.bf16.msra.mxu0 %v646
      %1119 = vmatprep.subr.bf16.mxu0 %v643
      %1120 = vmatpush2.bf16.msra.mxu0 %v642
      %1121 = vmatprep.mubr.bf16.mxu0 %v1046
      %1122 = vmatmul.mubr.bf16.gmra.mxu0 %v1044
      %v1123 = vpop.f32.mrf.mxu0
      %v1124 = vadd.f32 %v716, %v1123
      %v1125 = vpop.f32.mrf.mxu0
      %v1126 = vadd.f32 %v720, %v1125
      %v1127 = vpop.f32.mrf.mxu0
      %v1128 = vpop.f32.mrf.mxu0
      %1129 = vdwg.mxu0
      %v1130 = vmax.f32 %v1083, 0.0
      %v1131 = vmax.f32 %v1085, 0.0
      %v1132 = vmax.f32 %v1124, 0.0
      %v1133 = vmax.f32 %v1126, 0.0
      %1135 = vrot.lane.b32.xlu0 %v1014, 64
      %v1136 = vpop.permute.xlu0 %1135
      %v1138 = vsel %vm460, %v456, %v1136
      %v1140 = vsel %vm460, %v1039, 0
      %1142 = vmatprep.subr.bf16.mxu0 %v637
      %1143 = vmatpush1.bf16.msra.mxu0 %v636
      %1144 = vmatprep.subr.bf16.mxu0 %v633
      %1145 = vmatpush1.bf16.msra.mxu0 %v632
      %1146 = vmatprep.subr.bf16.mxu0 %v629
      %1147 = vmatpush1.bf16.msra.mxu0 %v628
      %1148 = vmatprep.subr.bf16.mxu0 %v625
      %1149 = vmatpush1.bf16.msra.mxu0 %v624
      %1150 = vmatprep.subr.bf16.mxu0 %v621
      %1151 = vmatpush1.bf16.msra.mxu0 %v620
      %1152 = vmatprep.subr.bf16.mxu0 %v617
      %1153 = vmatpush1.bf16.msra.mxu0 %v616
      %1154 = vmatprep.subr.bf16.mxu0 %v613
      %1155 = vmatpush1.bf16.msra.mxu0 %v612
      %1156 = vmatprep.subr.bf16.mxu0 %v609
      %1157 = vmatpush1.bf16.msra.mxu0 %v608
      %1158 = vmatprep.subr.bf16.mxu0 0
      %1159 = vmatpush2.bf16.msra.mxu0 0
      %1160 = vmatprep.subr.bf16.mxu0 0
      %1161 = vmatpush2.bf16.msra.mxu0 0
      %1162 = vmatprep.subr.bf16.mxu0 0
      %1163 = vmatpush2.bf16.msra.mxu0 0
      %1164 = vmatprep.subr.bf16.mxu0 0
      %1165 = vmatpush2.bf16.msra.mxu0 0
      %1166 = vmatprep.subr.bf16.mxu0 %v653
      %1167 = vmatpush2.bf16.msra.mxu0 %v652
      %1168 = vmatprep.subr.bf16.mxu0 %v649
      %1169 = vmatpush2.bf16.msra.mxu0 %v648
      %1170 = vmatprep.subr.bf16.mxu0 %v645
      %1171 = vmatpush2.bf16.msra.mxu0 %v644
      %1172 = vmatprep.subr.bf16.mxu0 %v641
      %1173 = vmatpush2.bf16.msra.mxu0 %v640
      %1174 = vmatprep.mubr.bf16.mxu0 %v1140
      %1175 = vmatmul.mubr.bf16.gmra.mxu0 %v1138
      %v1176 = vpop.f32.mrf.mxu0
      %v1177 = vadd.f32 %v708, %v1176
      %v1178 = vpop.f32.mrf.mxu0
      %v1179 = vadd.f32 %v712, %v1178
      %v1180 = vpop.f32.mrf.mxu0
      %v1181 = vpop.f32.mrf.mxu0
      %1182 = vdwg.mxu0
      %1183 = vmatprep.subr.bf16.mxu0 %v639
      %1184 = vmatpush1.bf16.msra.mxu0 %v638
      %1185 = vmatprep.subr.bf16.mxu0 %v635
      %1186 = vmatpush1.bf16.msra.mxu0 %v634
      %1187 = vmatprep.subr.bf16.mxu0 %v631
      %1188 = vmatpush1.bf16.msra.mxu0 %v630
      %1189 = vmatprep.subr.bf16.mxu0 %v627
      %1190 = vmatpush1.bf16.msra.mxu0 %v626
      %1191 = vmatprep.subr.bf16.mxu0 %v623
      %1192 = vmatpush1.bf16.msra.mxu0 %v622
      %1193 = vmatprep.subr.bf16.mxu0 %v619
      %1194 = vmatpush1.bf16.msra.mxu0 %v618
      %1195 = vmatprep.subr.bf16.mxu0 %v615
      %1196 = vmatpush1.bf16.msra.mxu0 %v614
      %1197 = vmatprep.subr.bf16.mxu0 %v611
      %1198 = vmatpush1.bf16.msra.mxu0 %v610
      %1199 = vmatprep.subr.bf16.mxu0 0
      %1200 = vmatpush2.bf16.msra.mxu0 0
      %1201 = vmatprep.subr.bf16.mxu0 0
      %1202 = vmatpush2.bf16.msra.mxu0 0
      %1203 = vmatprep.subr.bf16.mxu0 0
      %1204 = vmatpush2.bf16.msra.mxu0 0
      %1205 = vmatprep.subr.bf16.mxu0 0
      %1206 = vmatpush2.bf16.msra.mxu0 0
      %1207 = vmatprep.subr.bf16.mxu0 %v655
      %1208 = vmatpush2.bf16.msra.mxu0 %v654
      %1209 = vmatprep.subr.bf16.mxu0 %v651
      %1210 = vmatpush2.bf16.msra.mxu0 %v650
      %1211 = vmatprep.subr.bf16.mxu0 %v647
      %1212 = vmatpush2.bf16.msra.mxu0 %v646
      %1213 = vmatprep.subr.bf16.mxu0 %v643
      %1214 = vmatpush2.bf16.msra.mxu0 %v642
      %1215 = vmatprep.mubr.bf16.mxu0 %v1140
      %1216 = vmatmul.mubr.bf16.gmra.mxu0 %v1138
      %v1217 = vpop.f32.mrf.mxu0
      %v1218 = vadd.f32 %v716, %v1217
      %v1219 = vpop.f32.mrf.mxu0
      %v1220 = vadd.f32 %v720, %v1219
      %v1221 = vpop.f32.mrf.mxu0
      %v1222 = vpop.f32.mrf.mxu0
      %1223 = vdwg.mxu0
      %v1224 = vmax.f32 %v1177, 0.0
      %v1225 = vmax.f32 %v1179, 0.0
      %v1226 = vmax.f32 %v1218, 0.0
      %v1227 = vmax.f32 %v1220, 0.0
      %v1228 = vmax.f32 %v1130, %v1224
      %v1229 = vmax.f32 %v1131, %v1225
      %v1230 = vmax.f32 %v1132, %v1226
      %v1231 = vmax.f32 %v1133, %v1227
      %1233 = vrot.lane.b32.xlu0 %v1228, 96
      %v1234 = vpop.permute.xlu0 %1233
      %v1236 = vmax.f32 %v1228, %v1234
      %1238 = vrot.lane.b32.xlu0 %v1229, 96
      %v1239 = vpop.permute.xlu0 %1238
      %v1241 = vmax.f32 %v1229, %v1239
      %1243 = vrot.lane.b32.xlu0 %v1230, 96
      %v1244 = vpop.permute.xlu0 %1243
      %v1246 = vmax.f32 %v1230, %v1244
      %1248 = vrot.lane.b32.xlu0 %v1231, 96
      %v1249 = vpop.permute.xlu0 %1248
      %v1251 = vmax.f32 %v1231, %v1249
      %1253 = vrot.lane.b32.xlu0 %v1236, 96
      %v1254 = vpop.permute.xlu0 %1253
      %1257 = vrot.lane.b32.xlu0 %v1241, 64
      %v1258 = vpop.permute.xlu0 %1257
      %1260 = vrot.lane.b32.xlu0 %v1241, 32
      %v1261 = vpop.permute.xlu0 %1260
      %1264 = vrot.lane.b32.xlu0 %v1246, 96
      %v1265 = vpop.permute.xlu0 %1264
      %1268 = vrot.lane.b32.xlu0 %v1251, 64
      %v1269 = vpop.permute.xlu0 %1268
      %1271 = vrot.lane.b32.xlu0 %v1251, 32
      %v1272 = vpop.permute.xlu0 %1271
      %v1274 = vsel %vm378, %v1236, %v1254
      %v1275 = vsel %vm460, %v1274, %v1258
      %v1276 = vsel %vm955, %v1275, %v1261
      %v1277 = vsel %vm378, %v1246, %v1265
      %v1278 = vsel %vm460, %v1277, %v1269
      %v1279 = vsel %vm955, %v1278, %v1272
      %v1280 = vpack.c.bf16 %v1276, %v1276
      %v1281 = vpack.c.bf16 %v1279, %v1279
      %v1284 = vcombine.low %v1280, %v1281
      %v1286 = vunpack.c.l.s4 1966171168
      %v1287 = vunpack.c.0.s8 %v1286
      %v1288 = vlaneseq
      %v1289 = vshrl.u32 %v1288, 7
      %v1290 = vsub.s32 %v1287, %v1289
      %v1291 = vrot.slane %v1284, %v1290
      %v1293 = vunpack.c.l.s4 1966171168
      %v1294 = vunpack.c.0.s8 %v1293
      %v1295 = vlaneseq
      %v1296 = vshrl.u32 %v1295, 7
      %v1297 = vsub.s32 %v1294, %v1296
      %v1298 = vrot.slane %v1291, %v1297
      %s1300 = scalar_lea.vmem %s305, 2
      %v1301 = vld [vmem:[%s1300] sm:$0x3]
      %v1302 = vsel %vm986, %v1298, %v1301
      %1303 = vst [vmem:[%s1300] sm:$0x3] %v1302
      %s1304 = scalar_lea.vmem %s278, 6
      %v1305 = vld [vmem:[%s1304] sm:$0x1]
      %v1308 = vunpack.c.l.s4 1966171168
      %v1309 = vunpack.c.0.s8 %v1308
      %v1310 = vlaneseq
      %v1311 = vshrl.u32 %v1310, 7
      %v1312 = vsub.s32 %v1309, %v1311
      %v1313 = vrot.slane %v1305, %v1312
      %v1315 = vunpack.c.l.s4 1966171168
      %v1316 = vunpack.c.0.s8 %v1315
      %v1317 = vlaneseq
      %v1318 = vshrl.u32 %v1317, 7
      %v1319 = vsub.s32 %v1316, %v1318
      %v1320 = vrot.slane %v1313, %v1319
      %v1322 = vshrl.u32 %v1320, 16
      %1324 = vrot.lane.b32.xlu0 %v1322, 32
      %v1325 = vpop.permute.xlu0 %1324
      %v1328 = vsel %vm378, %v1305, %v1325
      %s1329 = scalar_lea.vmem %s278, 7
      %v1330 = vld [vmem:[%s1329] sm:$0x1]
      %v1333 = vunpack.c.l.s4 1966171168
      %v1334 = vunpack.c.0.s8 %v1333
      %v1335 = vlaneseq
      %v1336 = vshrl.u32 %v1335, 7
      %v1337 = vsub.s32 %v1334, %v1336
      %v1338 = vrot.slane %v1330, %v1337
      %v1340 = vunpack.c.l.s4 1966171168
      %v1341 = vunpack.c.0.s8 %v1340
      %v1342 = vlaneseq
      %v1343 = vshrl.u32 %v1342, 7
      %v1344 = vsub.s32 %v1341, %v1343
      %v1345 = vrot.slane %v1338, %v1344
      %v1347 = vshrl.u32 %v1345, 16
      %1349 = vrot.lane.b32.xlu0 %v1347, 32
      %v1350 = vpop.permute.xlu0 %1349
      %v1353 = vsel %vm378, %v1330, %v1350
      %1355 = vrot.lane.b32.xlu0 %v1039, 64
      %v1356 = vpop.permute.xlu0 %1355
      %v1358 = vsel %vm460, %v1014, %v1356
      %v1360 = vsel %vm460, %v1328, 0
      %1362 = vmatprep.subr.bf16.mxu0 %v637
      %1363 = vmatpush1.bf16.msra.mxu0 %v636
      %1364 = vmatprep.subr.bf16.mxu0 %v633
      %1365 = vmatpush1.bf16.msra.mxu0 %v632
      %1366 = vmatprep.subr.bf16.mxu0 %v629
      %1367 = vmatpush1.bf16.msra.mxu0 %v628
      %1368 = vmatprep.subr.bf16.mxu0 %v625
      %1369 = vmatpush1.bf16.msra.mxu0 %v624
      %1370 = vmatprep.subr.bf16.mxu0 %v621
      %1371 = vmatpush1.bf16.msra.mxu0 %v620
      %1372 = vmatprep.subr.bf16.mxu0 %v617
      %1373 = vmatpush1.bf16.msra.mxu0 %v616
      %1374 = vmatprep.subr.bf16.mxu0 %v613
      %1375 = vmatpush1.bf16.msra.mxu0 %v612
      %1376 = vmatprep.subr.bf16.mxu0 %v609
      %1377 = vmatpush1.bf16.msra.mxu0 %v608
      %1378 = vmatprep.subr.bf16.mxu0 0
      %1379 = vmatpush2.bf16.msra.mxu0 0
      %1380 = vmatprep.subr.bf16.mxu0 0
      %1381 = vmatpush2.bf16.msra.mxu0 0
      %1382 = vmatprep.subr.bf16.mxu0 0
      %1383 = vmatpush2.bf16.msra.mxu0 0
      %1384 = vmatprep.subr.bf16.mxu0 0
      %1385 = vmatpush2.bf16.msra.mxu0 0
      %1386 = vmatprep.subr.bf16.mxu0 %v653
      %1387 = vmatpush2.bf16.msra.mxu0 %v652
      %1388 = vmatprep.subr.bf16.mxu0 %v649
      %1389 = vmatpush2.bf16.msra.mxu0 %v648
      %1390 = vmatprep.subr.bf16.mxu0 %v645
      %1391 = vmatpush2.bf16.msra.mxu0 %v644
      %1392 = vmatprep.subr.bf16.mxu0 %v641
      %1393 = vmatpush2.bf16.msra.mxu0 %v640
      %1394 = vmatprep.mubr.bf16.mxu0 %v1360
      %1395 = vmatmul.mubr.bf16.gmra.mxu0 %v1358
      %v1396 = vpop.f32.mrf.mxu0
      %v1397 = vadd.f32 %v708, %v1396
      %v1398 = vpop.f32.mrf.mxu0
      %v1399 = vadd.f32 %v712, %v1398
      %v1400 = vpop.f32.mrf.mxu0
      %v1401 = vpop.f32.mrf.mxu0
      %1402 = vdwg.mxu0
      %1403 = vmatprep.subr.bf16.mxu0 %v639
      %1404 = vmatpush1.bf16.msra.mxu0 %v638
      %1405 = vmatprep.subr.bf16.mxu0 %v635
      %1406 = vmatpush1.bf16.msra.mxu0 %v634
      %1407 = vmatprep.subr.bf16.mxu0 %v631
      %1408 = vmatpush1.bf16.msra.mxu0 %v630
      %1409 = vmatprep.subr.bf16.mxu0 %v627
      %1410 = vmatpush1.bf16.msra.mxu0 %v626
      %1411 = vmatprep.subr.bf16.mxu0 %v623
      %1412 = vmatpush1.bf16.msra.mxu0 %v622
      %1413 = vmatprep.subr.bf16.mxu0 %v619
      %1414 = vmatpush1.bf16.msra.mxu0 %v618
      %1415 = vmatprep.subr.bf16.mxu0 %v615
      %1416 = vmatpush1.bf16.msra.mxu0 %v614
      %1417 = vmatprep.subr.bf16.mxu0 %v611
      %1418 = vmatpush1.bf16.msra.mxu0 %v610
      %1419 = vmatprep.subr.bf16.mxu0 0
      %1420 = vmatpush2.bf16.msra.mxu0 0
      %1421 = vmatprep.subr.bf16.mxu0 0
      %1422 = vmatpush2.bf16.msra.mxu0 0
      %1423 = vmatprep.subr.bf16.mxu0 0
      %1424 = vmatpush2.bf16.msra.mxu0 0
      %1425 = vmatprep.subr.bf16.mxu0 0
      %1426 = vmatpush2.bf16.msra.mxu0 0
      %1427 = vmatprep.subr.bf16.mxu0 %v655
      %1428 = vmatpush2.bf16.msra.mxu0 %v654
      %1429 = vmatprep.subr.bf16.mxu0 %v651
      %1430 = vmatpush2.bf16.msra.mxu0 %v650
      %1431 = vmatprep.subr.bf16.mxu0 %v647
      %1432 = vmatpush2.bf16.msra.mxu0 %v646
      %1433 = vmatprep.subr.bf16.mxu0 %v643
      %1434 = vmatpush2.bf16.msra.mxu0 %v642
      %1435 = vmatprep.mubr.bf16.mxu0 %v1360
      %1436 = vmatmul.mubr.bf16.gmra.mxu0 %v1358
      %v1437 = vpop.f32.mrf.mxu0
      %v1438 = vadd.f32 %v716, %v1437
      %v1439 = vpop.f32.mrf.mxu0
      %v1440 = vadd.f32 %v720, %v1439
      %v1441 = vpop.f32.mrf.mxu0
      %v1442 = vpop.f32.mrf.mxu0
      %1443 = vdwg.mxu0
      %v1444 = vmax.f32 %v1397, 0.0
      %v1445 = vmax.f32 %v1399, 0.0
      %v1446 = vmax.f32 %v1438, 0.0
      %v1447 = vmax.f32 %v1440, 0.0
      %1449 = vrot.lane.b32.xlu0 %v1328, 64
      %v1450 = vpop.permute.xlu0 %1449
      %v1452 = vsel %vm460, %v1039, %v1450
      %v1454 = vsel %vm460, %v1353, 0
      %1456 = vmatprep.subr.bf16.mxu0 %v637
      %1457 = vmatpush1.bf16.msra.mxu0 %v636
      %1458 = vmatprep.subr.bf16.mxu0 %v633
      %1459 = vmatpush1.bf16.msra.mxu0 %v632
      %1460 = vmatprep.subr.bf16.mxu0 %v629
      %1461 = vmatpush1.bf16.msra.mxu0 %v628
      %1462 = vmatprep.subr.bf16.mxu0 %v625
      %1463 = vmatpush1.bf16.msra.mxu0 %v624
      %1464 = vmatprep.subr.bf16.mxu0 %v621
      %1465 = vmatpush1.bf16.msra.mxu0 %v620
      %1466 = vmatprep.subr.bf16.mxu0 %v617
      %1467 = vmatpush1.bf16.msra.mxu0 %v616
      %1468 = vmatprep.subr.bf16.mxu0 %v613
      %1469 = vmatpush1.bf16.msra.mxu0 %v612
      %1470 = vmatprep.subr.bf16.mxu0 %v609
      %1471 = vmatpush1.bf16.msra.mxu0 %v608
      %1472 = vmatprep.subr.bf16.mxu0 0
      %1473 = vmatpush2.bf16.msra.mxu0 0
      %1474 = vmatprep.subr.bf16.mxu0 0
      %1475 = vmatpush2.bf16.msra.mxu0 0
      %1476 = vmatprep.subr.bf16.mxu0 0
      %1477 = vmatpush2.bf16.msra.mxu0 0
      %1478 = vmatprep.subr.bf16.mxu0 0
      %1479 = vmatpush2.bf16.msra.mxu0 0
      %1480 = vmatprep.subr.bf16.mxu0 %v653
      %1481 = vmatpush2.bf16.msra.mxu0 %v652
      %1482 = vmatprep.subr.bf16.mxu0 %v649
      %1483 = vmatpush2.bf16.msra.mxu0 %v648
      %1484 = vmatprep.subr.bf16.mxu0 %v645
      %1485 = vmatpush2.bf16.msra.mxu0 %v644
      %1486 = vmatprep.subr.bf16.mxu0 %v641
      %1487 = vmatpush2.bf16.msra.mxu0 %v640
      %1488 = vmatprep.mubr.bf16.mxu0 %v1454
      %1489 = vmatmul.mubr.bf16.gmra.mxu0 %v1452
      %v1490 = vpop.f32.mrf.mxu0
      %v1491 = vadd.f32 %v708, %v1490
      %v1492 = vpop.f32.mrf.mxu0
      %v1493 = vadd.f32 %v712, %v1492
      %v1494 = vpop.f32.mrf.mxu0
      %v1495 = vpop.f32.mrf.mxu0
      %1496 = vdwg.mxu0
      %1497 = vmatprep.subr.bf16.mxu0 %v639
      %1498 = vmatpush1.bf16.msra.mxu0 %v638
      %1499 = vmatprep.subr.bf16.mxu0 %v635
      %1500 = vmatpush1.bf16.msra.mxu0 %v634
      %1501 = vmatprep.subr.bf16.mxu0 %v631
      %1502 = vmatpush1.bf16.msra.mxu0 %v630
      %1503 = vmatprep.subr.bf16.mxu0 %v627
      %1504 = vmatpush1.bf16.msra.mxu0 %v626
      %1505 = vmatprep.subr.bf16.mxu0 %v623
      %1506 = vmatpush1.bf16.msra.mxu0 %v622
      %1507 = vmatprep.subr.bf16.mxu0 %v619
      %1508 = vmatpush1.bf16.msra.mxu0 %v618
      %1509 = vmatprep.subr.bf16.mxu0 %v615
      %1510 = vmatpush1.bf16.msra.mxu0 %v614
      %1511 = vmatprep.subr.bf16.mxu0 %v611
      %1512 = vmatpush1.bf16.msra.mxu0 %v610
      %1513 = vmatprep.subr.bf16.mxu0 0
      %1514 = vmatpush2.bf16.msra.mxu0 0
      %1515 = vmatprep.subr.bf16.mxu0 0
      %1516 = vmatpush2.bf16.msra.mxu0 0
      %1517 = vmatprep.subr.bf16.mxu0 0
      %1518 = vmatpush2.bf16.msra.mxu0 0
      %1519 = vmatprep.subr.bf16.mxu0 0
      %1520 = vmatpush2.bf16.msra.mxu0 0
      %1521 = vmatprep.subr.bf16.mxu0 %v655
      %1522 = vmatpush2.bf16.msra.mxu0 %v654
      %1523 = vmatprep.subr.bf16.mxu0 %v651
      %1524 = vmatpush2.bf16.msra.mxu0 %v650
      %1525 = vmatprep.subr.bf16.mxu0 %v647
      %1526 = vmatpush2.bf16.msra.mxu0 %v646
      %1527 = vmatprep.subr.bf16.mxu0 %v643
      %1528 = vmatpush2.bf16.msra.mxu0 %v642
      %1529 = vmatprep.mubr.bf16.mxu0 %v1454
      %1530 = vmatmul.mubr.bf16.gmra.mxu0 %v1452
      %v1531 = vpop.f32.mrf.mxu0
      %v1532 = vadd.f32 %v716, %v1531
      %v1533 = vpop.f32.mrf.mxu0
      %v1534 = vadd.f32 %v720, %v1533
      %v1535 = vpop.f32.mrf.mxu0
      %v1536 = vpop.f32.mrf.mxu0
      %1537 = vdwg.mxu0
      %v1538 = vmax.f32 %v1491, 0.0
      %v1539 = vmax.f32 %v1493, 0.0
      %v1540 = vmax.f32 %v1532, 0.0
      %v1541 = vmax.f32 %v1534, 0.0
      %v1542 = vmax.f32 %v1444, %v1538
      %v1543 = vmax.f32 %v1445, %v1539
      %v1544 = vmax.f32 %v1446, %v1540
      %v1545 = vmax.f32 %v1447, %v1541
      %1547 = vrot.lane.b32.xlu0 %v1542, 96
      %v1548 = vpop.permute.xlu0 %1547
      %v1550 = vmax.f32 %v1542, %v1548
      %1552 = vrot.lane.b32.xlu0 %v1543, 96
      %v1553 = vpop.permute.xlu0 %1552
      %v1555 = vmax.f32 %v1543, %v1553
      %1557 = vrot.lane.b32.xlu0 %v1544, 96
      %v1558 = vpop.permute.xlu0 %1557
      %v1560 = vmax.f32 %v1544, %v1558
      %1562 = vrot.lane.b32.xlu0 %v1545, 96
      %v1563 = vpop.permute.xlu0 %1562
      %v1565 = vmax.f32 %v1545, %v1563
      %1567 = vrot.lane.b32.xlu0 %v1550, 96
      %v1568 = vpop.permute.xlu0 %1567
      %1571 = vrot.lane.b32.xlu0 %v1555, 64
      %v1572 = vpop.permute.xlu0 %1571
      %1574 = vrot.lane.b32.xlu0 %v1555, 32
      %v1575 = vpop.permute.xlu0 %1574
      %1578 = vrot.lane.b32.xlu0 %v1560, 96
      %v1579 = vpop.permute.xlu0 %1578
      %1582 = vrot.lane.b32.xlu0 %v1565, 64
      %v1583 = vpop.permute.xlu0 %1582
      %1585 = vrot.lane.b32.xlu0 %v1565, 32
      %v1586 = vpop.permute.xlu0 %1585
      %v1588 = vsel %vm378, %v1550, %v1568
      %v1589 = vsel %vm460, %v1588, %v1572
      %v1590 = vsel %vm955, %v1589, %v1575
      %v1591 = vsel %vm378, %v1560, %v1579
      %v1592 = vsel %vm460, %v1591, %v1583
      %v1593 = vsel %vm955, %v1592, %v1586
      %v1594 = vpack.c.bf16 %v1590, %v1590
      %v1595 = vpack.c.bf16 %v1593, %v1593
      %v1598 = vcombine.low %v1594, %v1595
      %v1600 = vunpack.c.l.s4 1966171168
      %v1601 = vunpack.c.0.s8 %v1600
      %v1602 = vlaneseq
      %v1603 = vshrl.u32 %v1602, 7
      %v1604 = vsub.s32 %v1601, %v1603
      %v1605 = vrot.slane %v1598, %v1604
      %v1607 = vunpack.c.l.s4 1966171168
      %v1608 = vunpack.c.0.s8 %v1607
      %v1609 = vlaneseq
      %v1610 = vshrl.u32 %v1609, 7
      %v1611 = vsub.s32 %v1608, %v1610
      %v1612 = vrot.slane %v1605, %v1611
      %s1614 = scalar_lea.vmem %s305, 4
      %v1615 = vld [vmem:[%s1614] sm:$0x3]
      %v1616 = vsel %vm986, %v1612, %v1615
      %1617 = vst [vmem:[%s1614] sm:$0x3] %v1616
      %s1618 = scalar_lea.vmem %s278, 8
      %v1619 = vld [vmem:[%s1618] sm:$0x1]
      %v1622 = vunpack.c.l.s4 1966171168
      %v1623 = vunpack.c.0.s8 %v1622
      %v1624 = vlaneseq
      %v1625 = vshrl.u32 %v1624, 7
      %v1626 = vsub.s32 %v1623, %v1625
      %v1627 = vrot.slane %v1619, %v1626
      %v1629 = vunpack.c.l.s4 1966171168
      %v1630 = vunpack.c.0.s8 %v1629
      %v1631 = vlaneseq
      %v1632 = vshrl.u32 %v1631, 7
      %v1633 = vsub.s32 %v1630, %v1632
      %v1634 = vrot.slane %v1627, %v1633
      %v1636 = vshrl.u32 %v1634, 16
      %1638 = vrot.lane.b32.xlu0 %v1636, 32
      %v1639 = vpop.permute.xlu0 %1638
      %v1642 = vsel %vm378, %v1619, %v1639
      %s1643 = scalar_lea.vmem %s278, 9
      %v1644 = vld [vmem:[%s1643] sm:$0x1]
      %v1647 = vunpack.c.l.s4 1966171168
      %v1648 = vunpack.c.0.s8 %v1647
      %v1649 = vlaneseq
      %v1650 = vshrl.u32 %v1649, 7
      %v1651 = vsub.s32 %v1648, %v1650
      %v1652 = vrot.slane %v1644, %v1651
      %v1654 = vunpack.c.l.s4 1966171168
      %v1655 = vunpack.c.0.s8 %v1654
      %v1656 = vlaneseq
      %v1657 = vshrl.u32 %v1656, 7
      %v1658 = vsub.s32 %v1655, %v1657
      %v1659 = vrot.slane %v1652, %v1658
      %v1661 = vshrl.u32 %v1659, 16
      %1663 = vrot.lane.b32.xlu0 %v1661, 32
      %v1664 = vpop.permute.xlu0 %1663
      %v1667 = vsel %vm378, %v1644, %v1664
      %1669 = vrot.lane.b32.xlu0 %v1353, 64
      %v1670 = vpop.permute.xlu0 %1669
      %v1672 = vsel %vm460, %v1328, %v1670
      %v1674 = vsel %vm460, %v1642, 0
      %1676 = vmatprep.subr.bf16.mxu0 %v637
      %1677 = vmatpush1.bf16.msra.mxu0 %v636
      %1678 = vmatprep.subr.bf16.mxu0 %v633
      %1679 = vmatpush1.bf16.msra.mxu0 %v632
      %1680 = vmatprep.subr.bf16.mxu0 %v629
      %1681 = vmatpush1.bf16.msra.mxu0 %v628
      %1682 = vmatprep.subr.bf16.mxu0 %v625
      %1683 = vmatpush1.bf16.msra.mxu0 %v624
      %1684 = vmatprep.subr.bf16.mxu0 %v621
      %1685 = vmatpush1.bf16.msra.mxu0 %v620
      %1686 = vmatprep.subr.bf16.mxu0 %v617
      %1687 = vmatpush1.bf16.msra.mxu0 %v616
      %1688 = vmatprep.subr.bf16.mxu0 %v613
      %1689 = vmatpush1.bf16.msra.mxu0 %v612
      %1690 = vmatprep.subr.bf16.mxu0 %v609
      %1691 = vmatpush1.bf16.msra.mxu0 %v608
      %1692 = vmatprep.subr.bf16.mxu0 0
      %1693 = vmatpush2.bf16.msra.mxu0 0
      %1694 = vmatprep.subr.bf16.mxu0 0
      %1695 = vmatpush2.bf16.msra.mxu0 0
      %1696 = vmatprep.subr.bf16.mxu0 0
      %1697 = vmatpush2.bf16.msra.mxu0 0
      %1698 = vmatprep.subr.bf16.mxu0 0
      %1699 = vmatpush2.bf16.msra.mxu0 0
      %1700 = vmatprep.subr.bf16.mxu0 %v653
      %1701 = vmatpush2.bf16.msra.mxu0 %v652
      %1702 = vmatprep.subr.bf16.mxu0 %v649
      %1703 = vmatpush2.bf16.msra.mxu0 %v648
      %1704 = vmatprep.subr.bf16.mxu0 %v645
      %1705 = vmatpush2.bf16.msra.mxu0 %v644
      %1706 = vmatprep.subr.bf16.mxu0 %v641
      %1707 = vmatpush2.bf16.msra.mxu0 %v640
      %1708 = vmatprep.mubr.bf16.mxu0 %v1674
      %1709 = vmatmul.mubr.bf16.gmra.mxu0 %v1672
      %v1710 = vpop.f32.mrf.mxu0
      %v1711 = vadd.f32 %v708, %v1710
      %v1712 = vpop.f32.mrf.mxu0
      %v1713 = vadd.f32 %v712, %v1712
      %v1714 = vpop.f32.mrf.mxu0
      %v1715 = vpop.f32.mrf.mxu0
      %1716 = vdwg.mxu0
      %1717 = vmatprep.subr.bf16.mxu0 %v639
      %1718 = vmatpush1.bf16.msra.mxu0 %v638
      %1719 = vmatprep.subr.bf16.mxu0 %v635
      %1720 = vmatpush1.bf16.msra.mxu0 %v634
      %1721 = vmatprep.subr.bf16.mxu0 %v631
      %1722 = vmatpush1.bf16.msra.mxu0 %v630
      %1723 = vmatprep.subr.bf16.mxu0 %v627
      %1724 = vmatpush1.bf16.msra.mxu0 %v626
      %1725 = vmatprep.subr.bf16.mxu0 %v623
      %1726 = vmatpush1.bf16.msra.mxu0 %v622
      %1727 = vmatprep.subr.bf16.mxu0 %v619
      %1728 = vmatpush1.bf16.msra.mxu0 %v618
      %1729 = vmatprep.subr.bf16.mxu0 %v615
      %1730 = vmatpush1.bf16.msra.mxu0 %v614
      %1731 = vmatprep.subr.bf16.mxu0 %v611
      %1732 = vmatpush1.bf16.msra.mxu0 %v610
      %1733 = vmatprep.subr.bf16.mxu0 0
      %1734 = vmatpush2.bf16.msra.mxu0 0
      %1735 = vmatprep.subr.bf16.mxu0 0
      %1736 = vmatpush2.bf16.msra.mxu0 0
      %1737 = vmatprep.subr.bf16.mxu0 0
      %1738 = vmatpush2.bf16.msra.mxu0 0
      %1739 = vmatprep.subr.bf16.mxu0 0
      %1740 = vmatpush2.bf16.msra.mxu0 0
      %1741 = vmatprep.subr.bf16.mxu0 %v655
      %1742 = vmatpush2.bf16.msra.mxu0 %v654
      %1743 = vmatprep.subr.bf16.mxu0 %v651
      %1744 = vmatpush2.bf16.msra.mxu0 %v650
      %1745 = vmatprep.subr.bf16.mxu0 %v647
      %1746 = vmatpush2.bf16.msra.mxu0 %v646
      %1747 = vmatprep.subr.bf16.mxu0 %v643
      %1748 = vmatpush2.bf16.msra.mxu0 %v642
      %1749 = vmatprep.mubr.bf16.mxu0 %v1674
      %1750 = vmatmul.mubr.bf16.gmra.mxu0 %v1672
      %v1751 = vpop.f32.mrf.mxu0
      %v1752 = vadd.f32 %v716, %v1751
      %v1753 = vpop.f32.mrf.mxu0
      %v1754 = vadd.f32 %v720, %v1753
      %v1755 = vpop.f32.mrf.mxu0
      %v1756 = vpop.f32.mrf.mxu0
      %1757 = vdwg.mxu0
      %v1758 = vmax.f32 %v1711, 0.0
      %v1759 = vmax.f32 %v1713, 0.0
      %v1760 = vmax.f32 %v1752, 0.0
      %v1761 = vmax.f32 %v1754, 0.0
      %1763 = vrot.lane.b32.xlu0 %v1642, 64
      %v1764 = vpop.permute.xlu0 %1763
      %v1766 = vsel %vm460, %v1353, %v1764
      %v1768 = vsel %vm460, %v1667, 0
      %1770 = vmatprep.subr.bf16.mxu0 %v637
      %1771 = vmatpush1.bf16.msra.mxu0 %v636
      %1772 = vmatprep.subr.bf16.mxu0 %v633
      %1773 = vmatpush1.bf16.msra.mxu0 %v632
      %1774 = vmatprep.subr.bf16.mxu0 %v629
      %1775 = vmatpush1.bf16.msra.mxu0 %v628
      %1776 = vmatprep.subr.bf16.mxu0 %v625
      %1777 = vmatpush1.bf16.msra.mxu0 %v624
      %1778 = vmatprep.subr.bf16.mxu0 %v621
      %1779 = vmatpush1.bf16.msra.mxu0 %v620
      %1780 = vmatprep.subr.bf16.mxu0 %v617
      %1781 = vmatpush1.bf16.msra.mxu0 %v616
      %1782 = vmatprep.subr.bf16.mxu0 %v613
      %1783 = vmatpush1.bf16.msra.mxu0 %v612
      %1784 = vmatprep.subr.bf16.mxu0 %v609
      %1785 = vmatpush1.bf16.msra.mxu0 %v608
      %1786 = vmatprep.subr.bf16.mxu0 0
      %1787 = vmatpush2.bf16.msra.mxu0 0
      %1788 = vmatprep.subr.bf16.mxu0 0
      %1789 = vmatpush2.bf16.msra.mxu0 0
      %1790 = vmatprep.subr.bf16.mxu0 0
      %1791 = vmatpush2.bf16.msra.mxu0 0
      %1792 = vmatprep.subr.bf16.mxu0 0
      %1793 = vmatpush2.bf16.msra.mxu0 0
      %1794 = vmatprep.subr.bf16.mxu0 %v653
      %1795 = vmatpush2.bf16.msra.mxu0 %v652
      %1796 = vmatprep.subr.bf16.mxu0 %v649
      %1797 = vmatpush2.bf16.msra.mxu0 %v648
      %1798 = vmatprep.subr.bf16.mxu0 %v645
      %1799 = vmatpush2.bf16.msra.mxu0 %v644
      %1800 = vmatprep.subr.bf16.mxu0 %v641
      %1801 = vmatpush2.bf16.msra.mxu0 %v640
      %1802 = vmatprep.mubr.bf16.mxu0 %v1768
      %1803 = vmatmul.mubr.bf16.gmra.mxu0 %v1766
      %v1804 = vpop.f32.mrf.mxu0
      %v1805 = vadd.f32 %v708, %v1804
      %v1806 = vpop.f32.mrf.mxu0
      %v1807 = vadd.f32 %v712, %v1806
      %v1808 = vpop.f32.mrf.mxu0
      %v1809 = vpop.f32.mrf.mxu0
      %1810 = vdwg.mxu0
      %1811 = vmatprep.subr.bf16.mxu0 %v639
      %1812 = vmatpush1.bf16.msra.mxu0 %v638
      %1813 = vmatprep.subr.bf16.mxu0 %v635
      %1814 = vmatpush1.bf16.msra.mxu0 %v634
      %1815 = vmatprep.subr.bf16.mxu0 %v631
      %1816 = vmatpush1.bf16.msra.mxu0 %v630
      %1817 = vmatprep.subr.bf16.mxu0 %v627
      %1818 = vmatpush1.bf16.msra.mxu0 %v626
      %1819 = vmatprep.subr.bf16.mxu0 %v623
      %1820 = vmatpush1.bf16.msra.mxu0 %v622
      %1821 = vmatprep.subr.bf16.mxu0 %v619
      %1822 = vmatpush1.bf16.msra.mxu0 %v618
      %1823 = vmatprep.subr.bf16.mxu0 %v615
      %1824 = vmatpush1.bf16.msra.mxu0 %v614
      %1825 = vmatprep.subr.bf16.mxu0 %v611
      %1826 = vmatpush1.bf16.msra.mxu0 %v610
      %1827 = vmatprep.subr.bf16.mxu0 0
      %1828 = vmatpush2.bf16.msra.mxu0 0
      %1829 = vmatprep.subr.bf16.mxu0 0
      %1830 = vmatpush2.bf16.msra.mxu0 0
      %1831 = vmatprep.subr.bf16.mxu0 0
      %1832 = vmatpush2.bf16.msra.mxu0 0
      %1833 = vmatprep.subr.bf16.mxu0 0
      %1834 = vmatpush2.bf16.msra.mxu0 0
      %1835 = vmatprep.subr.bf16.mxu0 %v655
      %1836 = vmatpush2.bf16.msra.mxu0 %v654
      %1837 = vmatprep.subr.bf16.mxu0 %v651
      %1838 = vmatpush2.bf16.msra.mxu0 %v650
      %1839 = vmatprep.subr.bf16.mxu0 %v647
      %1840 = vmatpush2.bf16.msra.mxu0 %v646
      %1841 = vmatprep.subr.bf16.mxu0 %v643
      %1842 = vmatpush2.bf16.msra.mxu0 %v642
      %1843 = vmatprep.mubr.bf16.mxu0 %v1768
      %1844 = vmatmul.mubr.bf16.gmra.mxu0 %v1766
      %v1845 = vpop.f32.mrf.mxu0
      %v1846 = vadd.f32 %v716, %v1845
      %v1847 = vpop.f32.mrf.mxu0
      %v1848 = vadd.f32 %v720, %v1847
      %v1849 = vpop.f32.mrf.mxu0
      %v1850 = vpop.f32.mrf.mxu0
      %1851 = vdwg.mxu0
      %v1852 = vmax.f32 %v1805, 0.0
      %v1853 = vmax.f32 %v1807, 0.0
      %v1854 = vmax.f32 %v1846, 0.0
      %v1855 = vmax.f32 %v1848, 0.0
      %v1856 = vmax.f32 %v1758, %v1852
      %v1857 = vmax.f32 %v1759, %v1853
      %v1858 = vmax.f32 %v1760, %v1854
      %v1859 = vmax.f32 %v1761, %v1855
      %1861 = vrot.lane.b32.xlu0 %v1856, 96
      %v1862 = vpop.permute.xlu0 %1861
      %v1864 = vmax.f32 %v1856, %v1862
      %1866 = vrot.lane.b32.xlu0 %v1857, 96
      %v1867 = vpop.permute.xlu0 %1866
      %v1869 = vmax.f32 %v1857, %v1867
      %1871 = vrot.lane.b32.xlu0 %v1858, 96
      %v1872 = vpop.permute.xlu0 %1871
      %v1874 = vmax.f32 %v1858, %v1872
      %1876 = vrot.lane.b32.xlu0 %v1859, 96
      %v1877 = vpop.permute.xlu0 %1876
      %v1879 = vmax.f32 %v1859, %v1877
      %1881 = vrot.lane.b32.xlu0 %v1864, 96
      %v1882 = vpop.permute.xlu0 %1881
      %1885 = vrot.lane.b32.xlu0 %v1869, 64
      %v1886 = vpop.permute.xlu0 %1885
      %1888 = vrot.lane.b32.xlu0 %v1869, 32
      %v1889 = vpop.permute.xlu0 %1888
      %1892 = vrot.lane.b32.xlu0 %v1874, 96
      %v1893 = vpop.permute.xlu0 %1892
      %1896 = vrot.lane.b32.xlu0 %v1879, 64
      %v1897 = vpop.permute.xlu0 %1896
      %1899 = vrot.lane.b32.xlu0 %v1879, 32
      %v1900 = vpop.permute.xlu0 %1899
      %v1902 = vsel %vm378, %v1864, %v1882
      %v1903 = vsel %vm460, %v1902, %v1886
      %v1904 = vsel %vm955, %v1903, %v1889
      %v1905 = vsel %vm378, %v1874, %v1893
      %v1906 = vsel %vm460, %v1905, %v1897
      %v1907 = vsel %vm955, %v1906, %v1900
      %v1908 = vpack.c.bf16 %v1904, %v1904
      %v1909 = vpack.c.bf16 %v1907, %v1907
      %v1912 = vcombine.low %v1908, %v1909
      %v1914 = vunpack.c.l.s4 1966171168
      %v1915 = vunpack.c.0.s8 %v1914
      %v1916 = vlaneseq
      %v1917 = vshrl.u32 %v1916, 7
      %v1918 = vsub.s32 %v1915, %v1917
      %v1919 = vrot.slane %v1912, %v1918
      %v1921 = vunpack.c.l.s4 1966171168
      %v1922 = vunpack.c.0.s8 %v1921
      %v1923 = vlaneseq
      %v1924 = vshrl.u32 %v1923, 7
      %v1925 = vsub.s32 %v1922, %v1924
      %v1926 = vrot.slane %v1919, %v1925
      %s1928 = scalar_lea.vmem %s305, 6
      %v1929 = vld [vmem:[%s1928] sm:$0x3]
      %v1930 = vsel %vm986, %v1926, %v1929
      %1931 = vst [vmem:[%s1928] sm:$0x3] %v1930
      %s1932 = scalar_lea.vmem %s278, 10
      %v1933 = vld [vmem:[%s1932] sm:$0x1]
      %v1936 = vunpack.c.l.s4 1966171168
      %v1937 = vunpack.c.0.s8 %v1936
      %v1938 = vlaneseq
      %v1939 = vshrl.u32 %v1938, 7
      %v1940 = vsub.s32 %v1937, %v1939
      %v1941 = vrot.slane %v1933, %v1940
      %v1943 = vunpack.c.l.s4 1966171168
      %v1944 = vunpack.c.0.s8 %v1943
      %v1945 = vlaneseq
      %v1946 = vshrl.u32 %v1945, 7
      %v1947 = vsub.s32 %v1944, %v1946
      %v1948 = vrot.slane %v1941, %v1947
      %v1950 = vshrl.u32 %v1948, 16
      %1952 = vrot.lane.b32.xlu0 %v1950, 32
      %v1953 = vpop.permute.xlu0 %1952
      %v1956 = vsel %vm378, %v1933, %v1953
      %s1957 = scalar_lea.vmem %s278, 11
      %v1958 = vld [vmem:[%s1957] sm:$0x1]
      %v1961 = vunpack.c.l.s4 1966171168
      %v1962 = vunpack.c.0.s8 %v1961
      %v1963 = vlaneseq
      %v1964 = vshrl.u32 %v1963, 7
      %v1965 = vsub.s32 %v1962, %v1964
      %v1966 = vrot.slane %v1958, %v1965
      %v1968 = vunpack.c.l.s4 1966171168
      %v1969 = vunpack.c.0.s8 %v1968
      %v1970 = vlaneseq
      %v1971 = vshrl.u32 %v1970, 7
      %v1972 = vsub.s32 %v1969, %v1971
      %v1973 = vrot.slane %v1966, %v1972
      %v1975 = vshrl.u32 %v1973, 16
      %1977 = vrot.lane.b32.xlu0 %v1975, 32
      %v1978 = vpop.permute.xlu0 %1977
      %v1981 = vsel %vm378, %v1958, %v1978
      %1983 = vrot.lane.b32.xlu0 %v1667, 64
      %v1984 = vpop.permute.xlu0 %1983
      %v1986 = vsel %vm460, %v1642, %v1984
      %v1988 = vsel %vm460, %v1956, 0
      %1990 = vmatprep.subr.bf16.mxu0 %v637
      %1991 = vmatpush1.bf16.msra.mxu0 %v636
      %1992 = vmatprep.subr.bf16.mxu0 %v633
      %1993 = vmatpush1.bf16.msra.mxu0 %v632
      %1994 = vmatprep.subr.bf16.mxu0 %v629
      %1995 = vmatpush1.bf16.msra.mxu0 %v628
      %1996 = vmatprep.subr.bf16.mxu0 %v625
      %1997 = vmatpush1.bf16.msra.mxu0 %v624
      %1998 = vmatprep.subr.bf16.mxu0 %v621
      %1999 = vmatpush1.bf16.msra.mxu0 %v620
      %2000 = vmatprep.subr.bf16.mxu0 %v617
      %2001 = vmatpush1.bf16.msra.mxu0 %v616
      %2002 = vmatprep.subr.bf16.mxu0 %v613
      %2003 = vmatpush1.bf16.msra.mxu0 %v612
      %2004 = vmatprep.subr.bf16.mxu0 %v609
      %2005 = vmatpush1.bf16.msra.mxu0 %v608
      %2006 = vmatprep.subr.bf16.mxu0 0
      %2007 = vmatpush2.bf16.msra.mxu0 0
      %2008 = vmatprep.subr.bf16.mxu0 0
      %2009 = vmatpush2.bf16.msra.mxu0 0
      %2010 = vmatprep.subr.bf16.mxu0 0
      %2011 = vmatpush2.bf16.msra.mxu0 0
      %2012 = vmatprep.subr.bf16.mxu0 0
      %2013 = vmatpush2.bf16.msra.mxu0 0
      %2014 = vmatprep.subr.bf16.mxu0 %v653
      %2015 = vmatpush2.bf16.msra.mxu0 %v652
      %2016 = vmatprep.subr.bf16.mxu0 %v649
      %2017 = vmatpush2.bf16.msra.mxu0 %v648
      %2018 = vmatprep.subr.bf16.mxu0 %v645
      %2019 = vmatpush2.bf16.msra.mxu0 %v644
      %2020 = vmatprep.subr.bf16.mxu0 %v641
      %2021 = vmatpush2.bf16.msra.mxu0 %v640
      %2022 = vmatprep.mubr.bf16.mxu0 %v1988
      %2023 = vmatmul.mubr.bf16.gmra.mxu0 %v1986
      %v2024 = vpop.f32.mrf.mxu0
      %v2025 = vadd.f32 %v708, %v2024
      %v2026 = vpop.f32.mrf.mxu0
      %v2027 = vadd.f32 %v712, %v2026
      %v2028 = vpop.f32.mrf.mxu0
      %v2029 = vpop.f32.mrf.mxu0
      %2030 = vdwg.mxu0
      %2031 = vmatprep.subr.bf16.mxu0 %v639
      %2032 = vmatpush1.bf16.msra.mxu0 %v638
      %2033 = vmatprep.subr.bf16.mxu0 %v635
      %2034 = vmatpush1.bf16.msra.mxu0 %v634
      %2035 = vmatprep.subr.bf16.mxu0 %v631
      %2036 = vmatpush1.bf16.msra.mxu0 %v630
      %2037 = vmatprep.subr.bf16.mxu0 %v627
      %2038 = vmatpush1.bf16.msra.mxu0 %v626
      %2039 = vmatprep.subr.bf16.mxu0 %v623
      %2040 = vmatpush1.bf16.msra.mxu0 %v622
      %2041 = vmatprep.subr.bf16.mxu0 %v619
      %2042 = vmatpush1.bf16.msra.mxu0 %v618
      %2043 = vmatprep.subr.bf16.mxu0 %v615
      %2044 = vmatpush1.bf16.msra.mxu0 %v614
      %2045 = vmatprep.subr.bf16.mxu0 %v611
      %2046 = vmatpush1.bf16.msra.mxu0 %v610
      %2047 = vmatprep.subr.bf16.mxu0 0
      %2048 = vmatpush2.bf16.msra.mxu0 0
      %2049 = vmatprep.subr.bf16.mxu0 0
      %2050 = vmatpush2.bf16.msra.mxu0 0
      %2051 = vmatprep.subr.bf16.mxu0 0
      %2052 = vmatpush2.bf16.msra.mxu0 0
      %2053 = vmatprep.subr.bf16.mxu0 0
      %2054 = vmatpush2.bf16.msra.mxu0 0
      %2055 = vmatprep.subr.bf16.mxu0 %v655
      %2056 = vmatpush2.bf16.msra.mxu0 %v654
      %2057 = vmatprep.subr.bf16.mxu0 %v651
      %2058 = vmatpush2.bf16.msra.mxu0 %v650
      %2059 = vmatprep.subr.bf16.mxu0 %v647
      %2060 = vmatpush2.bf16.msra.mxu0 %v646
      %2061 = vmatprep.subr.bf16.mxu0 %v643
      %2062 = vmatpush2.bf16.msra.mxu0 %v642
      %2063 = vmatprep.mubr.bf16.mxu0 %v1988
      %2064 = vmatmul.mubr.bf16.gmra.mxu0 %v1986
      %v2065 = vpop.f32.mrf.mxu0
      %v2066 = vadd.f32 %v716, %v2065
      %v2067 = vpop.f32.mrf.mxu0
      %v2068 = vadd.f32 %v720, %v2067
      %v2069 = vpop.f32.mrf.mxu0
      %v2070 = vpop.f32.mrf.mxu0
      %2071 = vdwg.mxu0
      %v2072 = vmax.f32 %v2025, 0.0
      %v2073 = vmax.f32 %v2027, 0.0
      %v2074 = vmax.f32 %v2066, 0.0
      %v2075 = vmax.f32 %v2068, 0.0
      %2077 = vrot.lane.b32.xlu0 %v1956, 64
      %v2078 = vpop.permute.xlu0 %2077
      %v2080 = vsel %vm460, %v1667, %v2078
      %v2082 = vsel %vm460, %v1981, 0
      %2084 = vmatprep.subr.bf16.mxu0 %v637
      %2085 = vmatpush1.bf16.msra.mxu0 %v636
      %2086 = vmatprep.subr.bf16.mxu0 %v633
      %2087 = vmatpush1.bf16.msra.mxu0 %v632
      %2088 = vmatprep.subr.bf16.mxu0 %v629
      %2089 = vmatpush1.bf16.msra.mxu0 %v628
      %2090 = vmatprep.subr.bf16.mxu0 %v625
      %2091 = vmatpush1.bf16.msra.mxu0 %v624
      %2092 = vmatprep.subr.bf16.mxu0 %v621
      %2093 = vmatpush1.bf16.msra.mxu0 %v620
      %2094 = vmatprep.subr.bf16.mxu0 %v617
      %2095 = vmatpush1.bf16.msra.mxu0 %v616
      %2096 = vmatprep.subr.bf16.mxu0 %v613
      %2097 = vmatpush1.bf16.msra.mxu0 %v612
      %2098 = vmatprep.subr.bf16.mxu0 %v609
      %2099 = vmatpush1.bf16.msra.mxu0 %v608
      %2100 = vmatprep.subr.bf16.mxu0 0
      %2101 = vmatpush2.bf16.msra.mxu0 0
      %2102 = vmatprep.subr.bf16.mxu0 0
      %2103 = vmatpush2.bf16.msra.mxu0 0
      %2104 = vmatprep.subr.bf16.mxu0 0
      %2105 = vmatpush2.bf16.msra.mxu0 0
      %2106 = vmatprep.subr.bf16.mxu0 0
      %2107 = vmatpush2.bf16.msra.mxu0 0
      %2108 = vmatprep.subr.bf16.mxu0 %v653
      %2109 = vmatpush2.bf16.msra.mxu0 %v652
      %2110 = vmatprep.subr.bf16.mxu0 %v649
      %2111 = vmatpush2.bf16.msra.mxu0 %v648
      %2112 = vmatprep.subr.bf16.mxu0 %v645
      %2113 = vmatpush2.bf16.msra.mxu0 %v644
      %2114 = vmatprep.subr.bf16.mxu0 %v641
      %2115 = vmatpush2.bf16.msra.mxu0 %v640
      %2116 = vmatprep.mubr.bf16.mxu0 %v2082
      %2117 = vmatmul.mubr.bf16.gmra.mxu0 %v2080
      %v2118 = vpop.f32.mrf.mxu0
      %v2119 = vadd.f32 %v708, %v2118
      %v2120 = vpop.f32.mrf.mxu0
      %v2121 = vadd.f32 %v712, %v2120
      %v2122 = vpop.f32.mrf.mxu0
      %v2123 = vpop.f32.mrf.mxu0
      %2124 = vdwg.mxu0
      %2125 = vmatprep.subr.bf16.mxu0 %v639
      %2126 = vmatpush1.bf16.msra.mxu0 %v638
      %2127 = vmatprep.subr.bf16.mxu0 %v635
      %2128 = vmatpush1.bf16.msra.mxu0 %v634
      %2129 = vmatprep.subr.bf16.mxu0 %v631
      %2130 = vmatpush1.bf16.msra.mxu0 %v630
      %2131 = vmatprep.subr.bf16.mxu0 %v627
      %2132 = vmatpush1.bf16.msra.mxu0 %v626
      %2133 = vmatprep.subr.bf16.mxu0 %v623
      %2134 = vmatpush1.bf16.msra.mxu0 %v622
      %2135 = vmatprep.subr.bf16.mxu0 %v619
      %2136 = vmatpush1.bf16.msra.mxu0 %v618
      %2137 = vmatprep.subr.bf16.mxu0 %v615
      %2138 = vmatpush1.bf16.msra.mxu0 %v614
      %2139 = vmatprep.subr.bf16.mxu0 %v611
      %2140 = vmatpush1.bf16.msra.mxu0 %v610
      %2141 = vmatprep.subr.bf16.mxu0 0
      %2142 = vmatpush2.bf16.msra.mxu0 0
      %2143 = vmatprep.subr.bf16.mxu0 0
      %2144 = vmatpush2.bf16.msra.mxu0 0
      %2145 = vmatprep.subr.bf16.mxu0 0
      %2146 = vmatpush2.bf16.msra.mxu0 0
      %2147 = vmatprep.subr.bf16.mxu0 0
      %2148 = vmatpush2.bf16.msra.mxu0 0
      %2149 = vmatprep.subr.bf16.mxu0 %v655
      %2150 = vmatpush2.bf16.msra.mxu0 %v654
      %2151 = vmatprep.subr.bf16.mxu0 %v651
      %2152 = vmatpush2.bf16.msra.mxu0 %v650
      %2153 = vmatprep.subr.bf16.mxu0 %v647
      %2154 = vmatpush2.bf16.msra.mxu0 %v646
      %2155 = vmatprep.subr.bf16.mxu0 %v643
      %2156 = vmatpush2.bf16.msra.mxu0 %v642
      %2157 = vmatprep.mubr.bf16.mxu0 %v2082
      %2158 = vmatmul.mubr.bf16.gmra.mxu0 %v2080
      %v2159 = vpop.f32.mrf.mxu0
      %v2160 = vadd.f32 %v716, %v2159
      %v2161 = vpop.f32.mrf.mxu0
      %v2162 = vadd.f32 %v720, %v2161
      %v2163 = vpop.f32.mrf.mxu0
      %v2164 = vpop.f32.mrf.mxu0
      %2165 = vdwg.mxu0
      %v2166 = vmax.f32 %v2119, 0.0
      %v2167 = vmax.f32 %v2121, 0.0
      %v2168 = vmax.f32 %v2160, 0.0
      %v2169 = vmax.f32 %v2162, 0.0
      %v2170 = vmax.f32 %v2072, %v2166
      %v2171 = vmax.f32 %v2073, %v2167
      %v2172 = vmax.f32 %v2074, %v2168
      %v2173 = vmax.f32 %v2075, %v2169
      %2175 = vrot.lane.b32.xlu0 %v2170, 96
      %v2176 = vpop.permute.xlu0 %2175
      %v2178 = vmax.f32 %v2170, %v2176
      %2180 = vrot.lane.b32.xlu0 %v2171, 96
      %v2181 = vpop.permute.xlu0 %2180
      %v2183 = vmax.f32 %v2171, %v2181
      %2185 = vrot.lane.b32.xlu0 %v2172, 96
      %v2186 = vpop.permute.xlu0 %2185
      %v2188 = vmax.f32 %v2172, %v2186
      %2190 = vrot.lane.b32.xlu0 %v2173, 96
      %v2191 = vpop.permute.xlu0 %2190
      %v2193 = vmax.f32 %v2173, %v2191
      %2195 = vrot.lane.b32.xlu0 %v2178, 96
      %v2196 = vpop.permute.xlu0 %2195
      %2199 = vrot.lane.b32.xlu0 %v2183, 64
      %v2200 = vpop.permute.xlu0 %2199
      %2202 = vrot.lane.b32.xlu0 %v2183, 32
      %v2203 = vpop.permute.xlu0 %2202
      %2206 = vrot.lane.b32.xlu0 %v2188, 96
      %v2207 = vpop.permute.xlu0 %2206
      %2210 = vrot.lane.b32.xlu0 %v2193, 64
      %v2211 = vpop.permute.xlu0 %2210
      %2213 = vrot.lane.b32.xlu0 %v2193, 32
      %v2214 = vpop.permute.xlu0 %2213
      %v2216 = vsel %vm378, %v2178, %v2196
      %v2217 = vsel %vm460, %v2216, %v2200
      %v2218 = vsel %vm955, %v2217, %v2203
      %v2219 = vsel %vm378, %v2188, %v2207
      %v2220 = vsel %vm460, %v2219, %v2211
      %v2221 = vsel %vm955, %v2220, %v2214
      %v2222 = vpack.c.bf16 %v2218, %v2218
      %v2223 = vpack.c.bf16 %v2221, %v2221
      %v2226 = vcombine.low %v2222, %v2223
      %v2228 = vunpack.c.l.s4 1966171168
      %v2229 = vunpack.c.0.s8 %v2228
      %v2230 = vlaneseq
      %v2231 = vshrl.u32 %v2230, 7
      %v2232 = vsub.s32 %v2229, %v2231
      %v2233 = vrot.slane %v2226, %v2232
      %v2235 = vunpack.c.l.s4 1966171168
      %v2236 = vunpack.c.0.s8 %v2235
      %v2237 = vlaneseq
      %v2238 = vshrl.u32 %v2237, 7
      %v2239 = vsub.s32 %v2236, %v2238
      %v2240 = vrot.slane %v2233, %v2239
      %s2242 = scalar_lea.vmem %s305, 8
      %v2243 = vld [vmem:[%s2242] sm:$0x3]
      %v2244 = vsel %vm986, %v2240, %v2243
      %2245 = vst [vmem:[%s2242] sm:$0x3] %v2244
      %s2246 = scalar_lea.vmem %s278, 12
      %v2247 = vld [vmem:[%s2246] sm:$0x1]
      %v2250 = vunpack.c.l.s4 1966171168
      %v2251 = vunpack.c.0.s8 %v2250
      %v2252 = vlaneseq
      %v2253 = vshrl.u32 %v2252, 7
      %v2254 = vsub.s32 %v2251, %v2253
      %v2255 = vrot.slane %v2247, %v2254
      %v2257 = vunpack.c.l.s4 1966171168
      %v2258 = vunpack.c.0.s8 %v2257
      %v2259 = vlaneseq
      %v2260 = vshrl.u32 %v2259, 7
      %v2261 = vsub.s32 %v2258, %v2260
      %v2262 = vrot.slane %v2255, %v2261
      %v2264 = vshrl.u32 %v2262, 16
      %2266 = vrot.lane.b32.xlu0 %v2264, 32
      %v2267 = vpop.permute.xlu0 %2266
      %v2270 = vsel %vm378, %v2247, %v2267
      %s2271 = scalar_lea.vmem %s278, 13
      %v2272 = vld [vmem:[%s2271] sm:$0x1]
      %v2275 = vunpack.c.l.s4 1966171168
      %v2276 = vunpack.c.0.s8 %v2275
      %v2277 = vlaneseq
      %v2278 = vshrl.u32 %v2277, 7
      %v2279 = vsub.s32 %v2276, %v2278
      %v2280 = vrot.slane %v2272, %v2279
      %v2282 = vunpack.c.l.s4 1966171168
      %v2283 = vunpack.c.0.s8 %v2282
      %v2284 = vlaneseq
      %v2285 = vshrl.u32 %v2284, 7
      %v2286 = vsub.s32 %v2283, %v2285
      %v2287 = vrot.slane %v2280, %v2286
      %v2289 = vshrl.u32 %v2287, 16
      %2291 = vrot.lane.b32.xlu0 %v2289, 32
      %v2292 = vpop.permute.xlu0 %2291
      %v2295 = vsel %vm378, %v2272, %v2292
      %2297 = vrot.lane.b32.xlu0 %v1981, 64
      %v2298 = vpop.permute.xlu0 %2297
      %v2300 = vsel %vm460, %v1956, %v2298
      %v2302 = vsel %vm460, %v2270, 0
      %2304 = vmatprep.subr.bf16.mxu0 %v637
      %2305 = vmatpush1.bf16.msra.mxu0 %v636
      %2306 = vmatprep.subr.bf16.mxu0 %v633
      %2307 = vmatpush1.bf16.msra.mxu0 %v632
      %2308 = vmatprep.subr.bf16.mxu0 %v629
      %2309 = vmatpush1.bf16.msra.mxu0 %v628
      %2310 = vmatprep.subr.bf16.mxu0 %v625
      %2311 = vmatpush1.bf16.msra.mxu0 %v624
      %2312 = vmatprep.subr.bf16.mxu0 %v621
      %2313 = vmatpush1.bf16.msra.mxu0 %v620
      %2314 = vmatprep.subr.bf16.mxu0 %v617
      %2315 = vmatpush1.bf16.msra.mxu0 %v616
      %2316 = vmatprep.subr.bf16.mxu0 %v613
      %2317 = vmatpush1.bf16.msra.mxu0 %v612
      %2318 = vmatprep.subr.bf16.mxu0 %v609
      %2319 = vmatpush1.bf16.msra.mxu0 %v608
      %2320 = vmatprep.subr.bf16.mxu0 0
      %2321 = vmatpush2.bf16.msra.mxu0 0
      %2322 = vmatprep.subr.bf16.mxu0 0
      %2323 = vmatpush2.bf16.msra.mxu0 0
      %2324 = vmatprep.subr.bf16.mxu0 0
      %2325 = vmatpush2.bf16.msra.mxu0 0
      %2326 = vmatprep.subr.bf16.mxu0 0
      %2327 = vmatpush2.bf16.msra.mxu0 0
      %2328 = vmatprep.subr.bf16.mxu0 %v653
      %2329 = vmatpush2.bf16.msra.mxu0 %v652
      %2330 = vmatprep.subr.bf16.mxu0 %v649
      %2331 = vmatpush2.bf16.msra.mxu0 %v648
      %2332 = vmatprep.subr.bf16.mxu0 %v645
      %2333 = vmatpush2.bf16.msra.mxu0 %v644
      %2334 = vmatprep.subr.bf16.mxu0 %v641
      %2335 = vmatpush2.bf16.msra.mxu0 %v640
      %2336 = vmatprep.mubr.bf16.mxu0 %v2302
      %2337 = vmatmul.mubr.bf16.gmra.mxu0 %v2300
      %v2338 = vpop.f32.mrf.mxu0
      %v2339 = vadd.f32 %v708, %v2338
      %v2340 = vpop.f32.mrf.mxu0
      %v2341 = vadd.f32 %v712, %v2340
      %v2342 = vpop.f32.mrf.mxu0
      %v2343 = vpop.f32.mrf.mxu0
      %2344 = vdwg.mxu0
      %2345 = vmatprep.subr.bf16.mxu0 %v639
      %2346 = vmatpush1.bf16.msra.mxu0 %v638
      %2347 = vmatprep.subr.bf16.mxu0 %v635
      %2348 = vmatpush1.bf16.msra.mxu0 %v634
      %2349 = vmatprep.subr.bf16.mxu0 %v631
      %2350 = vmatpush1.bf16.msra.mxu0 %v630
      %2351 = vmatprep.subr.bf16.mxu0 %v627
      %2352 = vmatpush1.bf16.msra.mxu0 %v626
      %2353 = vmatprep.subr.bf16.mxu0 %v623
      %2354 = vmatpush1.bf16.msra.mxu0 %v622
      %2355 = vmatprep.subr.bf16.mxu0 %v619
      %2356 = vmatpush1.bf16.msra.mxu0 %v618
      %2357 = vmatprep.subr.bf16.mxu0 %v615
      %2358 = vmatpush1.bf16.msra.mxu0 %v614
      %2359 = vmatprep.subr.bf16.mxu0 %v611
      %2360 = vmatpush1.bf16.msra.mxu0 %v610
      %2361 = vmatprep.subr.bf16.mxu0 0
      %2362 = vmatpush2.bf16.msra.mxu0 0
      %2363 = vmatprep.subr.bf16.mxu0 0
      %2364 = vmatpush2.bf16.msra.mxu0 0
      %2365 = vmatprep.subr.bf16.mxu0 0
      %2366 = vmatpush2.bf16.msra.mxu0 0
      %2367 = vmatprep.subr.bf16.mxu0 0
      %2368 = vmatpush2.bf16.msra.mxu0 0
      %2369 = vmatprep.subr.bf16.mxu0 %v655
      %2370 = vmatpush2.bf16.msra.mxu0 %v654
      %2371 = vmatprep.subr.bf16.mxu0 %v651
      %2372 = vmatpush2.bf16.msra.mxu0 %v650
      %2373 = vmatprep.subr.bf16.mxu0 %v647
      %2374 = vmatpush2.bf16.msra.mxu0 %v646
      %2375 = vmatprep.subr.bf16.mxu0 %v643
      %2376 = vmatpush2.bf16.msra.mxu0 %v642
      %2377 = vmatprep.mubr.bf16.mxu0 %v2302
      %2378 = vmatmul.mubr.bf16.gmra.mxu0 %v2300
      %v2379 = vpop.f32.mrf.mxu0
      %v2380 = vadd.f32 %v716, %v2379
      %v2381 = vpop.f32.mrf.mxu0
      %v2382 = vadd.f32 %v720, %v2381
      %v2383 = vpop.f32.mrf.mxu0
      %v2384 = vpop.f32.mrf.mxu0
      %2385 = vdwg.mxu0
      %v2386 = vmax.f32 %v2339, 0.0
      %v2387 = vmax.f32 %v2341, 0.0
      %v2388 = vmax.f32 %v2380, 0.0
      %v2389 = vmax.f32 %v2382, 0.0
      %2391 = vrot.lane.b32.xlu0 %v2270, 64
      %v2392 = vpop.permute.xlu0 %2391
      %v2394 = vsel %vm460, %v1981, %v2392
      %v2396 = vsel %vm460, %v2295, 0
      %2398 = vmatprep.subr.bf16.mxu0 %v637
      %2399 = vmatpush1.bf16.msra.mxu0 %v636
      %2400 = vmatprep.subr.bf16.mxu0 %v633
      %2401 = vmatpush1.bf16.msra.mxu0 %v632
      %2402 = vmatprep.subr.bf16.mxu0 %v629
      %2403 = vmatpush1.bf16.msra.mxu0 %v628
      %2404 = vmatprep.subr.bf16.mxu0 %v625
      %2405 = vmatpush1.bf16.msra.mxu0 %v624
      %2406 = vmatprep.subr.bf16.mxu0 %v621
      %2407 = vmatpush1.bf16.msra.mxu0 %v620
      %2408 = vmatprep.subr.bf16.mxu0 %v617
      %2409 = vmatpush1.bf16.msra.mxu0 %v616
      %2410 = vmatprep.subr.bf16.mxu0 %v613
      %2411 = vmatpush1.bf16.msra.mxu0 %v612
      %2412 = vmatprep.subr.bf16.mxu0 %v609
      %2413 = vmatpush1.bf16.msra.mxu0 %v608
      %2414 = vmatprep.subr.bf16.mxu0 0
      %2415 = vmatpush2.bf16.msra.mxu0 0
      %2416 = vmatprep.subr.bf16.mxu0 0
      %2417 = vmatpush2.bf16.msra.mxu0 0
      %2418 = vmatprep.subr.bf16.mxu0 0
      %2419 = vmatpush2.bf16.msra.mxu0 0
      %2420 = vmatprep.subr.bf16.mxu0 0
      %2421 = vmatpush2.bf16.msra.mxu0 0
      %2422 = vmatprep.subr.bf16.mxu0 %v653
      %2423 = vmatpush2.bf16.msra.mxu0 %v652
      %2424 = vmatprep.subr.bf16.mxu0 %v649
      %2425 = vmatpush2.bf16.msra.mxu0 %v648
      %2426 = vmatprep.subr.bf16.mxu0 %v645
      %2427 = vmatpush2.bf16.msra.mxu0 %v644
      %2428 = vmatprep.subr.bf16.mxu0 %v641
      %2429 = vmatpush2.bf16.msra.mxu0 %v640
      %2430 = vmatprep.mubr.bf16.mxu0 %v2396
      %2431 = vmatmul.mubr.bf16.gmra.mxu0 %v2394
      %v2432 = vpop.f32.mrf.mxu0
      %v2433 = vadd.f32 %v708, %v2432
      %v2434 = vpop.f32.mrf.mxu0
      %v2435 = vadd.f32 %v712, %v2434
      %v2436 = vpop.f32.mrf.mxu0
      %v2437 = vpop.f32.mrf.mxu0
      %2438 = vdwg.mxu0
      %2439 = vmatprep.subr.bf16.mxu0 %v639
      %2440 = vmatpush1.bf16.msra.mxu0 %v638
      %2441 = vmatprep.subr.bf16.mxu0 %v635
      %2442 = vmatpush1.bf16.msra.mxu0 %v634
      %2443 = vmatprep.subr.bf16.mxu0 %v631
      %2444 = vmatpush1.bf16.msra.mxu0 %v630
      %2445 = vmatprep.subr.bf16.mxu0 %v627
      %2446 = vmatpush1.bf16.msra.mxu0 %v626
      %2447 = vmatprep.subr.bf16.mxu0 %v623
      %2448 = vmatpush1.bf16.msra.mxu0 %v622
      %2449 = vmatprep.subr.bf16.mxu0 %v619
      %2450 = vmatpush1.bf16.msra.mxu0 %v618
      %2451 = vmatprep.subr.bf16.mxu0 %v615
      %2452 = vmatpush1.bf16.msra.mxu0 %v614
      %2453 = vmatprep.subr.bf16.mxu0 %v611
      %2454 = vmatpush1.bf16.msra.mxu0 %v610
      %2455 = vmatprep.subr.bf16.mxu0 0
      %2456 = vmatpush2.bf16.msra.mxu0 0
      %2457 = vmatprep.subr.bf16.mxu0 0
      %2458 = vmatpush2.bf16.msra.mxu0 0
      %2459 = vmatprep.subr.bf16.mxu0 0
      %2460 = vmatpush2.bf16.msra.mxu0 0
      %2461 = vmatprep.subr.bf16.mxu0 0
      %2462 = vmatpush2.bf16.msra.mxu0 0
      %2463 = vmatprep.subr.bf16.mxu0 %v655
      %2464 = vmatpush2.bf16.msra.mxu0 %v654
      %2465 = vmatprep.subr.bf16.mxu0 %v651
      %2466 = vmatpush2.bf16.msra.mxu0 %v650
      %2467 = vmatprep.subr.bf16.mxu0 %v647
      %2468 = vmatpush2.bf16.msra.mxu0 %v646
      %2469 = vmatprep.subr.bf16.mxu0 %v643
      %2470 = vmatpush2.bf16.msra.mxu0 %v642
      %2471 = vmatprep.mubr.bf16.mxu0 %v2396
      %2472 = vmatmul.mubr.bf16.gmra.mxu0 %v2394
      %v2473 = vpop.f32.mrf.mxu0
      %v2474 = vadd.f32 %v716, %v2473
      %v2475 = vpop.f32.mrf.mxu0
      %v2476 = vadd.f32 %v720, %v2475
      %v2477 = vpop.f32.mrf.mxu0
      %v2478 = vpop.f32.mrf.mxu0
      %2479 = vdwg.mxu0
      %v2480 = vmax.f32 %v2433, 0.0
      %v2481 = vmax.f32 %v2435, 0.0
      %v2482 = vmax.f32 %v2474, 0.0
      %v2483 = vmax.f32 %v2476, 0.0
      %v2484 = vmax.f32 %v2386, %v2480
      %v2485 = vmax.f32 %v2387, %v2481
      %v2486 = vmax.f32 %v2388, %v2482
      %v2487 = vmax.f32 %v2389, %v2483
      %2489 = vrot.lane.b32.xlu0 %v2484, 96
      %v2490 = vpop.permute.xlu0 %2489
      %v2492 = vmax.f32 %v2484, %v2490
      %2494 = vrot.lane.b32.xlu0 %v2485, 96
      %v2495 = vpop.permute.xlu0 %2494
      %v2497 = vmax.f32 %v2485, %v2495
      %2499 = vrot.lane.b32.xlu0 %v2486, 96
      %v2500 = vpop.permute.xlu0 %2499
      %v2502 = vmax.f32 %v2486, %v2500
      %2504 = vrot.lane.b32.xlu0 %v2487, 96
      %v2505 = vpop.permute.xlu0 %2504
      %v2507 = vmax.f32 %v2487, %v2505
      %2509 = vrot.lane.b32.xlu0 %v2492, 96
      %v2510 = vpop.permute.xlu0 %2509
      %2513 = vrot.lane.b32.xlu0 %v2497, 64
      %v2514 = vpop.permute.xlu0 %2513
      %2516 = vrot.lane.b32.xlu0 %v2497, 32
      %v2517 = vpop.permute.xlu0 %2516
      %2520 = vrot.lane.b32.xlu0 %v2502, 96
      %v2521 = vpop.permute.xlu0 %2520
      %2524 = vrot.lane.b32.xlu0 %v2507, 64
      %v2525 = vpop.permute.xlu0 %2524
      %2527 = vrot.lane.b32.xlu0 %v2507, 32
      %v2528 = vpop.permute.xlu0 %2527
      %v2530 = vsel %vm378, %v2492, %v2510
      %v2531 = vsel %vm460, %v2530, %v2514
      %v2532 = vsel %vm955, %v2531, %v2517
      %v2533 = vsel %vm378, %v2502, %v2521
      %v2534 = vsel %vm460, %v2533, %v2525
      %v2535 = vsel %vm955, %v2534, %v2528
      %v2536 = vpack.c.bf16 %v2532, %v2532
      %v2537 = vpack.c.bf16 %v2535, %v2535
      %v2540 = vcombine.low %v2536, %v2537
      %v2542 = vunpack.c.l.s4 1966171168
      %v2543 = vunpack.c.0.s8 %v2542
      %v2544 = vlaneseq
      %v2545 = vshrl.u32 %v2544, 7
      %v2546 = vsub.s32 %v2543, %v2545
      %v2547 = vrot.slane %v2540, %v2546
      %v2549 = vunpack.c.l.s4 1966171168
      %v2550 = vunpack.c.0.s8 %v2549
      %v2551 = vlaneseq
      %v2552 = vshrl.u32 %v2551, 7
      %v2553 = vsub.s32 %v2550, %v2552
      %v2554 = vrot.slane %v2547, %v2553
      %s2556 = scalar_lea.vmem %s305, 10
      %v2557 = vld [vmem:[%s2556] sm:$0x3]
      %v2558 = vsel %vm986, %v2554, %v2557
      %2559 = vst [vmem:[%s2556] sm:$0x3] %v2558
      %s2560 = scalar_lea.vmem %s278, 14
      %v2561 = vld [vmem:[%s2560] sm:$0x1]
      %v2564 = vunpack.c.l.s4 1966171168
      %v2565 = vunpack.c.0.s8 %v2564
      %v2566 = vlaneseq
      %v2567 = vshrl.u32 %v2566, 7
      %v2568 = vsub.s32 %v2565, %v2567
      %v2569 = vrot.slane %v2561, %v2568
      %v2571 = vunpack.c.l.s4 1966171168
      %v2572 = vunpack.c.0.s8 %v2571
      %v2573 = vlaneseq
      %v2574 = vshrl.u32 %v2573, 7
      %v2575 = vsub.s32 %v2572, %v2574
      %v2576 = vrot.slane %v2569, %v2575
      %v2578 = vshrl.u32 %v2576, 16
      %2580 = vrot.lane.b32.xlu0 %v2578, 32
      %v2581 = vpop.permute.xlu0 %2580
      %v2584 = vsel %vm378, %v2561, %v2581
      %s2585 = scalar_lea.vmem %s278, 15
      %v2586 = vld [vmem:[%s2585] sm:$0x1]
      %v2589 = vunpack.c.l.s4 1966171168
      %v2590 = vunpack.c.0.s8 %v2589
      %v2591 = vlaneseq
      %v2592 = vshrl.u32 %v2591, 7
      %v2593 = vsub.s32 %v2590, %v2592
      %v2594 = vrot.slane %v2586, %v2593
      %v2596 = vunpack.c.l.s4 1966171168
      %v2597 = vunpack.c.0.s8 %v2596
      %v2598 = vlaneseq
      %v2599 = vshrl.u32 %v2598, 7
      %v2600 = vsub.s32 %v2597, %v2599
      %v2601 = vrot.slane %v2594, %v2600
      %v2603 = vshrl.u32 %v2601, 16
      %2605 = vrot.lane.b32.xlu0 %v2603, 32
      %v2606 = vpop.permute.xlu0 %2605
      %v2609 = vsel %vm378, %v2586, %v2606
      %2611 = vrot.lane.b32.xlu0 %v2295, 64
      %v2612 = vpop.permute.xlu0 %2611
      %v2614 = vsel %vm460, %v2270, %v2612
      %v2616 = vsel %vm460, %v2584, 0
      %2618 = vmatprep.subr.bf16.mxu0 %v637
      %2619 = vmatpush1.bf16.msra.mxu0 %v636
      %2620 = vmatprep.subr.bf16.mxu0 %v633
      %2621 = vmatpush1.bf16.msra.mxu0 %v632
      %2622 = vmatprep.subr.bf16.mxu0 %v629
      %2623 = vmatpush1.bf16.msra.mxu0 %v628
      %2624 = vmatprep.subr.bf16.mxu0 %v625
      %2625 = vmatpush1.bf16.msra.mxu0 %v624
      %2626 = vmatprep.subr.bf16.mxu0 %v621
      %2627 = vmatpush1.bf16.msra.mxu0 %v620
      %2628 = vmatprep.subr.bf16.mxu0 %v617
      %2629 = vmatpush1.bf16.msra.mxu0 %v616
      %2630 = vmatprep.subr.bf16.mxu0 %v613
      %2631 = vmatpush1.bf16.msra.mxu0 %v612
      %2632 = vmatprep.subr.bf16.mxu0 %v609
      %2633 = vmatpush1.bf16.msra.mxu0 %v608
      %2634 = vmatprep.subr.bf16.mxu0 0
      %2635 = vmatpush2.bf16.msra.mxu0 0
      %2636 = vmatprep.subr.bf16.mxu0 0
      %2637 = vmatpush2.bf16.msra.mxu0 0
      %2638 = vmatprep.subr.bf16.mxu0 0
      %2639 = vmatpush2.bf16.msra.mxu0 0
      %2640 = vmatprep.subr.bf16.mxu0 0
      %2641 = vmatpush2.bf16.msra.mxu0 0
      %2642 = vmatprep.subr.bf16.mxu0 %v653
      %2643 = vmatpush2.bf16.msra.mxu0 %v652
      %2644 = vmatprep.subr.bf16.mxu0 %v649
      %2645 = vmatpush2.bf16.msra.mxu0 %v648
      %2646 = vmatprep.subr.bf16.mxu0 %v645
      %2647 = vmatpush2.bf16.msra.mxu0 %v644
      %2648 = vmatprep.subr.bf16.mxu0 %v641
      %2649 = vmatpush2.bf16.msra.mxu0 %v640
      %2650 = vmatprep.mubr.bf16.mxu0 %v2616
      %2651 = vmatmul.mubr.bf16.gmra.mxu0 %v2614
      %v2652 = vpop.f32.mrf.mxu0
      %v2653 = vadd.f32 %v708, %v2652
      %v2654 = vpop.f32.mrf.mxu0
      %v2655 = vadd.f32 %v712, %v2654
      %v2656 = vpop.f32.mrf.mxu0
      %v2657 = vpop.f32.mrf.mxu0
      %2658 = vdwg.mxu0
      %2659 = vmatprep.subr.bf16.mxu0 %v639
      %2660 = vmatpush1.bf16.msra.mxu0 %v638
      %2661 = vmatprep.subr.bf16.mxu0 %v635
      %2662 = vmatpush1.bf16.msra.mxu0 %v634
      %2663 = vmatprep.subr.bf16.mxu0 %v631
      %2664 = vmatpush1.bf16.msra.mxu0 %v630
      %2665 = vmatprep.subr.bf16.mxu0 %v627
      %2666 = vmatpush1.bf16.msra.mxu0 %v626
      %2667 = vmatprep.subr.bf16.mxu0 %v623
      %2668 = vmatpush1.bf16.msra.mxu0 %v622
      %2669 = vmatprep.subr.bf16.mxu0 %v619
      %2670 = vmatpush1.bf16.msra.mxu0 %v618
      %2671 = vmatprep.subr.bf16.mxu0 %v615
      %2672 = vmatpush1.bf16.msra.mxu0 %v614
      %2673 = vmatprep.subr.bf16.mxu0 %v611
      %2674 = vmatpush1.bf16.msra.mxu0 %v610
      %2675 = vmatprep.subr.bf16.mxu0 0
      %2676 = vmatpush2.bf16.msra.mxu0 0
      %2677 = vmatprep.subr.bf16.mxu0 0
      %2678 = vmatpush2.bf16.msra.mxu0 0
      %2679 = vmatprep.subr.bf16.mxu0 0
      %2680 = vmatpush2.bf16.msra.mxu0 0
      %2681 = vmatprep.subr.bf16.mxu0 0
      %2682 = vmatpush2.bf16.msra.mxu0 0
      %2683 = vmatprep.subr.bf16.mxu0 %v655
      %2684 = vmatpush2.bf16.msra.mxu0 %v654
      %2685 = vmatprep.subr.bf16.mxu0 %v651
      %2686 = vmatpush2.bf16.msra.mxu0 %v650
      %2687 = vmatprep.subr.bf16.mxu0 %v647
      %2688 = vmatpush2.bf16.msra.mxu0 %v646
      %2689 = vmatprep.subr.bf16.mxu0 %v643
      %2690 = vmatpush2.bf16.msra.mxu0 %v642
      %2691 = vmatprep.mubr.bf16.mxu0 %v2616
      %2692 = vmatmul.mubr.bf16.gmra.mxu0 %v2614
      %v2693 = vpop.f32.mrf.mxu0
      %v2694 = vadd.f32 %v716, %v2693
      %v2695 = vpop.f32.mrf.mxu0
      %v2696 = vadd.f32 %v720, %v2695
      %v2697 = vpop.f32.mrf.mxu0
      %v2698 = vpop.f32.mrf.mxu0
      %2699 = vdwg.mxu0
      %v2700 = vmax.f32 %v2653, 0.0
      %v2701 = vmax.f32 %v2655, 0.0
      %v2702 = vmax.f32 %v2694, 0.0
      %v2703 = vmax.f32 %v2696, 0.0
      %2705 = vrot.lane.b32.xlu0 %v2584, 64
      %v2706 = vpop.permute.xlu0 %2705
      %v2708 = vsel %vm460, %v2295, %v2706
      %v2710 = vsel %vm460, %v2609, 0
      %2712 = vmatprep.subr.bf16.mxu0 %v637
      %2713 = vmatpush1.bf16.msra.mxu0 %v636
      %2714 = vmatprep.subr.bf16.mxu0 %v633
      %2715 = vmatpush1.bf16.msra.mxu0 %v632
      %2716 = vmatprep.subr.bf16.mxu0 %v629
      %2717 = vmatpush1.bf16.msra.mxu0 %v628
      %2718 = vmatprep.subr.bf16.mxu0 %v625
      %2719 = vmatpush1.bf16.msra.mxu0 %v624
      %2720 = vmatprep.subr.bf16.mxu0 %v621
      %2721 = vmatpush1.bf16.msra.mxu0 %v620
      %2722 = vmatprep.subr.bf16.mxu0 %v617
      %2723 = vmatpush1.bf16.msra.mxu0 %v616
      %2724 = vmatprep.subr.bf16.mxu0 %v613
      %2725 = vmatpush1.bf16.msra.mxu0 %v612
      %2726 = vmatprep.subr.bf16.mxu0 %v609
      %2727 = vmatpush1.bf16.msra.mxu0 %v608
      %2728 = vmatprep.subr.bf16.mxu0 0
      %2729 = vmatpush2.bf16.msra.mxu0 0
      %2730 = vmatprep.subr.bf16.mxu0 0
      %2731 = vmatpush2.bf16.msra.mxu0 0
      %2732 = vmatprep.subr.bf16.mxu0 0
      %2733 = vmatpush2.bf16.msra.mxu0 0
      %2734 = vmatprep.subr.bf16.mxu0 0
      %2735 = vmatpush2.bf16.msra.mxu0 0
      %2736 = vmatprep.subr.bf16.mxu0 %v653
      %2737 = vmatpush2.bf16.msra.mxu0 %v652
      %2738 = vmatprep.subr.bf16.mxu0 %v649
      %2739 = vmatpush2.bf16.msra.mxu0 %v648
      %2740 = vmatprep.subr.bf16.mxu0 %v645
      %2741 = vmatpush2.bf16.msra.mxu0 %v644
      %2742 = vmatprep.subr.bf16.mxu0 %v641
      %2743 = vmatpush2.bf16.msra.mxu0 %v640
      %2744 = vmatprep.mubr.bf16.mxu0 %v2710
      %2745 = vmatmul.mubr.bf16.gmra.mxu0 %v2708
      %v2746 = vpop.f32.mrf.mxu0
      %v2747 = vadd.f32 %v708, %v2746
      %v2748 = vpop.f32.mrf.mxu0
      %v2749 = vadd.f32 %v712, %v2748
      %v2750 = vpop.f32.mrf.mxu0
      %v2751 = vpop.f32.mrf.mxu0
      %2752 = vdwg.mxu0
      %2753 = vmatprep.subr.bf16.mxu0 %v639
      %2754 = vmatpush1.bf16.msra.mxu0 %v638
      %2755 = vmatprep.subr.bf16.mxu0 %v635
      %2756 = vmatpush1.bf16.msra.mxu0 %v634
      %2757 = vmatprep.subr.bf16.mxu0 %v631
      %2758 = vmatpush1.bf16.msra.mxu0 %v630
      %2759 = vmatprep.subr.bf16.mxu0 %v627
      %2760 = vmatpush1.bf16.msra.mxu0 %v626
      %2761 = vmatprep.subr.bf16.mxu0 %v623
      %2762 = vmatpush1.bf16.msra.mxu0 %v622
      %2763 = vmatprep.subr.bf16.mxu0 %v619
      %2764 = vmatpush1.bf16.msra.mxu0 %v618
      %2765 = vmatprep.subr.bf16.mxu0 %v615
      %2766 = vmatpush1.bf16.msra.mxu0 %v614
      %2767 = vmatprep.subr.bf16.mxu0 %v611
      %2768 = vmatpush1.bf16.msra.mxu0 %v610
      %2769 = vmatprep.subr.bf16.mxu0 0
      %2770 = vmatpush2.bf16.msra.mxu0 0
      %2771 = vmatprep.subr.bf16.mxu0 0
      %2772 = vmatpush2.bf16.msra.mxu0 0
      %2773 = vmatprep.subr.bf16.mxu0 0
      %2774 = vmatpush2.bf16.msra.mxu0 0
      %2775 = vmatprep.subr.bf16.mxu0 0
      %2776 = vmatpush2.bf16.msra.mxu0 0
      %2777 = vmatprep.subr.bf16.mxu0 %v655
      %2778 = vmatpush2.bf16.msra.mxu0 %v654
      %2779 = vmatprep.subr.bf16.mxu0 %v651
      %2780 = vmatpush2.bf16.msra.mxu0 %v650
      %2781 = vmatprep.subr.bf16.mxu0 %v647
      %2782 = vmatpush2.bf16.msra.mxu0 %v646
      %2783 = vmatprep.subr.bf16.mxu0 %v643
      %2784 = vmatpush2.bf16.msra.mxu0 %v642
      %2785 = vmatprep.mubr.bf16.mxu0 %v2710
      %2786 = vmatmul.mubr.bf16.gmra.mxu0 %v2708
      %v2787 = vpop.f32.mrf.mxu0
      %v2788 = vadd.f32 %v716, %v2787
      %v2789 = vpop.f32.mrf.mxu0
      %v2790 = vadd.f32 %v720, %v2789
      %v2791 = vpop.f32.mrf.mxu0
      %v2792 = vpop.f32.mrf.mxu0
      %2793 = vdwg.mxu0
      %v2794 = vmax.f32 %v2747, 0.0
      %v2795 = vmax.f32 %v2749, 0.0
      %v2796 = vmax.f32 %v2788, 0.0
      %v2797 = vmax.f32 %v2790, 0.0
      %v2798 = vmax.f32 %v2700, %v2794
      %v2799 = vmax.f32 %v2701, %v2795
      %v2800 = vmax.f32 %v2702, %v2796
      %v2801 = vmax.f32 %v2703, %v2797
      %2803 = vrot.lane.b32.xlu0 %v2798, 96
      %v2804 = vpop.permute.xlu0 %2803
      %v2806 = vmax.f32 %v2798, %v2804
      %2808 = vrot.lane.b32.xlu0 %v2799, 96
      %v2809 = vpop.permute.xlu0 %2808
      %v2811 = vmax.f32 %v2799, %v2809
      %2813 = vrot.lane.b32.xlu0 %v2800, 96
      %v2814 = vpop.permute.xlu0 %2813
      %v2816 = vmax.f32 %v2800, %v2814
      %2818 = vrot.lane.b32.xlu0 %v2801, 96
      %v2819 = vpop.permute.xlu0 %2818
      %v2821 = vmax.f32 %v2801, %v2819
      %2823 = vrot.lane.b32.xlu0 %v2806, 96
      %v2824 = vpop.permute.xlu0 %2823
      %2827 = vrot.lane.b32.xlu0 %v2811, 64
      %v2828 = vpop.permute.xlu0 %2827
      %2830 = vrot.lane.b32.xlu0 %v2811, 32
      %v2831 = vpop.permute.xlu0 %2830
      %2834 = vrot.lane.b32.xlu0 %v2816, 96
      %v2835 = vpop.permute.xlu0 %2834
      %2838 = vrot.lane.b32.xlu0 %v2821, 64
      %v2839 = vpop.permute.xlu0 %2838
      %2841 = vrot.lane.b32.xlu0 %v2821, 32
      %v2842 = vpop.permute.xlu0 %2841
      %v2844 = vsel %vm378, %v2806, %v2824
      %v2845 = vsel %vm460, %v2844, %v2828
      %v2846 = vsel %vm955, %v2845, %v2831
      %v2847 = vsel %vm378, %v2816, %v2835
      %v2848 = vsel %vm460, %v2847, %v2839
      %v2849 = vsel %vm955, %v2848, %v2842
      %v2850 = vpack.c.bf16 %v2846, %v2846
      %v2851 = vpack.c.bf16 %v2849, %v2849
      %v2854 = vcombine.low %v2850, %v2851
      %v2856 = vunpack.c.l.s4 1966171168
      %v2857 = vunpack.c.0.s8 %v2856
      %v2858 = vlaneseq
      %v2859 = vshrl.u32 %v2858, 7
      %v2860 = vsub.s32 %v2857, %v2859
      %v2861 = vrot.slane %v2854, %v2860
      %v2863 = vunpack.c.l.s4 1966171168
      %v2864 = vunpack.c.0.s8 %v2863
      %v2865 = vlaneseq
      %v2866 = vshrl.u32 %v2865, 7
      %v2867 = vsub.s32 %v2864, %v2866
      %v2868 = vrot.slane %v2861, %v2867
      %s2870 = scalar_lea.vmem %s305, 12
      %v2871 = vld [vmem:[%s2870] sm:$0x3]
      %v2872 = vsel %vm986, %v2868, %v2871
      %2873 = vst [vmem:[%s2870] sm:$0x3] %v2872
      %v2874 = vld [vmem:[%s294] sm:$0x1]
      %v2877 = vunpack.c.l.s4 1966171168
      %v2878 = vunpack.c.0.s8 %v2877
      %v2879 = vlaneseq
      %v2880 = vshrl.u32 %v2879, 7
      %v2881 = vsub.s32 %v2878, %v2880
      %v2882 = vrot.slane %v2874, %v2881
      %v2884 = vunpack.c.l.s4 1966171168
      %v2885 = vunpack.c.0.s8 %v2884
      %v2886 = vlaneseq
      %v2887 = vshrl.u32 %v2886, 7
      %v2888 = vsub.s32 %v2885, %v2887
      %v2889 = vrot.slane %v2882, %v2888
      %v2891 = vshrl.u32 %v2889, 16
      %2893 = vrot.lane.b32.xlu0 %v2891, 32
      %v2894 = vpop.permute.xlu0 %2893
      %v2897 = vsel %vm378, %v2874, %v2894
      %s2898 = scalar_lea.vmem %s294, 1
      %v2899 = vld [vmem:[%s2898] sm:$0x1]
      %v2902 = vunpack.c.l.s4 1966171168
      %v2903 = vunpack.c.0.s8 %v2902
      %v2904 = vlaneseq
      %v2905 = vshrl.u32 %v2904, 7
      %v2906 = vsub.s32 %v2903, %v2905
      %v2907 = vrot.slane %v2899, %v2906
      %v2909 = vunpack.c.l.s4 1966171168
      %v2910 = vunpack.c.0.s8 %v2909
      %v2911 = vlaneseq
      %v2912 = vshrl.u32 %v2911, 7
      %v2913 = vsub.s32 %v2910, %v2912
      %v2914 = vrot.slane %v2907, %v2913
      %v2916 = vshrl.u32 %v2914, 16
      %2918 = vrot.lane.b32.xlu0 %v2916, 32
      %v2919 = vpop.permute.xlu0 %2918
      %v2922 = vsel %vm378, %v2899, %v2919
      %2924 = vrot.lane.b32.xlu0 %v2609, 64
      %v2925 = vpop.permute.xlu0 %2924
      %v2927 = vsel %vm460, %v2584, %v2925
      %v2929 = vsel %vm460, %v2897, 0
      %2931 = vmatprep.subr.bf16.mxu0 %v637
      %2932 = vmatpush1.bf16.msra.mxu0 %v636
      %2933 = vmatprep.subr.bf16.mxu0 %v633
      %2934 = vmatpush1.bf16.msra.mxu0 %v632
      %2935 = vmatprep.subr.bf16.mxu0 %v629
      %2936 = vmatpush1.bf16.msra.mxu0 %v628
      %2937 = vmatprep.subr.bf16.mxu0 %v625
      %2938 = vmatpush1.bf16.msra.mxu0 %v624
      %2939 = vmatprep.subr.bf16.mxu0 %v621
      %2940 = vmatpush1.bf16.msra.mxu0 %v620
      %2941 = vmatprep.subr.bf16.mxu0 %v617
      %2942 = vmatpush1.bf16.msra.mxu0 %v616
      %2943 = vmatprep.subr.bf16.mxu0 %v613
      %2944 = vmatpush1.bf16.msra.mxu0 %v612
      %2945 = vmatprep.subr.bf16.mxu0 %v609
      %2946 = vmatpush1.bf16.msra.mxu0 %v608
      %2947 = vmatprep.subr.bf16.mxu0 0
      %2948 = vmatpush2.bf16.msra.mxu0 0
      %2949 = vmatprep.subr.bf16.mxu0 0
      %2950 = vmatpush2.bf16.msra.mxu0 0
      %2951 = vmatprep.subr.bf16.mxu0 0
      %2952 = vmatpush2.bf16.msra.mxu0 0
      %2953 = vmatprep.subr.bf16.mxu0 0
      %2954 = vmatpush2.bf16.msra.mxu0 0
      %2955 = vmatprep.subr.bf16.mxu0 %v653
      %2956 = vmatpush2.bf16.msra.mxu0 %v652
      %2957 = vmatprep.subr.bf16.mxu0 %v649
      %2958 = vmatpush2.bf16.msra.mxu0 %v648
      %2959 = vmatprep.subr.bf16.mxu0 %v645
      %2960 = vmatpush2.bf16.msra.mxu0 %v644
      %2961 = vmatprep.subr.bf16.mxu0 %v641
      %2962 = vmatpush2.bf16.msra.mxu0 %v640
      %2963 = vmatprep.mubr.bf16.mxu0 %v2929
      %2964 = vmatmul.mubr.bf16.gmra.mxu0 %v2927
      %v2965 = vpop.f32.mrf.mxu0
      %v2966 = vadd.f32 %v708, %v2965
      %v2967 = vpop.f32.mrf.mxu0
      %v2968 = vadd.f32 %v712, %v2967
      %v2969 = vpop.f32.mrf.mxu0
      %v2970 = vpop.f32.mrf.mxu0
      %2971 = vdwg.mxu0
      %2972 = vmatprep.subr.bf16.mxu0 %v639
      %2973 = vmatpush1.bf16.msra.mxu0 %v638
      %2974 = vmatprep.subr.bf16.mxu0 %v635
      %2975 = vmatpush1.bf16.msra.mxu0 %v634
      %2976 = vmatprep.subr.bf16.mxu0 %v631
      %2977 = vmatpush1.bf16.msra.mxu0 %v630
      %2978 = vmatprep.subr.bf16.mxu0 %v627
      %2979 = vmatpush1.bf16.msra.mxu0 %v626
      %2980 = vmatprep.subr.bf16.mxu0 %v623
      %2981 = vmatpush1.bf16.msra.mxu0 %v622
      %2982 = vmatprep.subr.bf16.mxu0 %v619
      %2983 = vmatpush1.bf16.msra.mxu0 %v618
      %2984 = vmatprep.subr.bf16.mxu0 %v615
      %2985 = vmatpush1.bf16.msra.mxu0 %v614
      %2986 = vmatprep.subr.bf16.mxu0 %v611
      %2987 = vmatpush1.bf16.msra.mxu0 %v610
      %2988 = vmatprep.subr.bf16.mxu0 0
      %2989 = vmatpush2.bf16.msra.mxu0 0
      %2990 = vmatprep.subr.bf16.mxu0 0
      %2991 = vmatpush2.bf16.msra.mxu0 0
      %2992 = vmatprep.subr.bf16.mxu0 0
      %2993 = vmatpush2.bf16.msra.mxu0 0
      %2994 = vmatprep.subr.bf16.mxu0 0
      %2995 = vmatpush2.bf16.msra.mxu0 0
      %2996 = vmatprep.subr.bf16.mxu0 %v655
      %2997 = vmatpush2.bf16.msra.mxu0 %v654
      %2998 = vmatprep.subr.bf16.mxu0 %v651
      %2999 = vmatpush2.bf16.msra.mxu0 %v650
      %3000 = vmatprep.subr.bf16.mxu0 %v647
      %3001 = vmatpush2.bf16.msra.mxu0 %v646
      %3002 = vmatprep.subr.bf16.mxu0 %v643
      %3003 = vmatpush2.bf16.msra.mxu0 %v642
      %3004 = vmatprep.mubr.bf16.mxu0 %v2929
      %3005 = vmatmul.mubr.bf16.gmra.mxu0 %v2927
      %v3006 = vpop.f32.mrf.mxu0
      %v3007 = vadd.f32 %v716, %v3006
      %v3008 = vpop.f32.mrf.mxu0
      %v3009 = vadd.f32 %v720, %v3008
      %v3010 = vpop.f32.mrf.mxu0
      %v3011 = vpop.f32.mrf.mxu0
      %3012 = vdwg.mxu0
      %v3013 = vmax.f32 %v2966, 0.0
      %v3014 = vmax.f32 %v2968, 0.0
      %v3015 = vmax.f32 %v3007, 0.0
      %v3016 = vmax.f32 %v3009, 0.0
      %3018 = vrot.lane.b32.xlu0 %v2897, 64
      %v3019 = vpop.permute.xlu0 %3018
      %v3021 = vsel %vm460, %v2609, %v3019
      %v3023 = vsel %vm460, %v2922, 0
      %3025 = vmatprep.subr.bf16.mxu0 %v637
      %3026 = vmatpush1.bf16.msra.mxu0 %v636
      %3027 = vmatprep.subr.bf16.mxu0 %v633
      %3028 = vmatpush1.bf16.msra.mxu0 %v632
      %3029 = vmatprep.subr.bf16.mxu0 %v629
      %3030 = vmatpush1.bf16.msra.mxu0 %v628
      %3031 = vmatprep.subr.bf16.mxu0 %v625
      %3032 = vmatpush1.bf16.msra.mxu0 %v624
      %3033 = vmatprep.subr.bf16.mxu0 %v621
      %3034 = vmatpush1.bf16.msra.mxu0 %v620
      %3035 = vmatprep.subr.bf16.mxu0 %v617
      %3036 = vmatpush1.bf16.msra.mxu0 %v616
      %3037 = vmatprep.subr.bf16.mxu0 %v613
      %3038 = vmatpush1.bf16.msra.mxu0 %v612
      %3039 = vmatprep.subr.bf16.mxu0 %v609
      %3040 = vmatpush1.bf16.msra.mxu0 %v608
      %3041 = vmatprep.subr.bf16.mxu0 0
      %3042 = vmatpush2.bf16.msra.mxu0 0
      %3043 = vmatprep.subr.bf16.mxu0 0
      %3044 = vmatpush2.bf16.msra.mxu0 0
      %3045 = vmatprep.subr.bf16.mxu0 0
      %3046 = vmatpush2.bf16.msra.mxu0 0
      %3047 = vmatprep.subr.bf16.mxu0 0
      %3048 = vmatpush2.bf16.msra.mxu0 0
      %3049 = vmatprep.subr.bf16.mxu0 %v653
      %3050 = vmatpush2.bf16.msra.mxu0 %v652
      %3051 = vmatprep.subr.bf16.mxu0 %v649
      %3052 = vmatpush2.bf16.msra.mxu0 %v648
      %3053 = vmatprep.subr.bf16.mxu0 %v645
      %3054 = vmatpush2.bf16.msra.mxu0 %v644
      %3055 = vmatprep.subr.bf16.mxu0 %v641
      %3056 = vmatpush2.bf16.msra.mxu0 %v640
      %3057 = vmatprep.mubr.bf16.mxu0 %v3023
      %3058 = vmatmul.mubr.bf16.gmra.mxu0 %v3021
      %v3059 = vpop.f32.mrf.mxu0
      %v3060 = vadd.f32 %v708, %v3059
      %v3061 = vpop.f32.mrf.mxu0
      %v3062 = vadd.f32 %v712, %v3061
      %v3063 = vpop.f32.mrf.mxu0
      %v3064 = vpop.f32.mrf.mxu0
      %3065 = vdwg.mxu0
      %3066 = vmatprep.subr.bf16.mxu0 %v639
      %3067 = vmatpush1.bf16.msra.mxu0 %v638
      %3068 = vmatprep.subr.bf16.mxu0 %v635
      %3069 = vmatpush1.bf16.msra.mxu0 %v634
      %3070 = vmatprep.subr.bf16.mxu0 %v631
      %3071 = vmatpush1.bf16.msra.mxu0 %v630
      %3072 = vmatprep.subr.bf16.mxu0 %v627
      %3073 = vmatpush1.bf16.msra.mxu0 %v626
      %3074 = vmatprep.subr.bf16.mxu0 %v623
      %3075 = vmatpush1.bf16.msra.mxu0 %v622
      %3076 = vmatprep.subr.bf16.mxu0 %v619
      %3077 = vmatpush1.bf16.msra.mxu0 %v618
      %3078 = vmatprep.subr.bf16.mxu0 %v615
      %3079 = vmatpush1.bf16.msra.mxu0 %v614
      %3080 = vmatprep.subr.bf16.mxu0 %v611
      %3081 = vmatpush1.bf16.msra.mxu0 %v610
      %3082 = vmatprep.subr.bf16.mxu0 0
      %3083 = vmatpush2.bf16.msra.mxu0 0
      %3084 = vmatprep.subr.bf16.mxu0 0
      %3085 = vmatpush2.bf16.msra.mxu0 0
      %3086 = vmatprep.subr.bf16.mxu0 0
      %3087 = vmatpush2.bf16.msra.mxu0 0
      %3088 = vmatprep.subr.bf16.mxu0 0
      %3089 = vmatpush2.bf16.msra.mxu0 0
      %3090 = vmatprep.subr.bf16.mxu0 %v655
      %3091 = vmatpush2.bf16.msra.mxu0 %v654
      %3092 = vmatprep.subr.bf16.mxu0 %v651
      %3093 = vmatpush2.bf16.msra.mxu0 %v650
      %3094 = vmatprep.subr.bf16.mxu0 %v647
      %3095 = vmatpush2.bf16.msra.mxu0 %v646
      %3096 = vmatprep.subr.bf16.mxu0 %v643
      %3097 = vmatpush2.bf16.msra.mxu0 %v642
      %3098 = vmatprep.mubr.bf16.mxu0 %v3023
      %3099 = vmatmul.mubr.bf16.gmra.mxu0 %v3021
      %v3100 = vpop.f32.mrf.mxu0
      %v3101 = vadd.f32 %v716, %v3100
      %v3102 = vpop.f32.mrf.mxu0
      %v3103 = vadd.f32 %v720, %v3102
      %v3104 = vpop.f32.mrf.mxu0
      %v3105 = vpop.f32.mrf.mxu0
      %3106 = vdwg.mxu0
      %v3107 = vmax.f32 %v3060, 0.0
      %v3108 = vmax.f32 %v3062, 0.0
      %v3109 = vmax.f32 %v3101, 0.0
      %v3110 = vmax.f32 %v3103, 0.0
      %v3111 = vmax.f32 %v3013, %v3107
      %v3112 = vmax.f32 %v3014, %v3108
      %v3113 = vmax.f32 %v3015, %v3109
      %v3114 = vmax.f32 %v3016, %v3110
      %3116 = vrot.lane.b32.xlu0 %v3111, 96
      %v3117 = vpop.permute.xlu0 %3116
      %v3119 = vmax.f32 %v3111, %v3117
      %3121 = vrot.lane.b32.xlu0 %v3112, 96
      %v3122 = vpop.permute.xlu0 %3121
      %v3124 = vmax.f32 %v3112, %v3122
      %3126 = vrot.lane.b32.xlu0 %v3113, 96
      %v3127 = vpop.permute.xlu0 %3126
      %v3129 = vmax.f32 %v3113, %v3127
      %3131 = vrot.lane.b32.xlu0 %v3114, 96
      %v3132 = vpop.permute.xlu0 %3131
      %v3134 = vmax.f32 %v3114, %v3132
      %3136 = vrot.lane.b32.xlu0 %v3119, 96
      %v3137 = vpop.permute.xlu0 %3136
      %3140 = vrot.lane.b32.xlu0 %v3124, 64
      %v3141 = vpop.permute.xlu0 %3140
      %3143 = vrot.lane.b32.xlu0 %v3124, 32
      %v3144 = vpop.permute.xlu0 %3143
      %3147 = vrot.lane.b32.xlu0 %v3129, 96
      %v3148 = vpop.permute.xlu0 %3147
      %3151 = vrot.lane.b32.xlu0 %v3134, 64
      %v3152 = vpop.permute.xlu0 %3151
      %3154 = vrot.lane.b32.xlu0 %v3134, 32
      %v3155 = vpop.permute.xlu0 %3154
      %v3157 = vsel %vm378, %v3119, %v3137
      %v3158 = vsel %vm460, %v3157, %v3141
      %v3159 = vsel %vm955, %v3158, %v3144
      %v3160 = vsel %vm378, %v3129, %v3148
      %v3161 = vsel %vm460, %v3160, %v3152
      %v3162 = vsel %vm955, %v3161, %v3155
      %v3163 = vpack.c.bf16 %v3159, %v3159
      %v3164 = vpack.c.bf16 %v3162, %v3162
      %v3167 = vcombine.low %v3163, %v3164
      %v3169 = vunpack.c.l.s4 1966171168
      %v3170 = vunpack.c.0.s8 %v3169
      %v3171 = vlaneseq
      %v3172 = vshrl.u32 %v3171, 7
      %v3173 = vsub.s32 %v3170, %v3172
      %v3174 = vrot.slane %v3167, %v3173
      %v3176 = vunpack.c.l.s4 1966171168
      %v3177 = vunpack.c.0.s8 %v3176
      %v3178 = vlaneseq
      %v3179 = vshrl.u32 %v3178, 7
      %v3180 = vsub.s32 %v3177, %v3179
      %v3181 = vrot.slane %v3174, %v3180
      %s3183 = scalar_lea.vmem %s305, 14
      %v3184 = vld [vmem:[%s3183] sm:$0x3]
      %v3185 = vsel %vm986, %v3181, %v3184
      %3186 = vst [vmem:[%s3183] sm:$0x3] %v3185
      %s3187 = smul.u32 8, %s20
      %p3188 = scmp.lt.s32.totalorder %s19, 1
      %s3189 = scalar_select %p3188, %s19, 1
      %p3190 = scmp.lt.s32.totalorder %s3187, 7
      %s3191 = scalar_select %p3190, %s3187, 7
      %s3192 = smul.addr %s3191, 2
      %s3193 = smul.addr %s3189, 16
      %s3194 = sadd.s32 %s3192, %s3193
      %s3195 = scalar_lea.vmem %s4, %s3194
      // Predicated region
      $region37: #{cnn_backbone_forward.3} parent=35 // pred_check
        %p3196 = pneg %p149
      $region38: #{cnn_backbone_forward.3} parent=35 // pred_check_branch
        %3198 = sbr.rel (%p3196) target = $region40
      $region39: #{cnn_backbone_forward.3} parent=35 // pred_region
        %s3199 = smul.u32 8, %s20
      $region40: #{cnn_backbone_forward.3} parent=35 // pred_fallthru
        _
    $region36: #{cnn_backbone_forward.3} parent=5 // pred_fallthru
      _
    %p3200 = scmp.le.s32.totalorder 2, %s10
    // Predicated region
    $region41: #{cnn_backbone_forward.3} parent=5 // pred_check
      %p3201 = pneg %p3200
    $region42: #{cnn_backbone_forward.3} parent=5 // pred_check_branch
      %3203 = sbr.rel (%p3201) target = $region44
    $region43: #{cnn_backbone_forward.3} parent=5 // pred_region
      %s3204 = ssub.s32 %s10, 2
      // Predicated region
      $region45: #{cnn_backbone_forward.3} parent=43 // pred_check
        %p3205 = pneg %p155
      $region46: #{cnn_backbone_forward.3} parent=43 // pred_check_branch
        %3207 = sbr.rel (%p3205) target = $region48
      $region47: #{cnn_backbone_forward.3} parent=43 // pred_region
        %s3208 = smul.u32 8, %s22
        %p3209 = scmp.lt.s32.totalorder %s21, 1
        %s3210 = scalar_select %p3209, %s21, 1
        %p3211 = scmp.lt.s32.totalorder %s3208, 7
        %s3212 = scalar_select %p3211, %s3208, 7
        %s3213 = smul.addr %s3212, 2
        %s3214 = smul.addr %s3210, 16
        %s3215 = sadd.s32 %s3213, %s3214
        %s3216 = scalar_lea.vmem %s4, %s3215
      $region48: #{cnn_backbone_forward.3} parent=43 // pred_fallthru
        _
    $region44: #{cnn_backbone_forward.3} parent=5 // pred_fallthru
      _
  $region6: #{cnn_backbone_forward.3} parent=0 // loop_footer
    %s14 = sadd.s32 1, %s10
  $region7: #{cnn_backbone_forward.3} parent=0 // loop_footer_branch
    %9 = sbr.rel target = $region3
  $region8: #{cnn_backbone_forward.3} parent=0 // loop_exit
    _

// kernel: cnn_backbone_forward.5
$region0: #{cnn_backbone_forward.5}
  #allocation0 [shape = 'u32[]', space=smem, size = 0x4, offset = 0x4, fixed_abs, tag = 'smem constant byte address 0x4 - core index']
  #allocation1 [shape = 'u32[144,128]{1,0:T(1,128)}', space=vmem, size = 0x12000, scoped, tag = 'internal scratch']
  #allocation2 [shape = 'f32[2,128]{1,0:T(2,128)}', space=vmem, size = 0x400, scoped, tag = 'scratch operand']
  #allocation3 [shape = 'f32[2,128]{1,0:T(2,128)}', space=vmem, size = 0x400, scoped, tag = 'scratch operand']
  %s0 = inlined_call_operand.vmem [shape: bf16[2,1024], index: 0, kind: input, shape index: {}, may-alias: {0,1}]
  %s1 = inlined_call_operand.vmem [shape: bf16[2,1024], index: 1, kind: input, shape index: {}, may-alias: {0,1}]
  %s2 = inlined_call_operand.vmem [shape: bf16[512,128], index: 2, kind: input, shape index: {}]
  %s3 = inlined_call_operand.vmem [shape: f32[1,64], index: 3, kind: input, shape index: {}]
  %s4 = inlined_call_operand.vmem [shape: f32[64,2], index: 4, kind: input, shape index: {}]
  %s5 = inlined_call_operand.vmem [shape: f32[1,2], index: 5, kind: input, shape index: {}]
  %s6 = inlined_call_operand.vmem [shape: f32[2,2], index: 6, kind: output, shape index: {}]
  %s7 = sld [smem:[#allocation0]]
  $region42: #{cnn_backbone_forward.5} parent=0
    _
  %s9 = ssub.s32 1, %s7
  %s10 = scalar_select 0, %s9, %s7
  // Predicated region
  $region2: #{cnn_backbone_forward.5} parent=0 // pred_check
    _
  $region3: #{cnn_backbone_forward.5} parent=0 // pred_check_branch
    %12 = sbr.rel (0) target = $region5
  $region4: #{cnn_backbone_forward.5} parent=0 // pred_region
    _
  $region5: #{cnn_backbone_forward.5} parent=0 // pred_fallthru
    _
  // Predicated region
  $region6: #{cnn_backbone_forward.5} parent=0 // pred_check
    _
  $region7: #{cnn_backbone_forward.5} parent=0 // pred_check_branch
    %14 = sbr.rel (0) target = $region9
  $region8: #{cnn_backbone_forward.5} parent=0 // pred_region
    %s15 = sadd.s32 0, 1
    %s16 = smul.u32 4, %s15
    %p17 = scmp.lt.s32.totalorder %s16, 7
    %s18 = scalar_select %p17, %s16, 7
    %s19 = scalar_lea.vmem %s1, %s18
    %s20 = sadd.s32 0, 1
    %s21 = smul.u32 4, %s20
  $region9: #{cnn_backbone_forward.5} parent=0 // pred_fallthru
    _
  // Predicated region
  $region10: #{cnn_backbone_forward.5} parent=0 // pred_check
    _
  $region11: #{cnn_backbone_forward.5} parent=0 // pred_check_branch
    %23 = sbr.rel (0) target = $region13
  $region12: #{cnn_backbone_forward.5} parent=0 // pred_region
    _
  $region13: #{cnn_backbone_forward.5} parent=0 // pred_fallthru
    _
  // Predicated region
  $region14: #{cnn_backbone_forward.5} parent=0 // pred_check
    _
  $region15: #{cnn_backbone_forward.5} parent=0 // pred_check_branch
    %25 = sbr.rel (0) target = $region17
  $region16: #{cnn_backbone_forward.5} parent=0 // pred_region
    _
  $region17: #{cnn_backbone_forward.5} parent=0 // pred_fallthru
    _
  // Predicated region
  $region18: #{cnn_backbone_forward.5} parent=0 // pred_check
    _
  $region19: #{cnn_backbone_forward.5} parent=0 // pred_check_branch
    %27 = sbr.rel (0) target = $region21
  $region20: #{cnn_backbone_forward.5} parent=0 // pred_region
    _
  $region21: #{cnn_backbone_forward.5} parent=0 // pred_fallthru
    _
  // Predicated region
  $region22: #{cnn_backbone_forward.5} parent=0 // pred_check
    _
  $region23: #{cnn_backbone_forward.5} parent=0 // pred_check_branch
    %29 = sbr.rel (0) target = $region25
  $region24: #{cnn_backbone_forward.5} parent=0 // pred_region
    _
  $region25: #{cnn_backbone_forward.5} parent=0 // pred_fallthru
    _
  %s30 = sadd.s32 0, 1
  %s31 = smul.u32 4, %s30
  %p32 = scmp.lt.s32.totalorder %s31, 7
  %s33 = scalar_select %p32, %s31, 7
  %s34 = scalar_lea.vmem %s1, %s33
  %s35 = sadd.s32 0, 1
  %s36 = smul.u32 4, %s35
  %p37 = scmp.lt.s32.totalorder %s36, 7
  %s38 = scalar_select %p37, %s36, 7
  %s39 = scalar_lea.vmem %s1, %s38
  %s40 = sadd.s32 0, 1
  %s41 = smul.u32 4, %s40
  %p43 = scmp.eq.s32.totalorder 0, 0
  // Predicated region
  $region26: #{cnn_backbone_forward.5} parent=0 // pred_check
    %p44 = pneg %p43
  $region27: #{cnn_backbone_forward.5} parent=0 // pred_check_branch
    %46 = sbr.rel (%p44) target = $region29
  $region28: #{cnn_backbone_forward.5} parent=0 // pred_region
    %47 = vst [vmem:[#allocation2] sm:$0x3] 0.0
    %48 = vst [vmem:[#allocation3] sm:$0x3] 0.0
  $region29: #{cnn_backbone_forward.5} parent=0 // pred_fallthru
    _
  %v49 = vld [vmem:[%s2] sm:$0xf]
  %v50 = vld [vmem:[%s2 + $0x4] sm:$0xf]
  %v51 = vld [vmem:[%s2 + $0x8] sm:$0xf]
  %v52 = vld [vmem:[%s2 + $0xc] sm:$0xf]
  %v53 = vld [vmem:[%s2 + $0x10] sm:$0xf]
  %v54 = vld [vmem:[%s2 + $0x14] sm:$0xf]
  %v55 = vld [vmem:[%s2 + $0x18] sm:$0xf]
  %v56 = vld [vmem:[%s2 + $0x1c] sm:$0xf]
  %v57 = vld [vmem:[%s2 + $0x20] sm:$0xf]
  %v58 = vld [vmem:[%s2 + $0x24] sm:$0xf]
  %v59 = vld [vmem:[%s2 + $0x28] sm:$0xf]
  %v60 = vld [vmem:[%s2 + $0x2c] sm:$0xf]
  %v61 = vld [vmem:[%s2 + $0x30] sm:$0xf]
  %v62 = vld [vmem:[%s2 + $0x34] sm:$0xf]
  %v63 = vld [vmem:[%s2 + $0x38] sm:$0xf]
  %v64 = vld [vmem:[%s2 + $0x3c] sm:$0xf]
  %v65 = vld [vmem:[%s2 + $0x40] sm:$0xf]
  %v66 = vld [vmem:[%s2 + $0x44] sm:$0xf]
  %v67 = vld [vmem:[%s2 + $0x48] sm:$0xf]
  %v68 = vld [vmem:[%s2 + $0x4c] sm:$0xf]
  %v69 = vld [vmem:[%s2 + $0x50] sm:$0xf]
  %v70 = vld [vmem:[%s2 + $0x54] sm:$0xf]
  %v71 = vld [vmem:[%s2 + $0x58] sm:$0xf]
  %v72 = vld [vmem:[%s2 + $0x5c] sm:$0xf]
  %v73 = vld [vmem:[%s2 + $0x60] sm:$0xf]
  %v74 = vld [vmem:[%s2 + $0x64] sm:$0xf]
  %v75 = vld [vmem:[%s2 + $0x68] sm:$0xf]
  %v76 = vld [vmem:[%s2 + $0x6c] sm:$0xf]
  %v77 = vld [vmem:[%s2 + $0x70] sm:$0xf]
  %v78 = vld [vmem:[%s2 + $0x74] sm:$0xf]
  %v79 = vld [vmem:[%s2 + $0x78] sm:$0xf]
  %v80 = vld [vmem:[%s2 + $0x7c] sm:$0xf]
  %v81 = vld [vmem:[%s2 + $0x80] sm:$0xf]
  %v82 = vld [vmem:[%s2 + $0x84] sm:$0xf]
  %v83 = vld [vmem:[%s2 + $0x88] sm:$0xf]
  %v84 = vld [vmem:[%s2 + $0x8c] sm:$0xf]
  %v85 = vld [vmem:[%s2 + $0x90] sm:$0xf]
  %v86 = vld [vmem:[%s2 + $0x94] sm:$0xf]
  %v87 = vld [vmem:[%s2 + $0x98] sm:$0xf]
  %v88 = vld [vmem:[%s2 + $0x9c] sm:$0xf]
  %v89 = vld [vmem:[%s2 + $0xa0] sm:$0xf]
  %v90 = vld [vmem:[%s2 + $0xa4] sm:$0xf]
  %v91 = vld [vmem:[%s2 + $0xa8] sm:$0xf]
  %v92 = vld [vmem:[%s2 + $0xac] sm:$0xf]
  %v93 = vld [vmem:[%s2 + $0xb0] sm:$0xf]
  %v94 = vld [vmem:[%s2 + $0xb4] sm:$0xf]
  %v95 = vld [vmem:[%s2 + $0xb8] sm:$0xf]
  %v96 = vld [vmem:[%s2 + $0xbc] sm:$0xf]
  %v97 = vld [vmem:[%s2 + $0xc0] sm:$0xf]
  %v98 = vld [vmem:[%s2 + $0xc4] sm:$0xf]
  %v99 = vld [vmem:[%s2 + $0xc8] sm:$0xf]
  %v100 = vld [vmem:[%s2 + $0xcc] sm:$0xf]
  %v101 = vld [vmem:[%s2 + $0xd0] sm:$0xf]
  %v102 = vld [vmem:[%s2 + $0xd4] sm:$0xf]
  %v103 = vld [vmem:[%s2 + $0xd8] sm:$0xf]
  %v104 = vld [vmem:[%s2 + $0xdc] sm:$0xf]
  %v105 = vld [vmem:[%s2 + $0xe0] sm:$0xf]
  %v106 = vld [vmem:[%s2 + $0xe4] sm:$0xf]
  %v107 = vld [vmem:[%s2 + $0xe8] sm:$0xf]
  %v108 = vld [vmem:[%s2 + $0xec] sm:$0xf]
  %v109 = vld [vmem:[%s2 + $0xf0] sm:$0xf]
  %v110 = vld [vmem:[%s2 + $0xf4] sm:$0xf]
  %v111 = vld [vmem:[%s2 + $0xf8] sm:$0xf]
  %v112 = vld [vmem:[%s2 + $0xfc] sm:$0xf]
  %v113 = vld [vmem:[#allocation2] sm:$0x3]
  %v114 = vld [vmem:[%s0] sm:$0xf]
  %v117 = vunpack.c.l.s4 1966171168
  %v118 = vunpack.c.0.s8 %v117
  %v119 = vlaneseq
  %v120 = vshrl.u32 %v119, 7
  %v121 = vsub.s32 %v118, %v120
  %v122 = vrot.slane %v114, %v121
  %v123 = vcombine.high %v122, %v122
  %v125 = vunpack.c.l.s4 1966171168
  %v126 = vunpack.c.0.s8 %v125
  %v127 = vlaneseq
  %v128 = vshrl.u32 %v127, 7
  %v129 = vsub.s32 %v126, %v128
  %v130 = vrot.slane %v122, %v129
  %v132 = vunpack.c.l.s4 1966171168
  %v133 = vunpack.c.0.s8 %v132
  %v134 = vlaneseq
  %v135 = vshrl.u32 %v134, 7
  %v136 = vsub.s32 %v133, %v135
  %v137 = vrot.slane %v123, %v136
  %v138 = vcombine.high %v130, %v130
  %v139 = vcombine.high %v137, %v137
  %v208 = vunpack.c.l.b16 %v49
  %v209 = vunpack.c.l.b16 %v50
  %v210 = vunpack.c.l.b16 %v51
  %v211 = vunpack.c.l.b16 %v52
  %v212 = vunpack.c.l.b16 %v53
  %v213 = vunpack.c.l.b16 %v54
  %v214 = vunpack.c.l.b16 %v55
  %v215 = vunpack.c.l.b16 %v56
  %v216 = vunpack.c.l.b16 %v57
  %v217 = vunpack.c.l.b16 %v58
  %v218 = vunpack.c.l.b16 %v59
  %v219 = vunpack.c.l.b16 %v60
  %v220 = vunpack.c.l.b16 %v61
  %v221 = vunpack.c.l.b16 %v62
  %v222 = vunpack.c.l.b16 %v63
  %v223 = vunpack.c.l.b16 %v64
  %v224 = vunpack.c.l.b16 %v65
  %v225 = vunpack.c.l.b16 %v66
  %v226 = vunpack.c.l.b16 %v67
  %v227 = vunpack.c.l.b16 %v68
  %v228 = vunpack.c.l.b16 %v69
  %v229 = vunpack.c.l.b16 %v70
  %v230 = vunpack.c.l.b16 %v71
  %v231 = vunpack.c.l.b16 %v72
  %v232 = vunpack.c.l.b16 %v73
  %v233 = vunpack.c.l.b16 %v74
  %v234 = vunpack.c.l.b16 %v75
  %v235 = vunpack.c.l.b16 %v76
  %v236 = vunpack.c.l.b16 %v77
  %v237 = vunpack.c.l.b16 %v78
  %v238 = vunpack.c.l.b16 %v79
  %v239 = vunpack.c.l.b16 %v80
  %v240 = vunpack.c.l.b16 %v81
  %v241 = vunpack.c.l.b16 %v82
  %v242 = vunpack.c.l.b16 %v83
  %v243 = vunpack.c.l.b16 %v84
  %v244 = vunpack.c.l.b16 %v85
  %v245 = vunpack.c.l.b16 %v86
  %v246 = vunpack.c.l.b16 %v87
  %v247 = vunpack.c.l.b16 %v88
  %v248 = vunpack.c.l.b16 %v89
  %v249 = vunpack.c.l.b16 %v90
  %v250 = vunpack.c.l.b16 %v91
  %v251 = vunpack.c.l.b16 %v92
  %v252 = vunpack.c.l.b16 %v93
  %v253 = vunpack.c.l.b16 %v94
  %v254 = vunpack.c.l.b16 %v95
  %v255 = vunpack.c.l.b16 %v96
  %v256 = vunpack.c.l.b16 %v97
  %v257 = vunpack.c.l.b16 %v98
  %v258 = vunpack.c.l.b16 %v99
  %v259 = vunpack.c.l.b16 %v100
  %v260 = vunpack.c.l.b16 %v101
  %v261 = vunpack.c.l.b16 %v102
  %v262 = vunpack.c.l.b16 %v103
  %v263 = vunpack.c.l.b16 %v104
  %v264 = vunpack.c.l.b16 %v105
  %v265 = vunpack.c.l.b16 %v106
  %v266 = vunpack.c.l.b16 %v107
  %v267 = vunpack.c.l.b16 %v108
  %v268 = vunpack.c.l.b16 %v109
  %v269 = vunpack.c.l.b16 %v110
  %v270 = vunpack.c.l.b16 %v111
  %v271 = vunpack.c.l.b16 %v112
  %v272 = vpack.c.b16 %v209, %v208
  %v273 = vpack.c.b16 %v211, %v210
  %v274 = vpack.c.b16 %v213, %v212
  %v275 = vpack.c.b16 %v215, %v214
  %v276 = vpack.c.b16 %v217, %v216
  %v277 = vpack.c.b16 %v219, %v218
  %v278 = vpack.c.b16 %v221, %v220
  %v279 = vpack.c.b16 %v223, %v222
  %v280 = vpack.c.b16 %v225, %v224
  %v281 = vpack.c.b16 %v227, %v226
  %v282 = vpack.c.b16 %v229, %v228
  %v283 = vpack.c.b16 %v231, %v230
  %v284 = vpack.c.b16 %v233, %v232
  %v285 = vpack.c.b16 %v235, %v234
  %v286 = vpack.c.b16 %v237, %v236
  %v287 = vpack.c.b16 %v239, %v238
  %v288 = vpack.c.b16 %v241, %v240
  %v289 = vpack.c.b16 %v243, %v242
  %v290 = vpack.c.b16 %v245, %v244
  %v291 = vpack.c.b16 %v247, %v246
  %v292 = vpack.c.b16 %v249, %v248
  %v293 = vpack.c.b16 %v251, %v250
  %v294 = vpack.c.b16 %v253, %v252
  %v295 = vpack.c.b16 %v255, %v254
  %v296 = vpack.c.b16 %v257, %v256
  %v297 = vpack.c.b16 %v259, %v258
  %v298 = vpack.c.b16 %v261, %v260
  %v299 = vpack.c.b16 %v263, %v262
  %v300 = vpack.c.b16 %v265, %v264
  %v301 = vpack.c.b16 %v267, %v266
  %v302 = vpack.c.b16 %v269, %v268
  %v303 = vpack.c.b16 %v271, %v270
  %336 = vmatprep.subr.bf16.mxu0 0
  %337 = vmatpush1.bf16.msra.mxu0 %v279
  %338 = vmatprep.subr.bf16.mxu0 0
  %339 = vmatpush1.bf16.msra.mxu0 %v278
  %340 = vmatprep.subr.bf16.mxu0 0
  %341 = vmatpush1.bf16.msra.mxu0 %v277
  %342 = vmatprep.subr.bf16.mxu0 0
  %343 = vmatpush1.bf16.msra.mxu0 %v276
  %344 = vmatprep.subr.bf16.mxu0 0
  %345 = vmatpush1.bf16.msra.mxu0 %v275
  %346 = vmatprep.subr.bf16.mxu0 0
  %347 = vmatpush1.bf16.msra.mxu0 %v274
  %348 = vmatprep.subr.bf16.mxu0 0
  %349 = vmatpush1.bf16.msra.mxu0 %v273
  %350 = vmatprep.subr.bf16.mxu0 0
  %351 = vmatpush1.bf16.msra.mxu0 %v272
  %352 = vmatprep.subr.bf16.mxu0 0
  %353 = vmatpush2.bf16.msra.mxu0 %v287
  %354 = vmatprep.subr.bf16.mxu0 0
  %355 = vmatpush2.bf16.msra.mxu0 %v286
  %356 = vmatprep.subr.bf16.mxu0 0
  %357 = vmatpush2.bf16.msra.mxu0 %v285
  %358 = vmatprep.subr.bf16.mxu0 0
  %359 = vmatpush2.bf16.msra.mxu0 %v284
  %360 = vmatprep.subr.bf16.mxu0 0
  %361 = vmatpush2.bf16.msra.mxu0 %v283
  %362 = vmatprep.subr.bf16.mxu0 0
  %363 = vmatpush2.bf16.msra.mxu0 %v282
  %364 = vmatprep.subr.bf16.mxu0 0
  %365 = vmatpush2.bf16.msra.mxu0 %v281
  %366 = vmatprep.subr.bf16.mxu0 0
  %367 = vmatpush2.bf16.msra.mxu0 %v280
  %368 = vmatprep.mubr.bf16.mxu0 %v137
  %369 = vmatmul.mubr.bf16.gmra.mxu0 %v130
  %v370 = vpop.f32.mrf.mxu0
  %v371 = vadd.f32 0.0, %v370
  %v372 = vpop.f32.mrf.mxu0
  %v373 = vpop.f32.mrf.mxu0
  %v374 = vpop.f32.mrf.mxu0
  %375 = vdwg.mxu0
  %376 = vmatprep.subr.bf16.mxu0 0
  %377 = vmatpush1.bf16.msra.mxu0 %v295
  %378 = vmatprep.subr.bf16.mxu0 0
  %379 = vmatpush1.bf16.msra.mxu0 %v294
  %380 = vmatprep.subr.bf16.mxu0 0
  %381 = vmatpush1.bf16.msra.mxu0 %v293
  %382 = vmatprep.subr.bf16.mxu0 0
  %383 = vmatpush1.bf16.msra.mxu0 %v292
  %384 = vmatprep.subr.bf16.mxu0 0
  %385 = vmatpush1.bf16.msra.mxu0 %v291
  %386 = vmatprep.subr.bf16.mxu0 0
  %387 = vmatpush1.bf16.msra.mxu0 %v290
  %388 = vmatprep.subr.bf16.mxu0 0
  %389 = vmatpush1.bf16.msra.mxu0 %v289
  %390 = vmatprep.subr.bf16.mxu0 0
  %391 = vmatpush1.bf16.msra.mxu0 %v288
  %392 = vmatprep.subr.bf16.mxu0 0
  %393 = vmatpush2.bf16.msra.mxu0 %v303
  %394 = vmatprep.subr.bf16.mxu0 0
  %395 = vmatpush2.bf16.msra.mxu0 %v302
  %396 = vmatprep.subr.bf16.mxu0 0
  %397 = vmatpush2.bf16.msra.mxu0 %v301
  %398 = vmatprep.subr.bf16.mxu0 0
  %399 = vmatpush2.bf16.msra.mxu0 %v300
  %400 = vmatprep.subr.bf16.mxu0 0
  %401 = vmatpush2.bf16.msra.mxu0 %v299
  %402 = vmatprep.subr.bf16.mxu0 0
  %403 = vmatpush2.bf16.msra.mxu0 %v298
  %404 = vmatprep.subr.bf16.mxu0 0
  %405 = vmatpush2.bf16.msra.mxu0 %v297
  %406 = vmatprep.subr.bf16.mxu0 0
  %407 = vmatpush2.bf16.msra.mxu0 %v296
  %408 = vmatprep.mubr.bf16.mxu0 %v139
  %409 = vmatmul.mubr.bf16.gmra.mxu0 %v138
  %v410 = vpop.f32.mrf.mxu0
  %v411 = vadd.f32 %v371, %v410
  %v412 = vpop.f32.mrf.mxu0
  %v413 = vpop.f32.mrf.mxu0
  %v414 = vpop.f32.mrf.mxu0
  %415 = vdwg.mxu0
  %v416 = vadd.f32 %v113, %v411
  %417 = vst [vmem:[#allocation2] sm:$0x3] %v416
  %v418 = vld [vmem:[#allocation3] sm:$0x3]
  %v419 = vld [vmem:[%s39] sm:$0xf]
  %v422 = vunpack.c.l.s4 1966171168
  %v423 = vunpack.c.0.s8 %v422
  %v424 = vlaneseq
  %v425 = vshrl.u32 %v424, 7
  %v426 = vsub.s32 %v423, %v425
  %v427 = vrot.slane %v419, %v426
  %v428 = vcombine.high %v427, %v427
  %v430 = vunpack.c.l.s4 1966171168
  %v431 = vunpack.c.0.s8 %v430
  %v432 = vlaneseq
  %v433 = vshrl.u32 %v432, 7
  %v434 = vsub.s32 %v431, %v433
  %v435 = vrot.slane %v427, %v434
  %v437 = vunpack.c.l.s4 1966171168
  %v438 = vunpack.c.0.s8 %v437
  %v439 = vlaneseq
  %v440 = vshrl.u32 %v439, 7
  %v441 = vsub.s32 %v438, %v440
  %v442 = vrot.slane %v428, %v441
  %v443 = vcombine.high %v435, %v435
  %v444 = vcombine.high %v442, %v442
  %449 = vmatprep.subr.bf16.mxu0 0
  %450 = vmatpush1.bf16.msra.mxu0 %v279
  %451 = vmatprep.subr.bf16.mxu0 0
  %452 = vmatpush1.bf16.msra.mxu0 %v278
  %453 = vmatprep.subr.bf16.mxu0 0
  %454 = vmatpush1.bf16.msra.mxu0 %v277
  %455 = vmatprep.subr.bf16.mxu0 0
  %456 = vmatpush1.bf16.msra.mxu0 %v276
  %457 = vmatprep.subr.bf16.mxu0 0
  %458 = vmatpush1.bf16.msra.mxu0 %v275
  %459 = vmatprep.subr.bf16.mxu0 0
  %460 = vmatpush1.bf16.msra.mxu0 %v274
  %461 = vmatprep.subr.bf16.mxu0 0
  %462 = vmatpush1.bf16.msra.mxu0 %v273
  %463 = vmatprep.subr.bf16.mxu0 0
  %464 = vmatpush1.bf16.msra.mxu0 %v272
  %465 = vmatprep.subr.bf16.mxu0 0
  %466 = vmatpush2.bf16.msra.mxu0 %v287
  %467 = vmatprep.subr.bf16.mxu0 0
  %468 = vmatpush2.bf16.msra.mxu0 %v286
  %469 = vmatprep.subr.bf16.mxu0 0
  %470 = vmatpush2.bf16.msra.mxu0 %v285
  %471 = vmatprep.subr.bf16.mxu0 0
  %472 = vmatpush2.bf16.msra.mxu0 %v284
  %473 = vmatprep.subr.bf16.mxu0 0
  %474 = vmatpush2.bf16.msra.mxu0 %v283
  %475 = vmatprep.subr.bf16.mxu0 0
  %476 = vmatpush2.bf16.msra.mxu0 %v282
  %477 = vmatprep.subr.bf16.mxu0 0
  %478 = vmatpush2.bf16.msra.mxu0 %v281
  %479 = vmatprep.subr.bf16.mxu0 0
  %480 = vmatpush2.bf16.msra.mxu0 %v280
  %481 = vmatprep.mubr.bf16.mxu0 %v442
  %482 = vmatmul.mubr.bf16.gmra.mxu0 %v435
  %v483 = vpop.f32.mrf.mxu0
  %v484 = vadd.f32 0.0, %v483
  %v485 = vpop.f32.mrf.mxu0
  %v486 = vpop.f32.mrf.mxu0
  %v487 = vpop.f32.mrf.mxu0
  %488 = vdwg.mxu0
  %489 = vmatprep.subr.bf16.mxu0 0
  %490 = vmatpush1.bf16.msra.mxu0 %v295
  %491 = vmatprep.subr.bf16.mxu0 0
  %492 = vmatpush1.bf16.msra.mxu0 %v294
  %493 = vmatprep.subr.bf16.mxu0 0
  %494 = vmatpush1.bf16.msra.mxu0 %v293
  %495 = vmatprep.subr.bf16.mxu0 0
  %496 = vmatpush1.bf16.msra.mxu0 %v292
  %497 = vmatprep.subr.bf16.mxu0 0
  %498 = vmatpush1.bf16.msra.mxu0 %v291
  %499 = vmatprep.subr.bf16.mxu0 0
  %500 = vmatpush1.bf16.msra.mxu0 %v290
  %501 = vmatprep.subr.bf16.mxu0 0
  %502 = vmatpush1.bf16.msra.mxu0 %v289
  %503 = vmatprep.subr.bf16.mxu0 0
  %504 = vmatpush1.bf16.msra.mxu0 %v288
  %505 = vmatprep.subr.bf16.mxu0 0
  %506 = vmatpush2.bf16.msra.mxu0 %v303
  %507 = vmatprep.subr.bf16.mxu0 0
  %508 = vmatpush2.bf16.msra.mxu0 %v302
  %509 = vmatprep.subr.bf16.mxu0 0
  %510 = vmatpush2.bf16.msra.mxu0 %v301
  %511 = vmatprep.subr.bf16.mxu0 0
  %512 = vmatpush2.bf16.msra.mxu0 %v300
  %513 = vmatprep.subr.bf16.mxu0 0
  %514 = vmatpush2.bf16.msra.mxu0 %v299
  %515 = vmatprep.subr.bf16.mxu0 0
  %516 = vmatpush2.bf16.msra.mxu0 %v298
  %517 = vmatprep.subr.bf16.mxu0 0
  %518 = vmatpush2.bf16.msra.mxu0 %v297
  %519 = vmatprep.subr.bf16.mxu0 0
  %520 = vmatpush2.bf16.msra.mxu0 %v296
  %521 = vmatprep.mubr.bf16.mxu0 %v444
  %522 = vmatmul.mubr.bf16.gmra.mxu0 %v443
  %v523 = vpop.f32.mrf.mxu0
  %v524 = vadd.f32 %v484, %v523
  %v525 = vpop.f32.mrf.mxu0
  %v526 = vpop.f32.mrf.mxu0
  %v527 = vpop.f32.mrf.mxu0
  %528 = vdwg.mxu0
  %v529 = vadd.f32 %v418, %v524
  %530 = vst [vmem:[#allocation3] sm:$0x3] %v529
  // Predicated region
  $region30: #{cnn_backbone_forward.5} parent=0 // pred_check
    %p531 = pneg %p43
  $region31: #{cnn_backbone_forward.5} parent=0 // pred_check_branch
    %533 = sbr.rel (%p531) target = $region33
  $region32: #{cnn_backbone_forward.5} parent=0 // pred_region
    %v534 = vld [vmem:[#allocation2] sm:$0x3]
    %v535 = vld [vmem:[#allocation3] sm:$0x3]
    %537 = vrot.lane.b32.xlu0 %v535, 64
    %v538 = vpop.permute.xlu0 %537
    %v540 = vadd.f32 %v534, %v538
    %v541 = vld [vmem:[%s3] sm:$0x1]
    %v543 = vlaneseq
    %v544 = vshrl.u32 %v543, 7
    %v545 = vsub.s32 0, %v544
    %v546 = vrot.slane %v541, %v545
    %v548 = vadd.f32 %v540, %v546
    %v549 = vmax.f32 %v548, 0.0
    %v550 = vld [vmem:[%s4] sm:$0xff]
    %v551 = vld [vmem:[%s4 + $0x8] sm:$0xff]
    %v552 = vld [vmem:[%s4 + $0x10] sm:$0xff]
    %v553 = vld [vmem:[%s4 + $0x18] sm:$0xff]
    %v554 = vld [vmem:[%s4 + $0x20] sm:$0xff]
    %v555 = vld [vmem:[%s4 + $0x28] sm:$0xff]
    %v556 = vld [vmem:[%s4 + $0x30] sm:$0xff]
    %v557 = vld [vmem:[%s4 + $0x38] sm:$0xff]
    %v558 = vld [vmem:[%s5] sm:$0x1]
    %v560 = vlaneseq
    %v561 = vshrl.u32 %v560, 7
    %v562 = vsub.s32 0, %v561
    %v563 = vrot.slane %v558, %v562
    %vm565 = vcmask 523264
    %v567 = vsel %vm565, %v549, 0
    %569 = vmatprep.subr.mxu0 0.0
    %570 = vmatpush1.msra.mxu0 0.0
    %571 = vmatprep.subr.mxu0 0.0
    %572 = vmatpush1.msra.mxu0 0.0
    %573 = vmatprep.subr.mxu0 0.0
    %574 = vmatpush1.msra.mxu0 0.0
    %575 = vmatprep.subr.mxu0 0.0
    %576 = vmatpush1.msra.mxu0 0.0
    %577 = vmatprep.subr.mxu0 0.0
    %578 = vmatpush1.msra.mxu0 0.0
    %579 = vmatprep.subr.mxu0 0.0
    %580 = vmatpush1.msra.mxu0 0.0
    %581 = vmatprep.subr.mxu0 0.0
    %582 = vmatpush1.msra.mxu0 0.0
    %583 = vmatprep.subr.mxu0 0.0
    %584 = vmatpush1.msra.mxu0 0.0
    %585 = vmatprep.subr.mxu0 0.0
    %586 = vmatpush1.msra.mxu0 %v557
    %587 = vmatprep.subr.mxu0 0.0
    %588 = vmatpush1.msra.mxu0 %v556
    %589 = vmatprep.subr.mxu0 0.0
    %590 = vmatpush1.msra.mxu0 %v555
    %591 = vmatprep.subr.mxu0 0.0
    %592 = vmatpush1.msra.mxu0 %v554
    %593 = vmatprep.subr.mxu0 0.0
    %594 = vmatpush1.msra.mxu0 %v553
    %595 = vmatprep.subr.mxu0 0.0
    %596 = vmatpush1.msra.mxu0 %v552
    %597 = vmatprep.subr.mxu0 0.0
    %598 = vmatpush1.msra.mxu0 %v551
    %599 = vmatprep.subr.mxu0 0.0
    %600 = vmatpush1.msra.mxu0 %v550
    %601 = vmatprep.subr.mxu0 0.0
    %602 = vmatpush2.msra.mxu0 0.0
    %603 = vmatprep.subr.mxu0 0.0
    %604 = vmatpush2.msra.mxu0 0.0
    %605 = vmatprep.subr.mxu0 0.0
    %606 = vmatpush2.msra.mxu0 0.0
    %607 = vmatprep.subr.mxu0 0.0
    %608 = vmatpush2.msra.mxu0 0.0
    %609 = vmatprep.subr.mxu0 0.0
    %610 = vmatpush2.msra.mxu0 0.0
    %611 = vmatprep.subr.mxu0 0.0
    %612 = vmatpush2.msra.mxu0 0.0
    %613 = vmatprep.subr.mxu0 0.0
    %614 = vmatpush2.msra.mxu0 0.0
    %615 = vmatprep.subr.mxu0 0.0
    %616 = vmatpush2.msra.mxu0 0.0
    %617 = vmatprep.subr.mxu0 0.0
    %618 = vmatpush2.msra.mxu0 0.0
    %619 = vmatprep.subr.mxu0 0.0
    %620 = vmatpush2.msra.mxu0 0.0
    %621 = vmatprep.subr.mxu0 0.0
    %622 = vmatpush2.msra.mxu0 0.0
    %623 = vmatprep.subr.mxu0 0.0
    %624 = vmatpush2.msra.mxu0 0.0
    %625 = vmatprep.subr.mxu0 0.0
    %626 = vmatpush2.msra.mxu0 0.0
    %627 = vmatprep.subr.mxu0 0.0
    %628 = vmatpush2.msra.mxu0 0.0
    %629 = vmatprep.subr.mxu0 0.0
    %630 = vmatpush2.msra.mxu0 0.0
    %631 = vmatprep.subr.mxu0 0.0
    %632 = vmatpush2.msra.mxu0 0.0
    %633 = vmatprep.mubr.f32.mxu0 0.0
    %634 = vmatmul.mubr.f32.gmra.mxu0 %v567
    %v635 = vpop.f32.mrf.mxu0
    %v636 = vadd.f32 %v563, %v635
    %v637 = vpop.f32.mrf.mxu0
    %638 = vdwg.mxu0
    %vm639 = vcmask 9216
    %640 = vst.msk [vmem:[%s6] sm:$0x3] %vm639, %v636
  $region33: #{cnn_backbone_forward.5} parent=0 // pred_fallthru
    _
  // Predicated region
  $region34: #{cnn_backbone_forward.5} parent=0 // pred_check
    _
  $region35: #{cnn_backbone_forward.5} parent=0 // pred_check_branch
    %642 = sbr.rel (0) target = $region37
  $region36: #{cnn_backbone_forward.5} parent=0 // pred_region
    _
  $region37: #{cnn_backbone_forward.5} parent=0 // pred_fallthru
    _
  // Predicated region
  $region38: #{cnn_backbone_forward.5} parent=0 // pred_check
    _
  $region39: #{cnn_backbone_forward.5} parent=0 // pred_check_branch
    %644 = sbr.rel (0) target = $region41
  $region40: #{cnn_backbone_forward.5} parent=0 // pred_region
    _
  $region41: #{cnn_backbone_forward.5} parent=0 // pred_fallthru
    _

// kernel: cnn_backbone_forward.4
$region0: #{cnn_backbone_forward.4}
  #allocation0 [shape = 'u32[]', space=smem, size = 0x4, offset = 0x4, fixed_abs, tag = 'smem constant byte address 0x4 - core index']
  #allocation1 [shape = 'u32[144,128]{1,0:T(1,128)}', space=vmem, size = 0x12000, scoped, tag = 'internal scratch']
  %s0 = inlined_call_operand.vmem [shape: bf16[2,5,2,5,64], index: 0, kind: input, shape index: {}, may-alias: {0,1}]
  %s1 = inlined_call_operand.vmem [shape: bf16[2,5,2,5,64], index: 1, kind: input, shape index: {}, may-alias: {0,1}]
  %s2 = inlined_call_operand.vmem [shape: bf16[384,128], index: 2, kind: input, shape index: {}]
  %s3 = inlined_call_operand.vmem [shape: f32[1,128], index: 3, kind: input, shape index: {}]
  %s4 = inlined_call_operand.vmem [shape: bf16[2,4,4,64], index: 4, kind: output, shape index: {}]
  %s5 = sld [smem:[#allocation0]]
  $region49: #{cnn_backbone_forward.4} parent=0
    _
  %s7 = ssub.s32 1, %s5
  %s8 = scalar_select 0, %s7, %s5
  loop: start=0, step=1, limit=4
  $region2: #{cnn_backbone_forward.4} parent=0 // loop_pre_header
    _
  $region3: #{cnn_backbone_forward.4} parent=0 // loop_header
    %s10 = sphi 0, %s14
    %p11 = scmp.ge.s32.totalorder %s10, 4
    %s17 = sphi 0, %s29
    %s18 = sphi 0, %s25
    %s19 = sphi 0, %s17
    %s20 = sphi 0, %s18
    %s21 = sphi 0, %s19
    %s22 = sphi 0, %s20
    %s34 = sphi 0, %s36
    %s37 = sphi 0, %s34
    %s38 = sphi 0, %s37
    %s54 = sphi 0, %s38
    %s66 = sphi 0, %s68
    %s69 = sphi 0, %s66
    %s70 = sphi 0, %s69
    %s86 = sphi 0, %s70
    %s90 = sphi 0, %s90
    %s92 = sphi 0, %s90
    %s93 = sphi 0, %s92
    %s107 = sphi 0, %s93
    %s111 = sphi 0, %s111
    %s113 = sphi 0, %s111
    %s114 = sphi 0, %s113
    %s128 = sphi 0, %s114
    %s136 = sphi 0, %s138
    %s139 = sphi 0, %s136
    %s140 = sphi 0, %s139
    %s156 = sphi 0, %s140
  $region4: #{cnn_backbone_forward.4} parent=0 // loop_header_branch
    %13 = sbr.rel (%p11) target = $region8
  $region5: #{cnn_backbone_forward.4} parent=0 // loop_body
    %s15 = ssub.s32 %s10, 1
    %s16 = ssub.s32 %s10, 2
    %s23 = sadd.s32 1, %s18
    %p24 = scmp.ge.s32.totalorder %s23, 1
    %s25 = scalar_select %p24, 0, %s23
    %s26 = sadd.s32 1, %s17
    %s27 = scalar_select %p24, %s26, %s17
    %p28 = scmp.ge.s32.totalorder %s27, 2
    %s29 = scalar_select %p28, 0, %s27
    %s30 = ssub.s32 %s17, %s29
    %s31 = ssub.s32 %s18, %s25
    %s32 = sor.u32 %s30, %s31
    %p33 = scmp.eq.s32.totalorder %s32, 0
    %s35 = sadd.s32 %s34, 1
    %s36 = scalar_select %p33, %s34, %s35
    %p39 = pneg %p33
    %p40 = scmp.eq.s32.totalorder %s10, 1
    %p41 = por %p39, %p40
    %p42 = scmp.ne.s32.totalorder %s34, %s37
    %p43 = scmp.eq.s32.totalorder %s10, 0
    %p44 = por %p42, %p43
    %p45 = scmp.ne.s32.totalorder %s34, %s37
    %p46 = scmp.eq.s32.totalorder %s15, 1
    %p47 = por %p45, %p46
    %p48 = scmp.ne.s32.totalorder %s37, %s38
    %p49 = scmp.eq.s32.totalorder %s15, 0
    %p50 = por %p48, %p49
    %p51 = scmp.ne.s32.totalorder %s37, %s38
    %p52 = scmp.eq.s32.totalorder %s16, 1
    %p53 = por %p51, %p52
    %p55 = scmp.ne.s32.totalorder %s38, %s54
    %p56 = scmp.eq.s32.totalorder %s16, 0
    %p57 = por %p55, %p56
    %s58 = sadd.s32 %s18, 1
    %s59 = smul.u32 %s58, 4
    %s60 = sadd.s32 %s25, 1
    %s61 = smul.u32 %s60, 4
    %s62 = ssub.s32 %s17, %s29
    %s63 = ssub.s32 %s59, %s61
    %s64 = sor.u32 %s62, %s63
    %p65 = scmp.eq.s32.totalorder %s64, 0
    %s67 = sadd.s32 %s66, 1
    %s68 = scalar_select %p65, %s66, %s67
    %p71 = pneg %p65
    %p72 = scmp.eq.s32.totalorder %s10, 1
    %p73 = por %p71, %p72
    %p74 = scmp.ne.s32.totalorder %s66, %s69
    %p75 = scmp.eq.s32.totalorder %s10, 0
    %p76 = por %p74, %p75
    %p77 = scmp.ne.s32.totalorder %s66, %s69
    %p78 = scmp.eq.s32.totalorder %s15, 1
    %p79 = por %p77, %p78
    %p80 = scmp.ne.s32.totalorder %s69, %s70
    %p81 = scmp.eq.s32.totalorder %s15, 0
    %p82 = por %p80, %p81
    %p83 = scmp.ne.s32.totalorder %s69, %s70
    %p84 = scmp.eq.s32.totalorder %s16, 1
    %p85 = por %p83, %p84
    %p87 = scmp.ne.s32.totalorder %s70, %s86
    %p88 = scmp.eq.s32.totalorder %s16, 0
    %p89 = por %p87, %p88
    %s91 = sadd.s32 %s90, 1
    %p94 = scmp.eq.s32.totalorder %s10, 1
    %p95 = scmp.ne.s32.totalorder %s90, %s92
    %p96 = scmp.eq.s32.totalorder %s10, 0
    %p97 = por %p95, %p96
    %p98 = scmp.ne.s32.totalorder %s90, %s92
    %p99 = scmp.eq.s32.totalorder %s15, 1
    %p100 = por %p98, %p99
    %p101 = scmp.ne.s32.totalorder %s92, %s93
    %p102 = scmp.eq.s32.totalorder %s15, 0
    %p103 = por %p101, %p102
    %p104 = scmp.ne.s32.totalorder %s92, %s93
    %p105 = scmp.eq.s32.totalorder %s16, 1
    %p106 = por %p104, %p105
    %p108 = scmp.ne.s32.totalorder %s93, %s107
    %p109 = scmp.eq.s32.totalorder %s16, 0
    %p110 = por %p108, %p109
    %s112 = sadd.s32 %s111, 1
    %p115 = scmp.eq.s32.totalorder %s10, 1
    %p116 = scmp.ne.s32.totalorder %s111, %s113
    %p117 = scmp.eq.s32.totalorder %s10, 0
    %p118 = por %p116, %p117
    %p119 = scmp.ne.s32.totalorder %s111, %s113
    %p120 = scmp.eq.s32.totalorder %s15, 1
    %p121 = por %p119, %p120
    %p122 = scmp.ne.s32.totalorder %s113, %s114
    %p123 = scmp.eq.s32.totalorder %s15, 0
    %p124 = por %p122, %p123
    %p125 = scmp.ne.s32.totalorder %s113, %s114
    %p126 = scmp.eq.s32.totalorder %s16, 1
    %p127 = por %p125, %p126
    %p129 = scmp.ne.s32.totalorder %s114, %s128
    %p130 = scmp.eq.s32.totalorder %s16, 0
    %p131 = por %p129, %p130
    %s132 = ssub.s32 %s17, %s29
    %s133 = ssub.s32 %s18, %s25
    %s134 = sor.u32 %s132, %s133
    %p135 = scmp.eq.s32.totalorder %s134, 0
    %s137 = sadd.s32 %s136, 1
    %s138 = scalar_select %p135, %s136, %s137
    %p141 = pneg %p135
    %p142 = scmp.eq.s32.totalorder %s10, 1
    %p143 = por %p141, %p142
    %p144 = scmp.ne.s32.totalorder %s136, %s139
    %p145 = scmp.eq.s32.totalorder %s10, 0
    %p146 = por %p144, %p145
    %p147 = scmp.ne.s32.totalorder %s136, %s139
    %p148 = scmp.eq.s32.totalorder %s15, 1
    %p149 = por %p147, %p148
    %p150 = scmp.ne.s32.totalorder %s139, %s140
    %p151 = scmp.eq.s32.totalorder %s15, 0
    %p152 = por %p150, %p151
    %p153 = scmp.ne.s32.totalorder %s139, %s140
    %p154 = scmp.eq.s32.totalorder %s16, 1
    %p155 = por %p153, %p154
    %p157 = scmp.ne.s32.totalorder %s140, %s156
    %p158 = scmp.eq.s32.totalorder %s16, 0
    %p159 = por %p157, %p158
    %p160 = scmp.le.s32.totalorder 1, %s10
    %p161 = scmp.lt.s32.totalorder %s10, 3
    %p162 = pnand %p160, %p161
    %p163 = pneg %p162
    // Predicated region
    $region9: #{cnn_backbone_forward.4} parent=5 // pred_check
      _
    $region10: #{cnn_backbone_forward.4} parent=5 // pred_check_branch
      %165 = sbr.rel (%p162) target = $region12
    $region11: #{cnn_backbone_forward.4} parent=5 // pred_region
      %s166 = ssub.s32 %s10, 1
      // Predicated region
      $region13: #{cnn_backbone_forward.4} parent=11 // pred_check
        %p167 = pneg %p103
      $region14: #{cnn_backbone_forward.4} parent=11 // pred_check_branch
        %169 = sbr.rel (%p167) target = $region16
      $region15: #{cnn_backbone_forward.4} parent=11 // pred_region
        _
      $region16: #{cnn_backbone_forward.4} parent=11 // pred_fallthru
        _
      // Predicated region
      $region17: #{cnn_backbone_forward.4} parent=11 // pred_check
        %p170 = pneg %p124
      $region18: #{cnn_backbone_forward.4} parent=11 // pred_check_branch
        %172 = sbr.rel (%p170) target = $region20
      $region19: #{cnn_backbone_forward.4} parent=11 // pred_region
        _
      $region20: #{cnn_backbone_forward.4} parent=11 // pred_fallthru
        _
    $region12: #{cnn_backbone_forward.4} parent=5 // pred_fallthru
      _
    %p173 = scmp.lt.s32.totalorder %s10, 2
    // Predicated region
    $region21: #{cnn_backbone_forward.4} parent=5 // pred_check
      %p174 = pneg %p173
    $region22: #{cnn_backbone_forward.4} parent=5 // pred_check_branch
      %176 = sbr.rel (%p174) target = $region24
    $region23: #{cnn_backbone_forward.4} parent=5 // pred_region
      // Predicated region
      $region25: #{cnn_backbone_forward.4} parent=23 // pred_check
        %p177 = pneg %p44
      $region26: #{cnn_backbone_forward.4} parent=23 // pred_check_branch
        %179 = sbr.rel (%p177) target = $region28
      $region27: #{cnn_backbone_forward.4} parent=23 // pred_region
        %s180 = smul.u32 4, %s18
        %s181 = ssub.s32 5, %s180
        %p182 = scmp.lt.s32.totalorder %s181, 4
        %s183 = scalar_select %p182, %s181, 4
        %s184 = smul.u32 64, %s183
        %s185 = smul.u32 %s184, 2
        %p186 = scmp.lt.s32.totalorder %s17, 1
        %s187 = scalar_select %p186, %s17, 1
        %p188 = scmp.lt.s32.totalorder %s180, 4
        %s189 = scalar_select %p188, %s180, 4
        %s190 = smul.addr %s189, 2
        %s191 = smul.addr %s187, 10
        %s192 = sadd.s32 %s190, %s191
        %s193 = smul.addr %s192, 4
        %s194 = scalar_lea.vmem %s0, %s193
        %s195 = smul.u32 4, %s18
        %s196 = ssub.s32 5, %s195
        %p197 = scmp.lt.s32.totalorder %s196, 4
        %s198 = scalar_select %p197, %s196, 4
        %s199 = smul.u32 64, %s198
        %s200 = smul.u32 %s199, 2
      $region28: #{cnn_backbone_forward.4} parent=23 // pred_fallthru
        _
      // Predicated region
      $region29: #{cnn_backbone_forward.4} parent=23 // pred_check
        %p201 = pneg %p76
      $region30: #{cnn_backbone_forward.4} parent=23 // pred_check_branch
        %203 = sbr.rel (%p201) target = $region32
      $region31: #{cnn_backbone_forward.4} parent=23 // pred_region
        %s204 = sadd.s32 %s18, 1
        %s205 = smul.u32 %s204, 4
        %p206 = scmp.lt.s32.totalorder %s17, 1
        %s207 = scalar_select %p206, %s17, 1
        %p208 = scmp.lt.s32.totalorder %s205, 4
        %s209 = scalar_select %p208, %s205, 4
        %s210 = smul.addr %s209, 2
        %s211 = smul.addr %s207, 10
        %s212 = sadd.s32 %s210, %s211
        %s213 = smul.addr %s212, 4
        %s214 = scalar_lea.vmem %s1, %s213
        %s215 = sadd.s32 %s18, 1
        %s216 = smul.u32 %s215, 4
      $region32: #{cnn_backbone_forward.4} parent=23 // pred_fallthru
        _
    $region24: #{cnn_backbone_forward.4} parent=5 // pred_fallthru
      _
    %p217 = scmp.le.s32.totalorder 1, %s10
    %p218 = scmp.lt.s32.totalorder %s10, 3
    %p219 = pnand %p217, %p218
    %p220 = pneg %p219
    // Predicated region
    $region33: #{cnn_backbone_forward.4} parent=5 // pred_check
      _
    $region34: #{cnn_backbone_forward.4} parent=5 // pred_check_branch
      %222 = sbr.rel (%p219) target = $region36
    $region35: #{cnn_backbone_forward.4} parent=5 // pred_region
      %s223 = ssub.s32 %s10, 1
      %s224 = smul.u32 4, %s20
      %s225 = ssub.s32 5, %s224
      %p226 = scmp.lt.s32.totalorder %s225, 4
      %s227 = scalar_select %p226, %s225, 4
      %s228 = smul.u32 64, %s227
      %s229 = smul.u32 %s228, 2
      %p230 = scmp.lt.s32.totalorder %s19, 1
      %s231 = scalar_select %p230, %s19, 1
      %p232 = scmp.lt.s32.totalorder %s224, 4
      %s233 = scalar_select %p232, %s224, 4
      %s234 = smul.addr %s233, 2
      %s235 = smul.addr %s231, 10
      %s236 = sadd.s32 %s234, %s235
      %s237 = smul.addr %s236, 4
      %s238 = scalar_lea.vmem %s0, %s237
      %p239 = pneg %p50
      %p240 = pneg %p47
      %s241 = sadd.s32 %s20, 1
      %s242 = smul.u32 %s241, 4
      %p243 = scmp.lt.s32.totalorder %s19, 1
      %s244 = scalar_select %p243, %s19, 1
      %p245 = scmp.lt.s32.totalorder %s242, 4
      %s246 = scalar_select %p245, %s242, 4
      %s247 = smul.addr %s246, 2
      %s248 = smul.addr %s244, 10
      %s249 = sadd.s32 %s247, %s248
      %s250 = smul.addr %s249, 4
      %s251 = scalar_lea.vmem %s1, %s250
      %p252 = pneg %p82
      %p253 = pneg %p79
      %p254 = pneg %p103
      %p255 = pneg %p100
      %p256 = pneg %p124
      %p257 = pneg %p121
      %p258 = pneg %p152
      %p259 = pneg %p149
      %s260 = smul.u32 4, %s20
      %p261 = scmp.lt.s32.totalorder %s19, 1
      %s262 = scalar_select %p261, %s19, 1
      %p263 = scmp.lt.s32.totalorder %s260, 3
      %s264 = scalar_select %p263, %s260, 3
      %s265 = smul.addr %s262, 4
      %s266 = sadd.s32 %s264, %s265
      %s267 = smul.addr %s266, 2
      %s268 = scalar_lea.vmem %s4, %s267
      %s269 = smul.u32 4, %s20
      %s270 = ssub.s32 5, %s269
      %p271 = scmp.lt.s32.totalorder %s270, 4
      %s272 = scalar_select %p271, %s270, 4
      %s273 = smul.u32 64, %s272
      %s274 = smul.u32 %s273, 2
      %p275 = scmp.lt.s32.totalorder %s19, 1
      %s276 = scalar_select %p275, %s19, 1
      %p277 = scmp.lt.s32.totalorder %s269, 4
      %s278 = scalar_select %p277, %s269, 4
      %s279 = smul.addr %s278, 2
      %s280 = smul.addr %s276, 10
      %s281 = sadd.s32 %s279, %s280
      %s282 = smul.addr %s281, 4
      %s283 = scalar_lea.vmem %s0, %s282
      %s284 = smul.u32 4, %s20
      %s285 = ssub.s32 5, %s284
      %p286 = scmp.lt.s32.totalorder %s285, 4
      %s287 = scalar_select %p286, %s285, 4
      %s288 = smul.u32 64, %s287
      %s289 = smul.u32 %s288, 2
      %s290 = sadd.s32 %s20, 1
      %s291 = smul.u32 %s290, 4
      %p292 = scmp.lt.s32.totalorder %s19, 1
      %s293 = scalar_select %p292, %s19, 1
      %p294 = scmp.lt.s32.totalorder %s291, 4
      %s295 = scalar_select %p294, %s291, 4
      %s296 = smul.addr %s295, 2
      %s297 = smul.addr %s293, 10
      %s298 = sadd.s32 %s296, %s297
      %s299 = smul.addr %s298, 4
      %s300 = scalar_lea.vmem %s1, %s299
      %s301 = sadd.s32 %s20, 1
      %s302 = smul.u32 %s301, 4
      %s303 = smul.u32 4, %s20
      %p304 = scmp.lt.s32.totalorder %s19, 1
      %s305 = scalar_select %p304, %s19, 1
      %p306 = scmp.lt.s32.totalorder %s303, 3
      %s307 = scalar_select %p306, %s303, 3
      %s308 = smul.addr %s305, 4
      %s309 = sadd.s32 %s307, %s308
      %s310 = smul.addr %s309, 2
      %s311 = scalar_lea.vmem %s4, %s310
      %s312 = smul.u32 4, %s20
      %v314 = vld [vmem:[%s2] sm:$0xf]
      %v315 = vld [vmem:[%s2 + $0x4] sm:$0xf]
      %v316 = vld [vmem:[%s2 + $0x8] sm:$0xf]
      %v317 = vld [vmem:[%s2 + $0xc] sm:$0xf]
      %v318 = vld [vmem:[%s2 + $0x10] sm:$0xf]
      %v319 = vld [vmem:[%s2 + $0x14] sm:$0xf]
      %v320 = vld [vmem:[%s2 + $0x18] sm:$0xf]
      %v321 = vld [vmem:[%s2 + $0x1c] sm:$0xf]
      %v322 = vld [vmem:[%s2 + $0x20] sm:$0xf]
      %v323 = vld [vmem:[%s2 + $0x24] sm:$0xf]
      %v324 = vld [vmem:[%s2 + $0x28] sm:$0xf]
      %v325 = vld [vmem:[%s2 + $0x2c] sm:$0xf]
      %v326 = vld [vmem:[%s2 + $0x30] sm:$0xf]
      %v327 = vld [vmem:[%s2 + $0x34] sm:$0xf]
      %v328 = vld [vmem:[%s2 + $0x38] sm:$0xf]
      %v329 = vld [vmem:[%s2 + $0x3c] sm:$0xf]
      %v330 = vld [vmem:[%s2 + $0x40] sm:$0xf]
      %v331 = vld [vmem:[%s2 + $0x44] sm:$0xf]
      %v332 = vld [vmem:[%s2 + $0x48] sm:$0xf]
      %v333 = vld [vmem:[%s2 + $0x4c] sm:$0xf]
      %v334 = vld [vmem:[%s2 + $0x50] sm:$0xf]
      %v335 = vld [vmem:[%s2 + $0x54] sm:$0xf]
      %v336 = vld [vmem:[%s2 + $0x58] sm:$0xf]
      %v337 = vld [vmem:[%s2 + $0x5c] sm:$0xf]
      %v338 = vld [vmem:[%s2 + $0x60] sm:$0xf]
      %v339 = vld [vmem:[%s2 + $0x64] sm:$0xf]
      %v340 = vld [vmem:[%s2 + $0x68] sm:$0xf]
      %v341 = vld [vmem:[%s2 + $0x6c] sm:$0xf]
      %v342 = vld [vmem:[%s2 + $0x70] sm:$0xf]
      %v343 = vld [vmem:[%s2 + $0x74] sm:$0xf]
      %v344 = vld [vmem:[%s2 + $0x78] sm:$0xf]
      %v345 = vld [vmem:[%s2 + $0x7c] sm:$0xf]
      %v346 = vld [vmem:[%s2 + $0x80] sm:$0xf]
      %v347 = vld [vmem:[%s2 + $0x84] sm:$0xf]
      %v348 = vld [vmem:[%s2 + $0x88] sm:$0xf]
      %v349 = vld [vmem:[%s2 + $0x8c] sm:$0xf]
      %v350 = vld [vmem:[%s2 + $0x90] sm:$0xf]
      %v351 = vld [vmem:[%s2 + $0x94] sm:$0xf]
      %v352 = vld [vmem:[%s2 + $0x98] sm:$0xf]
      %v353 = vld [vmem:[%s2 + $0x9c] sm:$0xf]
      %v354 = vld [vmem:[%s2 + $0xa0] sm:$0xf]
      %v355 = vld [vmem:[%s2 + $0xa4] sm:$0xf]
      %v356 = vld [vmem:[%s2 + $0xa8] sm:$0xf]
      %v357 = vld [vmem:[%s2 + $0xac] sm:$0xf]
      %v358 = vld [vmem:[%s2 + $0xb0] sm:$0xf]
      %v359 = vld [vmem:[%s2 + $0xb4] sm:$0xf]
      %v360 = vld [vmem:[%s2 + $0xb8] sm:$0xf]
      %v361 = vld [vmem:[%s2 + $0xbc] sm:$0xf]
      %v362 = vld [vmem:[%s3] sm:$0x1]
      %v363 = vld [vmem:[%s283] sm:$0x3]
      %v364 = vld [vmem:[%s283] sm:$0x7]
      %v366 = vunpack.c.l.b16 %v364
      %v367 = vpack.c.b16 %v366, %v366
      %v369 = vshrl.u32 %v367, 16
      %v371 = vshll.u32 %v367, 16
      %v373 = vrot.slane %v371, 1
      %v374 = vor.u32 %v369, %v373
      %375 = vrot.lane.b32.xlu0 %v374, 64
      %v376 = vpop.permute.xlu0 %375
      %vm377 = vcmask 523264
      %v380 = vsel %vm377, %v363, %v376
      %s382 = scalar_lea.vmem %s283, 4
      %v383 = vld [vmem:[%s382] sm:$0x3]
      %v384 = vld [vmem:[%s382] sm:$0x7]
      %v386 = vunpack.c.l.b16 %v384
      %v387 = vpack.c.b16 %v386, %v386
      %v389 = vshrl.u32 %v387, 16
      %v391 = vshll.u32 %v387, 16
      %v393 = vrot.slane %v391, 1
      %v394 = vor.u32 %v389, %v393
      %395 = vrot.lane.b32.xlu0 %v394, 64
      %v396 = vpop.permute.xlu0 %395
      %v399 = vsel %vm377, %v383, %v396
      %s401 = scalar_lea.vmem %s283, 8
      %v402 = vld [vmem:[%s401] sm:$0x3]
      %v403 = vld [vmem:[%s401] sm:$0x7]
      %v405 = vunpack.c.l.b16 %v403
      %v406 = vpack.c.b16 %v405, %v405
      %v408 = vshrl.u32 %v406, 16
      %v410 = vshll.u32 %v406, 16
      %v412 = vrot.slane %v410, 1
      %v413 = vor.u32 %v408, %v412
      %414 = vrot.lane.b32.xlu0 %v413, 64
      %v415 = vpop.permute.xlu0 %414
      %v418 = vsel %vm377, %v402, %v415
      %s420 = scalar_lea.vmem %s283, 12
      %v421 = vld [vmem:[%s420] sm:$0x3]
      %v422 = vld [vmem:[%s420] sm:$0x7]
      %v424 = vunpack.c.l.b16 %v422
      %v425 = vpack.c.b16 %v424, %v424
      %v427 = vshrl.u32 %v425, 16
      %v429 = vshll.u32 %v425, 16
      %v431 = vrot.slane %v429, 1
      %v432 = vor.u32 %v427, %v431
      %433 = vrot.lane.b32.xlu0 %v432, 64
      %v434 = vpop.permute.xlu0 %433
      %v437 = vsel %vm377, %v421, %v434
      %v440 = vlaneseq
      %v441 = vshrl.u32 %v440, 7
      %v442 = vsub.s32 0, %v441
      %v443 = vrot.slane %v362, %v442
      %v493 = vunpack.c.l.b16 %v314
      %v494 = vunpack.c.l.b16 %v315
      %v495 = vunpack.c.l.b16 %v316
      %v496 = vunpack.c.l.b16 %v317
      %v497 = vunpack.c.l.b16 %v318
      %v498 = vunpack.c.l.b16 %v319
      %v499 = vunpack.c.l.b16 %v320
      %v500 = vunpack.c.l.b16 %v321
      %v501 = vunpack.c.l.b16 %v322
      %v502 = vunpack.c.l.b16 %v323
      %v503 = vunpack.c.l.b16 %v324
      %v504 = vunpack.c.l.b16 %v325
      %v505 = vunpack.c.l.b16 %v326
      %v506 = vunpack.c.l.b16 %v327
      %v507 = vunpack.c.l.b16 %v328
      %v508 = vunpack.c.l.b16 %v329
      %v509 = vunpack.c.l.b16 %v330
      %v510 = vunpack.c.l.b16 %v331
      %v511 = vunpack.c.l.b16 %v332
      %v512 = vunpack.c.l.b16 %v333
      %v513 = vunpack.c.l.b16 %v334
      %v514 = vunpack.c.l.b16 %v335
      %v515 = vunpack.c.l.b16 %v336
      %v516 = vunpack.c.l.b16 %v337
      %v517 = vunpack.c.l.b16 %v338
      %v518 = vunpack.c.l.b16 %v339
      %v519 = vunpack.c.l.b16 %v340
      %v520 = vunpack.c.l.b16 %v341
      %v521 = vunpack.c.l.b16 %v342
      %v522 = vunpack.c.l.b16 %v343
      %v523 = vunpack.c.l.b16 %v344
      %v524 = vunpack.c.l.b16 %v345
      %v525 = vunpack.c.l.b16 %v346
      %v526 = vunpack.c.l.b16 %v347
      %v527 = vunpack.c.l.b16 %v348
      %v528 = vunpack.c.l.b16 %v349
      %v529 = vunpack.c.l.b16 %v350
      %v530 = vunpack.c.l.b16 %v351
      %v531 = vunpack.c.l.b16 %v352
      %v532 = vunpack.c.l.b16 %v353
      %v533 = vunpack.c.l.b16 %v354
      %v534 = vunpack.c.l.b16 %v355
      %v535 = vunpack.c.l.b16 %v356
      %v536 = vunpack.c.l.b16 %v357
      %v537 = vunpack.c.l.b16 %v358
      %v538 = vunpack.c.l.b16 %v359
      %v539 = vunpack.c.l.b16 %v360
      %v540 = vunpack.c.l.b16 %v361
      %v541 = vpack.c.b16 %v494, %v493
      %v542 = vpack.c.b16 %v496, %v495
      %v543 = vpack.c.b16 %v498, %v497
      %v544 = vpack.c.b16 %v500, %v499
      %v545 = vpack.c.b16 %v502, %v501
      %v546 = vpack.c.b16 %v504, %v503
      %v547 = vpack.c.b16 %v506, %v505
      %v548 = vpack.c.b16 %v508, %v507
      %v549 = vpack.c.b16 %v510, %v509
      %v550 = vpack.c.b16 %v512, %v511
      %v551 = vpack.c.b16 %v514, %v513
      %v552 = vpack.c.b16 %v516, %v515
      %v553 = vpack.c.b16 %v518, %v517
      %v554 = vpack.c.b16 %v520, %v519
      %v555 = vpack.c.b16 %v522, %v521
      %v556 = vpack.c.b16 %v524, %v523
      %v557 = vpack.c.b16 %v526, %v525
      %v558 = vpack.c.b16 %v528, %v527
      %v559 = vpack.c.b16 %v530, %v529
      %v560 = vpack.c.b16 %v532, %v531
      %v561 = vpack.c.b16 %v534, %v533
      %v562 = vpack.c.b16 %v536, %v535
      %v563 = vpack.c.b16 %v538, %v537
      %v564 = vpack.c.b16 %v540, %v539
      %589 = vmatprep.subr.bf16.mxu0 0
      %590 = vmatpush1.bf16.msra.mxu0 %v548
      %591 = vmatprep.subr.bf16.mxu0 0
      %592 = vmatpush1.bf16.msra.mxu0 %v547
      %593 = vmatprep.subr.bf16.mxu0 0
      %594 = vmatpush1.bf16.msra.mxu0 %v546
      %595 = vmatprep.subr.bf16.mxu0 0
      %596 = vmatpush1.bf16.msra.mxu0 %v545
      %597 = vmatprep.subr.bf16.mxu0 0
      %598 = vmatpush1.bf16.msra.mxu0 %v544
      %599 = vmatprep.subr.bf16.mxu0 0
      %600 = vmatpush1.bf16.msra.mxu0 %v543
      %601 = vmatprep.subr.bf16.mxu0 0
      %602 = vmatpush1.bf16.msra.mxu0 %v542
      %603 = vmatprep.subr.bf16.mxu0 0
      %604 = vmatpush1.bf16.msra.mxu0 %v541
      %605 = vmatprep.subr.bf16.mxu0 0
      %606 = vmatpush2.bf16.msra.mxu0 %v556
      %607 = vmatprep.subr.bf16.mxu0 0
      %608 = vmatpush2.bf16.msra.mxu0 %v555
      %609 = vmatprep.subr.bf16.mxu0 0
      %610 = vmatpush2.bf16.msra.mxu0 %v554
      %611 = vmatprep.subr.bf16.mxu0 0
      %612 = vmatpush2.bf16.msra.mxu0 %v553
      %613 = vmatprep.subr.bf16.mxu0 0
      %614 = vmatpush2.bf16.msra.mxu0 %v552
      %615 = vmatprep.subr.bf16.mxu0 0
      %616 = vmatpush2.bf16.msra.mxu0 %v551
      %617 = vmatprep.subr.bf16.mxu0 0
      %618 = vmatpush2.bf16.msra.mxu0 %v550
      %619 = vmatprep.subr.bf16.mxu0 0
      %620 = vmatpush2.bf16.msra.mxu0 %v549
      %621 = vmatprep.mubr.bf16.mxu0 %v399
      %622 = vmatmul.mubr.bf16.gmra.mxu0 %v380
      %v623 = vpop.f32.mrf.mxu0
      %v624 = vadd.f32 %v443, %v623
      %v625 = vpop.f32.mrf.mxu0
      %v626 = vpop.f32.mrf.mxu0
      %v627 = vpop.f32.mrf.mxu0
      %628 = vdwg.mxu0
      %629 = vmatprep.subr.bf16.mxu0 0
      %630 = vmatpush1.bf16.msra.mxu0 %v564
      %631 = vmatprep.subr.bf16.mxu0 0
      %632 = vmatpush1.bf16.msra.mxu0 %v563
      %633 = vmatprep.subr.bf16.mxu0 0
      %634 = vmatpush1.bf16.msra.mxu0 %v562
      %635 = vmatprep.subr.bf16.mxu0 0
      %636 = vmatpush1.bf16.msra.mxu0 %v561
      %637 = vmatprep.subr.bf16.mxu0 0
      %638 = vmatpush1.bf16.msra.mxu0 %v560
      %639 = vmatprep.subr.bf16.mxu0 0
      %640 = vmatpush1.bf16.msra.mxu0 %v559
      %641 = vmatprep.subr.bf16.mxu0 0
      %642 = vmatpush1.bf16.msra.mxu0 %v558
      %643 = vmatprep.subr.bf16.mxu0 0
      %644 = vmatpush1.bf16.msra.mxu0 %v557
      %645 = vmatprep.subr.bf16.mxu0 0
      %646 = vmatpush2.bf16.msra.mxu0 0
      %647 = vmatprep.subr.bf16.mxu0 0
      %648 = vmatpush2.bf16.msra.mxu0 0
      %649 = vmatprep.subr.bf16.mxu0 0
      %650 = vmatpush2.bf16.msra.mxu0 0
      %651 = vmatprep.subr.bf16.mxu0 0
      %652 = vmatpush2.bf16.msra.mxu0 0
      %653 = vmatprep.subr.bf16.mxu0 0
      %654 = vmatpush2.bf16.msra.mxu0 0
      %655 = vmatprep.subr.bf16.mxu0 0
      %656 = vmatpush2.bf16.msra.mxu0 0
      %657 = vmatprep.subr.bf16.mxu0 0
      %658 = vmatpush2.bf16.msra.mxu0 0
      %659 = vmatprep.subr.bf16.mxu0 0
      %660 = vmatpush2.bf16.msra.mxu0 0
      %661 = vmatprep.mubr.bf16.mxu0 0
      %662 = vmatmul.mubr.bf16.gmra.mxu0 %v418
      %v663 = vpop.f32.mrf.mxu0
      %v664 = vadd.f32 %v624, %v663
      %v665 = vpop.f32.mrf.mxu0
      %v666 = vpop.f32.mrf.mxu0
      %v667 = vpop.f32.mrf.mxu0
      %668 = vdwg.mxu0
      %v669 = vmax.f32 %v664, 0.0
      %670 = vmatprep.subr.bf16.mxu0 0
      %671 = vmatpush1.bf16.msra.mxu0 %v548
      %672 = vmatprep.subr.bf16.mxu0 0
      %673 = vmatpush1.bf16.msra.mxu0 %v547
      %674 = vmatprep.subr.bf16.mxu0 0
      %675 = vmatpush1.bf16.msra.mxu0 %v546
      %676 = vmatprep.subr.bf16.mxu0 0
      %677 = vmatpush1.bf16.msra.mxu0 %v545
      %678 = vmatprep.subr.bf16.mxu0 0
      %679 = vmatpush1.bf16.msra.mxu0 %v544
      %680 = vmatprep.subr.bf16.mxu0 0
      %681 = vmatpush1.bf16.msra.mxu0 %v543
      %682 = vmatprep.subr.bf16.mxu0 0
      %683 = vmatpush1.bf16.msra.mxu0 %v542
      %684 = vmatprep.subr.bf16.mxu0 0
      %685 = vmatpush1.bf16.msra.mxu0 %v541
      %686 = vmatprep.subr.bf16.mxu0 0
      %687 = vmatpush2.bf16.msra.mxu0 %v556
      %688 = vmatprep.subr.bf16.mxu0 0
      %689 = vmatpush2.bf16.msra.mxu0 %v555
      %690 = vmatprep.subr.bf16.mxu0 0
      %691 = vmatpush2.bf16.msra.mxu0 %v554
      %692 = vmatprep.subr.bf16.mxu0 0
      %693 = vmatpush2.bf16.msra.mxu0 %v553
      %694 = vmatprep.subr.bf16.mxu0 0
      %695 = vmatpush2.bf16.msra.mxu0 %v552
      %696 = vmatprep.subr.bf16.mxu0 0
      %697 = vmatpush2.bf16.msra.mxu0 %v551
      %698 = vmatprep.subr.bf16.mxu0 0
      %699 = vmatpush2.bf16.msra.mxu0 %v550
      %700 = vmatprep.subr.bf16.mxu0 0
      %701 = vmatpush2.bf16.msra.mxu0 %v549
      %702 = vmatprep.mubr.bf16.mxu0 %v418
      %703 = vmatmul.mubr.bf16.gmra.mxu0 %v399
      %v704 = vpop.f32.mrf.mxu0
      %v705 = vadd.f32 %v443, %v704
      %v706 = vpop.f32.mrf.mxu0
      %v707 = vpop.f32.mrf.mxu0
      %v708 = vpop.f32.mrf.mxu0
      %709 = vdwg.mxu0
      %710 = vmatprep.subr.bf16.mxu0 0
      %711 = vmatpush1.bf16.msra.mxu0 %v564
      %712 = vmatprep.subr.bf16.mxu0 0
      %713 = vmatpush1.bf16.msra.mxu0 %v563
      %714 = vmatprep.subr.bf16.mxu0 0
      %715 = vmatpush1.bf16.msra.mxu0 %v562
      %716 = vmatprep.subr.bf16.mxu0 0
      %717 = vmatpush1.bf16.msra.mxu0 %v561
      %718 = vmatprep.subr.bf16.mxu0 0
      %719 = vmatpush1.bf16.msra.mxu0 %v560
      %720 = vmatprep.subr.bf16.mxu0 0
      %721 = vmatpush1.bf16.msra.mxu0 %v559
      %722 = vmatprep.subr.bf16.mxu0 0
      %723 = vmatpush1.bf16.msra.mxu0 %v558
      %724 = vmatprep.subr.bf16.mxu0 0
      %725 = vmatpush1.bf16.msra.mxu0 %v557
      %726 = vmatprep.subr.bf16.mxu0 0
      %727 = vmatpush2.bf16.msra.mxu0 0
      %728 = vmatprep.subr.bf16.mxu0 0
      %729 = vmatpush2.bf16.msra.mxu0 0
      %730 = vmatprep.subr.bf16.mxu0 0
      %731 = vmatpush2.bf16.msra.mxu0 0
      %732 = vmatprep.subr.bf16.mxu0 0
      %733 = vmatpush2.bf16.msra.mxu0 0
      %734 = vmatprep.subr.bf16.mxu0 0
      %735 = vmatpush2.bf16.msra.mxu0 0
      %736 = vmatprep.subr.bf16.mxu0 0
      %737 = vmatpush2.bf16.msra.mxu0 0
      %738 = vmatprep.subr.bf16.mxu0 0
      %739 = vmatpush2.bf16.msra.mxu0 0
      %740 = vmatprep.subr.bf16.mxu0 0
      %741 = vmatpush2.bf16.msra.mxu0 0
      %742 = vmatprep.mubr.bf16.mxu0 0
      %743 = vmatmul.mubr.bf16.gmra.mxu0 %v437
      %v744 = vpop.f32.mrf.mxu0
      %v745 = vadd.f32 %v705, %v744
      %v746 = vpop.f32.mrf.mxu0
      %v747 = vpop.f32.mrf.mxu0
      %v748 = vpop.f32.mrf.mxu0
      %749 = vdwg.mxu0
      %v750 = vmax.f32 %v745, 0.0
      %v751 = vmax.f32 %v669, %v750
      %753 = vrot.lane.b32.xlu0 %v751, 64
      %v754 = vpop.permute.xlu0 %753
      %v756 = vmax.f32 %v751, %v754
      %v757 = vpack.c.bf16 %v756, %v756
      %vm758 = vcmask 517120
      %759 = vst.msk [vmem:[%s311] sm:$0x3] %vm758, %v757
      %s760 = scalar_lea.vmem %s283, 16
      %v761 = vld [vmem:[%s760] sm:$0x3]
      %v762 = vld [vmem:[%s760] sm:$0x7]
      %v764 = vunpack.c.l.b16 %v762
      %v765 = vpack.c.b16 %v764, %v764
      %v767 = vshrl.u32 %v765, 16
      %v769 = vshll.u32 %v765, 16
      %v771 = vrot.slane %v769, 1
      %v772 = vor.u32 %v767, %v771
      %773 = vrot.lane.b32.xlu0 %v772, 64
      %v774 = vpop.permute.xlu0 %773
      %v777 = vsel %vm377, %v761, %v774
      %s779 = scalar_lea.vmem %s283, 20
      %v780 = vld [vmem:[%s779] sm:$0x3]
      %v781 = vld [vmem:[%s779] sm:$0x7]
      %v783 = vunpack.c.l.b16 %v781
      %v784 = vpack.c.b16 %v783, %v783
      %v786 = vshrl.u32 %v784, 16
      %v788 = vshll.u32 %v784, 16
      %v790 = vrot.slane %v788, 1
      %v791 = vor.u32 %v786, %v790
      %792 = vrot.lane.b32.xlu0 %v791, 64
      %v793 = vpop.permute.xlu0 %792
      %v796 = vsel %vm377, %v780, %v793
      %798 = vmatprep.subr.bf16.mxu0 0
      %799 = vmatpush1.bf16.msra.mxu0 %v548
      %800 = vmatprep.subr.bf16.mxu0 0
      %801 = vmatpush1.bf16.msra.mxu0 %v547
      %802 = vmatprep.subr.bf16.mxu0 0
      %803 = vmatpush1.bf16.msra.mxu0 %v546
      %804 = vmatprep.subr.bf16.mxu0 0
      %805 = vmatpush1.bf16.msra.mxu0 %v545
      %806 = vmatprep.subr.bf16.mxu0 0
      %807 = vmatpush1.bf16.msra.mxu0 %v544
      %808 = vmatprep.subr.bf16.mxu0 0
      %809 = vmatpush1.bf16.msra.mxu0 %v543
      %810 = vmatprep.subr.bf16.mxu0 0
      %811 = vmatpush1.bf16.msra.mxu0 %v542
      %812 = vmatprep.subr.bf16.mxu0 0
      %813 = vmatpush1.bf16.msra.mxu0 %v541
      %814 = vmatprep.subr.bf16.mxu0 0
      %815 = vmatpush2.bf16.msra.mxu0 %v556
      %816 = vmatprep.subr.bf16.mxu0 0
      %817 = vmatpush2.bf16.msra.mxu0 %v555
      %818 = vmatprep.subr.bf16.mxu0 0
      %819 = vmatpush2.bf16.msra.mxu0 %v554
      %820 = vmatprep.subr.bf16.mxu0 0
      %821 = vmatpush2.bf16.msra.mxu0 %v553
      %822 = vmatprep.subr.bf16.mxu0 0
      %823 = vmatpush2.bf16.msra.mxu0 %v552
      %824 = vmatprep.subr.bf16.mxu0 0
      %825 = vmatpush2.bf16.msra.mxu0 %v551
      %826 = vmatprep.subr.bf16.mxu0 0
      %827 = vmatpush2.bf16.msra.mxu0 %v550
      %828 = vmatprep.subr.bf16.mxu0 0
      %829 = vmatpush2.bf16.msra.mxu0 %v549
      %830 = vmatprep.mubr.bf16.mxu0 %v437
      %831 = vmatmul.mubr.bf16.gmra.mxu0 %v418
      %v832 = vpop.f32.mrf.mxu0
      %v833 = vadd.f32 %v443, %v832
      %v834 = vpop.f32.mrf.mxu0
      %v835 = vpop.f32.mrf.mxu0
      %v836 = vpop.f32.mrf.mxu0
      %837 = vdwg.mxu0
      %838 = vmatprep.subr.bf16.mxu0 0
      %839 = vmatpush1.bf16.msra.mxu0 %v564
      %840 = vmatprep.subr.bf16.mxu0 0
      %841 = vmatpush1.bf16.msra.mxu0 %v563
      %842 = vmatprep.subr.bf16.mxu0 0
      %843 = vmatpush1.bf16.msra.mxu0 %v562
      %844 = vmatprep.subr.bf16.mxu0 0
      %845 = vmatpush1.bf16.msra.mxu0 %v561
      %846 = vmatprep.subr.bf16.mxu0 0
      %847 = vmatpush1.bf16.msra.mxu0 %v560
      %848 = vmatprep.subr.bf16.mxu0 0
      %849 = vmatpush1.bf16.msra.mxu0 %v559
      %850 = vmatprep.subr.bf16.mxu0 0
      %851 = vmatpush1.bf16.msra.mxu0 %v558
      %852 = vmatprep.subr.bf16.mxu0 0
      %853 = vmatpush1.bf16.msra.mxu0 %v557
      %854 = vmatprep.subr.bf16.mxu0 0
      %855 = vmatpush2.bf16.msra.mxu0 0
      %856 = vmatprep.subr.bf16.mxu0 0
      %857 = vmatpush2.bf16.msra.mxu0 0
      %858 = vmatprep.subr.bf16.mxu0 0
      %859 = vmatpush2.bf16.msra.mxu0 0
      %860 = vmatprep.subr.bf16.mxu0 0
      %861 = vmatpush2.bf16.msra.mxu0 0
      %862 = vmatprep.subr.bf16.mxu0 0
      %863 = vmatpush2.bf16.msra.mxu0 0
      %864 = vmatprep.subr.bf16.mxu0 0
      %865 = vmatpush2.bf16.msra.mxu0 0
      %866 = vmatprep.subr.bf16.mxu0 0
      %867 = vmatpush2.bf16.msra.mxu0 0
      %868 = vmatprep.subr.bf16.mxu0 0
      %869 = vmatpush2.bf16.msra.mxu0 0
      %870 = vmatprep.mubr.bf16.mxu0 0
      %871 = vmatmul.mubr.bf16.gmra.mxu0 %v777
      %v872 = vpop.f32.mrf.mxu0
      %v873 = vadd.f32 %v833, %v872
      %v874 = vpop.f32.mrf.mxu0
      %v875 = vpop.f32.mrf.mxu0
      %v876 = vpop.f32.mrf.mxu0
      %877 = vdwg.mxu0
      %v878 = vmax.f32 %v873, 0.0
      %879 = vmatprep.subr.bf16.mxu0 0
      %880 = vmatpush1.bf16.msra.mxu0 %v548
      %881 = vmatprep.subr.bf16.mxu0 0
      %882 = vmatpush1.bf16.msra.mxu0 %v547
      %883 = vmatprep.subr.bf16.mxu0 0
      %884 = vmatpush1.bf16.msra.mxu0 %v546
      %885 = vmatprep.subr.bf16.mxu0 0
      %886 = vmatpush1.bf16.msra.mxu0 %v545
      %887 = vmatprep.subr.bf16.mxu0 0
      %888 = vmatpush1.bf16.msra.mxu0 %v544
      %889 = vmatprep.subr.bf16.mxu0 0
      %890 = vmatpush1.bf16.msra.mxu0 %v543
      %891 = vmatprep.subr.bf16.mxu0 0
      %892 = vmatpush1.bf16.msra.mxu0 %v542
      %893 = vmatprep.subr.bf16.mxu0 0
      %894 = vmatpush1.bf16.msra.mxu0 %v541
      %895 = vmatprep.subr.bf16.mxu0 0
      %896 = vmatpush2.bf16.msra.mxu0 %v556
      %897 = vmatprep.subr.bf16.mxu0 0
      %898 = vmatpush2.bf16.msra.mxu0 %v555
      %899 = vmatprep.subr.bf16.mxu0 0
      %900 = vmatpush2.bf16.msra.mxu0 %v554
      %901 = vmatprep.subr.bf16.mxu0 0
      %902 = vmatpush2.bf16.msra.mxu0 %v553
      %903 = vmatprep.subr.bf16.mxu0 0
      %904 = vmatpush2.bf16.msra.mxu0 %v552
      %905 = vmatprep.subr.bf16.mxu0 0
      %906 = vmatpush2.bf16.msra.mxu0 %v551
      %907 = vmatprep.subr.bf16.mxu0 0
      %908 = vmatpush2.bf16.msra.mxu0 %v550
      %909 = vmatprep.subr.bf16.mxu0 0
      %910 = vmatpush2.bf16.msra.mxu0 %v549
      %911 = vmatprep.mubr.bf16.mxu0 %v777
      %912 = vmatmul.mubr.bf16.gmra.mxu0 %v437
      %v913 = vpop.f32.mrf.mxu0
      %v914 = vadd.f32 %v443, %v913
      %v915 = vpop.f32.mrf.mxu0
      %v916 = vpop.f32.mrf.mxu0
      %v917 = vpop.f32.mrf.mxu0
      %918 = vdwg.mxu0
      %919 = vmatprep.subr.bf16.mxu0 0
      %920 = vmatpush1.bf16.msra.mxu0 %v564
      %921 = vmatprep.subr.bf16.mxu0 0
      %922 = vmatpush1.bf16.msra.mxu0 %v563
      %923 = vmatprep.subr.bf16.mxu0 0
      %924 = vmatpush1.bf16.msra.mxu0 %v562
      %925 = vmatprep.subr.bf16.mxu0 0
      %926 = vmatpush1.bf16.msra.mxu0 %v561
      %927 = vmatprep.subr.bf16.mxu0 0
      %928 = vmatpush1.bf16.msra.mxu0 %v560
      %929 = vmatprep.subr.bf16.mxu0 0
      %930 = vmatpush1.bf16.msra.mxu0 %v559
      %931 = vmatprep.subr.bf16.mxu0 0
      %932 = vmatpush1.bf16.msra.mxu0 %v558
      %933 = vmatprep.subr.bf16.mxu0 0
      %934 = vmatpush1.bf16.msra.mxu0 %v557
      %935 = vmatprep.subr.bf16.mxu0 0
      %936 = vmatpush2.bf16.msra.mxu0 0
      %937 = vmatprep.subr.bf16.mxu0 0
      %938 = vmatpush2.bf16.msra.mxu0 0
      %939 = vmatprep.subr.bf16.mxu0 0
      %940 = vmatpush2.bf16.msra.mxu0 0
      %941 = vmatprep.subr.bf16.mxu0 0
      %942 = vmatpush2.bf16.msra.mxu0 0
      %943 = vmatprep.subr.bf16.mxu0 0
      %944 = vmatpush2.bf16.msra.mxu0 0
      %945 = vmatprep.subr.bf16.mxu0 0
      %946 = vmatpush2.bf16.msra.mxu0 0
      %947 = vmatprep.subr.bf16.mxu0 0
      %948 = vmatpush2.bf16.msra.mxu0 0
      %949 = vmatprep.subr.bf16.mxu0 0
      %950 = vmatpush2.bf16.msra.mxu0 0
      %951 = vmatprep.mubr.bf16.mxu0 0
      %952 = vmatmul.mubr.bf16.gmra.mxu0 %v796
      %v953 = vpop.f32.mrf.mxu0
      %v954 = vadd.f32 %v914, %v953
      %v955 = vpop.f32.mrf.mxu0
      %v956 = vpop.f32.mrf.mxu0
      %v957 = vpop.f32.mrf.mxu0
      %958 = vdwg.mxu0
      %v959 = vmax.f32 %v954, 0.0
      %v960 = vmax.f32 %v878, %v959
      %962 = vrot.lane.b32.xlu0 %v960, 64
      %v963 = vpop.permute.xlu0 %962
      %v965 = vmax.f32 %v960, %v963
      %v966 = vpack.c.bf16 %v965, %v965
      %s967 = scalar_lea.vmem %s311, 2
      %968 = vst.msk [vmem:[%s967] sm:$0x3] %vm758, %v966
      %s969 = scalar_lea.vmem %s283, 24
      %v970 = vld [vmem:[%s969] sm:$0x3]
      %v971 = vld [vmem:[%s969] sm:$0x7]
      %v973 = vunpack.c.l.b16 %v971
      %v974 = vpack.c.b16 %v973, %v973
      %v976 = vshrl.u32 %v974, 16
      %v978 = vshll.u32 %v974, 16
      %v980 = vrot.slane %v978, 1
      %v981 = vor.u32 %v976, %v980
      %982 = vrot.lane.b32.xlu0 %v981, 64
      %v983 = vpop.permute.xlu0 %982
      %v986 = vsel %vm377, %v970, %v983
      %s988 = scalar_lea.vmem %s283, 28
      %v989 = vld [vmem:[%s988] sm:$0x3]
      %v990 = vld [vmem:[%s988] sm:$0x7]
      %v992 = vunpack.c.l.b16 %v990
      %v993 = vpack.c.b16 %v992, %v992
      %v995 = vshrl.u32 %v993, 16
      %v997 = vshll.u32 %v993, 16
      %v999 = vrot.slane %v997, 1
      %v1000 = vor.u32 %v995, %v999
      %1001 = vrot.lane.b32.xlu0 %v1000, 64
      %v1002 = vpop.permute.xlu0 %1001
      %v1005 = vsel %vm377, %v989, %v1002
      %1007 = vmatprep.subr.bf16.mxu0 0
      %1008 = vmatpush1.bf16.msra.mxu0 %v548
      %1009 = vmatprep.subr.bf16.mxu0 0
      %1010 = vmatpush1.bf16.msra.mxu0 %v547
      %1011 = vmatprep.subr.bf16.mxu0 0
      %1012 = vmatpush1.bf16.msra.mxu0 %v546
      %1013 = vmatprep.subr.bf16.mxu0 0
      %1014 = vmatpush1.bf16.msra.mxu0 %v545
      %1015 = vmatprep.subr.bf16.mxu0 0
      %1016 = vmatpush1.bf16.msra.mxu0 %v544
      %1017 = vmatprep.subr.bf16.mxu0 0
      %1018 = vmatpush1.bf16.msra.mxu0 %v543
      %1019 = vmatprep.subr.bf16.mxu0 0
      %1020 = vmatpush1.bf16.msra.mxu0 %v542
      %1021 = vmatprep.subr.bf16.mxu0 0
      %1022 = vmatpush1.bf16.msra.mxu0 %v541
      %1023 = vmatprep.subr.bf16.mxu0 0
      %1024 = vmatpush2.bf16.msra.mxu0 %v556
      %1025 = vmatprep.subr.bf16.mxu0 0
      %1026 = vmatpush2.bf16.msra.mxu0 %v555
      %1027 = vmatprep.subr.bf16.mxu0 0
      %1028 = vmatpush2.bf16.msra.mxu0 %v554
      %1029 = vmatprep.subr.bf16.mxu0 0
      %1030 = vmatpush2.bf16.msra.mxu0 %v553
      %1031 = vmatprep.subr.bf16.mxu0 0
      %1032 = vmatpush2.bf16.msra.mxu0 %v552
      %1033 = vmatprep.subr.bf16.mxu0 0
      %1034 = vmatpush2.bf16.msra.mxu0 %v551
      %1035 = vmatprep.subr.bf16.mxu0 0
      %1036 = vmatpush2.bf16.msra.mxu0 %v550
      %1037 = vmatprep.subr.bf16.mxu0 0
      %1038 = vmatpush2.bf16.msra.mxu0 %v549
      %1039 = vmatprep.mubr.bf16.mxu0 %v796
      %1040 = vmatmul.mubr.bf16.gmra.mxu0 %v777
      %v1041 = vpop.f32.mrf.mxu0
      %v1042 = vadd.f32 %v443, %v1041
      %v1043 = vpop.f32.mrf.mxu0
      %v1044 = vpop.f32.mrf.mxu0
      %v1045 = vpop.f32.mrf.mxu0
      %1046 = vdwg.mxu0
      %1047 = vmatprep.subr.bf16.mxu0 0
      %1048 = vmatpush1.bf16.msra.mxu0 %v564
      %1049 = vmatprep.subr.bf16.mxu0 0
      %1050 = vmatpush1.bf16.msra.mxu0 %v563
      %1051 = vmatprep.subr.bf16.mxu0 0
      %1052 = vmatpush1.bf16.msra.mxu0 %v562
      %1053 = vmatprep.subr.bf16.mxu0 0
      %1054 = vmatpush1.bf16.msra.mxu0 %v561
      %1055 = vmatprep.subr.bf16.mxu0 0
      %1056 = vmatpush1.bf16.msra.mxu0 %v560
      %1057 = vmatprep.subr.bf16.mxu0 0
      %1058 = vmatpush1.bf16.msra.mxu0 %v559
      %1059 = vmatprep.subr.bf16.mxu0 0
      %1060 = vmatpush1.bf16.msra.mxu0 %v558
      %1061 = vmatprep.subr.bf16.mxu0 0
      %1062 = vmatpush1.bf16.msra.mxu0 %v557
      %1063 = vmatprep.subr.bf16.mxu0 0
      %1064 = vmatpush2.bf16.msra.mxu0 0
      %1065 = vmatprep.subr.bf16.mxu0 0
      %1066 = vmatpush2.bf16.msra.mxu0 0
      %1067 = vmatprep.subr.bf16.mxu0 0
      %1068 = vmatpush2.bf16.msra.mxu0 0
      %1069 = vmatprep.subr.bf16.mxu0 0
      %1070 = vmatpush2.bf16.msra.mxu0 0
      %1071 = vmatprep.subr.bf16.mxu0 0
      %1072 = vmatpush2.bf16.msra.mxu0 0
      %1073 = vmatprep.subr.bf16.mxu0 0
      %1074 = vmatpush2.bf16.msra.mxu0 0
      %1075 = vmatprep.subr.bf16.mxu0 0
      %1076 = vmatpush2.bf16.msra.mxu0 0
      %1077 = vmatprep.subr.bf16.mxu0 0
      %1078 = vmatpush2.bf16.msra.mxu0 0
      %1079 = vmatprep.mubr.bf16.mxu0 0
      %1080 = vmatmul.mubr.bf16.gmra.mxu0 %v986
      %v1081 = vpop.f32.mrf.mxu0
      %v1082 = vadd.f32 %v1042, %v1081
      %v1083 = vpop.f32.mrf.mxu0
      %v1084 = vpop.f32.mrf.mxu0
      %v1085 = vpop.f32.mrf.mxu0
      %1086 = vdwg.mxu0
      %v1087 = vmax.f32 %v1082, 0.0
      %1088 = vmatprep.subr.bf16.mxu0 0
      %1089 = vmatpush1.bf16.msra.mxu0 %v548
      %1090 = vmatprep.subr.bf16.mxu0 0
      %1091 = vmatpush1.bf16.msra.mxu0 %v547
      %1092 = vmatprep.subr.bf16.mxu0 0
      %1093 = vmatpush1.bf16.msra.mxu0 %v546
      %1094 = vmatprep.subr.bf16.mxu0 0
      %1095 = vmatpush1.bf16.msra.mxu0 %v545
      %1096 = vmatprep.subr.bf16.mxu0 0
      %1097 = vmatpush1.bf16.msra.mxu0 %v544
      %1098 = vmatprep.subr.bf16.mxu0 0
      %1099 = vmatpush1.bf16.msra.mxu0 %v543
      %1100 = vmatprep.subr.bf16.mxu0 0
      %1101 = vmatpush1.bf16.msra.mxu0 %v542
      %1102 = vmatprep.subr.bf16.mxu0 0
      %1103 = vmatpush1.bf16.msra.mxu0 %v541
      %1104 = vmatprep.subr.bf16.mxu0 0
      %1105 = vmatpush2.bf16.msra.mxu0 %v556
      %1106 = vmatprep.subr.bf16.mxu0 0
      %1107 = vmatpush2.bf16.msra.mxu0 %v555
      %1108 = vmatprep.subr.bf16.mxu0 0
      %1109 = vmatpush2.bf16.msra.mxu0 %v554
      %1110 = vmatprep.subr.bf16.mxu0 0
      %1111 = vmatpush2.bf16.msra.mxu0 %v553
      %1112 = vmatprep.subr.bf16.mxu0 0
      %1113 = vmatpush2.bf16.msra.mxu0 %v552
      %1114 = vmatprep.subr.bf16.mxu0 0
      %1115 = vmatpush2.bf16.msra.mxu0 %v551
      %1116 = vmatprep.subr.bf16.mxu0 0
      %1117 = vmatpush2.bf16.msra.mxu0 %v550
      %1118 = vmatprep.subr.bf16.mxu0 0
      %1119 = vmatpush2.bf16.msra.mxu0 %v549
      %1120 = vmatprep.mubr.bf16.mxu0 %v986
      %1121 = vmatmul.mubr.bf16.gmra.mxu0 %v796
      %v1122 = vpop.f32.mrf.mxu0
      %v1123 = vadd.f32 %v443, %v1122
      %v1124 = vpop.f32.mrf.mxu0
      %v1125 = vpop.f32.mrf.mxu0
      %v1126 = vpop.f32.mrf.mxu0
      %1127 = vdwg.mxu0
      %1128 = vmatprep.subr.bf16.mxu0 0
      %1129 = vmatpush1.bf16.msra.mxu0 %v564
      %1130 = vmatprep.subr.bf16.mxu0 0
      %1131 = vmatpush1.bf16.msra.mxu0 %v563
      %1132 = vmatprep.subr.bf16.mxu0 0
      %1133 = vmatpush1.bf16.msra.mxu0 %v562
      %1134 = vmatprep.subr.bf16.mxu0 0
      %1135 = vmatpush1.bf16.msra.mxu0 %v561
      %1136 = vmatprep.subr.bf16.mxu0 0
      %1137 = vmatpush1.bf16.msra.mxu0 %v560
      %1138 = vmatprep.subr.bf16.mxu0 0
      %1139 = vmatpush1.bf16.msra.mxu0 %v559
      %1140 = vmatprep.subr.bf16.mxu0 0
      %1141 = vmatpush1.bf16.msra.mxu0 %v558
      %1142 = vmatprep.subr.bf16.mxu0 0
      %1143 = vmatpush1.bf16.msra.mxu0 %v557
      %1144 = vmatprep.subr.bf16.mxu0 0
      %1145 = vmatpush2.bf16.msra.mxu0 0
      %1146 = vmatprep.subr.bf16.mxu0 0
      %1147 = vmatpush2.bf16.msra.mxu0 0
      %1148 = vmatprep.subr.bf16.mxu0 0
      %1149 = vmatpush2.bf16.msra.mxu0 0
      %1150 = vmatprep.subr.bf16.mxu0 0
      %1151 = vmatpush2.bf16.msra.mxu0 0
      %1152 = vmatprep.subr.bf16.mxu0 0
      %1153 = vmatpush2.bf16.msra.mxu0 0
      %1154 = vmatprep.subr.bf16.mxu0 0
      %1155 = vmatpush2.bf16.msra.mxu0 0
      %1156 = vmatprep.subr.bf16.mxu0 0
      %1157 = vmatpush2.bf16.msra.mxu0 0
      %1158 = vmatprep.subr.bf16.mxu0 0
      %1159 = vmatpush2.bf16.msra.mxu0 0
      %1160 = vmatprep.mubr.bf16.mxu0 0
      %1161 = vmatmul.mubr.bf16.gmra.mxu0 %v1005
      %v1162 = vpop.f32.mrf.mxu0
      %v1163 = vadd.f32 %v1123, %v1162
      %v1164 = vpop.f32.mrf.mxu0
      %v1165 = vpop.f32.mrf.mxu0
      %v1166 = vpop.f32.mrf.mxu0
      %1167 = vdwg.mxu0
      %v1168 = vmax.f32 %v1163, 0.0
      %v1169 = vmax.f32 %v1087, %v1168
      %1171 = vrot.lane.b32.xlu0 %v1169, 64
      %v1172 = vpop.permute.xlu0 %1171
      %v1174 = vmax.f32 %v1169, %v1172
      %v1175 = vpack.c.bf16 %v1174, %v1174
      %s1176 = scalar_lea.vmem %s311, 4
      %1177 = vst.msk [vmem:[%s1176] sm:$0x3] %vm758, %v1175
      %v1178 = vld [vmem:[%s300] sm:$0x3]
      %v1179 = vld [vmem:[%s300] sm:$0x7]
      %v1181 = vunpack.c.l.b16 %v1179
      %v1182 = vpack.c.b16 %v1181, %v1181
      %v1184 = vshrl.u32 %v1182, 16
      %v1186 = vshll.u32 %v1182, 16
      %v1188 = vrot.slane %v1186, 1
      %v1189 = vor.u32 %v1184, %v1188
      %1190 = vrot.lane.b32.xlu0 %v1189, 64
      %v1191 = vpop.permute.xlu0 %1190
      %v1194 = vsel %vm377, %v1178, %v1191
      %s1196 = scalar_lea.vmem %s300, 4
      %v1197 = vld [vmem:[%s1196] sm:$0x3]
      %v1198 = vld [vmem:[%s1196] sm:$0x7]
      %v1200 = vunpack.c.l.b16 %v1198
      %v1201 = vpack.c.b16 %v1200, %v1200
      %v1203 = vshrl.u32 %v1201, 16
      %v1205 = vshll.u32 %v1201, 16
      %v1207 = vrot.slane %v1205, 1
      %v1208 = vor.u32 %v1203, %v1207
      %1209 = vrot.lane.b32.xlu0 %v1208, 64
      %v1210 = vpop.permute.xlu0 %1209
      %v1213 = vsel %vm377, %v1197, %v1210
      %1215 = vmatprep.subr.bf16.mxu0 0
      %1216 = vmatpush1.bf16.msra.mxu0 %v548
      %1217 = vmatprep.subr.bf16.mxu0 0
      %1218 = vmatpush1.bf16.msra.mxu0 %v547
      %1219 = vmatprep.subr.bf16.mxu0 0
      %1220 = vmatpush1.bf16.msra.mxu0 %v546
      %1221 = vmatprep.subr.bf16.mxu0 0
      %1222 = vmatpush1.bf16.msra.mxu0 %v545
      %1223 = vmatprep.subr.bf16.mxu0 0
      %1224 = vmatpush1.bf16.msra.mxu0 %v544
      %1225 = vmatprep.subr.bf16.mxu0 0
      %1226 = vmatpush1.bf16.msra.mxu0 %v543
      %1227 = vmatprep.subr.bf16.mxu0 0
      %1228 = vmatpush1.bf16.msra.mxu0 %v542
      %1229 = vmatprep.subr.bf16.mxu0 0
      %1230 = vmatpush1.bf16.msra.mxu0 %v541
      %1231 = vmatprep.subr.bf16.mxu0 0
      %1232 = vmatpush2.bf16.msra.mxu0 %v556
      %1233 = vmatprep.subr.bf16.mxu0 0
      %1234 = vmatpush2.bf16.msra.mxu0 %v555
      %1235 = vmatprep.subr.bf16.mxu0 0
      %1236 = vmatpush2.bf16.msra.mxu0 %v554
      %1237 = vmatprep.subr.bf16.mxu0 0
      %1238 = vmatpush2.bf16.msra.mxu0 %v553
      %1239 = vmatprep.subr.bf16.mxu0 0
      %1240 = vmatpush2.bf16.msra.mxu0 %v552
      %1241 = vmatprep.subr.bf16.mxu0 0
      %1242 = vmatpush2.bf16.msra.mxu0 %v551
      %1243 = vmatprep.subr.bf16.mxu0 0
      %1244 = vmatpush2.bf16.msra.mxu0 %v550
      %1245 = vmatprep.subr.bf16.mxu0 0
      %1246 = vmatpush2.bf16.msra.mxu0 %v549
      %1247 = vmatprep.mubr.bf16.mxu0 %v1005
      %1248 = vmatmul.mubr.bf16.gmra.mxu0 %v986
      %v1249 = vpop.f32.mrf.mxu0
      %v1250 = vadd.f32 %v443, %v1249
      %v1251 = vpop.f32.mrf.mxu0
      %v1252 = vpop.f32.mrf.mxu0
      %v1253 = vpop.f32.mrf.mxu0
      %1254 = vdwg.mxu0
      %1255 = vmatprep.subr.bf16.mxu0 0
      %1256 = vmatpush1.bf16.msra.mxu0 %v564
      %1257 = vmatprep.subr.bf16.mxu0 0
      %1258 = vmatpush1.bf16.msra.mxu0 %v563
      %1259 = vmatprep.subr.bf16.mxu0 0
      %1260 = vmatpush1.bf16.msra.mxu0 %v562
      %1261 = vmatprep.subr.bf16.mxu0 0
      %1262 = vmatpush1.bf16.msra.mxu0 %v561
      %1263 = vmatprep.subr.bf16.mxu0 0
      %1264 = vmatpush1.bf16.msra.mxu0 %v560
      %1265 = vmatprep.subr.bf16.mxu0 0
      %1266 = vmatpush1.bf16.msra.mxu0 %v559
      %1267 = vmatprep.subr.bf16.mxu0 0
      %1268 = vmatpush1.bf16.msra.mxu0 %v558
      %1269 = vmatprep.subr.bf16.mxu0 0
      %1270 = vmatpush1.bf16.msra.mxu0 %v557
      %1271 = vmatprep.subr.bf16.mxu0 0
      %1272 = vmatpush2.bf16.msra.mxu0 0
      %1273 = vmatprep.subr.bf16.mxu0 0
      %1274 = vmatpush2.bf16.msra.mxu0 0
      %1275 = vmatprep.subr.bf16.mxu0 0
      %1276 = vmatpush2.bf16.msra.mxu0 0
      %1277 = vmatprep.subr.bf16.mxu0 0
      %1278 = vmatpush2.bf16.msra.mxu0 0
      %1279 = vmatprep.subr.bf16.mxu0 0
      %1280 = vmatpush2.bf16.msra.mxu0 0
      %1281 = vmatprep.subr.bf16.mxu0 0
      %1282 = vmatpush2.bf16.msra.mxu0 0
      %1283 = vmatprep.subr.bf16.mxu0 0
      %1284 = vmatpush2.bf16.msra.mxu0 0
      %1285 = vmatprep.subr.bf16.mxu0 0
      %1286 = vmatpush2.bf16.msra.mxu0 0
      %1287 = vmatprep.mubr.bf16.mxu0 0
      %1288 = vmatmul.mubr.bf16.gmra.mxu0 %v1194
      %v1289 = vpop.f32.mrf.mxu0
      %v1290 = vadd.f32 %v1250, %v1289
      %v1291 = vpop.f32.mrf.mxu0
      %v1292 = vpop.f32.mrf.mxu0
      %v1293 = vpop.f32.mrf.mxu0
      %1294 = vdwg.mxu0
      %v1295 = vmax.f32 %v1290, 0.0
      %1296 = vmatprep.subr.bf16.mxu0 0
      %1297 = vmatpush1.bf16.msra.mxu0 %v548
      %1298 = vmatprep.subr.bf16.mxu0 0
      %1299 = vmatpush1.bf16.msra.mxu0 %v547
      %1300 = vmatprep.subr.bf16.mxu0 0
      %1301 = vmatpush1.bf16.msra.mxu0 %v546
      %1302 = vmatprep.subr.bf16.mxu0 0
      %1303 = vmatpush1.bf16.msra.mxu0 %v545
      %1304 = vmatprep.subr.bf16.mxu0 0
      %1305 = vmatpush1.bf16.msra.mxu0 %v544
      %1306 = vmatprep.subr.bf16.mxu0 0
      %1307 = vmatpush1.bf16.msra.mxu0 %v543
      %1308 = vmatprep.subr.bf16.mxu0 0
      %1309 = vmatpush1.bf16.msra.mxu0 %v542
      %1310 = vmatprep.subr.bf16.mxu0 0
      %1311 = vmatpush1.bf16.msra.mxu0 %v541
      %1312 = vmatprep.subr.bf16.mxu0 0
      %1313 = vmatpush2.bf16.msra.mxu0 %v556
      %1314 = vmatprep.subr.bf16.mxu0 0
      %1315 = vmatpush2.bf16.msra.mxu0 %v555
      %1316 = vmatprep.subr.bf16.mxu0 0
      %1317 = vmatpush2.bf16.msra.mxu0 %v554
      %1318 = vmatprep.subr.bf16.mxu0 0
      %1319 = vmatpush2.bf16.msra.mxu0 %v553
      %1320 = vmatprep.subr.bf16.mxu0 0
      %1321 = vmatpush2.bf16.msra.mxu0 %v552
      %1322 = vmatprep.subr.bf16.mxu0 0
      %1323 = vmatpush2.bf16.msra.mxu0 %v551
      %1324 = vmatprep.subr.bf16.mxu0 0
      %1325 = vmatpush2.bf16.msra.mxu0 %v550
      %1326 = vmatprep.subr.bf16.mxu0 0
      %1327 = vmatpush2.bf16.msra.mxu0 %v549
      %1328 = vmatprep.mubr.bf16.mxu0 %v1194
      %1329 = vmatmul.mubr.bf16.gmra.mxu0 %v1005
      %v1330 = vpop.f32.mrf.mxu0
      %v1331 = vadd.f32 %v443, %v1330
      %v1332 = vpop.f32.mrf.mxu0
      %v1333 = vpop.f32.mrf.mxu0
      %v1334 = vpop.f32.mrf.mxu0
      %1335 = vdwg.mxu0
      %1336 = vmatprep.subr.bf16.mxu0 0
      %1337 = vmatpush1.bf16.msra.mxu0 %v564
      %1338 = vmatprep.subr.bf16.mxu0 0
      %1339 = vmatpush1.bf16.msra.mxu0 %v563
      %1340 = vmatprep.subr.bf16.mxu0 0
      %1341 = vmatpush1.bf16.msra.mxu0 %v562
      %1342 = vmatprep.subr.bf16.mxu0 0
      %1343 = vmatpush1.bf16.msra.mxu0 %v561
      %1344 = vmatprep.subr.bf16.mxu0 0
      %1345 = vmatpush1.bf16.msra.mxu0 %v560
      %1346 = vmatprep.subr.bf16.mxu0 0
      %1347 = vmatpush1.bf16.msra.mxu0 %v559
      %1348 = vmatprep.subr.bf16.mxu0 0
      %1349 = vmatpush1.bf16.msra.mxu0 %v558
      %1350 = vmatprep.subr.bf16.mxu0 0
      %1351 = vmatpush1.bf16.msra.mxu0 %v557
      %1352 = vmatprep.subr.bf16.mxu0 0
      %1353 = vmatpush2.bf16.msra.mxu0 0
      %1354 = vmatprep.subr.bf16.mxu0 0
      %1355 = vmatpush2.bf16.msra.mxu0 0
      %1356 = vmatprep.subr.bf16.mxu0 0
      %1357 = vmatpush2.bf16.msra.mxu0 0
      %1358 = vmatprep.subr.bf16.mxu0 0
      %1359 = vmatpush2.bf16.msra.mxu0 0
      %1360 = vmatprep.subr.bf16.mxu0 0
      %1361 = vmatpush2.bf16.msra.mxu0 0
      %1362 = vmatprep.subr.bf16.mxu0 0
      %1363 = vmatpush2.bf16.msra.mxu0 0
      %1364 = vmatprep.subr.bf16.mxu0 0
      %1365 = vmatpush2.bf16.msra.mxu0 0
      %1366 = vmatprep.subr.bf16.mxu0 0
      %1367 = vmatpush2.bf16.msra.mxu0 0
      %1368 = vmatprep.mubr.bf16.mxu0 0
      %1369 = vmatmul.mubr.bf16.gmra.mxu0 %v1213
      %v1370 = vpop.f32.mrf.mxu0
      %v1371 = vadd.f32 %v1331, %v1370
      %v1372 = vpop.f32.mrf.mxu0
      %v1373 = vpop.f32.mrf.mxu0
      %v1374 = vpop.f32.mrf.mxu0
      %1375 = vdwg.mxu0
      %v1376 = vmax.f32 %v1371, 0.0
      %v1377 = vmax.f32 %v1295, %v1376
      %1379 = vrot.lane.b32.xlu0 %v1377, 64
      %v1380 = vpop.permute.xlu0 %1379
      %v1382 = vmax.f32 %v1377, %v1380
      %v1383 = vpack.c.bf16 %v1382, %v1382
      %s1384 = scalar_lea.vmem %s311, 6
      %1385 = vst.msk [vmem:[%s1384] sm:$0x3] %vm758, %v1383
      %s1386 = smul.u32 4, %s20
      %p1387 = scmp.lt.s32.totalorder %s19, 1
      %s1388 = scalar_select %p1387, %s19, 1
      %p1389 = scmp.lt.s32.totalorder %s1386, 3
      %s1390 = scalar_select %p1389, %s1386, 3
      %s1391 = smul.addr %s1388, 4
      %s1392 = sadd.s32 %s1390, %s1391
      %s1393 = smul.addr %s1392, 2
      %s1394 = scalar_lea.vmem %s4, %s1393
      // Predicated region
      $region37: #{cnn_backbone_forward.4} parent=35 // pred_check
        %p1395 = pneg %p149
      $region38: #{cnn_backbone_forward.4} parent=35 // pred_check_branch
        %1397 = sbr.rel (%p1395) target = $region40
      $region39: #{cnn_backbone_forward.4} parent=35 // pred_region
        %s1398 = smul.u32 4, %s20
      $region40: #{cnn_backbone_forward.4} parent=35 // pred_fallthru
        _
    $region36: #{cnn_backbone_forward.4} parent=5 // pred_fallthru
      _
    %p1399 = scmp.le.s32.totalorder 2, %s10
    // Predicated region
    $region41: #{cnn_backbone_forward.4} parent=5 // pred_check
      %p1400 = pneg %p1399
    $region42: #{cnn_backbone_forward.4} parent=5 // pred_check_branch
      %1402 = sbr.rel (%p1400) target = $region44
    $region43: #{cnn_backbone_forward.4} parent=5 // pred_region
      %s1403 = ssub.s32 %s10, 2
      // Predicated region
      $region45: #{cnn_backbone_forward.4} parent=43 // pred_check
        %p1404 = pneg %p155
      $region46: #{cnn_backbone_forward.4} parent=43 // pred_check_branch
        %1406 = sbr.rel (%p1404) target = $region48
      $region47: #{cnn_backbone_forward.4} parent=43 // pred_region
        %s1407 = smul.u32 4, %s22
        %p1408 = scmp.lt.s32.totalorder %s21, 1
        %s1409 = scalar_select %p1408, %s21, 1
        %p1410 = scmp.lt.s32.totalorder %s1407, 3
        %s1411 = scalar_select %p1410, %s1407, 3
        %s1412 = smul.addr %s1409, 4
        %s1413 = sadd.s32 %s1411, %s1412
        %s1414 = smul.addr %s1413, 2
        %s1415 = scalar_lea.vmem %s4, %s1414
      $region48: #{cnn_backbone_forward.4} parent=43 // pred_fallthru
        _
    $region44: #{cnn_backbone_forward.4} parent=5 // pred_fallthru
      _
  $region6: #{cnn_backbone_forward.4} parent=0 // loop_footer
    %s14 = sadd.s32 1, %s10
  $region7: #{cnn_backbone_forward.4} parent=0 // loop_footer_branch
    %9 = sbr.rel target = $region3
  $region8: #{cnn_backbone_forward.4} parent=0 // loop_exit
    _

</llo_original>
